<compile_context>
chip_gen: v5e
topology: v5e:2x2
jax: 0.10.0
libtpu: 0.0.40
codegen_flags: <defaults>
</compile_context>

<pallas_src>
import jax
import jax.numpy as jnp
from jax import lax
from jax.experimental import pallas as pl
from jax.experimental.pallas import tpu as pltpu


# ----------------------------------------------------------------------------
# Fused BN -> Conv3x3(pad=1) -> bias -> ReLU -> MaxPool(2,2) kernel (one image per grid step)
# ----------------------------------------------------------------------------
def conv_bn_relu_pool_kernel(x_ref, w_ref, b_ref, scale_ref, shift_ref, o_ref):
    """
    x_ref:     (1, H, C, W)   unpadded input image; C in sublanes, W in lanes
    w_ref:     (Cout, 9*C)    conv weights (bf16), K ordered as (dx, dy, cin)
    b_ref:     (Cout, 1)      conv bias
    scale_ref: (C, 1)         gamma / sqrt(var + eps)   (train-mode batch stats)
    shift_ref: (C, 1)         beta - mean * scale
    o_ref:     (1, H//2, Cout, W//2)
    """
    H = x_ref.shape[1]
    W = x_ref.shape[3]
    H2 = o_ref.shape[1]
    W2 = o_ref.shape[3]

    # Hoisted once per kernel invocation (loop-invariant).
    wmat = w_ref[...]                    # (Cout, 9C) bf16
    bias = b_ref[...]                    # (Cout, 1)  f32
    scale = scale_ref[...]               # (C, 1)     f32
    shift = shift_ref[...]               # (C, 1)     f32

    # Lane masks for the left/right conv halo (replaces the XLA-side zero-padding pass).
    lane = lax.broadcasted_iota(jnp.int32, (1, W), 1)
    not_first = lane != 0
    not_last = lane != W - 1

    # Even-lane 0/1 selection matrix for the horizontal half of the 2x2 maxpool,
    # generated in-kernel (no HBM DMA).
    rsel = lax.broadcasted_iota(jnp.int32, (W, W2), 0)
    csel = lax.broadcasted_iota(jnp.int32, (W, W2), 1)
    sel = (rsel == 2 * csel).astype(jnp.bfloat16)         # (W, W2)

    def bn_row(idx, flag):
        # Load one input row and apply BatchNorm; `flag` (0/1) folds the top/bottom zero
        # padding into the affine so out-of-range rows contribute exactly 0.
        r = x_ref[0, idx]                                  # (C, W) f32
        return r * (scale * flag) + shift * flag

    def conv_row(stack):
        # stack: (3C, W) = BN'd rows [y-1, y, y+1]. Build the (9C, W) im2col RHS with lane
        # rolls (XLU) + edge masks, then a single MXU matmul with K = 9C.
        left = jnp.where(not_first, pltpu.roll(stack, 1, axis=1), 0.0)       # input col x-1
        right = jnp.where(not_last, pltpu.roll(stack, W - 1, axis=1), 0.0)   # input col x+1
        rhs = jnp.concatenate([left, stack, right], axis=0).astype(jnp.bfloat16)
        return jnp.dot(wmat, rhs, preferred_element_type=jnp.float32)        # (Cout, W) f32

    def body(hp, carry):
        y = 2 * hp
        top = (hp > 0).astype(jnp.float32)
        bot = (hp < H2 - 1).astype(jnp.float32)
        # Load + BN the 4 input rows shared by the two conv rows of this pooled row once.
        r0 = bn_row(jnp.maximum(y - 1, 0), top)
        r1 = bn_row(y, 1.0)
        r2 = bn_row(y + 1, 1.0)
        r3 = bn_row(jnp.minimum(y + 2, H - 1), bot)
        cA = conv_row(jnp.concatenate([r0, r1, r2], axis=0))
        cB = conv_row(jnp.concatenate([r1, r2, r3], axis=0))
        # bias + ReLU commute with the 2x2 max, so take the maxes first.
        p = jnp.maximum(jnp.maximum(cA, cB) + bias, 0.0)                     # (Cout, W)
        m = jnp.maximum(p, pltpu.roll(p, W - 1, axis=1))                     # lane-pair max
        pooled = jnp.dot(m.astype(jnp.bfloat16), sel,
                         preferred_element_type=jnp.float32)                 # (Cout, W2)
        o_ref[0, hp] = pooled.astype(o_ref.dtype)
        return carry

    lax.fori_loop(0, H2, body, 0)


def conv_block(x, wmat, b, gamma, beta, eps=1e-5):
    """x: (N, H, C, W) f32 -> (N, H//2, Cout, W//2) f32."""
    N, H, C, W = x.shape
    Cout = wmat.shape[0]
    # TODO(synk): nn.BatchNorm1d on a 4D NCHW input raises in PyTorch; interpreted here as
    # per-channel BatchNorm2d with training-mode batch statistics (biased variance).
    mean = jnp.mean(x, axis=(0, 1, 3))
    var = jnp.var(x, axis=(0, 1, 3))
    scale = gamma * lax.rsqrt(var + eps)
    shift = beta - mean * scale
    H2, W2 = H // 2, W // 2
    return pl.pallas_call(
        conv_bn_relu_pool_kernel,
        out_shape=jax.ShapeDtypeStruct((N, H2, Cout, W2), jnp.float32),
        grid=(N,),
        in_specs=[
            pl.BlockSpec((1, H, C, W), lambda n: (n, 0, 0, 0)),
            pl.BlockSpec((Cout, 9 * C), lambda n: (0, 0)),
            pl.BlockSpec((Cout, 1), lambda n: (0, 0)),
            pl.BlockSpec((C, 1), lambda n: (0, 0)),
            pl.BlockSpec((C, 1), lambda n: (0, 0)),
        ],
        out_specs=pl.BlockSpec((1, H2, Cout, W2), lambda n: (n, 0, 0, 0)),
        compiler_params=pltpu.CompilerParams(dimension_semantics=("parallel",)),
    )(x, wmat, b.reshape(Cout, 1), scale.reshape(C, 1), shift.reshape(C, 1))


# ----------------------------------------------------------------------------
# Fused Linear -> ReLU -> Linear -> ReLU kernel (single pallas_call, bf16 weights)
# ----------------------------------------------------------------------------
def mlp_kernel(x_ref, w1_ref, b1_ref, w2_ref, b2_ref, o_ref):
    x = x_ref[...].astype(jnp.bfloat16)
    h = jnp.dot(x, w1_ref[...], preferred_element_type=jnp.float32) + b1_ref[...]
    h = jnp.maximum(h, 0.0)
    # TODO(synk): nn.Dropout(0.5) is stochastic in train mode; applied as identity (eval semantics).
    y = jnp.dot(h.astype(jnp.bfloat16), w2_ref[...], preferred_element_type=jnp.float32) + b2_ref[...]
    o_ref[...] = jnp.maximum(y, 0.0).astype(o_ref.dtype)


def mlp(x, w1, b1, w2, b2):
    M = x.shape[0]
    Nout = w2.shape[1]
    return pl.pallas_call(
        mlp_kernel,
        out_shape=jax.ShapeDtypeStruct((M, Nout), jnp.float32),
    )(x, w1, b1.reshape(1, -1), w2, b2.reshape(1, -1))


# ----------------------------------------------------------------------------
# Model
# ----------------------------------------------------------------------------
def pack_conv_weights(w, cin_pad):
    """(3, 3, Cout, Cin) f32 -> (Cout, 9*cin_pad) bf16, K ordered (dx, dy, cin)."""
    kh, kw, cout, cin = w.shape
    if cin_pad > cin:
        w = jnp.pad(w, ((0, 0), (0, 0), (0, 0), (0, cin_pad - cin)))
    return jnp.transpose(w, (2, 1, 0, 3)).reshape(cout, kh * kw * cin_pad).astype(jnp.bfloat16)


def init_params(key):
    convs = []
    for cin, cout in [(3, 16), (16, 32), (32, 64), (64, 64), (64, 64)]:
        cin_pad = max(cin, 8)
        key, kw_, kb = jax.random.split(key, 3)
        w = jax.random.normal(kw_, (3, 3, cout, cin), jnp.float32) / jnp.sqrt(9.0 * cin)
        gamma = jnp.zeros((cin_pad,), jnp.float32).at[:cin].set(1.0)   # padded channels: gamma=0
        convs.append(dict(
            wmat=pack_conv_weights(w, cin_pad),
            b=0.01 * jax.random.normal(kb, (cout,), jnp.float32),
            gamma=gamma,
            beta=jnp.zeros((cin_pad,), jnp.float32),
        ))
    key, k1, k2, k3, k4 = jax.random.split(key, 5)
    fc1_w = (jax.random.normal(k1, (4096, 256), jnp.float32) / jnp.sqrt(4096.0)).astype(jnp.bfloat16)
    fc1_b = 0.01 * jax.random.normal(k2, (256,), jnp.float32)
    fc2_w = (jax.random.normal(k3, (256, 64), jnp.float32) / jnp.sqrt(256.0)).astype(jnp.bfloat16)
    fc2_b = 0.01 * jax.random.normal(k4, (64,), jnp.float32)
    return dict(convs=convs, fc1_w=fc1_w, fc1_b=fc1_b, fc2_w=fc2_w, fc2_b=fc2_b)


@jax.jit
def forward(x, params):
    """x: (N, 3, 256, 256) NCHW, as in PyTorch."""
    N = x.shape[0]
    h = jnp.transpose(x, (0, 2, 1, 3))                      # NCHW -> (N, H, C, W) kernel layout
    c_pad = params["convs"][0]["gamma"].shape[0]            # first-block channel padding (3 -> 8)
    h = jnp.pad(h, ((0, 0), (0, 0), (0, c_pad - h.shape[2]), (0, 0)))
    for blk in params["convs"]:
        h = conv_block(h, blk["wmat"], blk["b"], blk["gamma"], blk["beta"])
    # h: (N, 8, 64, 8) in (N, H, C, W)
    # TODO(synk): nn.Flatten(1, 0) is invalid (end_dim < start_dim); interpreted as Flatten(1).
    feats = jnp.transpose(h, (0, 2, 1, 3)).reshape(N, -1)   # (N, 4096), NCHW-order flatten
    out = mlp(feats, params["fc1_w"], params["fc1_b"], params["fc2_w"], params["fc2_b"])
    # TODO(synk): final nn.Linear(256, 1) is shape-incompatible with the (N, 64) output of the
    # preceding Linear(256, 64); omitted rather than faked.
    return out


if __name__ == "__main__":
    key = jax.random.PRNGKey(0)
    pkey, xkey = jax.random.split(key)
    params = init_params(pkey)
    # Spatial size 256x256 is implied by nn.Linear(4096, 256): 64 * (256/2^5)^2 == 4096.
    x = jax.random.normal(xkey, (2, 3, 256, 256), jnp.float32)
    out = forward(x, params)
    jax.block_until_ready(out)
    assert out.shape == (2, 64) and out.dtype == jnp.float32
    print("KERNEL_OK")
</pallas_src>

<mosaic_0001>
module attributes {stable_mosaic.version = 11 : i64} {
  func.func @conv_bn_relu_pool_kernel(%arg0: i32, %arg1: memref<1x256x8x256xf32, #tpu.memory_space<vmem>>, %arg2: memref<16x72xbf16, #tpu.memory_space<vmem>>, %arg3: memref<16x1xf32, #tpu.memory_space<vmem>>, %arg4: memref<8x1xf32, #tpu.memory_space<vmem>>, %arg5: memref<8x1xf32, #tpu.memory_space<vmem>>, %arg6: memref<1x128x16x128xf32, #tpu.memory_space<vmem>>) attributes {dimension_semantics = [#tpu.dimension_semantics<parallel>], iteration_bounds = array<i64: 2>, scalar_prefetch = 0 : i64, scratch_operands = 0 : i64, tpu.core_type = #tpu.core_type<tc>, window_params = [{transform_indices = @transform_0, window_bounds = array<i64: 1, 256, 8, 256>}, {pipeline_mode = #tpu.pipeline_mode<synchronous>, transform_indices = @transform_1, window_bounds = array<i64: 16, 72>}, {pipeline_mode = #tpu.pipeline_mode<synchronous>, transform_indices = @transform_2, window_bounds = array<i64: 16, 1>}, {pipeline_mode = #tpu.pipeline_mode<synchronous>, transform_indices = @transform_3, window_bounds = array<i64: 8, 1>}, {pipeline_mode = #tpu.pipeline_mode<synchronous>, transform_indices = @transform_4, window_bounds = array<i64: 8, 1>}, {transform_indices = @transform_5, window_bounds = array<i64: 1, 128, 16, 128>}]} {
    %c0 = arith.constant 0 : index
    %c0_0 = arith.constant 0 : index
    %0 = vector.load %arg2[%c0, %c0_0] : memref<16x72xbf16, #tpu.memory_space<vmem>>, vector<16x72xbf16>
    %c0_1 = arith.constant 0 : index
    %c0_2 = arith.constant 0 : index
    %1 = vector.load %arg3[%c0_1, %c0_2] : memref<16x1xf32, #tpu.memory_space<vmem>>, vector<16x1xf32>
    %c0_3 = arith.constant 0 : index
    %c0_4 = arith.constant 0 : index
    %2 = vector.load %arg4[%c0_3, %c0_4] : memref<8x1xf32, #tpu.memory_space<vmem>>, vector<8x1xf32>
    %c0_5 = arith.constant 0 : index
    %c0_6 = arith.constant 0 : index
    %3 = vector.load %arg5[%c0_5, %c0_6] : memref<8x1xf32, #tpu.memory_space<vmem>>, vector<8x1xf32>
    %4 = tpu.iota {dimensions = array<i32: 1>} : vector<1x256xi32>
    %c0_i32 = arith.constant 0 : i32
    %5 = vector.broadcast %c0_i32 : i32 to vector<1x256xi32>
    %6 = arith.cmpi ne, %4, %5 : vector<1x256xi32>
    %c255_i32 = arith.constant 255 : i32
    %7 = vector.broadcast %c255_i32 : i32 to vector<1x256xi32>
    %8 = arith.cmpi ne, %4, %7 : vector<1x256xi32>
    %9 = tpu.iota {dimensions = array<i32: 0>} : vector<256x128xi32>
    %10 = tpu.iota {dimensions = array<i32: 1>} : vector<256x128xi32>
    %c2_i32 = arith.constant 2 : i32
    %11 = vector.broadcast %c2_i32 : i32 to vector<256x128xi32>
    %12 = arith.muli %11, %10 : vector<256x128xi32>
    %13 = arith.cmpi eq, %9, %12 : vector<256x128xi32>
    %14 = arith.extui %13 : vector<256x128xi1> to vector<256x128xi32>
    %15 = arith.sitofp %14 : vector<256x128xi32> to vector<256x128xf32>
    %16 = arith.truncf %15 : vector<256x128xf32> to vector<256x128xbf16>
    %c0_i32_7 = arith.constant 0 : i32
    %c128_i32 = arith.constant 128 : i32
    %17 = arith.addi %c0_i32_7, %c128_i32 : i32
    %c1_i32 = arith.constant 1 : i32
    scf.for %arg7 = %c0_i32_7 to %17 step %c1_i32  : i32 {
      %c2_i32_9 = arith.constant 2 : i32
      %18 = arith.muli %c2_i32_9, %arg7 : i32
      %c0_i32_10 = arith.constant 0 : i32
      %19 = arith.cmpi sgt, %arg7, %c0_i32_10 : i32
      %20 = arith.extui %19 : i1 to i32
      %21 = arith.sitofp %20 : i32 to f32
      %c127_i32 = arith.constant 127 : i32
      %22 = arith.cmpi slt, %arg7, %c127_i32 : i32
      %23 = arith.extui %22 : i1 to i32
      %24 = arith.sitofp %23 : i32 to f32
      %c1_i32_11 = arith.constant 1 : i32
      %25 = arith.subi %18, %c1_i32_11 : i32
      %c0_i32_12 = arith.constant 0 : i32
      %26 = arith.maxsi %25, %c0_i32_12 : i32
      %c0_13 = arith.constant 0 : index
      %27 = arith.index_cast %26 : i32 to index
      %c0_14 = arith.constant 0 : index
      %c0_15 = arith.constant 0 : index
      %28 = vector.load %arg1[%c0_13, %27, %c0_14, %c0_15] : memref<1x256x8x256xf32, #tpu.memory_space<vmem>>, vector<1x1x8x256xf32>
      %29 = vector.shape_cast %28 : vector<1x1x8x256xf32> to vector<8x256xf32>
      %30 = vector.broadcast %21 : f32 to vector<8x1xf32>
      %31 = arith.mulf %2, %30 : vector<8x1xf32>
      %32 = vector.broadcast %31 : vector<8x1xf32> to vector<8x256xf32>
      %33 = arith.mulf %29, %32 : vector<8x256xf32>
      %34 = vector.broadcast %21 : f32 to vector<8x1xf32>
      %35 = arith.mulf %3, %34 : vector<8x1xf32>
      %36 = vector.broadcast %35 : vector<8x1xf32> to vector<8x256xf32>
      %37 = arith.addf %33, %36 : vector<8x256xf32>
      %c0_16 = arith.constant 0 : index
      %38 = arith.index_cast %18 : i32 to index
      %c0_17 = arith.constant 0 : index
      %c0_18 = arith.constant 0 : index
      %39 = vector.load %arg1[%c0_16, %38, %c0_17, %c0_18] : memref<1x256x8x256xf32, #tpu.memory_space<vmem>>, vector<1x1x8x256xf32>
      %40 = vector.shape_cast %39 : vector<1x1x8x256xf32> to vector<8x256xf32>
      %cst = arith.constant 1.000000e+00 : f32
      %41 = vector.broadcast %cst : f32 to vector<8x1xf32>
      %42 = arith.mulf %2, %41 : vector<8x1xf32>
      %43 = vector.broadcast %42 : vector<8x1xf32> to vector<8x256xf32>
      %44 = arith.mulf %40, %43 : vector<8x256xf32>
      %cst_19 = arith.constant 1.000000e+00 : f32
      %45 = vector.broadcast %cst_19 : f32 to vector<8x1xf32>
      %46 = arith.mulf %3, %45 : vector<8x1xf32>
      %47 = vector.broadcast %46 : vector<8x1xf32> to vector<8x256xf32>
      %48 = arith.addf %44, %47 : vector<8x256xf32>
      %c1_i32_20 = arith.constant 1 : i32
      %49 = arith.addi %18, %c1_i32_20 : i32
      %c0_21 = arith.constant 0 : index
      %50 = arith.index_cast %49 : i32 to index
      %c0_22 = arith.constant 0 : index
      %c0_23 = arith.constant 0 : index
      %51 = vector.load %arg1[%c0_21, %50, %c0_22, %c0_23] : memref<1x256x8x256xf32, #tpu.memory_space<vmem>>, vector<1x1x8x256xf32>
      %52 = vector.shape_cast %51 : vector<1x1x8x256xf32> to vector<8x256xf32>
      %cst_24 = arith.constant 1.000000e+00 : f32
      %53 = vector.broadcast %cst_24 : f32 to vector<8x1xf32>
      %54 = arith.mulf %2, %53 : vector<8x1xf32>
      %55 = vector.broadcast %54 : vector<8x1xf32> to vector<8x256xf32>
      %56 = arith.mulf %52, %55 : vector<8x256xf32>
      %cst_25 = arith.constant 1.000000e+00 : f32
      %57 = vector.broadcast %cst_25 : f32 to vector<8x1xf32>
      %58 = arith.mulf %3, %57 : vector<8x1xf32>
      %59 = vector.broadcast %58 : vector<8x1xf32> to vector<8x256xf32>
      %60 = arith.addf %56, %59 : vector<8x256xf32>
      %c2_i32_26 = arith.constant 2 : i32
      %61 = arith.addi %18, %c2_i32_26 : i32
      %c255_i32_27 = arith.constant 255 : i32
      %62 = arith.minsi %61, %c255_i32_27 : i32
      %c0_28 = arith.constant 0 : index
      %63 = arith.index_cast %62 : i32 to index
      %c0_29 = arith.constant 0 : index
      %c0_30 = arith.constant 0 : index
      %64 = vector.load %arg1[%c0_28, %63, %c0_29, %c0_30] : memref<1x256x8x256xf32, #tpu.memory_space<vmem>>, vector<1x1x8x256xf32>
      %65 = vector.shape_cast %64 : vector<1x1x8x256xf32> to vector<8x256xf32>
      %66 = vector.broadcast %24 : f32 to vector<8x1xf32>
      %67 = arith.mulf %2, %66 : vector<8x1xf32>
      %68 = vector.broadcast %67 : vector<8x1xf32> to vector<8x256xf32>
      %69 = arith.mulf %65, %68 : vector<8x256xf32>
      %70 = vector.broadcast %24 : f32 to vector<8x1xf32>
      %71 = arith.mulf %3, %70 : vector<8x1xf32>
      %72 = vector.broadcast %71 : vector<8x1xf32> to vector<8x256xf32>
      %73 = arith.addf %69, %72 : vector<8x256xf32>
      %74 = tpu.concatenate %37, %48, %60 in 0 : vector<8x256xf32>, vector<8x256xf32>, vector<8x256xf32> -> vector<24x256xf32>
      %c1_i32_31 = arith.constant 1 : i32
      %75 = tpu.dynamic_rotate %74 by %c1_i32_31 dim 1 : vector<24x256xf32>, i32 -> vector<24x256xf32>
      %cst_32 = arith.constant 0.000000e+00 : f32
      %76 = vector.shape_cast %6 : vector<1x256xi1> to vector<1x256xi1>
      %77 = vector.broadcast %76 : vector<1x256xi1> to vector<24x256xi1>
      %78 = vector.broadcast %cst_32 : f32 to vector<24x256xf32>
      %79 = arith.select %77, %75, %78 : vector<24x256xi1>, vector<24x256xf32>
      %c255_i32_33 = arith.constant 255 : i32
      %80 = tpu.dynamic_rotate %74 by %c255_i32_33 dim 1 : vector<24x256xf32>, i32 -> vector<24x256xf32>
      %cst_34 = arith.constant 0.000000e+00 : f32
      %81 = vector.shape_cast %8 : vector<1x256xi1> to vector<1x256xi1>
      %82 = vector.broadcast %81 : vector<1x256xi1> to vector<24x256xi1>
      %83 = vector.broadcast %cst_34 : f32 to vector<24x256xf32>
      %84 = arith.select %82, %80, %83 : vector<24x256xi1>, vector<24x256xf32>
      %85 = tpu.concatenate %79, %74, %84 in 0 : vector<24x256xf32>, vector<24x256xf32>, vector<24x256xf32> -> vector<72x256xf32>
      %86 = arith.truncf %85 : vector<72x256xf32> to vector<72x256xbf16>
      %cst_35 = arith.constant dense<0.000000e+00> : vector<16x256xf32>
      %87 = tpu.matmul %0, %86, %cst_35 {dimension_numbers = #tpu.dot_dimension_numbers<[1], [0], [0], [1], [0, 0, 1, 1], [], []>} : vector<16x72xbf16>, vector<72x256xbf16>, vector<16x256xf32> -> vector<16x256xf32>
      %88 = tpu.concatenate %48, %60, %73 in 0 : vector<8x256xf32>, vector<8x256xf32>, vector<8x256xf32> -> vector<24x256xf32>
      %c1_i32_36 = arith.constant 1 : i32
      %89 = tpu.dynamic_rotate %88 by %c1_i32_36 dim 1 : vector<24x256xf32>, i32 -> vector<24x256xf32>
      %cst_37 = arith.constant 0.000000e+00 : f32
      %90 = vector.shape_cast %6 : vector<1x256xi1> to vector<1x256xi1>
      %91 = vector.broadcast %90 : vector<1x256xi1> to vector<24x256xi1>
      %92 = vector.broadcast %cst_37 : f32 to vector<24x256xf32>
      %93 = arith.select %91, %89, %92 : vector<24x256xi1>, vector<24x256xf32>
      %c255_i32_38 = arith.constant 255 : i32
      %94 = tpu.dynamic_rotate %88 by %c255_i32_38 dim 1 : vector<24x256xf32>, i32 -> vector<24x256xf32>
      %cst_39 = arith.constant 0.000000e+00 : f32
      %95 = vector.shape_cast %8 : vector<1x256xi1> to vector<1x256xi1>
      %96 = vector.broadcast %95 : vector<1x256xi1> to vector<24x256xi1>
      %97 = vector.broadcast %cst_39 : f32 to vector<24x256xf32>
      %98 = arith.select %96, %94, %97 : vector<24x256xi1>, vector<24x256xf32>
      %99 = tpu.concatenate %93, %88, %98 in 0 : vector<24x256xf32>, vector<24x256xf32>, vector<24x256xf32> -> vector<72x256xf32>
      %100 = arith.truncf %99 : vector<72x256xf32> to vector<72x256xbf16>
      %cst_40 = arith.constant dense<0.000000e+00> : vector<16x256xf32>
      %101 = tpu.matmul %0, %100, %cst_40 {dimension_numbers = #tpu.dot_dimension_numbers<[1], [0], [0], [1], [0, 0, 1, 1], [], []>} : vector<16x72xbf16>, vector<72x256xbf16>, vector<16x256xf32> -> vector<16x256xf32>
      %102 = arith.maximumf %87, %101 : vector<16x256xf32>
      %103 = vector.broadcast %1 : vector<16x1xf32> to vector<16x256xf32>
      %104 = arith.addf %102, %103 : vector<16x256xf32>
      %cst_41 = arith.constant 0.000000e+00 : f32
      %105 = vector.broadcast %cst_41 : f32 to vector<16x256xf32>
      %106 = arith.maximumf %104, %105 : vector<16x256xf32>
      %c255_i32_42 = arith.constant 255 : i32
      %107 = tpu.dynamic_rotate %106 by %c255_i32_42 dim 1 : vector<16x256xf32>, i32 -> vector<16x256xf32>
      %108 = arith.maximumf %106, %107 : vector<16x256xf32>
      %109 = arith.truncf %108 : vector<16x256xf32> to vector<16x256xbf16>
      %cst_43 = arith.constant dense<0.000000e+00> : vector<16x128xf32>
      %110 = tpu.matmul %109, %16, %cst_43 {dimension_numbers = #tpu.dot_dimension_numbers<[1], [0], [0], [1], [0, 0, 1, 1], [], []>} : vector<16x256xbf16>, vector<256x128xbf16>, vector<16x128xf32> -> vector<16x128xf32>
      %c0_44 = arith.constant 0 : index
      %111 = arith.index_cast %arg7 : i32 to index
      %c0_45 = arith.constant 0 : index
      %c0_46 = arith.constant 0 : index
      %112 = vector.load %arg6[%c0_44, %111, %c0_45, %c0_46] : memref<1x128x16x128xf32, #tpu.memory_space<vmem>>, vector<1x1x16x128xf32>
      %113 = vector.shape_cast %112 : vector<1x1x16x128xf32> to vector<16x128xf32>
      %114 = vector.shape_cast %110 : vector<16x128xf32> to vector<1x1x16x128xf32>
      tpu.vector_store %arg6[%c0_44, %111, %c0_45, %c0_46], %114 {strides = array<i32>} : memref<1x128x16x128xf32, #tpu.memory_space<vmem>>, vector<1x1x16x128xf32>,
    }
    %c128_i32_8 = arith.constant 128 : i32
    return
  }
  func.func @transform_0(%arg0: i32) -> (i32, i32, i32, i32) {
    %c0_i32 = arith.constant 0 : i32
    %c0_i32_0 = arith.constant 0 : i32
    %c0_i32_1 = arith.constant 0 : i32
    %c0_i32_2 = arith.constant 0 : i32
    return %arg0, %c0_i32, %c0_i32_0, %c0_i32_1 : i32, i32, i32, i32
  }
  func.func @transform_1(%arg0: i32) -> (i32, i32) {
    %c0_i32 = arith.constant 0 : i32
    %c0_i32_0 = arith.constant 0 : i32
    %c0_i32_1 = arith.constant 0 : i32
    return %c0_i32, %c0_i32_0 : i32, i32
  }
  func.func @transform_2(%arg0: i32) -> (i32, i32) {
    %c0_i32 = arith.constant 0 : i32
    %c0_i32_0 = arith.constant 0 : i32
    %c0_i32_1 = arith.constant 0 : i32
    return %c0_i32, %c0_i32_0 : i32, i32
  }
  func.func @transform_3(%arg0: i32) -> (i32, i32) {
    %c0_i32 = arith.constant 0 : i32
    %c0_i32_0 = arith.constant 0 : i32
    %c0_i32_1 = arith.constant 0 : i32
    return %c0_i32, %c0_i32_0 : i32, i32
  }
  func.func @transform_4(%arg0: i32) -> (i32, i32) {
    %c0_i32 = arith.constant 0 : i32
    %c0_i32_0 = arith.constant 0 : i32
    %c0_i32_1 = arith.constant 0 : i32
    return %c0_i32, %c0_i32_0 : i32, i32
  }
  func.func @transform_5(%arg0: i32) -> (i32, i32, i32, i32) {
    %c0_i32 = arith.constant 0 : i32
    %c0_i32_0 = arith.constant 0 : i32
    %c0_i32_1 = arith.constant 0 : i32
    %c0_i32_2 = arith.constant 0 : i32
    return %arg0, %c0_i32, %c0_i32_0, %c0_i32_1 : i32, i32, i32, i32
  }
}

module attributes {stable_mosaic.version = 11 : i64} {
  func.func @conv_bn_relu_pool_kernel(%arg0: i32, %arg1: memref<1x128x16x128xf32, #tpu.memory_space<vmem>>, %arg2: memref<32x144xbf16, #tpu.memory_space<vmem>>, %arg3: memref<32x1xf32, #tpu.memory_space<vmem>>, %arg4: memref<16x1xf32, #tpu.memory_space<vmem>>, %arg5: memref<16x1xf32, #tpu.memory_space<vmem>>, %arg6: memref<1x64x32x64xf32, #tpu.memory_space<vmem>>) attributes {dimension_semantics = [#tpu.dimension_semantics<parallel>], iteration_bounds = array<i64: 2>, scalar_prefetch = 0 : i64, scratch_operands = 0 : i64, tpu.core_type = #tpu.core_type<tc>, window_params = [{transform_indices = @transform_0, window_bounds = array<i64: 1, 128, 16, 128>}, {pipeline_mode = #tpu.pipeline_mode<synchronous>, transform_indices = @transform_1, window_bounds = array<i64: 32, 144>}, {pipeline_mode = #tpu.pipeline_mode<synchronous>, transform_indices = @transform_2, window_bounds = array<i64: 32, 1>}, {pipeline_mode = #tpu.pipeline_mode<synchronous>, transform_indices = @transform_3, window_bounds = array<i64: 16, 1>}, {pipeline_mode = #tpu.pipeline_mode<synchronous>, transform_indices = @transform_4, window_bounds = array<i64: 16, 1>}, {transform_indices = @transform_5, window_bounds = array<i64: 1, 64, 32, 64>}]} {
    %c0 = arith.constant 0 : index
    %c0_0 = arith.constant 0 : index
    %0 = vector.load %arg2[%c0, %c0_0] : memref<32x144xbf16, #tpu.memory_space<vmem>>, vector<32x144xbf16>
    %c0_1 = arith.constant 0 : index
    %c0_2 = arith.constant 0 : index
    %1 = vector.load %arg3[%c0_1, %c0_2] : memref<32x1xf32, #tpu.memory_space<vmem>>, vector<32x1xf32>
    %c0_3 = arith.constant 0 : index
    %c0_4 = arith.constant 0 : index
    %2 = vector.load %arg4[%c0_3, %c0_4] : memref<16x1xf32, #tpu.memory_space<vmem>>, vector<16x1xf32>
    %c0_5 = arith.constant 0 : index
    %c0_6 = arith.constant 0 : index
    %3 = vector.load %arg5[%c0_5, %c0_6] : memref<16x1xf32, #tpu.memory_space<vmem>>, vector<16x1xf32>
    %4 = tpu.iota {dimensions = array<i32: 1>} : vector<1x128xi32>
    %c0_i32 = arith.constant 0 : i32
    %5 = vector.broadcast %c0_i32 : i32 to vector<1x128xi32>
    %6 = arith.cmpi ne, %4, %5 : vector<1x128xi32>
    %c127_i32 = arith.constant 127 : i32
    %7 = vector.broadcast %c127_i32 : i32 to vector<1x128xi32>
    %8 = arith.cmpi ne, %4, %7 : vector<1x128xi32>
    %9 = tpu.iota {dimensions = array<i32: 0>} : vector<128x64xi32>
    %10 = tpu.iota {dimensions = array<i32: 1>} : vector<128x64xi32>
    %c2_i32 = arith.constant 2 : i32
    %11 = vector.broadcast %c2_i32 : i32 to vector<128x64xi32>
    %12 = arith.muli %11, %10 : vector<128x64xi32>
    %13 = arith.cmpi eq, %9, %12 : vector<128x64xi32>
    %14 = arith.extui %13 : vector<128x64xi1> to vector<128x64xi32>
    %15 = arith.sitofp %14 : vector<128x64xi32> to vector<128x64xf32>
    %16 = arith.truncf %15 : vector<128x64xf32> to vector<128x64xbf16>
    %c0_i32_7 = arith.constant 0 : i32
    %c64_i32 = arith.constant 64 : i32
    %17 = arith.addi %c0_i32_7, %c64_i32 : i32
    %c1_i32 = arith.constant 1 : i32
    scf.for %arg7 = %c0_i32_7 to %17 step %c1_i32  : i32 {
      %c2_i32_9 = arith.constant 2 : i32
      %18 = arith.muli %c2_i32_9, %arg7 : i32
      %c0_i32_10 = arith.constant 0 : i32
      %19 = arith.cmpi sgt, %arg7, %c0_i32_10 : i32
      %20 = arith.extui %19 : i1 to i32
      %21 = arith.sitofp %20 : i32 to f32
      %c63_i32 = arith.constant 63 : i32
      %22 = arith.cmpi slt, %arg7, %c63_i32 : i32
      %23 = arith.extui %22 : i1 to i32
      %24 = arith.sitofp %23 : i32 to f32
      %c1_i32_11 = arith.constant 1 : i32
      %25 = arith.subi %18, %c1_i32_11 : i32
      %c0_i32_12 = arith.constant 0 : i32
      %26 = arith.maxsi %25, %c0_i32_12 : i32
      %c0_13 = arith.constant 0 : index
      %27 = arith.index_cast %26 : i32 to index
      %c0_14 = arith.constant 0 : index
      %c0_15 = arith.constant 0 : index
      %28 = vector.load %arg1[%c0_13, %27, %c0_14, %c0_15] : memref<1x128x16x128xf32, #tpu.memory_space<vmem>>, vector<1x1x16x128xf32>
      %29 = vector.shape_cast %28 : vector<1x1x16x128xf32> to vector<16x128xf32>
      %30 = vector.broadcast %21 : f32 to vector<16x1xf32>
      %31 = arith.mulf %2, %30 : vector<16x1xf32>
      %32 = vector.broadcast %31 : vector<16x1xf32> to vector<16x128xf32>
      %33 = arith.mulf %29, %32 : vector<16x128xf32>
      %34 = vector.broadcast %21 : f32 to vector<16x1xf32>
      %35 = arith.mulf %3, %34 : vector<16x1xf32>
      %36 = vector.broadcast %35 : vector<16x1xf32> to vector<16x128xf32>
      %37 = arith.addf %33, %36 : vector<16x128xf32>
      %c0_16 = arith.constant 0 : index
      %38 = arith.index_cast %18 : i32 to index
      %c0_17 = arith.constant 0 : index
      %c0_18 = arith.constant 0 : index
      %39 = vector.load %arg1[%c0_16, %38, %c0_17, %c0_18] : memref<1x128x16x128xf32, #tpu.memory_space<vmem>>, vector<1x1x16x128xf32>
      %40 = vector.shape_cast %39 : vector<1x1x16x128xf32> to vector<16x128xf32>
      %cst = arith.constant 1.000000e+00 : f32
      %41 = vector.broadcast %cst : f32 to vector<16x1xf32>
      %42 = arith.mulf %2, %41 : vector<16x1xf32>
      %43 = vector.broadcast %42 : vector<16x1xf32> to vector<16x128xf32>
      %44 = arith.mulf %40, %43 : vector<16x128xf32>
      %cst_19 = arith.constant 1.000000e+00 : f32
      %45 = vector.broadcast %cst_19 : f32 to vector<16x1xf32>
      %46 = arith.mulf %3, %45 : vector<16x1xf32>
      %47 = vector.broadcast %46 : vector<16x1xf32> to vector<16x128xf32>
      %48 = arith.addf %44, %47 : vector<16x128xf32>
      %c1_i32_20 = arith.constant 1 : i32
      %49 = arith.addi %18, %c1_i32_20 : i32
      %c0_21 = arith.constant 0 : index
      %50 = arith.index_cast %49 : i32 to index
      %c0_22 = arith.constant 0 : index
      %c0_23 = arith.constant 0 : index
      %51 = vector.load %arg1[%c0_21, %50, %c0_22, %c0_23] : memref<1x128x16x128xf32, #tpu.memory_space<vmem>>, vector<1x1x16x128xf32>
      %52 = vector.shape_cast %51 : vector<1x1x16x128xf32> to vector<16x128xf32>
      %cst_24 = arith.constant 1.000000e+00 : f32
      %53 = vector.broadcast %cst_24 : f32 to vector<16x1xf32>
      %54 = arith.mulf %2, %53 : vector<16x1xf32>
      %55 = vector.broadcast %54 : vector<16x1xf32> to vector<16x128xf32>
      %56 = arith.mulf %52, %55 : vector<16x128xf32>
      %cst_25 = arith.constant 1.000000e+00 : f32
      %57 = vector.broadcast %cst_25 : f32 to vector<16x1xf32>
      %58 = arith.mulf %3, %57 : vector<16x1xf32>
      %59 = vector.broadcast %58 : vector<16x1xf32> to vector<16x128xf32>
      %60 = arith.addf %56, %59 : vector<16x128xf32>
      %c2_i32_26 = arith.constant 2 : i32
      %61 = arith.addi %18, %c2_i32_26 : i32
      %c127_i32_27 = arith.constant 127 : i32
      %62 = arith.minsi %61, %c127_i32_27 : i32
      %c0_28 = arith.constant 0 : index
      %63 = arith.index_cast %62 : i32 to index
      %c0_29 = arith.constant 0 : index
      %c0_30 = arith.constant 0 : index
      %64 = vector.load %arg1[%c0_28, %63, %c0_29, %c0_30] : memref<1x128x16x128xf32, #tpu.memory_space<vmem>>, vector<1x1x16x128xf32>
      %65 = vector.shape_cast %64 : vector<1x1x16x128xf32> to vector<16x128xf32>
      %66 = vector.broadcast %24 : f32 to vector<16x1xf32>
      %67 = arith.mulf %2, %66 : vector<16x1xf32>
      %68 = vector.broadcast %67 : vector<16x1xf32> to vector<16x128xf32>
      %69 = arith.mulf %65, %68 : vector<16x128xf32>
      %70 = vector.broadcast %24 : f32 to vector<16x1xf32>
      %71 = arith.mulf %3, %70 : vector<16x1xf32>
      %72 = vector.broadcast %71 : vector<16x1xf32> to vector<16x128xf32>
      %73 = arith.addf %69, %72 : vector<16x128xf32>
      %74 = tpu.concatenate %37, %48, %60 in 0 : vector<16x128xf32>, vector<16x128xf32>, vector<16x128xf32> -> vector<48x128xf32>
      %c1_i32_31 = arith.constant 1 : i32
      %75 = tpu.dynamic_rotate %74 by %c1_i32_31 dim 1 : vector<48x128xf32>, i32 -> vector<48x128xf32>
      %cst_32 = arith.constant 0.000000e+00 : f32
      %76 = vector.shape_cast %6 : vector<1x128xi1> to vector<1x128xi1>
      %77 = vector.broadcast %76 : vector<1x128xi1> to vector<48x128xi1>
      %78 = vector.broadcast %cst_32 : f32 to vector<48x128xf32>
      %79 = arith.select %77, %75, %78 : vector<48x128xi1>, vector<48x128xf32>
      %c127_i32_33 = arith.constant 127 : i32
      %80 = tpu.dynamic_rotate %74 by %c127_i32_33 dim 1 : vector<48x128xf32>, i32 -> vector<48x128xf32>
      %cst_34 = arith.constant 0.000000e+00 : f32
      %81 = vector.shape_cast %8 : vector<1x128xi1> to vector<1x128xi1>
      %82 = vector.broadcast %81 : vector<1x128xi1> to vector<48x128xi1>
      %83 = vector.broadcast %cst_34 : f32 to vector<48x128xf32>
      %84 = arith.select %82, %80, %83 : vector<48x128xi1>, vector<48x128xf32>
      %85 = tpu.concatenate %79, %74, %84 in 0 : vector<48x128xf32>, vector<48x128xf32>, vector<48x128xf32> -> vector<144x128xf32>
      %86 = arith.truncf %85 : vector<144x128xf32> to vector<144x128xbf16>
      %cst_35 = arith.constant dense<0.000000e+00> : vector<32x128xf32>
      %87 = tpu.matmul %0, %86, %cst_35 {dimension_numbers = #tpu.dot_dimension_numbers<[1], [0], [0], [1], [0, 0, 1, 1], [], []>} : vector<32x144xbf16>, vector<144x128xbf16>, vector<32x128xf32> -> vector<32x128xf32>
      %88 = tpu.concatenate %48, %60, %73 in 0 : vector<16x128xf32>, vector<16x128xf32>, vector<16x128xf32> -> vector<48x128xf32>
      %c1_i32_36 = arith.constant 1 : i32
      %89 = tpu.dynamic_rotate %88 by %c1_i32_36 dim 1 : vector<48x128xf32>, i32 -> vector<48x128xf32>
      %cst_37 = arith.constant 0.000000e+00 : f32
      %90 = vector.shape_cast %6 : vector<1x128xi1> to vector<1x128xi1>
      %91 = vector.broadcast %90 : vector<1x128xi1> to vector<48x128xi1>
      %92 = vector.broadcast %cst_37 : f32 to vector<48x128xf32>
      %93 = arith.select %91, %89, %92 : vector<48x128xi1>, vector<48x128xf32>
      %c127_i32_38 = arith.constant 127 : i32
      %94 = tpu.dynamic_rotate %88 by %c127_i32_38 dim 1 : vector<48x128xf32>, i32 -> vector<48x128xf32>
      %cst_39 = arith.constant 0.000000e+00 : f32
      %95 = vector.shape_cast %8 : vector<1x128xi1> to vector<1x128xi1>
      %96 = vector.broadcast %95 : vector<1x128xi1> to vector<48x128xi1>
      %97 = vector.broadcast %cst_39 : f32 to vector<48x128xf32>
      %98 = arith.select %96, %94, %97 : vector<48x128xi1>, vector<48x128xf32>
      %99 = tpu.concatenate %93, %88, %98 in 0 : vector<48x128xf32>, vector<48x128xf32>, vector<48x128xf32> -> vector<144x128xf32>
      %100 = arith.truncf %99 : vector<144x128xf32> to vector<144x128xbf16>
      %cst_40 = arith.constant dense<0.000000e+00> : vector<32x128xf32>
      %101 = tpu.matmul %0, %100, %cst_40 {dimension_numbers = #tpu.dot_dimension_numbers<[1], [0], [0], [1], [0, 0, 1, 1], [], []>} : vector<32x144xbf16>, vector<144x128xbf16>, vector<32x128xf32> -> vector<32x128xf32>
      %102 = arith.maximumf %87, %101 : vector<32x128xf32>
      %103 = vector.broadcast %1 : vector<32x1xf32> to vector<32x128xf32>
      %104 = arith.addf %102, %103 : vector<32x128xf32>
      %cst_41 = arith.constant 0.000000e+00 : f32
      %105 = vector.broadcast %cst_41 : f32 to vector<32x128xf32>
      %106 = arith.maximumf %104, %105 : vector<32x128xf32>
      %c127_i32_42 = arith.constant 127 : i32
      %107 = tpu.dynamic_rotate %106 by %c127_i32_42 dim 1 : vector<32x128xf32>, i32 -> vector<32x128xf32>
      %108 = arith.maximumf %106, %107 : vector<32x128xf32>
      %109 = arith.truncf %108 : vector<32x128xf32> to vector<32x128xbf16>
      %cst_43 = arith.constant dense<0.000000e+00> : vector<32x64xf32>
      %110 = tpu.matmul %109, %16, %cst_43 {dimension_numbers = #tpu.dot_dimension_numbers<[1], [0], [0], [1], [0, 0, 1, 1], [], []>} : vector<32x128xbf16>, vector<128x64xbf16>, vector<32x64xf32> -> vector<32x64xf32>
      %c0_44 = arith.constant 0 : index
      %111 = arith.index_cast %arg7 : i32 to index
      %c0_45 = arith.constant 0 : index
      %c0_46 = arith.constant 0 : index
      %112 = vector.load %arg6[%c0_44, %111, %c0_45, %c0_46] : memref<1x64x32x64xf32, #tpu.memory_space<vmem>>, vector<1x1x32x64xf32>
      %113 = vector.shape_cast %112 : vector<1x1x32x64xf32> to vector<32x64xf32>
      %114 = vector.shape_cast %110 : vector<32x64xf32> to vector<1x1x32x64xf32>
      tpu.vector_store %arg6[%c0_44, %111, %c0_45, %c0_46], %114 {strides = array<i32>} : memref<1x64x32x64xf32, #tpu.memory_space<vmem>>, vector<1x1x32x64xf32>,
    }
    %c64_i32_8 = arith.constant 64 : i32
    return
  }
  func.func @transform_0(%arg0: i32) -> (i32, i32, i32, i32) {
    %c0_i32 = arith.constant 0 : i32
    %c0_i32_0 = arith.constant 0 : i32
    %c0_i32_1 = arith.constant 0 : i32
    %c0_i32_2 = arith.constant 0 : i32
    return %arg0, %c0_i32, %c0_i32_0, %c0_i32_1 : i32, i32, i32, i32
  }
  func.func @transform_1(%arg0: i32) -> (i32, i32) {
    %c0_i32 = arith.constant 0 : i32
    %c0_i32_0 = arith.constant 0 : i32
    %c0_i32_1 = arith.constant 0 : i32
    return %c0_i32, %c0_i32_0 : i32, i32
  }
  func.func @transform_2(%arg0: i32) -> (i32, i32) {
    %c0_i32 = arith.constant 0 : i32
    %c0_i32_0 = arith.constant 0 : i32
    %c0_i32_1 = arith.constant 0 : i32
    return %c0_i32, %c0_i32_0 : i32, i32
  }
  func.func @transform_3(%arg0: i32) -> (i32, i32) {
    %c0_i32 = arith.constant 0 : i32
    %c0_i32_0 = arith.constant 0 : i32
    %c0_i32_1 = arith.constant 0 : i32
    return %c0_i32, %c0_i32_0 : i32, i32
  }
  func.func @transform_4(%arg0: i32) -> (i32, i32) {
    %c0_i32 = arith.constant 0 : i32
    %c0_i32_0 = arith.constant 0 : i32
    %c0_i32_1 = arith.constant 0 : i32
    return %c0_i32, %c0_i32_0 : i32, i32
  }
  func.func @transform_5(%arg0: i32) -> (i32, i32, i32, i32) {
    %c0_i32 = arith.constant 0 : i32
    %c0_i32_0 = arith.constant 0 : i32
    %c0_i32_1 = arith.constant 0 : i32
    %c0_i32_2 = arith.constant 0 : i32
    return %arg0, %c0_i32, %c0_i32_0, %c0_i32_1 : i32, i32, i32, i32
  }
}

module attributes {stable_mosaic.version = 11 : i64} {
  func.func @conv_bn_relu_pool_kernel(%arg0: i32, %arg1: memref<1x64x32x64xf32, #tpu.memory_space<vmem>>, %arg2: memref<64x288xbf16, #tpu.memory_space<vmem>>, %arg3: memref<64x1xf32, #tpu.memory_space<vmem>>, %arg4: memref<32x1xf32, #tpu.memory_space<vmem>>, %arg5: memref<32x1xf32, #tpu.memory_space<vmem>>, %arg6: memref<1x32x64x32xf32, #tpu.memory_space<vmem>>) attributes {dimension_semantics = [#tpu.dimension_semantics<parallel>], iteration_bounds = array<i64: 2>, scalar_prefetch = 0 : i64, scratch_operands = 0 : i64, tpu.core_type = #tpu.core_type<tc>, window_params = [{transform_indices = @transform_0, window_bounds = array<i64: 1, 64, 32, 64>}, {pipeline_mode = #tpu.pipeline_mode<synchronous>, transform_indices = @transform_1, window_bounds = array<i64: 64, 288>}, {pipeline_mode = #tpu.pipeline_mode<synchronous>, transform_indices = @transform_2, window_bounds = array<i64: 64, 1>}, {pipeline_mode = #tpu.pipeline_mode<synchronous>, transform_indices = @transform_3, window_bounds = array<i64: 32, 1>}, {pipeline_mode = #tpu.pipeline_mode<synchronous>, transform_indices = @transform_4, window_bounds = array<i64: 32, 1>}, {transform_indices = @transform_5, window_bounds = array<i64: 1, 32, 64, 32>}]} {
    %c0 = arith.constant 0 : index
    %c0_0 = arith.constant 0 : index
    %0 = vector.load %arg2[%c0, %c0_0] : memref<64x288xbf16, #tpu.memory_space<vmem>>, vector<64x288xbf16>
    %c0_1 = arith.constant 0 : index
    %c0_2 = arith.constant 0 : index
    %1 = vector.load %arg3[%c0_1, %c0_2] : memref<64x1xf32, #tpu.memory_space<vmem>>, vector<64x1xf32>
    %c0_3 = arith.constant 0 : index
    %c0_4 = arith.constant 0 : index
    %2 = vector.load %arg4[%c0_3, %c0_4] : memref<32x1xf32, #tpu.memory_space<vmem>>, vector<32x1xf32>
    %c0_5 = arith.constant 0 : index
    %c0_6 = arith.constant 0 : index
    %3 = vector.load %arg5[%c0_5, %c0_6] : memref<32x1xf32, #tpu.memory_space<vmem>>, vector<32x1xf32>
    %4 = tpu.iota {dimensions = array<i32: 1>} : vector<1x64xi32>
    %c0_i32 = arith.constant 0 : i32
    %5 = vector.broadcast %c0_i32 : i32 to vector<1x64xi32>
    %6 = arith.cmpi ne, %4, %5 : vector<1x64xi32>
    %c63_i32 = arith.constant 63 : i32
    %7 = vector.broadcast %c63_i32 : i32 to vector<1x64xi32>
    %8 = arith.cmpi ne, %4, %7 : vector<1x64xi32>
    %9 = tpu.iota {dimensions = array<i32: 0>} : vector<64x32xi32>
    %10 = tpu.iota {dimensions = array<i32: 1>} : vector<64x32xi32>
    %c2_i32 = arith.constant 2 : i32
    %11 = vector.broadcast %c2_i32 : i32 to vector<64x32xi32>
    %12 = arith.muli %11, %10 : vector<64x32xi32>
    %13 = arith.cmpi eq, %9, %12 : vector<64x32xi32>
    %14 = arith.extui %13 : vector<64x32xi1> to vector<64x32xi32>
    %15 = arith.sitofp %14 : vector<64x32xi32> to vector<64x32xf32>
    %16 = arith.truncf %15 : vector<64x32xf32> to vector<64x32xbf16>
    %c0_i32_7 = arith.constant 0 : i32
    %c32_i32 = arith.constant 32 : i32
    %17 = arith.addi %c0_i32_7, %c32_i32 : i32
    %c1_i32 = arith.constant 1 : i32
    scf.for %arg7 = %c0_i32_7 to %17 step %c1_i32  : i32 {
      %c2_i32_9 = arith.constant 2 : i32
      %18 = arith.muli %c2_i32_9, %arg7 : i32
      %c0_i32_10 = arith.constant 0 : i32
      %19 = arith.cmpi sgt, %arg7, %c0_i32_10 : i32
      %20 = arith.extui %19 : i1 to i32
      %21 = arith.sitofp %20 : i32 to f32
      %c31_i32 = arith.constant 31 : i32
      %22 = arith.cmpi slt, %arg7, %c31_i32 : i32
      %23 = arith.extui %22 : i1 to i32
      %24 = arith.sitofp %23 : i32 to f32
      %c1_i32_11 = arith.constant 1 : i32
      %25 = arith.subi %18, %c1_i32_11 : i32
      %c0_i32_12 = arith.constant 0 : i32
      %26 = arith.maxsi %25, %c0_i32_12 : i32
      %c0_13 = arith.constant 0 : index
      %27 = arith.index_cast %26 : i32 to index
      %c0_14 = arith.constant 0 : index
      %c0_15 = arith.constant 0 : index
      %28 = vector.load %arg1[%c0_13, %27, %c0_14, %c0_15] : memref<1x64x32x64xf32, #tpu.memory_space<vmem>>, vector<1x1x32x64xf32>
      %29 = vector.shape_cast %28 : vector<1x1x32x64xf32> to vector<32x64xf32>
      %30 = vector.broadcast %21 : f32 to vector<32x1xf32>
      %31 = arith.mulf %2, %30 : vector<32x1xf32>
      %32 = vector.broadcast %31 : vector<32x1xf32> to vector<32x64xf32>
      %33 = arith.mulf %29, %32 : vector<32x64xf32>
      %34 = vector.broadcast %21 : f32 to vector<32x1xf32>
      %35 = arith.mulf %3, %34 : vector<32x1xf32>
      %36 = vector.broadcast %35 : vector<32x1xf32> to vector<32x64xf32>
      %37 = arith.addf %33, %36 : vector<32x64xf32>
      %c0_16 = arith.constant 0 : index
      %38 = arith.index_cast %18 : i32 to index
      %c0_17 = arith.constant 0 : index
      %c0_18 = arith.constant 0 : index
      %39 = vector.load %arg1[%c0_16, %38, %c0_17, %c0_18] : memref<1x64x32x64xf32, #tpu.memory_space<vmem>>, vector<1x1x32x64xf32>
      %40 = vector.shape_cast %39 : vector<1x1x32x64xf32> to vector<32x64xf32>
      %cst = arith.constant 1.000000e+00 : f32
      %41 = vector.broadcast %cst : f32 to vector<32x1xf32>
      %42 = arith.mulf %2, %41 : vector<32x1xf32>
      %43 = vector.broadcast %42 : vector<32x1xf32> to vector<32x64xf32>
      %44 = arith.mulf %40, %43 : vector<32x64xf32>
      %cst_19 = arith.constant 1.000000e+00 : f32
      %45 = vector.broadcast %cst_19 : f32 to vector<32x1xf32>
      %46 = arith.mulf %3, %45 : vector<32x1xf32>
      %47 = vector.broadcast %46 : vector<32x1xf32> to vector<32x64xf32>
      %48 = arith.addf %44, %47 : vector<32x64xf32>
      %c1_i32_20 = arith.constant 1 : i32
      %49 = arith.addi %18, %c1_i32_20 : i32
      %c0_21 = arith.constant 0 : index
      %50 = arith.index_cast %49 : i32 to index
      %c0_22 = arith.constant 0 : index
      %c0_23 = arith.constant 0 : index
      %51 = vector.load %arg1[%c0_21, %50, %c0_22, %c0_23] : memref<1x64x32x64xf32, #tpu.memory_space<vmem>>, vector<1x1x32x64xf32>
      %52 = vector.shape_cast %51 : vector<1x1x32x64xf32> to vector<32x64xf32>
      %cst_24 = arith.constant 1.000000e+00 : f32
      %53 = vector.broadcast %cst_24 : f32 to vector<32x1xf32>
      %54 = arith.mulf %2, %53 : vector<32x1xf32>
      %55 = vector.broadcast %54 : vector<32x1xf32> to vector<32x64xf32>
      %56 = arith.mulf %52, %55 : vector<32x64xf32>
      %cst_25 = arith.constant 1.000000e+00 : f32
      %57 = vector.broadcast %cst_25 : f32 to vector<32x1xf32>
      %58 = arith.mulf %3, %57 : vector<32x1xf32>
      %59 = vector.broadcast %58 : vector<32x1xf32> to vector<32x64xf32>
      %60 = arith.addf %56, %59 : vector<32x64xf32>
      %c2_i32_26 = arith.constant 2 : i32
      %61 = arith.addi %18, %c2_i32_26 : i32
      %c63_i32_27 = arith.constant 63 : i32
      %62 = arith.minsi %61, %c63_i32_27 : i32
      %c0_28 = arith.constant 0 : index
      %63 = arith.index_cast %62 : i32 to index
      %c0_29 = arith.constant 0 : index
      %c0_30 = arith.constant 0 : index
      %64 = vector.load %arg1[%c0_28, %63, %c0_29, %c0_30] : memref<1x64x32x64xf32, #tpu.memory_space<vmem>>, vector<1x1x32x64xf32>
      %65 = vector.shape_cast %64 : vector<1x1x32x64xf32> to vector<32x64xf32>
      %66 = vector.broadcast %24 : f32 to vector<32x1xf32>
      %67 = arith.mulf %2, %66 : vector<32x1xf32>
      %68 = vector.broadcast %67 : vector<32x1xf32> to vector<32x64xf32>
      %69 = arith.mulf %65, %68 : vector<32x64xf32>
      %70 = vector.broadcast %24 : f32 to vector<32x1xf32>
      %71 = arith.mulf %3, %70 : vector<32x1xf32>
      %72 = vector.broadcast %71 : vector<32x1xf32> to vector<32x64xf32>
      %73 = arith.addf %69, %72 : vector<32x64xf32>
      %74 = tpu.concatenate %37, %48, %60 in 0 : vector<32x64xf32>, vector<32x64xf32>, vector<32x64xf32> -> vector<96x64xf32>
      %c1_i32_31 = arith.constant 1 : i32
      %75 = tpu.dynamic_rotate %74 by %c1_i32_31 dim 1 : vector<96x64xf32>, i32 -> vector<96x64xf32>
      %cst_32 = arith.constant 0.000000e+00 : f32
      %76 = vector.shape_cast %6 : vector<1x64xi1> to vector<1x64xi1>
      %77 = vector.broadcast %76 : vector<1x64xi1> to vector<96x64xi1>
      %78 = vector.broadcast %cst_32 : f32 to vector<96x64xf32>
      %79 = arith.select %77, %75, %78 : vector<96x64xi1>, vector<96x64xf32>
      %c63_i32_33 = arith.constant 63 : i32
      %80 = tpu.dynamic_rotate %74 by %c63_i32_33 dim 1 : vector<96x64xf32>, i32 -> vector<96x64xf32>
      %cst_34 = arith.constant 0.000000e+00 : f32
      %81 = vector.shape_cast %8 : vector<1x64xi1> to vector<1x64xi1>
      %82 = vector.broadcast %81 : vector<1x64xi1> to vector<96x64xi1>
      %83 = vector.broadcast %cst_34 : f32 to vector<96x64xf32>
      %84 = arith.select %82, %80, %83 : vector<96x64xi1>, vector<96x64xf32>
      %85 = tpu.concatenate %79, %74, %84 in 0 : vector<96x64xf32>, vector<96x64xf32>, vector<96x64xf32> -> vector<288x64xf32>
      %86 = arith.truncf %85 : vector<288x64xf32> to vector<288x64xbf16>
      %cst_35 = arith.constant dense<0.000000e+00> : vector<64x64xf32>
      %87 = tpu.matmul %0, %86, %cst_35 {dimension_numbers = #tpu.dot_dimension_numbers<[1], [0], [0], [1], [0, 0, 1, 1], [], []>} : vector<64x288xbf16>, vector<288x64xbf16>, vector<64x64xf32> -> vector<64x64xf32>
      %88 = tpu.concatenate %48, %60, %73 in 0 : vector<32x64xf32>, vector<32x64xf32>, vector<32x64xf32> -> vector<96x64xf32>
      %c1_i32_36 = arith.constant 1 : i32
      %89 = tpu.dynamic_rotate %88 by %c1_i32_36 dim 1 : vector<96x64xf32>, i32 -> vector<96x64xf32>
      %cst_37 = arith.constant 0.000000e+00 : f32
      %90 = vector.shape_cast %6 : vector<1x64xi1> to vector<1x64xi1>
      %91 = vector.broadcast %90 : vector<1x64xi1> to vector<96x64xi1>
      %92 = vector.broadcast %cst_37 : f32 to vector<96x64xf32>
      %93 = arith.select %91, %89, %92 : vector<96x64xi1>, vector<96x64xf32>
      %c63_i32_38 = arith.constant 63 : i32
      %94 = tpu.dynamic_rotate %88 by %c63_i32_38 dim 1 : vector<96x64xf32>, i32 -> vector<96x64xf32>
      %cst_39 = arith.constant 0.000000e+00 : f32
      %95 = vector.shape_cast %8 : vector<1x64xi1> to vector<1x64xi1>
      %96 = vector.broadcast %95 : vector<1x64xi1> to vector<96x64xi1>
      %97 = vector.broadcast %cst_39 : f32 to vector<96x64xf32>
      %98 = arith.select %96, %94, %97 : vector<96x64xi1>, vector<96x64xf32>
      %99 = tpu.concatenate %93, %88, %98 in 0 : vector<96x64xf32>, vector<96x64xf32>, vector<96x64xf32> -> vector<288x64xf32>
      %100 = arith.truncf %99 : vector<288x64xf32> to vector<288x64xbf16>
      %cst_40 = arith.constant dense<0.000000e+00> : vector<64x64xf32>
      %101 = tpu.matmul %0, %100, %cst_40 {dimension_numbers = #tpu.dot_dimension_numbers<[1], [0], [0], [1], [0, 0, 1, 1], [], []>} : vector<64x288xbf16>, vector<288x64xbf16>, vector<64x64xf32> -> vector<64x64xf32>
      %102 = arith.maximumf %87, %101 : vector<64x64xf32>
      %103 = vector.broadcast %1 : vector<64x1xf32> to vector<64x64xf32>
      %104 = arith.addf %102, %103 : vector<64x64xf32>
      %cst_41 = arith.constant 0.000000e+00 : f32
      %105 = vector.broadcast %cst_41 : f32 to vector<64x64xf32>
      %106 = arith.maximumf %104, %105 : vector<64x64xf32>
      %c63_i32_42 = arith.constant 63 : i32
      %107 = tpu.dynamic_rotate %106 by %c63_i32_42 dim 1 : vector<64x64xf32>, i32 -> vector<64x64xf32>
      %108 = arith.maximumf %106, %107 : vector<64x64xf32>
      %109 = arith.truncf %108 : vector<64x64xf32> to vector<64x64xbf16>
      %cst_43 = arith.constant dense<0.000000e+00> : vector<64x32xf32>
      %110 = tpu.matmul %109, %16, %cst_43 {dimension_numbers = #tpu.dot_dimension_numbers<[1], [0], [0], [1], [0, 0, 1, 1], [], []>} : vector<64x64xbf16>, vector<64x32xbf16>, vector<64x32xf32> -> vector<64x32xf32>
      %c0_44 = arith.constant 0 : index
      %111 = arith.index_cast %arg7 : i32 to index
      %c0_45 = arith.constant 0 : index
      %c0_46 = arith.constant 0 : index
      %112 = vector.load %arg6[%c0_44, %111, %c0_45, %c0_46] : memref<1x32x64x32xf32, #tpu.memory_space<vmem>>, vector<1x1x64x32xf32>
      %113 = vector.shape_cast %112 : vector<1x1x64x32xf32> to vector<64x32xf32>
      %114 = vector.shape_cast %110 : vector<64x32xf32> to vector<1x1x64x32xf32>
      tpu.vector_store %arg6[%c0_44, %111, %c0_45, %c0_46], %114 {strides = array<i32>} : memref<1x32x64x32xf32, #tpu.memory_space<vmem>>, vector<1x1x64x32xf32>,
    }
    %c32_i32_8 = arith.constant 32 : i32
    return
  }
  func.func @transform_0(%arg0: i32) -> (i32, i32, i32, i32) {
    %c0_i32 = arith.constant 0 : i32
    %c0_i32_0 = arith.constant 0 : i32
    %c0_i32_1 = arith.constant 0 : i32
    %c0_i32_2 = arith.constant 0 : i32
    return %arg0, %c0_i32, %c0_i32_0, %c0_i32_1 : i32, i32, i32, i32
  }
  func.func @transform_1(%arg0: i32) -> (i32, i32) {
    %c0_i32 = arith.constant 0 : i32
    %c0_i32_0 = arith.constant 0 : i32
    %c0_i32_1 = arith.constant 0 : i32
    return %c0_i32, %c0_i32_0 : i32, i32
  }
  func.func @transform_2(%arg0: i32) -> (i32, i32) {
    %c0_i32 = arith.constant 0 : i32
    %c0_i32_0 = arith.constant 0 : i32
    %c0_i32_1 = arith.constant 0 : i32
    return %c0_i32, %c0_i32_0 : i32, i32
  }
  func.func @transform_3(%arg0: i32) -> (i32, i32) {
    %c0_i32 = arith.constant 0 : i32
    %c0_i32_0 = arith.constant 0 : i32
    %c0_i32_1 = arith.constant 0 : i32
    return %c0_i32, %c0_i32_0 : i32, i32
  }
  func.func @transform_4(%arg0: i32) -> (i32, i32) {
    %c0_i32 = arith.constant 0 : i32
    %c0_i32_0 = arith.constant 0 : i32
    %c0_i32_1 = arith.constant 0 : i32
    return %c0_i32, %c0_i32_0 : i32, i32
  }
  func.func @transform_5(%arg0: i32) -> (i32, i32, i32, i32) {
    %c0_i32 = arith.constant 0 : i32
    %c0_i32_0 = arith.constant 0 : i32
    %c0_i32_1 = arith.constant 0 : i32
    %c0_i32_2 = arith.constant 0 : i32
    return %arg0, %c0_i32, %c0_i32_0, %c0_i32_1 : i32, i32, i32, i32
  }
}

module attributes {stable_mosaic.version = 11 : i64} {
  func.func @conv_bn_relu_pool_kernel(%arg0: i32, %arg1: memref<1x32x64x32xf32, #tpu.memory_space<vmem>>, %arg2: memref<64x576xbf16, #tpu.memory_space<vmem>>, %arg3: memref<64x1xf32, #tpu.memory_space<vmem>>, %arg4: memref<64x1xf32, #tpu.memory_space<vmem>>, %arg5: memref<64x1xf32, #tpu.memory_space<vmem>>, %arg6: memref<1x16x64x16xf32, #tpu.memory_space<vmem>>) attributes {dimension_semantics = [#tpu.dimension_semantics<parallel>], iteration_bounds = array<i64: 2>, scalar_prefetch = 0 : i64, scratch_operands = 0 : i64, tpu.core_type = #tpu.core_type<tc>, window_params = [{transform_indices = @transform_0, window_bounds = array<i64: 1, 32, 64, 32>}, {pipeline_mode = #tpu.pipeline_mode<synchronous>, transform_indices = @transform_1, window_bounds = array<i64: 64, 576>}, {pipeline_mode = #tpu.pipeline_mode<synchronous>, transform_indices = @transform_2, window_bounds = array<i64: 64, 1>}, {pipeline_mode = #tpu.pipeline_mode<synchronous>, transform_indices = @transform_3, window_bounds = array<i64: 64, 1>}, {pipeline_mode = #tpu.pipeline_mode<synchronous>, transform_indices = @transform_4, window_bounds = array<i64: 64, 1>}, {transform_indices = @transform_5, window_bounds = array<i64: 1, 16, 64, 16>}]} {
    %c0 = arith.constant 0 : index
    %c0_0 = arith.constant 0 : index
    %0 = vector.load %arg2[%c0, %c0_0] : memref<64x576xbf16, #tpu.memory_space<vmem>>, vector<64x576xbf16>
    %c0_1 = arith.constant 0 : index
    %c0_2 = arith.constant 0 : index
    %1 = vector.load %arg3[%c0_1, %c0_2] : memref<64x1xf32, #tpu.memory_space<vmem>>, vector<64x1xf32>
    %c0_3 = arith.constant 0 : index
    %c0_4 = arith.constant 0 : index
    %2 = vector.load %arg4[%c0_3, %c0_4] : memref<64x1xf32, #tpu.memory_space<vmem>>, vector<64x1xf32>
    %c0_5 = arith.constant 0 : index
    %c0_6 = arith.constant 0 : index
    %3 = vector.load %arg5[%c0_5, %c0_6] : memref<64x1xf32, #tpu.memory_space<vmem>>, vector<64x1xf32>
    %4 = tpu.iota {dimensions = array<i32: 1>} : vector<1x32xi32>
    %c0_i32 = arith.constant 0 : i32
    %5 = vector.broadcast %c0_i32 : i32 to vector<1x32xi32>
    %6 = arith.cmpi ne, %4, %5 : vector<1x32xi32>
    %c31_i32 = arith.constant 31 : i32
    %7 = vector.broadcast %c31_i32 : i32 to vector<1x32xi32>
    %8 = arith.cmpi ne, %4, %7 : vector<1x32xi32>
    %9 = tpu.iota {dimensions = array<i32: 0>} : vector<32x16xi32>
    %10 = tpu.iota {dimensions = array<i32: 1>} : vector<32x16xi32>
    %c2_i32 = arith.constant 2 : i32
    %11 = vector.broadcast %c2_i32 : i32 to vector<32x16xi32>
    %12 = arith.muli %11, %10 : vector<32x16xi32>
    %13 = arith.cmpi eq, %9, %12 : vector<32x16xi32>
    %14 = arith.extui %13 : vector<32x16xi1> to vector<32x16xi32>
    %15 = arith.sitofp %14 : vector<32x16xi32> to vector<32x16xf32>
    %16 = arith.truncf %15 : vector<32x16xf32> to vector<32x16xbf16>
    %c0_i32_7 = arith.constant 0 : i32
    %c16_i32 = arith.constant 16 : i32
    %17 = arith.addi %c0_i32_7, %c16_i32 : i32
    %c1_i32 = arith.constant 1 : i32
    scf.for %arg7 = %c0_i32_7 to %17 step %c1_i32  : i32 {
      %c2_i32_9 = arith.constant 2 : i32
      %18 = arith.muli %c2_i32_9, %arg7 : i32
      %c0_i32_10 = arith.constant 0 : i32
      %19 = arith.cmpi sgt, %arg7, %c0_i32_10 : i32
      %20 = arith.extui %19 : i1 to i32
      %21 = arith.sitofp %20 : i32 to f32
      %c15_i32 = arith.constant 15 : i32
      %22 = arith.cmpi slt, %arg7, %c15_i32 : i32
      %23 = arith.extui %22 : i1 to i32
      %24 = arith.sitofp %23 : i32 to f32
      %c1_i32_11 = arith.constant 1 : i32
      %25 = arith.subi %18, %c1_i32_11 : i32
      %c0_i32_12 = arith.constant 0 : i32
      %26 = arith.maxsi %25, %c0_i32_12 : i32
      %c0_13 = arith.constant 0 : index
      %27 = arith.index_cast %26 : i32 to index
      %c0_14 = arith.constant 0 : index
      %c0_15 = arith.constant 0 : index
      %28 = vector.load %arg1[%c0_13, %27, %c0_14, %c0_15] : memref<1x32x64x32xf32, #tpu.memory_space<vmem>>, vector<1x1x64x32xf32>
      %29 = vector.shape_cast %28 : vector<1x1x64x32xf32> to vector<64x32xf32>
      %30 = vector.broadcast %21 : f32 to vector<64x1xf32>
      %31 = arith.mulf %2, %30 : vector<64x1xf32>
      %32 = vector.broadcast %31 : vector<64x1xf32> to vector<64x32xf32>
      %33 = arith.mulf %29, %32 : vector<64x32xf32>
      %34 = vector.broadcast %21 : f32 to vector<64x1xf32>
      %35 = arith.mulf %3, %34 : vector<64x1xf32>
      %36 = vector.broadcast %35 : vector<64x1xf32> to vector<64x32xf32>
      %37 = arith.addf %33, %36 : vector<64x32xf32>
      %c0_16 = arith.constant 0 : index
      %38 = arith.index_cast %18 : i32 to index
      %c0_17 = arith.constant 0 : index
      %c0_18 = arith.constant 0 : index
      %39 = vector.load %arg1[%c0_16, %38, %c0_17, %c0_18] : memref<1x32x64x32xf32, #tpu.memory_space<vmem>>, vector<1x1x64x32xf32>
      %40 = vector.shape_cast %39 : vector<1x1x64x32xf32> to vector<64x32xf32>
      %cst = arith.constant 1.000000e+00 : f32
      %41 = vector.broadcast %cst : f32 to vector<64x1xf32>
      %42 = arith.mulf %2, %41 : vector<64x1xf32>
      %43 = vector.broadcast %42 : vector<64x1xf32> to vector<64x32xf32>
      %44 = arith.mulf %40, %43 : vector<64x32xf32>
      %cst_19 = arith.constant 1.000000e+00 : f32
      %45 = vector.broadcast %cst_19 : f32 to vector<64x1xf32>
      %46 = arith.mulf %3, %45 : vector<64x1xf32>
      %47 = vector.broadcast %46 : vector<64x1xf32> to vector<64x32xf32>
      %48 = arith.addf %44, %47 : vector<64x32xf32>
      %c1_i32_20 = arith.constant 1 : i32
      %49 = arith.addi %18, %c1_i32_20 : i32
      %c0_21 = arith.constant 0 : index
      %50 = arith.index_cast %49 : i32 to index
      %c0_22 = arith.constant 0 : index
      %c0_23 = arith.constant 0 : index
      %51 = vector.load %arg1[%c0_21, %50, %c0_22, %c0_23] : memref<1x32x64x32xf32, #tpu.memory_space<vmem>>, vector<1x1x64x32xf32>
      %52 = vector.shape_cast %51 : vector<1x1x64x32xf32> to vector<64x32xf32>
      %cst_24 = arith.constant 1.000000e+00 : f32
      %53 = vector.broadcast %cst_24 : f32 to vector<64x1xf32>
      %54 = arith.mulf %2, %53 : vector<64x1xf32>
      %55 = vector.broadcast %54 : vector<64x1xf32> to vector<64x32xf32>
      %56 = arith.mulf %52, %55 : vector<64x32xf32>
      %cst_25 = arith.constant 1.000000e+00 : f32
      %57 = vector.broadcast %cst_25 : f32 to vector<64x1xf32>
      %58 = arith.mulf %3, %57 : vector<64x1xf32>
      %59 = vector.broadcast %58 : vector<64x1xf32> to vector<64x32xf32>
      %60 = arith.addf %56, %59 : vector<64x32xf32>
      %c2_i32_26 = arith.constant 2 : i32
      %61 = arith.addi %18, %c2_i32_26 : i32
      %c31_i32_27 = arith.constant 31 : i32
      %62 = arith.minsi %61, %c31_i32_27 : i32
      %c0_28 = arith.constant 0 : index
      %63 = arith.index_cast %62 : i32 to index
      %c0_29 = arith.constant 0 : index
      %c0_30 = arith.constant 0 : index
      %64 = vector.load %arg1[%c0_28, %63, %c0_29, %c0_30] : memref<1x32x64x32xf32, #tpu.memory_space<vmem>>, vector<1x1x64x32xf32>
      %65 = vector.shape_cast %64 : vector<1x1x64x32xf32> to vector<64x32xf32>
      %66 = vector.broadcast %24 : f32 to vector<64x1xf32>
      %67 = arith.mulf %2, %66 : vector<64x1xf32>
      %68 = vector.broadcast %67 : vector<64x1xf32> to vector<64x32xf32>
      %69 = arith.mulf %65, %68 : vector<64x32xf32>
      %70 = vector.broadcast %24 : f32 to vector<64x1xf32>
      %71 = arith.mulf %3, %70 : vector<64x1xf32>
      %72 = vector.broadcast %71 : vector<64x1xf32> to vector<64x32xf32>
      %73 = arith.addf %69, %72 : vector<64x32xf32>
      %74 = tpu.concatenate %37, %48, %60 in 0 : vector<64x32xf32>, vector<64x32xf32>, vector<64x32xf32> -> vector<192x32xf32>
      %c1_i32_31 = arith.constant 1 : i32
      %75 = tpu.dynamic_rotate %74 by %c1_i32_31 dim 1 : vector<192x32xf32>, i32 -> vector<192x32xf32>
      %cst_32 = arith.constant 0.000000e+00 : f32
      %76 = vector.shape_cast %6 : vector<1x32xi1> to vector<1x32xi1>
      %77 = vector.broadcast %76 : vector<1x32xi1> to vector<192x32xi1>
      %78 = vector.broadcast %cst_32 : f32 to vector<192x32xf32>
      %79 = arith.select %77, %75, %78 : vector<192x32xi1>, vector<192x32xf32>
      %c31_i32_33 = arith.constant 31 : i32
      %80 = tpu.dynamic_rotate %74 by %c31_i32_33 dim 1 : vector<192x32xf32>, i32 -> vector<192x32xf32>
      %cst_34 = arith.constant 0.000000e+00 : f32
      %81 = vector.shape_cast %8 : vector<1x32xi1> to vector<1x32xi1>
      %82 = vector.broadcast %81 : vector<1x32xi1> to vector<192x32xi1>
      %83 = vector.broadcast %cst_34 : f32 to vector<192x32xf32>
      %84 = arith.select %82, %80, %83 : vector<192x32xi1>, vector<192x32xf32>
      %85 = tpu.concatenate %79, %74, %84 in 0 : vector<192x32xf32>, vector<192x32xf32>, vector<192x32xf32> -> vector<576x32xf32>
      %86 = arith.truncf %85 : vector<576x32xf32> to vector<576x32xbf16>
      %cst_35 = arith.constant dense<0.000000e+00> : vector<64x32xf32>
      %87 = tpu.matmul %0, %86, %cst_35 {dimension_numbers = #tpu.dot_dimension_numbers<[1], [0], [0], [1], [0, 0, 1, 1], [], []>} : vector<64x576xbf16>, vector<576x32xbf16>, vector<64x32xf32> -> vector<64x32xf32>
      %88 = tpu.concatenate %48, %60, %73 in 0 : vector<64x32xf32>, vector<64x32xf32>, vector<64x32xf32> -> vector<192x32xf32>
      %c1_i32_36 = arith.constant 1 : i32
      %89 = tpu.dynamic_rotate %88 by %c1_i32_36 dim 1 : vector<192x32xf32>, i32 -> vector<192x32xf32>
      %cst_37 = arith.constant 0.000000e+00 : f32
      %90 = vector.shape_cast %6 : vector<1x32xi1> to vector<1x32xi1>
      %91 = vector.broadcast %90 : vector<1x32xi1> to vector<192x32xi1>
      %92 = vector.broadcast %cst_37 : f32 to vector<192x32xf32>
      %93 = arith.select %91, %89, %92 : vector<192x32xi1>, vector<192x32xf32>
      %c31_i32_38 = arith.constant 31 : i32
      %94 = tpu.dynamic_rotate %88 by %c31_i32_38 dim 1 : vector<192x32xf32>, i32 -> vector<192x32xf32>
      %cst_39 = arith.constant 0.000000e+00 : f32
      %95 = vector.shape_cast %8 : vector<1x32xi1> to vector<1x32xi1>
      %96 = vector.broadcast %95 : vector<1x32xi1> to vector<192x32xi1>
      %97 = vector.broadcast %cst_39 : f32 to vector<192x32xf32>
      %98 = arith.select %96, %94, %97 : vector<192x32xi1>, vector<192x32xf32>
      %99 = tpu.concatenate %93, %88, %98 in 0 : vector<192x32xf32>, vector<192x32xf32>, vector<192x32xf32> -> vector<576x32xf32>
      %100 = arith.truncf %99 : vector<576x32xf32> to vector<576x32xbf16>
      %cst_40 = arith.constant dense<0.000000e+00> : vector<64x32xf32>
      %101 = tpu.matmul %0, %100, %cst_40 {dimension_numbers = #tpu.dot_dimension_numbers<[1], [0], [0], [1], [0, 0, 1, 1], [], []>} : vector<64x576xbf16>, vector<576x32xbf16>, vector<64x32xf32> -> vector<64x32xf32>
      %102 = arith.maximumf %87, %101 : vector<64x32xf32>
      %103 = vector.broadcast %1 : vector<64x1xf32> to vector<64x32xf32>
      %104 = arith.addf %102, %103 : vector<64x32xf32>
      %cst_41 = arith.constant 0.000000e+00 : f32
      %105 = vector.broadcast %cst_41 : f32 to vector<64x32xf32>
      %106 = arith.maximumf %104, %105 : vector<64x32xf32>
      %c31_i32_42 = arith.constant 31 : i32
      %107 = tpu.dynamic_rotate %106 by %c31_i32_42 dim 1 : vector<64x32xf32>, i32 -> vector<64x32xf32>
      %108 = arith.maximumf %106, %107 : vector<64x32xf32>
      %109 = arith.truncf %108 : vector<64x32xf32> to vector<64x32xbf16>
      %cst_43 = arith.constant dense<0.000000e+00> : vector<64x16xf32>
      %110 = tpu.matmul %109, %16, %cst_43 {dimension_numbers = #tpu.dot_dimension_numbers<[1], [0], [0], [1], [0, 0, 1, 1], [], []>} : vector<64x32xbf16>, vector<32x16xbf16>, vector<64x16xf32> -> vector<64x16xf32>
      %c0_44 = arith.constant 0 : index
      %111 = arith.index_cast %arg7 : i32 to index
      %c0_45 = arith.constant 0 : index
      %c0_46 = arith.constant 0 : index
      %112 = vector.load %arg6[%c0_44, %111, %c0_45, %c0_46] : memref<1x16x64x16xf32, #tpu.memory_space<vmem>>, vector<1x1x64x16xf32>
      %113 = vector.shape_cast %112 : vector<1x1x64x16xf32> to vector<64x16xf32>
      %114 = vector.shape_cast %110 : vector<64x16xf32> to vector<1x1x64x16xf32>
      tpu.vector_store %arg6[%c0_44, %111, %c0_45, %c0_46], %114 {strides = array<i32>} : memref<1x16x64x16xf32, #tpu.memory_space<vmem>>, vector<1x1x64x16xf32>,
    }
    %c16_i32_8 = arith.constant 16 : i32
    return
  }
  func.func @transform_0(%arg0: i32) -> (i32, i32, i32, i32) {
    %c0_i32 = arith.constant 0 : i32
    %c0_i32_0 = arith.constant 0 : i32
    %c0_i32_1 = arith.constant 0 : i32
    %c0_i32_2 = arith.constant 0 : i32
    return %arg0, %c0_i32, %c0_i32_0, %c0_i32_1 : i32, i32, i32, i32
  }
  func.func @transform_1(%arg0: i32) -> (i32, i32) {
    %c0_i32 = arith.constant 0 : i32
    %c0_i32_0 = arith.constant 0 : i32
    %c0_i32_1 = arith.constant 0 : i32
    return %c0_i32, %c0_i32_0 : i32, i32
  }
  func.func @transform_2(%arg0: i32) -> (i32, i32) {
    %c0_i32 = arith.constant 0 : i32
    %c0_i32_0 = arith.constant 0 : i32
    %c0_i32_1 = arith.constant 0 : i32
    return %c0_i32, %c0_i32_0 : i32, i32
  }
  func.func @transform_3(%arg0: i32) -> (i32, i32) {
    %c0_i32 = arith.constant 0 : i32
    %c0_i32_0 = arith.constant 0 : i32
    %c0_i32_1 = arith.constant 0 : i32
    return %c0_i32, %c0_i32_0 : i32, i32
  }
  func.func @transform_4(%arg0: i32) -> (i32, i32) {
    %c0_i32 = arith.constant 0 : i32
    %c0_i32_0 = arith.constant 0 : i32
    %c0_i32_1 = arith.constant 0 : i32
    return %c0_i32, %c0_i32_0 : i32, i32
  }
  func.func @transform_5(%arg0: i32) -> (i32, i32, i32, i32) {
    %c0_i32 = arith.constant 0 : i32
    %c0_i32_0 = arith.constant 0 : i32
    %c0_i32_1 = arith.constant 0 : i32
    %c0_i32_2 = arith.constant 0 : i32
    return %arg0, %c0_i32, %c0_i32_0, %c0_i32_1 : i32, i32, i32, i32
  }
}

module attributes {stable_mosaic.version = 11 : i64} {
  func.func @conv_bn_relu_pool_kernel(%arg0: i32, %arg1: memref<1x16x64x16xf32, #tpu.memory_space<vmem>>, %arg2: memref<64x576xbf16, #tpu.memory_space<vmem>>, %arg3: memref<64x1xf32, #tpu.memory_space<vmem>>, %arg4: memref<64x1xf32, #tpu.memory_space<vmem>>, %arg5: memref<64x1xf32, #tpu.memory_space<vmem>>, %arg6: memref<1x8x64x8xf32, #tpu.memory_space<vmem>>) attributes {dimension_semantics = [#tpu.dimension_semantics<parallel>], iteration_bounds = array<i64: 2>, scalar_prefetch = 0 : i64, scratch_operands = 0 : i64, tpu.core_type = #tpu.core_type<tc>, window_params = [{transform_indices = @transform_0, window_bounds = array<i64: 1, 16, 64, 16>}, {pipeline_mode = #tpu.pipeline_mode<synchronous>, transform_indices = @transform_1, window_bounds = array<i64: 64, 576>}, {pipeline_mode = #tpu.pipeline_mode<synchronous>, transform_indices = @transform_2, window_bounds = array<i64: 64, 1>}, {pipeline_mode = #tpu.pipeline_mode<synchronous>, transform_indices = @transform_3, window_bounds = array<i64: 64, 1>}, {pipeline_mode = #tpu.pipeline_mode<synchronous>, transform_indices = @transform_4, window_bounds = array<i64: 64, 1>}, {transform_indices = @transform_5, window_bounds = array<i64: 1, 8, 64, 8>}]} {
    %c0 = arith.constant 0 : index
    %c0_0 = arith.constant 0 : index
    %0 = vector.load %arg2[%c0, %c0_0] : memref<64x576xbf16, #tpu.memory_space<vmem>>, vector<64x576xbf16>
    %c0_1 = arith.constant 0 : index
    %c0_2 = arith.constant 0 : index
    %1 = vector.load %arg3[%c0_1, %c0_2] : memref<64x1xf32, #tpu.memory_space<vmem>>, vector<64x1xf32>
    %c0_3 = arith.constant 0 : index
    %c0_4 = arith.constant 0 : index
    %2 = vector.load %arg4[%c0_3, %c0_4] : memref<64x1xf32, #tpu.memory_space<vmem>>, vector<64x1xf32>
    %c0_5 = arith.constant 0 : index
    %c0_6 = arith.constant 0 : index
    %3 = vector.load %arg5[%c0_5, %c0_6] : memref<64x1xf32, #tpu.memory_space<vmem>>, vector<64x1xf32>
    %4 = tpu.iota {dimensions = array<i32: 1>} : vector<1x16xi32>
    %c0_i32 = arith.constant 0 : i32
    %5 = vector.broadcast %c0_i32 : i32 to vector<1x16xi32>
    %6 = arith.cmpi ne, %4, %5 : vector<1x16xi32>
    %c15_i32 = arith.constant 15 : i32
    %7 = vector.broadcast %c15_i32 : i32 to vector<1x16xi32>
    %8 = arith.cmpi ne, %4, %7 : vector<1x16xi32>
    %9 = tpu.iota {dimensions = array<i32: 0>} : vector<16x8xi32>
    %10 = tpu.iota {dimensions = array<i32: 1>} : vector<16x8xi32>
    %c2_i32 = arith.constant 2 : i32
    %11 = vector.broadcast %c2_i32 : i32 to vector<16x8xi32>
    %12 = arith.muli %11, %10 : vector<16x8xi32>
    %13 = arith.cmpi eq, %9, %12 : vector<16x8xi32>
    %14 = arith.extui %13 : vector<16x8xi1> to vector<16x8xi32>
    %15 = arith.sitofp %14 : vector<16x8xi32> to vector<16x8xf32>
    %16 = arith.truncf %15 : vector<16x8xf32> to vector<16x8xbf16>
    %c0_i32_7 = arith.constant 0 : i32
    %c8_i32 = arith.constant 8 : i32
    %17 = arith.addi %c0_i32_7, %c8_i32 : i32
    %c1_i32 = arith.constant 1 : i32
    scf.for %arg7 = %c0_i32_7 to %17 step %c1_i32  : i32 {
      %c2_i32_9 = arith.constant 2 : i32
      %18 = arith.muli %c2_i32_9, %arg7 : i32
      %c0_i32_10 = arith.constant 0 : i32
      %19 = arith.cmpi sgt, %arg7, %c0_i32_10 : i32
      %20 = arith.extui %19 : i1 to i32
      %21 = arith.sitofp %20 : i32 to f32
      %c7_i32 = arith.constant 7 : i32
      %22 = arith.cmpi slt, %arg7, %c7_i32 : i32
      %23 = arith.extui %22 : i1 to i32
      %24 = arith.sitofp %23 : i32 to f32
      %c1_i32_11 = arith.constant 1 : i32
      %25 = arith.subi %18, %c1_i32_11 : i32
      %c0_i32_12 = arith.constant 0 : i32
      %26 = arith.maxsi %25, %c0_i32_12 : i32
      %c0_13 = arith.constant 0 : index
      %27 = arith.index_cast %26 : i32 to index
      %c0_14 = arith.constant 0 : index
      %c0_15 = arith.constant 0 : index
      %28 = vector.load %arg1[%c0_13, %27, %c0_14, %c0_15] : memref<1x16x64x16xf32, #tpu.memory_space<vmem>>, vector<1x1x64x16xf32>
      %29 = vector.shape_cast %28 : vector<1x1x64x16xf32> to vector<64x16xf32>
      %30 = vector.broadcast %21 : f32 to vector<64x1xf32>
      %31 = arith.mulf %2, %30 : vector<64x1xf32>
      %32 = vector.broadcast %31 : vector<64x1xf32> to vector<64x16xf32>
      %33 = arith.mulf %29, %32 : vector<64x16xf32>
      %34 = vector.broadcast %21 : f32 to vector<64x1xf32>
      %35 = arith.mulf %3, %34 : vector<64x1xf32>
      %36 = vector.broadcast %35 : vector<64x1xf32> to vector<64x16xf32>
      %37 = arith.addf %33, %36 : vector<64x16xf32>
      %c0_16 = arith.constant 0 : index
      %38 = arith.index_cast %18 : i32 to index
      %c0_17 = arith.constant 0 : index
      %c0_18 = arith.constant 0 : index
      %39 = vector.load %arg1[%c0_16, %38, %c0_17, %c0_18] : memref<1x16x64x16xf32, #tpu.memory_space<vmem>>, vector<1x1x64x16xf32>
      %40 = vector.shape_cast %39 : vector<1x1x64x16xf32> to vector<64x16xf32>
      %cst = arith.constant 1.000000e+00 : f32
      %41 = vector.broadcast %cst : f32 to vector<64x1xf32>
      %42 = arith.mulf %2, %41 : vector<64x1xf32>
      %43 = vector.broadcast %42 : vector<64x1xf32> to vector<64x16xf32>
      %44 = arith.mulf %40, %43 : vector<64x16xf32>
      %cst_19 = arith.constant 1.000000e+00 : f32
      %45 = vector.broadcast %cst_19 : f32 to vector<64x1xf32>
      %46 = arith.mulf %3, %45 : vector<64x1xf32>
      %47 = vector.broadcast %46 : vector<64x1xf32> to vector<64x16xf32>
      %48 = arith.addf %44, %47 : vector<64x16xf32>
      %c1_i32_20 = arith.constant 1 : i32
      %49 = arith.addi %18, %c1_i32_20 : i32
      %c0_21 = arith.constant 0 : index
      %50 = arith.index_cast %49 : i32 to index
      %c0_22 = arith.constant 0 : index
      %c0_23 = arith.constant 0 : index
      %51 = vector.load %arg1[%c0_21, %50, %c0_22, %c0_23] : memref<1x16x64x16xf32, #tpu.memory_space<vmem>>, vector<1x1x64x16xf32>
      %52 = vector.shape_cast %51 : vector<1x1x64x16xf32> to vector<64x16xf32>
      %cst_24 = arith.constant 1.000000e+00 : f32
      %53 = vector.broadcast %cst_24 : f32 to vector<64x1xf32>
      %54 = arith.mulf %2, %53 : vector<64x1xf32>
      %55 = vector.broadcast %54 : vector<64x1xf32> to vector<64x16xf32>
      %56 = arith.mulf %52, %55 : vector<64x16xf32>
      %cst_25 = arith.constant 1.000000e+00 : f32
      %57 = vector.broadcast %cst_25 : f32 to vector<64x1xf32>
      %58 = arith.mulf %3, %57 : vector<64x1xf32>
      %59 = vector.broadcast %58 : vector<64x1xf32> to vector<64x16xf32>
      %60 = arith.addf %56, %59 : vector<64x16xf32>
      %c2_i32_26 = arith.constant 2 : i32
      %61 = arith.addi %18, %c2_i32_26 : i32
      %c15_i32_27 = arith.constant 15 : i32
      %62 = arith.minsi %61, %c15_i32_27 : i32
      %c0_28 = arith.constant 0 : index
      %63 = arith.index_cast %62 : i32 to index
      %c0_29 = arith.constant 0 : index
      %c0_30 = arith.constant 0 : index
      %64 = vector.load %arg1[%c0_28, %63, %c0_29, %c0_30] : memref<1x16x64x16xf32, #tpu.memory_space<vmem>>, vector<1x1x64x16xf32>
      %65 = vector.shape_cast %64 : vector<1x1x64x16xf32> to vector<64x16xf32>
      %66 = vector.broadcast %24 : f32 to vector<64x1xf32>
      %67 = arith.mulf %2, %66 : vector<64x1xf32>
      %68 = vector.broadcast %67 : vector<64x1xf32> to vector<64x16xf32>
      %69 = arith.mulf %65, %68 : vector<64x16xf32>
      %70 = vector.broadcast %24 : f32 to vector<64x1xf32>
      %71 = arith.mulf %3, %70 : vector<64x1xf32>
      %72 = vector.broadcast %71 : vector<64x1xf32> to vector<64x16xf32>
      %73 = arith.addf %69, %72 : vector<64x16xf32>
      %74 = tpu.concatenate %37, %48, %60 in 0 : vector<64x16xf32>, vector<64x16xf32>, vector<64x16xf32> -> vector<192x16xf32>
      %c1_i32_31 = arith.constant 1 : i32
      %75 = tpu.dynamic_rotate %74 by %c1_i32_31 dim 1 : vector<192x16xf32>, i32 -> vector<192x16xf32>
      %cst_32 = arith.constant 0.000000e+00 : f32
      %76 = vector.shape_cast %6 : vector<1x16xi1> to vector<1x16xi1>
      %77 = vector.broadcast %76 : vector<1x16xi1> to vector<192x16xi1>
      %78 = vector.broadcast %cst_32 : f32 to vector<192x16xf32>
      %79 = arith.select %77, %75, %78 : vector<192x16xi1>, vector<192x16xf32>
      %c15_i32_33 = arith.constant 15 : i32
      %80 = tpu.dynamic_rotate %74 by %c15_i32_33 dim 1 : vector<192x16xf32>, i32 -> vector<192x16xf32>
      %cst_34 = arith.constant 0.000000e+00 : f32
      %81 = vector.shape_cast %8 : vector<1x16xi1> to vector<1x16xi1>
      %82 = vector.broadcast %81 : vector<1x16xi1> to vector<192x16xi1>
      %83 = vector.broadcast %cst_34 : f32 to vector<192x16xf32>
      %84 = arith.select %82, %80, %83 : vector<192x16xi1>, vector<192x16xf32>
      %85 = tpu.concatenate %79, %74, %84 in 0 : vector<192x16xf32>, vector<192x16xf32>, vector<192x16xf32> -> vector<576x16xf32>
      %86 = arith.truncf %85 : vector<576x16xf32> to vector<576x16xbf16>
      %cst_35 = arith.constant dense<0.000000e+00> : vector<64x16xf32>
      %87 = tpu.matmul %0, %86, %cst_35 {dimension_numbers = #tpu.dot_dimension_numbers<[1], [0], [0], [1], [0, 0, 1, 1], [], []>} : vector<64x576xbf16>, vector<576x16xbf16>, vector<64x16xf32> -> vector<64x16xf32>
      %88 = tpu.concatenate %48, %60, %73 in 0 : vector<64x16xf32>, vector<64x16xf32>, vector<64x16xf32> -> vector<192x16xf32>
      %c1_i32_36 = arith.constant 1 : i32
      %89 = tpu.dynamic_rotate %88 by %c1_i32_36 dim 1 : vector<192x16xf32>, i32 -> vector<192x16xf32>
      %cst_37 = arith.constant 0.000000e+00 : f32
      %90 = vector.shape_cast %6 : vector<1x16xi1> to vector<1x16xi1>
      %91 = vector.broadcast %90 : vector<1x16xi1> to vector<192x16xi1>
      %92 = vector.broadcast %cst_37 : f32 to vector<192x16xf32>
      %93 = arith.select %91, %89, %92 : vector<192x16xi1>, vector<192x16xf32>
      %c15_i32_38 = arith.constant 15 : i32
      %94 = tpu.dynamic_rotate %88 by %c15_i32_38 dim 1 : vector<192x16xf32>, i32 -> vector<192x16xf32>
      %cst_39 = arith.constant 0.000000e+00 : f32
      %95 = vector.shape_cast %8 : vector<1x16xi1> to vector<1x16xi1>
      %96 = vector.broadcast %95 : vector<1x16xi1> to vector<192x16xi1>
      %97 = vector.broadcast %cst_39 : f32 to vector<192x16xf32>
      %98 = arith.select %96, %94, %97 : vector<192x16xi1>, vector<192x16xf32>
      %99 = tpu.concatenate %93, %88, %98 in 0 : vector<192x16xf32>, vector<192x16xf32>, vector<192x16xf32> -> vector<576x16xf32>
      %100 = arith.truncf %99 : vector<576x16xf32> to vector<576x16xbf16>
      %cst_40 = arith.constant dense<0.000000e+00> : vector<64x16xf32>
      %101 = tpu.matmul %0, %100, %cst_40 {dimension_numbers = #tpu.dot_dimension_numbers<[1], [0], [0], [1], [0, 0, 1, 1], [], []>} : vector<64x576xbf16>, vector<576x16xbf16>, vector<64x16xf32> -> vector<64x16xf32>
      %102 = arith.maximumf %87, %101 : vector<64x16xf32>
      %103 = vector.broadcast %1 : vector<64x1xf32> to vector<64x16xf32>
      %104 = arith.addf %102, %103 : vector<64x16xf32>
      %cst_41 = arith.constant 0.000000e+00 : f32
      %105 = vector.broadcast %cst_41 : f32 to vector<64x16xf32>
      %106 = arith.maximumf %104, %105 : vector<64x16xf32>
      %c15_i32_42 = arith.constant 15 : i32
      %107 = tpu.dynamic_rotate %106 by %c15_i32_42 dim 1 : vector<64x16xf32>, i32 -> vector<64x16xf32>
      %108 = arith.maximumf %106, %107 : vector<64x16xf32>
      %109 = arith.truncf %108 : vector<64x16xf32> to vector<64x16xbf16>
      %cst_43 = arith.constant dense<0.000000e+00> : vector<64x8xf32>
      %110 = tpu.matmul %109, %16, %cst_43 {dimension_numbers = #tpu.dot_dimension_numbers<[1], [0], [0], [1], [0, 0, 1, 1], [], []>} : vector<64x16xbf16>, vector<16x8xbf16>, vector<64x8xf32> -> vector<64x8xf32>
      %c0_44 = arith.constant 0 : index
      %111 = arith.index_cast %arg7 : i32 to index
      %c0_45 = arith.constant 0 : index
      %c0_46 = arith.constant 0 : index
      %112 = vector.load %arg6[%c0_44, %111, %c0_45, %c0_46] : memref<1x8x64x8xf32, #tpu.memory_space<vmem>>, vector<1x1x64x8xf32>
      %113 = vector.shape_cast %112 : vector<1x1x64x8xf32> to vector<64x8xf32>
      %114 = vector.shape_cast %110 : vector<64x8xf32> to vector<1x1x64x8xf32>
      tpu.vector_store %arg6[%c0_44, %111, %c0_45, %c0_46], %114 {strides = array<i32>} : memref<1x8x64x8xf32, #tpu.memory_space<vmem>>, vector<1x1x64x8xf32>,
    }
    %c8_i32_8 = arith.constant 8 : i32
    return
  }
  func.func @transform_0(%arg0: i32) -> (i32, i32, i32, i32) {
    %c0_i32 = arith.constant 0 : i32
    %c0_i32_0 = arith.constant 0 : i32
    %c0_i32_1 = arith.constant 0 : i32
    %c0_i32_2 = arith.constant 0 : i32
    return %arg0, %c0_i32, %c0_i32_0, %c0_i32_1 : i32, i32, i32, i32
  }
  func.func @transform_1(%arg0: i32) -> (i32, i32) {
    %c0_i32 = arith.constant 0 : i32
    %c0_i32_0 = arith.constant 0 : i32
    %c0_i32_1 = arith.constant 0 : i32
    return %c0_i32, %c0_i32_0 : i32, i32
  }
  func.func @transform_2(%arg0: i32) -> (i32, i32) {
    %c0_i32 = arith.constant 0 : i32
    %c0_i32_0 = arith.constant 0 : i32
    %c0_i32_1 = arith.constant 0 : i32
    return %c0_i32, %c0_i32_0 : i32, i32
  }
  func.func @transform_3(%arg0: i32) -> (i32, i32) {
    %c0_i32 = arith.constant 0 : i32
    %c0_i32_0 = arith.constant 0 : i32
    %c0_i32_1 = arith.constant 0 : i32
    return %c0_i32, %c0_i32_0 : i32, i32
  }
  func.func @transform_4(%arg0: i32) -> (i32, i32) {
    %c0_i32 = arith.constant 0 : i32
    %c0_i32_0 = arith.constant 0 : i32
    %c0_i32_1 = arith.constant 0 : i32
    return %c0_i32, %c0_i32_0 : i32, i32
  }
  func.func @transform_5(%arg0: i32) -> (i32, i32, i32, i32) {
    %c0_i32 = arith.constant 0 : i32
    %c0_i32_0 = arith.constant 0 : i32
    %c0_i32_1 = arith.constant 0 : i32
    %c0_i32_2 = arith.constant 0 : i32
    return %arg0, %c0_i32, %c0_i32_0, %c0_i32_1 : i32, i32, i32, i32
  }
}

module attributes {stable_mosaic.version = 11 : i64} {
  func.func @mlp_kernel(%arg0: memref<2x4096xf32, #tpu.memory_space<vmem>>, %arg1: memref<4096x256xbf16, #tpu.memory_space<vmem>>, %arg2: memref<1x256xf32, #tpu.memory_space<vmem>>, %arg3: memref<256x64xbf16, #tpu.memory_space<vmem>>, %arg4: memref<1x64xf32, #tpu.memory_space<vmem>>, %arg5: memref<2x64xf32, #tpu.memory_space<vmem>>) attributes {dimension_semantics = [], scalar_prefetch = 0 : i64, scratch_operands = 0 : i64, tpu.core_type = #tpu.core_type<tc>} {
    %c0 = arith.constant 0 : index
    %c0_0 = arith.constant 0 : index
    %0 = vector.load %arg0[%c0, %c0_0] : memref<2x4096xf32, #tpu.memory_space<vmem>>, vector<2x4096xf32>
    %1 = arith.truncf %0 : vector<2x4096xf32> to vector<2x4096xbf16>
    %c0_1 = arith.constant 0 : index
    %c0_2 = arith.constant 0 : index
    %2 = vector.load %arg1[%c0_1, %c0_2] : memref<4096x256xbf16, #tpu.memory_space<vmem>>, vector<4096x256xbf16>
    %cst = arith.constant dense<0.000000e+00> : vector<2x256xf32>
    %3 = tpu.matmul %1, %2, %cst {dimension_numbers = #tpu.dot_dimension_numbers<[1], [0], [0], [1], [0, 0, 1, 1], [], []>} : vector<2x4096xbf16>, vector<4096x256xbf16>, vector<2x256xf32> -> vector<2x256xf32>
    %c0_3 = arith.constant 0 : index
    %c0_4 = arith.constant 0 : index
    %4 = vector.load %arg2[%c0_3, %c0_4] : memref<1x256xf32, #tpu.memory_space<vmem>>, vector<1x256xf32>
    %5 = vector.broadcast %4 : vector<1x256xf32> to vector<2x256xf32>
    %6 = arith.addf %3, %5 : vector<2x256xf32>
    %cst_5 = arith.constant 0.000000e+00 : f32
    %7 = vector.broadcast %cst_5 : f32 to vector<2x256xf32>
    %8 = arith.maximumf %6, %7 : vector<2x256xf32>
    %9 = arith.truncf %8 : vector<2x256xf32> to vector<2x256xbf16>
    %c0_6 = arith.constant 0 : index
    %c0_7 = arith.constant 0 : index
    %10 = vector.load %arg3[%c0_6, %c0_7] : memref<256x64xbf16, #tpu.memory_space<vmem>>, vector<256x64xbf16>
    %cst_8 = arith.constant dense<0.000000e+00> : vector<2x64xf32>
    %11 = tpu.matmul %9, %10, %cst_8 {dimension_numbers = #tpu.dot_dimension_numbers<[1], [0], [0], [1], [0, 0, 1, 1], [], []>} : vector<2x256xbf16>, vector<256x64xbf16>, vector<2x64xf32> -> vector<2x64xf32>
    %c0_9 = arith.constant 0 : index
    %c0_10 = arith.constant 0 : index
    %12 = vector.load %arg4[%c0_9, %c0_10] : memref<1x64xf32, #tpu.memory_space<vmem>>, vector<1x64xf32>
    %13 = vector.broadcast %12 : vector<1x64xf32> to vector<2x64xf32>
    %14 = arith.addf %11, %13 : vector<2x64xf32>
    %cst_11 = arith.constant 0.000000e+00 : f32
    %15 = vector.broadcast %cst_11 : f32 to vector<2x64xf32>
    %16 = arith.maximumf %14, %15 : vector<2x64xf32>
    %c0_12 = arith.constant 0 : index
    %c0_13 = arith.constant 0 : index
    %17 = vector.load %arg5[%c0_12, %c0_13] : memref<2x64xf32, #tpu.memory_space<vmem>>, vector<2x64xf32>
    tpu.vector_store %arg5[%c0_12, %c0_13], %16 {strides = array<i32>} : memref<2x64xf32, #tpu.memory_space<vmem>>, vector<2x64xf32>,
    return
  }
}

</mosaic_0001>

<llo_original>
// kernel: forward.6
$region0: #{forward.6}
  #allocation0 [shape = 'u32[]', space=smem, size = 0x4, offset = 0x4, fixed_abs, tag = 'smem constant byte address 0x4 - core index']
  #allocation1 [shape = 'u32[72,128]{1,0:T(1,128)}', space=vmem, size = 0x9000, scoped, tag = 'internal scratch']
  %s0 = inlined_call_operand.vmem [shape: f32[2,256,8,256], index: 0, kind: input, shape index: {}]
  %s1 = inlined_call_operand.vmem [shape: bf16[16,72], index: 1, kind: input, shape index: {}]
  %s2 = inlined_call_operand.vmem [shape: f32[16,1], index: 2, kind: input, shape index: {}]
  %s3 = inlined_call_operand.vmem [shape: f32[8,1], index: 3, kind: input, shape index: {}]
  %s4 = inlined_call_operand.vmem [shape: f32[8,1], index: 4, kind: input, shape index: {}]
  %s5 = inlined_call_operand.vmem [shape: f32[2,128,16,128], index: 5, kind: output, shape index: {}]
  %s6 = sld [smem:[#allocation0]]
  $region60: #{forward.6} parent=0
    _
  %s8 = ssub.s32 1, %s6
  %s9 = scalar_select 0, %s8, %s6
  loop: start=0, step=1, limit=4
  $region2: #{forward.6} parent=0 // loop_pre_header
    _
  $region3: #{forward.6} parent=0 // loop_header
    %s11 = sphi 0, %s15
    %p12 = scmp.ge.s32.totalorder %s11, 4
    %s21 = sphi 0, %s23
    %s24 = sphi 0, %s21
    %s25 = sphi 0, %s24
    %s41 = sphi 0, %s25
    %s45 = sphi 0, %s45
    %s47 = sphi 0, %s45
    %s48 = sphi 0, %s47
    %s62 = sphi 0, %s48
    %s66 = sphi 0, %s66
    %s68 = sphi 0, %s66
    %s69 = sphi 0, %s68
    %s83 = sphi 0, %s69
    %s87 = sphi 0, %s87
    %s89 = sphi 0, %s87
    %s90 = sphi 0, %s89
    %s104 = sphi 0, %s90
    %s108 = sphi 0, %s108
    %s110 = sphi 0, %s108
    %s111 = sphi 0, %s110
    %s125 = sphi 0, %s111
    %s131 = sphi 0, %s133
    %s134 = sphi 0, %s131
    %s135 = sphi 0, %s134
    %s151 = sphi 0, %s135
  $region4: #{forward.6} parent=0 // loop_header_branch
    %14 = sbr.rel (%p12) target = $region8
  $region5: #{forward.6} parent=0 // loop_body
    %s16 = ssub.s32 %s11, 1
    %s17 = ssub.s32 %s11, 2
    %s18 = sadd.s32 %s11, 1
    %s19 = ssub.s32 %s11, %s18
    %p20 = scmp.eq.s32.totalorder %s19, 0
    %s22 = sadd.s32 %s21, 1
    %s23 = scalar_select %p20, %s21, %s22
    %p26 = pneg %p20
    %p27 = scmp.eq.s32.totalorder %s11, 1
    %p28 = por %p26, %p27
    %p29 = scmp.ne.s32.totalorder %s21, %s24
    %p30 = scmp.eq.s32.totalorder %s11, 0
    %p31 = por %p29, %p30
    %p32 = scmp.ne.s32.totalorder %s21, %s24
    %p33 = scmp.eq.s32.totalorder %s16, 1
    %p34 = por %p32, %p33
    %p35 = scmp.ne.s32.totalorder %s24, %s25
    %p36 = scmp.eq.s32.totalorder %s16, 0
    %p37 = por %p35, %p36
    %p38 = scmp.ne.s32.totalorder %s24, %s25
    %p39 = scmp.eq.s32.totalorder %s17, 1
    %p40 = por %p38, %p39
    %p42 = scmp.ne.s32.totalorder %s25, %s41
    %p43 = scmp.eq.s32.totalorder %s17, 0
    %p44 = por %p42, %p43
    %s46 = sadd.s32 %s45, 1
    %p49 = scmp.eq.s32.totalorder %s11, 1
    %p50 = scmp.ne.s32.totalorder %s45, %s47
    %p51 = scmp.eq.s32.totalorder %s11, 0
    %p52 = por %p50, %p51
    %p53 = scmp.ne.s32.totalorder %s45, %s47
    %p54 = scmp.eq.s32.totalorder %s16, 1
    %p55 = por %p53, %p54
    %p56 = scmp.ne.s32.totalorder %s47, %s48
    %p57 = scmp.eq.s32.totalorder %s16, 0
    %p58 = por %p56, %p57
    %p59 = scmp.ne.s32.totalorder %s47, %s48
    %p60 = scmp.eq.s32.totalorder %s17, 1
    %p61 = por %p59, %p60
    %p63 = scmp.ne.s32.totalorder %s48, %s62
    %p64 = scmp.eq.s32.totalorder %s17, 0
    %p65 = por %p63, %p64
    %s67 = sadd.s32 %s66, 1
    %p70 = scmp.eq.s32.totalorder %s11, 1
    %p71 = scmp.ne.s32.totalorder %s66, %s68
    %p72 = scmp.eq.s32.totalorder %s11, 0
    %p73 = por %p71, %p72
    %p74 = scmp.ne.s32.totalorder %s66, %s68
    %p75 = scmp.eq.s32.totalorder %s16, 1
    %p76 = por %p74, %p75
    %p77 = scmp.ne.s32.totalorder %s68, %s69
    %p78 = scmp.eq.s32.totalorder %s16, 0
    %p79 = por %p77, %p78
    %p80 = scmp.ne.s32.totalorder %s68, %s69
    %p81 = scmp.eq.s32.totalorder %s17, 1
    %p82 = por %p80, %p81
    %p84 = scmp.ne.s32.totalorder %s69, %s83
    %p85 = scmp.eq.s32.totalorder %s17, 0
    %p86 = por %p84, %p85
    %s88 = sadd.s32 %s87, 1
    %p91 = scmp.eq.s32.totalorder %s11, 1
    %p92 = scmp.ne.s32.totalorder %s87, %s89
    %p93 = scmp.eq.s32.totalorder %s11, 0
    %p94 = por %p92, %p93
    %p95 = scmp.ne.s32.totalorder %s87, %s89
    %p96 = scmp.eq.s32.totalorder %s16, 1
    %p97 = por %p95, %p96
    %p98 = scmp.ne.s32.totalorder %s89, %s90
    %p99 = scmp.eq.s32.totalorder %s16, 0
    %p100 = por %p98, %p99
    %p101 = scmp.ne.s32.totalorder %s89, %s90
    %p102 = scmp.eq.s32.totalorder %s17, 1
    %p103 = por %p101, %p102
    %p105 = scmp.ne.s32.totalorder %s90, %s104
    %p106 = scmp.eq.s32.totalorder %s17, 0
    %p107 = por %p105, %p106
    %s109 = sadd.s32 %s108, 1
    %p112 = scmp.eq.s32.totalorder %s11, 1
    %p113 = scmp.ne.s32.totalorder %s108, %s110
    %p114 = scmp.eq.s32.totalorder %s11, 0
    %p115 = por %p113, %p114
    %p116 = scmp.ne.s32.totalorder %s108, %s110
    %p117 = scmp.eq.s32.totalorder %s16, 1
    %p118 = por %p116, %p117
    %p119 = scmp.ne.s32.totalorder %s110, %s111
    %p120 = scmp.eq.s32.totalorder %s16, 0
    %p121 = por %p119, %p120
    %p122 = scmp.ne.s32.totalorder %s110, %s111
    %p123 = scmp.eq.s32.totalorder %s17, 1
    %p124 = por %p122, %p123
    %p126 = scmp.ne.s32.totalorder %s111, %s125
    %p127 = scmp.eq.s32.totalorder %s17, 0
    %p128 = por %p126, %p127
    %s129 = ssub.s32 %s11, %s18
    %p130 = scmp.eq.s32.totalorder %s129, 0
    %s132 = sadd.s32 %s131, 1
    %s133 = scalar_select %p130, %s131, %s132
    %p136 = pneg %p130
    %p137 = scmp.eq.s32.totalorder %s11, 1
    %p138 = por %p136, %p137
    %p139 = scmp.ne.s32.totalorder %s131, %s134
    %p140 = scmp.eq.s32.totalorder %s11, 0
    %p141 = por %p139, %p140
    %p142 = scmp.ne.s32.totalorder %s131, %s134
    %p143 = scmp.eq.s32.totalorder %s16, 1
    %p144 = por %p142, %p143
    %p145 = scmp.ne.s32.totalorder %s134, %s135
    %p146 = scmp.eq.s32.totalorder %s16, 0
    %p147 = por %p145, %p146
    %p148 = scmp.ne.s32.totalorder %s134, %s135
    %p149 = scmp.eq.s32.totalorder %s17, 1
    %p150 = por %p148, %p149
    %p152 = scmp.ne.s32.totalorder %s135, %s151
    %p153 = scmp.eq.s32.totalorder %s17, 0
    %p154 = por %p152, %p153
    %p155 = scmp.le.s32.totalorder 1, %s11
    %p156 = scmp.lt.s32.totalorder %s11, 3
    %p157 = pnand %p155, %p156
    %p158 = pneg %p157
    // Predicated region
    $region9: #{forward.6} parent=5 // pred_check
      _
    $region10: #{forward.6} parent=5 // pred_check_branch
      %160 = sbr.rel (%p157) target = $region12
    $region11: #{forward.6} parent=5 // pred_region
      %s161 = ssub.s32 %s11, 1
      // Predicated region
      $region13: #{forward.6} parent=11 // pred_check
        %p162 = pneg %p58
      $region14: #{forward.6} parent=11 // pred_check_branch
        %164 = sbr.rel (%p162) target = $region16
      $region15: #{forward.6} parent=11 // pred_region
        _
      $region16: #{forward.6} parent=11 // pred_fallthru
        _
      // Predicated region
      $region17: #{forward.6} parent=11 // pred_check
        %p165 = pneg %p79
      $region18: #{forward.6} parent=11 // pred_check_branch
        %167 = sbr.rel (%p165) target = $region20
      $region19: #{forward.6} parent=11 // pred_region
        _
      $region20: #{forward.6} parent=11 // pred_fallthru
        _
      // Predicated region
      $region21: #{forward.6} parent=11 // pred_check
        %p168 = pneg %p100
      $region22: #{forward.6} parent=11 // pred_check_branch
        %170 = sbr.rel (%p168) target = $region24
      $region23: #{forward.6} parent=11 // pred_region
        _
      $region24: #{forward.6} parent=11 // pred_fallthru
        _
      // Predicated region
      $region25: #{forward.6} parent=11 // pred_check
        %p171 = pneg %p121
      $region26: #{forward.6} parent=11 // pred_check_branch
        %173 = sbr.rel (%p171) target = $region28
      $region27: #{forward.6} parent=11 // pred_region
        _
      $region28: #{forward.6} parent=11 // pred_fallthru
        _
    $region12: #{forward.6} parent=5 // pred_fallthru
      _
    %p174 = scmp.lt.s32.totalorder %s11, 2
    // Predicated region
    $region29: #{forward.6} parent=5 // pred_check
      %p175 = pneg %p174
    $region30: #{forward.6} parent=5 // pred_check_branch
      %177 = sbr.rel (%p175) target = $region32
    $region31: #{forward.6} parent=5 // pred_region
      // Predicated region
      $region33: #{forward.6} parent=31 // pred_check
        %p178 = pneg %p31
      $region34: #{forward.6} parent=31 // pred_check_branch
        %180 = sbr.rel (%p178) target = $region36
      $region35: #{forward.6} parent=31 // pred_region
        %p181 = scmp.lt.s32.totalorder %s11, 1
        %s182 = scalar_select %p181, %s11, 1
        %s183 = smul.addr %s182, 512
        %s184 = smul.addr %s183, 8
        %s185 = scalar_lea.vmem %s0, %s184
      $region36: #{forward.6} parent=31 // pred_fallthru
        _
    $region32: #{forward.6} parent=5 // pred_fallthru
      _
    %p186 = scmp.le.s32.totalorder 1, %s11
    %p187 = scmp.lt.s32.totalorder %s11, 3
    %p188 = pnand %p186, %p187
    %p189 = pneg %p188
    // Predicated region
    $region37: #{forward.6} parent=5 // pred_check
      _
    $region38: #{forward.6} parent=5 // pred_check_branch
      %191 = sbr.rel (%p188) target = $region40
    $region39: #{forward.6} parent=5 // pred_region
      %s192 = ssub.s32 %s11, 1
      %p193 = scmp.lt.s32.totalorder %s16, 1
      %s194 = scalar_select %p193, %s16, 1
      %s195 = smul.addr %s194, 512
      %s196 = smul.addr %s195, 8
      %s197 = scalar_lea.vmem %s0, %s196
      %p198 = pneg %p37
      %p199 = pneg %p34
      %p200 = pneg %p58
      %p201 = pneg %p55
      %p202 = pneg %p79
      %p203 = pneg %p76
      %p204 = pneg %p100
      %p205 = pneg %p97
      %p206 = pneg %p121
      %p207 = pneg %p118
      %p208 = pneg %p147
      %p209 = pneg %p144
      %p210 = scmp.lt.s32.totalorder %s16, 1
      %s211 = scalar_select %p210, %s16, 1
      %s212 = smul.addr %s211, 256
      %s213 = smul.addr %s212, 8
      %s214 = scalar_lea.vmem %s5, %s213
      %p215 = scmp.lt.s32.totalorder %s16, 1
      %s216 = scalar_select %p215, %s16, 1
      %s217 = smul.addr %s216, 512
      %s218 = smul.addr %s217, 8
      %s219 = scalar_lea.vmem %s0, %s218
      %p220 = scmp.lt.s32.totalorder %s16, 1
      %s221 = scalar_select %p220, %s16, 1
      %s222 = smul.addr %s221, 256
      %s223 = smul.addr %s222, 8
      %s224 = scalar_lea.vmem %s5, %s223
      %v226 = vld [vmem:[%s1] sm:$0xf]
      %v227 = vld [vmem:[%s1 + $0x4] sm:$0xf]
      %v228 = vld [vmem:[%s2] sm:$0xff]
      %v229 = vld [vmem:[%s2 + $0x8] sm:$0xff]
      %v230 = vld [vmem:[%s3] sm:$0xff]
      %v231 = vld [vmem:[%s4] sm:$0xff]
      %v232 = vlaneseq
      %v233 = vand.u32 %v232, 127
      %v234 = vadd.s32 %v233, 128
      %vm235 = vcmp.ne.s32.totalorder %v233, 0
      %vm236 = vcmp.ne.s32.totalorder %v234, 0
      %vm237 = vcmp.ne.s32.totalorder %v233, 255
      %vm238 = vcmp.ne.s32.totalorder %v234, 255
      %v239 = vlaneseq
      %v240 = vshrl.u32 %v239, 7
      %v241 = vadd.s32 %v240, 8
      %v242 = vadd.s32 %v240, 16
      %v243 = vadd.s32 %v240, 24
      %v244 = vadd.s32 %v240, 32
      %v245 = vadd.s32 %v240, 40
      %v246 = vadd.s32 %v240, 48
      %v247 = vadd.s32 %v240, 56
      %v248 = vadd.s32 %v240, 64
      %v249 = vadd.s32 %v240, 72
      %v250 = vadd.s32 %v240, 80
      %v251 = vadd.s32 %v240, 88
      %v252 = vadd.s32 %v240, 96
      %v253 = vadd.s32 %v240, 104
      %v254 = vadd.s32 %v240, 112
      %v255 = vadd.s32 %v240, 120
      %v256 = vadd.s32 %v240, 128
      %v257 = vadd.s32 %v240, 136
      %v258 = vadd.s32 %v240, 144
      %v259 = vadd.s32 %v240, 152
      %v260 = vadd.s32 %v240, 160
      %v261 = vadd.s32 %v240, 168
      %v262 = vadd.s32 %v240, 176
      %v263 = vadd.s32 %v240, 184
      %v264 = vadd.s32 %v240, 192
      %v265 = vadd.s32 %v240, 200
      %v266 = vadd.s32 %v240, 208
      %v267 = vadd.s32 %v240, 216
      %v268 = vadd.s32 %v240, 224
      %v269 = vadd.s32 %v240, 232
      %v270 = vadd.s32 %v240, 240
      %v271 = vadd.s32 %v240, 248
      %v272 = vmul.u32 %v233, 2
      %vm273 = vcmp.eq.s32.totalorder %v240, %v272
      %vm274 = vcmp.eq.s32.totalorder %v241, %v272
      %vm275 = vcmp.eq.s32.totalorder %v242, %v272
      %vm276 = vcmp.eq.s32.totalorder %v243, %v272
      %vm277 = vcmp.eq.s32.totalorder %v244, %v272
      %vm278 = vcmp.eq.s32.totalorder %v245, %v272
      %vm279 = vcmp.eq.s32.totalorder %v246, %v272
      %vm280 = vcmp.eq.s32.totalorder %v247, %v272
      %vm281 = vcmp.eq.s32.totalorder %v248, %v272
      %vm282 = vcmp.eq.s32.totalorder %v249, %v272
      %vm283 = vcmp.eq.s32.totalorder %v250, %v272
      %vm284 = vcmp.eq.s32.totalorder %v251, %v272
      %vm285 = vcmp.eq.s32.totalorder %v252, %v272
      %vm286 = vcmp.eq.s32.totalorder %v253, %v272
      %vm287 = vcmp.eq.s32.totalorder %v254, %v272
      %vm288 = vcmp.eq.s32.totalorder %v255, %v272
      %vm289 = vcmp.eq.s32.totalorder %v256, %v272
      %vm290 = vcmp.eq.s32.totalorder %v257, %v272
      %vm291 = vcmp.eq.s32.totalorder %v258, %v272
      %vm292 = vcmp.eq.s32.totalorder %v259, %v272
      %vm293 = vcmp.eq.s32.totalorder %v260, %v272
      %vm294 = vcmp.eq.s32.totalorder %v261, %v272
      %vm295 = vcmp.eq.s32.totalorder %v262, %v272
      %vm296 = vcmp.eq.s32.totalorder %v263, %v272
      %vm297 = vcmp.eq.s32.totalorder %v264, %v272
      %vm298 = vcmp.eq.s32.totalorder %v265, %v272
      %vm299 = vcmp.eq.s32.totalorder %v266, %v272
      %vm300 = vcmp.eq.s32.totalorder %v267, %v272
      %vm301 = vcmp.eq.s32.totalorder %v268, %v272
      %vm302 = vcmp.eq.s32.totalorder %v269, %v272
      %vm303 = vcmp.eq.s32.totalorder %v270, %v272
      %vm304 = vcmp.eq.s32.totalorder %v271, %v272
      %v305 = vsel %vm273, 1, 0
      %v306 = vsel %vm274, 1, 0
      %v307 = vsel %vm275, 1, 0
      %v308 = vsel %vm276, 1, 0
      %v309 = vsel %vm277, 1, 0
      %v310 = vsel %vm278, 1, 0
      %v311 = vsel %vm279, 1, 0
      %v312 = vsel %vm280, 1, 0
      %v313 = vsel %vm281, 1, 0
      %v314 = vsel %vm282, 1, 0
      %v315 = vsel %vm283, 1, 0
      %v316 = vsel %vm284, 1, 0
      %v317 = vsel %vm285, 1, 0
      %v318 = vsel %vm286, 1, 0
      %v319 = vsel %vm287, 1, 0
      %v320 = vsel %vm288, 1, 0
      %v321 = vsel %vm289, 1, 0
      %v322 = vsel %vm290, 1, 0
      %v323 = vsel %vm291, 1, 0
      %v324 = vsel %vm292, 1, 0
      %v325 = vsel %vm293, 1, 0
      %v326 = vsel %vm294, 1, 0
      %v327 = vsel %vm295, 1, 0
      %v328 = vsel %vm296, 1, 0
      %v329 = vsel %vm297, 1, 0
      %v330 = vsel %vm298, 1, 0
      %v331 = vsel %vm299, 1, 0
      %v332 = vsel %vm300, 1, 0
      %v333 = vsel %vm301, 1, 0
      %v334 = vsel %vm302, 1, 0
      %v335 = vsel %vm303, 1, 0
      %v336 = vsel %vm304, 1, 0
      %v337 = vcvt.s32.f32 %v305
      %v338 = vcvt.s32.f32 %v306
      %v339 = vcvt.s32.f32 %v307
      %v340 = vcvt.s32.f32 %v308
      %v341 = vcvt.s32.f32 %v309
      %v342 = vcvt.s32.f32 %v310
      %v343 = vcvt.s32.f32 %v311
      %v344 = vcvt.s32.f32 %v312
      %v345 = vcvt.s32.f32 %v313
      %v346 = vcvt.s32.f32 %v314
      %v347 = vcvt.s32.f32 %v315
      %v348 = vcvt.s32.f32 %v316
      %v349 = vcvt.s32.f32 %v317
      %v350 = vcvt.s32.f32 %v318
      %v351 = vcvt.s32.f32 %v319
      %v352 = vcvt.s32.f32 %v320
      %v353 = vcvt.s32.f32 %v321
      %v354 = vcvt.s32.f32 %v322
      %v355 = vcvt.s32.f32 %v323
      %v356 = vcvt.s32.f32 %v324
      %v357 = vcvt.s32.f32 %v325
      %v358 = vcvt.s32.f32 %v326
      %v359 = vcvt.s32.f32 %v327
      %v360 = vcvt.s32.f32 %v328
      %v361 = vcvt.s32.f32 %v329
      %v362 = vcvt.s32.f32 %v330
      %v363 = vcvt.s32.f32 %v331
      %v364 = vcvt.s32.f32 %v332
      %v365 = vcvt.s32.f32 %v333
      %v366 = vcvt.s32.f32 %v334
      %v367 = vcvt.s32.f32 %v335
      %v368 = vcvt.s32.f32 %v336
      %v369 = vpack.c.bf16 %v338, %v337
      %v370 = vpack.c.bf16 %v340, %v339
      %v371 = vpack.c.bf16 %v342, %v341
      %v372 = vpack.c.bf16 %v344, %v343
      %v373 = vpack.c.bf16 %v346, %v345
      %v374 = vpack.c.bf16 %v348, %v347
      %v375 = vpack.c.bf16 %v350, %v349
      %v376 = vpack.c.bf16 %v352, %v351
      %v377 = vpack.c.bf16 %v354, %v353
      %v378 = vpack.c.bf16 %v356, %v355
      %v379 = vpack.c.bf16 %v358, %v357
      %v380 = vpack.c.bf16 %v360, %v359
      %v381 = vpack.c.bf16 %v362, %v361
      %v382 = vpack.c.bf16 %v364, %v363
      %v383 = vpack.c.bf16 %v366, %v365
      %v384 = vpack.c.bf16 %v368, %v367
      loop: start=0, step=1, limit=128
      $region41: #{forward.6} parent=39 // loop_pre_header
        _
      $region42: #{forward.6} parent=39 // loop_header
        %s386 = sphi 0, %s390
        %p387 = scmp.ge.s32.totalorder %s386, 128
      $region43: #{forward.6} parent=39 // loop_header_branch
        %389 = sbr.rel (%p387) target = $region47
      $region44: #{forward.6} parent=39 // loop_body
        %s391 = smul.u32 %s386, 2
        %p392 = scmp.gt.s32.totalorder %s386, 0
        %s393 = scalar_select %p392, 1, 0
        %s394 = scvt.s32.f32 %s393
        %p395 = scmp.lt.s32.totalorder %s386, 127
        %s396 = scalar_select %p395, 1, 0
        %s397 = scvt.s32.f32 %s396
        %s398 = ssub.s32 %s391, 1
        %p399 = scmp.gt.s32.totalorder %s398, 0
        %s400 = scalar_select %p399, %s398, 0
        %s401 = smul.u32 %s400, 2
        %s402 = smul.addr %s401, 8
        %s403 = scalar_lea.vmem %s219, %s402
        %v404 = vld [vmem:[%s403] sm:$0xff]
        %v405 = vld [vmem:[%s403 + $0x8] sm:$0xff]
        %v406 = vstv %s394
        %v407 = vmul.f32 %v230, %v406
        %409 = vset.pattern.permute.xlu0 0
        %410 = vperm.xlu0 %409, %v407
        %v411 = vpop.permute.xlu0 %410
        %v413 = vmul.f32 %v404, %v411
        %v414 = vmul.f32 %v405, %v411
        %v415 = vmul.f32 %v231, %v406
        %417 = vset.pattern.permute.xlu0 0
        %418 = vperm.xlu0 %417, %v415
        %v419 = vpop.permute.xlu0 %418
        %v421 = vadd.f32 %v413, %v419
        %v422 = vadd.f32 %v414, %v419
        %s423 = smul.u32 %s391, 2
        %s424 = smul.addr %s423, 8
        %s425 = scalar_lea.vmem %s219, %s424
        %v426 = vld [vmem:[%s425] sm:$0xff]
        %v427 = vld [vmem:[%s425 + $0x8] sm:$0xff]
        %429 = vset.pattern.permute.xlu0 0
        %430 = vperm.xlu0 %429, %v230
        %v431 = vpop.permute.xlu0 %430
        %v433 = vmul.f32 %v426, %v431
        %v434 = vmul.f32 %v427, %v431
        %436 = vset.pattern.permute.xlu0 0
        %437 = vperm.xlu0 %436, %v231
        %v438 = vpop.permute.xlu0 %437
        %v440 = vadd.f32 %v433, %v438
        %v441 = vadd.f32 %v434, %v438
        %s442 = sadd.s32 %s391, 1
        %s443 = smul.u32 %s442, 2
        %s444 = smul.addr %s443, 8
        %s445 = scalar_lea.vmem %s219, %s444
        %v446 = vld [vmem:[%s445] sm:$0xff]
        %v447 = vld [vmem:[%s445 + $0x8] sm:$0xff]
        %v448 = vmul.f32 %v446, %v431
        %v449 = vmul.f32 %v447, %v431
        %v450 = vadd.f32 %v448, %v438
        %v451 = vadd.f32 %v449, %v438
        %s452 = sadd.s32 %s391, 2
        %p453 = scmp.lt.s32.totalorder %s452, 255
        %s454 = scalar_select %p453, %s452, 255
        %s455 = smul.u32 %s454, 2
        %s456 = smul.addr %s455, 8
        %s457 = scalar_lea.vmem %s219, %s456
        %v458 = vld [vmem:[%s457] sm:$0xff]
        %v459 = vld [vmem:[%s457 + $0x8] sm:$0xff]
        %v460 = vstv %s397
        %v461 = vmul.f32 %v230, %v460
        %463 = vset.pattern.permute.xlu0 0
        %464 = vperm.xlu0 %463, %v461
        %v465 = vpop.permute.xlu0 %464
        %v467 = vmul.f32 %v458, %v465
        %v468 = vmul.f32 %v459, %v465
        %v469 = vmul.f32 %v231, %v460
        %471 = vset.pattern.permute.xlu0 0
        %472 = vperm.xlu0 %471, %v469
        %v473 = vpop.permute.xlu0 %472
        %v475 = vadd.f32 %v467, %v473
        %v476 = vadd.f32 %v468, %v473
        %477 = vrot.lane.b32.xlu0 %v421, 1
        %v478 = vpop.permute.xlu0 %477
        %479 = vrot.lane.b32.xlu0 %v440, 1
        %v480 = vpop.permute.xlu0 %479
        %481 = vrot.lane.b32.xlu0 %v450, 1
        %v482 = vpop.permute.xlu0 %481
        %483 = vrot.lane.b32.xlu0 %v422, 1
        %v484 = vpop.permute.xlu0 %483
        %485 = vrot.lane.b32.xlu0 %v441, 1
        %v486 = vpop.permute.xlu0 %485
        %487 = vrot.lane.b32.xlu0 %v451, 1
        %v488 = vpop.permute.xlu0 %487
        %vm489 = vcmp.lt.s32.totalorder %v233, 1
        %v490 = vsel %vm489, %v478, %v484
        %v491 = vsel %vm489, %v480, %v486
        %v492 = vsel %vm489, %v482, %v488
        %v493 = vsel %vm489, %v484, %v478
        %v494 = vsel %vm489, %v486, %v480
        %v495 = vsel %vm489, %v488, %v482
        %v496 = vsel %vm235, 1, 0
        %v497 = vsel %vm236, 1, 0
        %vm498 = vcmp.eq.s32.totalorder %v496, 1
        %vm499 = vcmp.eq.s32.totalorder %v497, 1
        %v500 = vsel %vm498, %v493, 0.0
        %v501 = vsel %vm499, %v490, 0.0
        %v502 = vsel %vm498, %v494, 0.0
        %v503 = vsel %vm499, %v491, 0.0
        %v504 = vsel %vm498, %v495, 0.0
        %v505 = vsel %vm499, %v492, 0.0
        %506 = vrot.lane.b32.xlu0 %v421, 127
        %v507 = vpop.permute.xlu0 %506
        %508 = vrot.lane.b32.xlu0 %v440, 127
        %v509 = vpop.permute.xlu0 %508
        %510 = vrot.lane.b32.xlu0 %v450, 127
        %v511 = vpop.permute.xlu0 %510
        %512 = vrot.lane.b32.xlu0 %v422, 127
        %v513 = vpop.permute.xlu0 %512
        %514 = vrot.lane.b32.xlu0 %v441, 127
        %v515 = vpop.permute.xlu0 %514
        %516 = vrot.lane.b32.xlu0 %v451, 127
        %v517 = vpop.permute.xlu0 %516
        %vm518 = vcmp.lt.s32.totalorder %v233, 127
        %v519 = vsel %vm518, %v507, %v513
        %v520 = vsel %vm518, %v509, %v515
        %v521 = vsel %vm518, %v511, %v517
        %v522 = vsel %vm518, %v513, %v507
        %v523 = vsel %vm518, %v515, %v509
        %v524 = vsel %vm518, %v517, %v511
        %v525 = vsel %vm237, 1, 0
        %v526 = vsel %vm238, 1, 0
        %vm527 = vcmp.eq.s32.totalorder %v525, 1
        %vm528 = vcmp.eq.s32.totalorder %v526, 1
        %v529 = vsel %vm527, %v519, 0.0
        %v530 = vsel %vm528, %v522, 0.0
        %v531 = vsel %vm527, %v520, 0.0
        %v532 = vsel %vm528, %v523, 0.0
        %v533 = vsel %vm527, %v521, 0.0
        %v534 = vsel %vm528, %v524, 0.0
        %v535 = vpack.c.bf16 %v502, %v500
        %v536 = vpack.c.bf16 %v503, %v501
        %v537 = vpack.c.bf16 %v421, %v504
        %v538 = vpack.c.bf16 %v422, %v505
        %v539 = vpack.c.bf16 %v450, %v440
        %v540 = vpack.c.bf16 %v451, %v441
        %v541 = vpack.c.bf16 %v531, %v529
        %v542 = vpack.c.bf16 %v532, %v530
        %v543 = vpack.c.bf16 %v533, %v533
        %v544 = vpack.c.bf16 %v534, %v534
        %v547 = vunpack.c.l.b16 %v226
        %v548 = vunpack.c.l.b16 %v227
        %v549 = vpack.c.b16 %v548, %v547
        %vm550 = vcmask 588800
        %v552 = vsel %vm550, %v549, 0
        %vm554 = vcmask 1043456
        %v556 = vsel %vm554, %v543, 0
        %v559 = vsel %vm554, %v544, 0
        %561 = vmatpush.bf16.msra.mxu0 0
        %562 = vmatpush.bf16.msra.mxu0 0
        %563 = vmatpush.bf16.msra.mxu0 0
        %564 = vmatpush.bf16.msra.mxu0 %v556
        %565 = vmatpush.bf16.msra.mxu0 %v541
        %566 = vmatpush.bf16.msra.mxu0 %v539
        %567 = vmatpush.bf16.msra.mxu0 %v537
        %568 = vmatpush.bf16.msra.mxu0 %v535
        %569 = vmatmul.bf16.gmra.mxu0 %v552
        %v570 = vpop.f32.mrf.mxu0
        %v571 = vadd.f32 0.0, %v570
        %v572 = vpop.f32.mrf.mxu0
        %v573 = vadd.f32 0.0, %v572
        %574 = vdwg.mxu0
        %575 = vmatpush.bf16.msra.mxu0 0
        %576 = vmatpush.bf16.msra.mxu0 0
        %577 = vmatpush.bf16.msra.mxu0 0
        %578 = vmatpush.bf16.msra.mxu0 %v559
        %579 = vmatpush.bf16.msra.mxu0 %v542
        %580 = vmatpush.bf16.msra.mxu0 %v540
        %581 = vmatpush.bf16.msra.mxu0 %v538
        %582 = vmatpush.bf16.msra.mxu0 %v536
        %583 = vmatmul.bf16.gmra.mxu0 %v552
        %v584 = vpop.f32.mrf.mxu0
        %v585 = vadd.f32 0.0, %v584
        %v586 = vpop.f32.mrf.mxu0
        %v587 = vadd.f32 0.0, %v586
        %588 = vdwg.mxu0
        %589 = vrot.lane.b32.xlu0 %v475, 1
        %v590 = vpop.permute.xlu0 %589
        %591 = vrot.lane.b32.xlu0 %v476, 1
        %v592 = vpop.permute.xlu0 %591
        %v593 = vsel %vm489, %v590, %v592
        %v594 = vsel %vm489, %v592, %v590
        %v595 = vsel %vm498, %v594, 0.0
        %v596 = vsel %vm499, %v593, 0.0
        %597 = vrot.lane.b32.xlu0 %v475, 127
        %v598 = vpop.permute.xlu0 %597
        %599 = vrot.lane.b32.xlu0 %v476, 127
        %v600 = vpop.permute.xlu0 %599
        %v601 = vsel %vm518, %v598, %v600
        %v602 = vsel %vm518, %v600, %v598
        %v603 = vsel %vm527, %v601, 0.0
        %v604 = vsel %vm528, %v602, 0.0
        %v605 = vpack.c.bf16 %v504, %v502
        %v606 = vpack.c.bf16 %v505, %v503
        %v607 = vpack.c.bf16 %v440, %v595
        %v608 = vpack.c.bf16 %v441, %v596
        %v609 = vpack.c.bf16 %v475, %v450
        %v610 = vpack.c.bf16 %v476, %v451
        %v611 = vpack.c.bf16 %v533, %v531
        %v612 = vpack.c.bf16 %v534, %v532
        %v613 = vpack.c.bf16 %v603, %v603
        %v614 = vpack.c.bf16 %v604, %v604
        %v616 = vsel %vm554, %v613, 0
        %v619 = vsel %vm554, %v614, 0
        %621 = vmatpush.bf16.msra.mxu0 0
        %622 = vmatpush.bf16.msra.mxu0 0
        %623 = vmatpush.bf16.msra.mxu0 0
        %624 = vmatpush.bf16.msra.mxu0 %v616
        %625 = vmatpush.bf16.msra.mxu0 %v611
        %626 = vmatpush.bf16.msra.mxu0 %v609
        %627 = vmatpush.bf16.msra.mxu0 %v607
        %628 = vmatpush.bf16.msra.mxu0 %v605
        %629 = vmatmul.bf16.gmra.mxu0 %v552
        %v630 = vpop.f32.mrf.mxu0
        %v631 = vadd.f32 0.0, %v630
        %v632 = vpop.f32.mrf.mxu0
        %v633 = vadd.f32 0.0, %v632
        %634 = vdwg.mxu0
        %635 = vmatpush.bf16.msra.mxu0 0
        %636 = vmatpush.bf16.msra.mxu0 0
        %637 = vmatpush.bf16.msra.mxu0 0
        %638 = vmatpush.bf16.msra.mxu0 %v619
        %639 = vmatpush.bf16.msra.mxu0 %v612
        %640 = vmatpush.bf16.msra.mxu0 %v610
        %641 = vmatpush.bf16.msra.mxu0 %v608
        %642 = vmatpush.bf16.msra.mxu0 %v606
        %643 = vmatmul.bf16.gmra.mxu0 %v552
        %v644 = vpop.f32.mrf.mxu0
        %v645 = vadd.f32 0.0, %v644
        %v646 = vpop.f32.mrf.mxu0
        %v647 = vadd.f32 0.0, %v646
        %648 = vdwg.mxu0
        %v649 = vmax.f32 %v571, %v631
        %v650 = vmax.f32 %v585, %v645
        %v651 = vmax.f32 %v573, %v633
        %v652 = vmax.f32 %v587, %v647
        %654 = vset.pattern.permute.xlu0 0
        %655 = vperm.xlu0 %654, %v228
        %v656 = vpop.permute.xlu0 %655
        %659 = vset.pattern.permute.xlu0 0
        %660 = vperm.xlu0 %659, %v229
        %v661 = vpop.permute.xlu0 %660
        %v663 = vadd.f32 %v649, %v656
        %v664 = vadd.f32 %v650, %v656
        %v665 = vadd.f32 %v651, %v661
        %v666 = vadd.f32 %v652, %v661
        %v667 = vmax.f32 %v663, 0.0
        %v668 = vmax.f32 %v664, 0.0
        %v669 = vmax.f32 %v665, 0.0
        %v670 = vmax.f32 %v666, 0.0
        %671 = vrot.lane.b32.xlu0 %v667, 127
        %v672 = vpop.permute.xlu0 %671
        %673 = vrot.lane.b32.xlu0 %v669, 127
        %v674 = vpop.permute.xlu0 %673
        %675 = vrot.lane.b32.xlu0 %v668, 127
        %v676 = vpop.permute.xlu0 %675
        %677 = vrot.lane.b32.xlu0 %v670, 127
        %v678 = vpop.permute.xlu0 %677
        %v679 = vsel %vm518, %v672, %v676
        %v680 = vsel %vm518, %v674, %v678
        %v681 = vsel %vm518, %v676, %v672
        %v682 = vsel %vm518, %v678, %v674
        %v683 = vmax.f32 %v667, %v679
        %v684 = vmax.f32 %v668, %v681
        %v685 = vmax.f32 %v669, %v680
        %v686 = vmax.f32 %v670, %v682
        %v687 = vpack.c.bf16 %v685, %v683
        %v688 = vpack.c.bf16 %v686, %v684
        %689 = vmatpush.bf16.msra.mxu0 %v376
        %690 = vmatpush.bf16.msra.mxu0 %v375
        %691 = vmatpush.bf16.msra.mxu0 %v374
        %692 = vmatpush.bf16.msra.mxu0 %v373
        %693 = vmatpush.bf16.msra.mxu0 %v372
        %694 = vmatpush.bf16.msra.mxu0 %v371
        %695 = vmatpush.bf16.msra.mxu0 %v370
        %696 = vmatpush.bf16.msra.mxu0 %v369
        %697 = vmatmul.bf16.gmra.mxu0 %v687
        %v698 = vpop.f32.mrf.mxu0
        %v699 = vadd.f32 0.0, %v698
        %v700 = vpop.f32.mrf.mxu0
        %v701 = vadd.f32 0.0, %v700
        %702 = vdwg.mxu0
        %703 = vmatpush.bf16.msra.mxu0 %v384
        %704 = vmatpush.bf16.msra.mxu0 %v383
        %705 = vmatpush.bf16.msra.mxu0 %v382
        %706 = vmatpush.bf16.msra.mxu0 %v381
        %707 = vmatpush.bf16.msra.mxu0 %v380
        %708 = vmatpush.bf16.msra.mxu0 %v379
        %709 = vmatpush.bf16.msra.mxu0 %v378
        %710 = vmatpush.bf16.msra.mxu0 %v377
        %711 = vmatmul.bf16.gmra.mxu0 %v688
        %v712 = vpop.f32.mrf.mxu0
        %v713 = vadd.f32 %v699, %v712
        %v714 = vpop.f32.mrf.mxu0
        %v715 = vadd.f32 %v701, %v714
        %716 = vdwg.mxu0
        %s717 = smul.u32 %s386, 16
        %s718 = scalar_lea.vmem %s224, %s717
        %719 = vst [vmem:[%s718] sm:$0xff] %v713
        %720 = vst [vmem:[%s718 + $0x8] sm:$0xff] %v715
      $region45: #{forward.6} parent=39 // loop_footer
        %s390 = sadd.s32 1, %s386
      $region46: #{forward.6} parent=39 // loop_footer_branch
        %385 = sbr.rel target = $region42
      $region47: #{forward.6} parent=39 // loop_exit
        _
      %p721 = scmp.lt.s32.totalorder %s16, 1
      %s722 = scalar_select %p721, %s16, 1
      %s723 = smul.addr %s722, 256
      %s724 = smul.addr %s723, 8
      %s725 = scalar_lea.vmem %s5, %s724
      // Predicated region
      $region48: #{forward.6} parent=39 // pred_check
        %p726 = pneg %p144
      $region49: #{forward.6} parent=39 // pred_check_branch
        %728 = sbr.rel (%p726) target = $region51
      $region50: #{forward.6} parent=39 // pred_region
        _
      $region51: #{forward.6} parent=39 // pred_fallthru
        _
    $region40: #{forward.6} parent=5 // pred_fallthru
      _
    %p729 = scmp.le.s32.totalorder 2, %s11
    // Predicated region
    $region52: #{forward.6} parent=5 // pred_check
      %p730 = pneg %p729
    $region53: #{forward.6} parent=5 // pred_check_branch
      %732 = sbr.rel (%p730) target = $region55
    $region54: #{forward.6} parent=5 // pred_region
      %s733 = ssub.s32 %s11, 2
      // Predicated region
      $region56: #{forward.6} parent=54 // pred_check
        %p734 = pneg %p150
      $region57: #{forward.6} parent=54 // pred_check_branch
        %736 = sbr.rel (%p734) target = $region59
      $region58: #{forward.6} parent=54 // pred_region
        %p737 = scmp.lt.s32.totalorder %s17, 1
        %s738 = scalar_select %p737, %s17, 1
        %s739 = smul.addr %s738, 256
        %s740 = smul.addr %s739, 8
        %s741 = scalar_lea.vmem %s5, %s740
      $region59: #{forward.6} parent=54 // pred_fallthru
        _
    $region55: #{forward.6} parent=5 // pred_fallthru
      _
  $region6: #{forward.6} parent=0 // loop_footer
    %s15 = sadd.s32 1, %s11
  $region7: #{forward.6} parent=0 // loop_footer_branch
    %10 = sbr.rel target = $region3
  $region8: #{forward.6} parent=0 // loop_exit
    _

// kernel: forward.7
$region0: #{forward.7}
  #allocation0 [shape = 'u32[]', space=smem, size = 0x4, offset = 0x4, fixed_abs, tag = 'smem constant byte address 0x4 - core index']
  #allocation1 [shape = 'u32[72,128]{1,0:T(1,128)}', space=vmem, size = 0x9000, scoped, tag = 'internal scratch']
  %s0 = inlined_call_operand.vmem [shape: f32[2,128,16,128], index: 0, kind: input, shape index: {}]
  %s1 = inlined_call_operand.vmem [shape: bf16[32,144], index: 1, kind: input, shape index: {}]
  %s2 = inlined_call_operand.vmem [shape: f32[32,1], index: 2, kind: input, shape index: {}]
  %s3 = inlined_call_operand.vmem [shape: f32[16,1], index: 3, kind: input, shape index: {}]
  %s4 = inlined_call_operand.vmem [shape: f32[16,1], index: 4, kind: input, shape index: {}]
  %s5 = inlined_call_operand.vmem [shape: f32[2,64,32,64], index: 5, kind: output, shape index: {}]
  %s6 = sld [smem:[#allocation0]]
  $region60: #{forward.7} parent=0
    _
  %s8 = ssub.s32 1, %s6
  %s9 = scalar_select 0, %s8, %s6
  loop: start=0, step=1, limit=4
  $region2: #{forward.7} parent=0 // loop_pre_header
    _
  $region3: #{forward.7} parent=0 // loop_header
    %s11 = sphi 0, %s15
    %p12 = scmp.ge.s32.totalorder %s11, 4
    %s21 = sphi 0, %s23
    %s24 = sphi 0, %s21
    %s25 = sphi 0, %s24
    %s41 = sphi 0, %s25
    %s45 = sphi 0, %s45
    %s47 = sphi 0, %s45
    %s48 = sphi 0, %s47
    %s62 = sphi 0, %s48
    %s66 = sphi 0, %s66
    %s68 = sphi 0, %s66
    %s69 = sphi 0, %s68
    %s83 = sphi 0, %s69
    %s87 = sphi 0, %s87
    %s89 = sphi 0, %s87
    %s90 = sphi 0, %s89
    %s104 = sphi 0, %s90
    %s108 = sphi 0, %s108
    %s110 = sphi 0, %s108
    %s111 = sphi 0, %s110
    %s125 = sphi 0, %s111
    %s131 = sphi 0, %s133
    %s134 = sphi 0, %s131
    %s135 = sphi 0, %s134
    %s151 = sphi 0, %s135
  $region4: #{forward.7} parent=0 // loop_header_branch
    %14 = sbr.rel (%p12) target = $region8
  $region5: #{forward.7} parent=0 // loop_body
    %s16 = ssub.s32 %s11, 1
    %s17 = ssub.s32 %s11, 2
    %s18 = sadd.s32 %s11, 1
    %s19 = ssub.s32 %s11, %s18
    %p20 = scmp.eq.s32.totalorder %s19, 0
    %s22 = sadd.s32 %s21, 1
    %s23 = scalar_select %p20, %s21, %s22
    %p26 = pneg %p20
    %p27 = scmp.eq.s32.totalorder %s11, 1
    %p28 = por %p26, %p27
    %p29 = scmp.ne.s32.totalorder %s21, %s24
    %p30 = scmp.eq.s32.totalorder %s11, 0
    %p31 = por %p29, %p30
    %p32 = scmp.ne.s32.totalorder %s21, %s24
    %p33 = scmp.eq.s32.totalorder %s16, 1
    %p34 = por %p32, %p33
    %p35 = scmp.ne.s32.totalorder %s24, %s25
    %p36 = scmp.eq.s32.totalorder %s16, 0
    %p37 = por %p35, %p36
    %p38 = scmp.ne.s32.totalorder %s24, %s25
    %p39 = scmp.eq.s32.totalorder %s17, 1
    %p40 = por %p38, %p39
    %p42 = scmp.ne.s32.totalorder %s25, %s41
    %p43 = scmp.eq.s32.totalorder %s17, 0
    %p44 = por %p42, %p43
    %s46 = sadd.s32 %s45, 1
    %p49 = scmp.eq.s32.totalorder %s11, 1
    %p50 = scmp.ne.s32.totalorder %s45, %s47
    %p51 = scmp.eq.s32.totalorder %s11, 0
    %p52 = por %p50, %p51
    %p53 = scmp.ne.s32.totalorder %s45, %s47
    %p54 = scmp.eq.s32.totalorder %s16, 1
    %p55 = por %p53, %p54
    %p56 = scmp.ne.s32.totalorder %s47, %s48
    %p57 = scmp.eq.s32.totalorder %s16, 0
    %p58 = por %p56, %p57
    %p59 = scmp.ne.s32.totalorder %s47, %s48
    %p60 = scmp.eq.s32.totalorder %s17, 1
    %p61 = por %p59, %p60
    %p63 = scmp.ne.s32.totalorder %s48, %s62
    %p64 = scmp.eq.s32.totalorder %s17, 0
    %p65 = por %p63, %p64
    %s67 = sadd.s32 %s66, 1
    %p70 = scmp.eq.s32.totalorder %s11, 1
    %p71 = scmp.ne.s32.totalorder %s66, %s68
    %p72 = scmp.eq.s32.totalorder %s11, 0
    %p73 = por %p71, %p72
    %p74 = scmp.ne.s32.totalorder %s66, %s68
    %p75 = scmp.eq.s32.totalorder %s16, 1
    %p76 = por %p74, %p75
    %p77 = scmp.ne.s32.totalorder %s68, %s69
    %p78 = scmp.eq.s32.totalorder %s16, 0
    %p79 = por %p77, %p78
    %p80 = scmp.ne.s32.totalorder %s68, %s69
    %p81 = scmp.eq.s32.totalorder %s17, 1
    %p82 = por %p80, %p81
    %p84 = scmp.ne.s32.totalorder %s69, %s83
    %p85 = scmp.eq.s32.totalorder %s17, 0
    %p86 = por %p84, %p85
    %s88 = sadd.s32 %s87, 1
    %p91 = scmp.eq.s32.totalorder %s11, 1
    %p92 = scmp.ne.s32.totalorder %s87, %s89
    %p93 = scmp.eq.s32.totalorder %s11, 0
    %p94 = por %p92, %p93
    %p95 = scmp.ne.s32.totalorder %s87, %s89
    %p96 = scmp.eq.s32.totalorder %s16, 1
    %p97 = por %p95, %p96
    %p98 = scmp.ne.s32.totalorder %s89, %s90
    %p99 = scmp.eq.s32.totalorder %s16, 0
    %p100 = por %p98, %p99
    %p101 = scmp.ne.s32.totalorder %s89, %s90
    %p102 = scmp.eq.s32.totalorder %s17, 1
    %p103 = por %p101, %p102
    %p105 = scmp.ne.s32.totalorder %s90, %s104
    %p106 = scmp.eq.s32.totalorder %s17, 0
    %p107 = por %p105, %p106
    %s109 = sadd.s32 %s108, 1
    %p112 = scmp.eq.s32.totalorder %s11, 1
    %p113 = scmp.ne.s32.totalorder %s108, %s110
    %p114 = scmp.eq.s32.totalorder %s11, 0
    %p115 = por %p113, %p114
    %p116 = scmp.ne.s32.totalorder %s108, %s110
    %p117 = scmp.eq.s32.totalorder %s16, 1
    %p118 = por %p116, %p117
    %p119 = scmp.ne.s32.totalorder %s110, %s111
    %p120 = scmp.eq.s32.totalorder %s16, 0
    %p121 = por %p119, %p120
    %p122 = scmp.ne.s32.totalorder %s110, %s111
    %p123 = scmp.eq.s32.totalorder %s17, 1
    %p124 = por %p122, %p123
    %p126 = scmp.ne.s32.totalorder %s111, %s125
    %p127 = scmp.eq.s32.totalorder %s17, 0
    %p128 = por %p126, %p127
    %s129 = ssub.s32 %s11, %s18
    %p130 = scmp.eq.s32.totalorder %s129, 0
    %s132 = sadd.s32 %s131, 1
    %s133 = scalar_select %p130, %s131, %s132
    %p136 = pneg %p130
    %p137 = scmp.eq.s32.totalorder %s11, 1
    %p138 = por %p136, %p137
    %p139 = scmp.ne.s32.totalorder %s131, %s134
    %p140 = scmp.eq.s32.totalorder %s11, 0
    %p141 = por %p139, %p140
    %p142 = scmp.ne.s32.totalorder %s131, %s134
    %p143 = scmp.eq.s32.totalorder %s16, 1
    %p144 = por %p142, %p143
    %p145 = scmp.ne.s32.totalorder %s134, %s135
    %p146 = scmp.eq.s32.totalorder %s16, 0
    %p147 = por %p145, %p146
    %p148 = scmp.ne.s32.totalorder %s134, %s135
    %p149 = scmp.eq.s32.totalorder %s17, 1
    %p150 = por %p148, %p149
    %p152 = scmp.ne.s32.totalorder %s135, %s151
    %p153 = scmp.eq.s32.totalorder %s17, 0
    %p154 = por %p152, %p153
    %p155 = scmp.le.s32.totalorder 1, %s11
    %p156 = scmp.lt.s32.totalorder %s11, 3
    %p157 = pnand %p155, %p156
    %p158 = pneg %p157
    // Predicated region
    $region9: #{forward.7} parent=5 // pred_check
      _
    $region10: #{forward.7} parent=5 // pred_check_branch
      %160 = sbr.rel (%p157) target = $region12
    $region11: #{forward.7} parent=5 // pred_region
      %s161 = ssub.s32 %s11, 1
      // Predicated region
      $region13: #{forward.7} parent=11 // pred_check
        %p162 = pneg %p58
      $region14: #{forward.7} parent=11 // pred_check_branch
        %164 = sbr.rel (%p162) target = $region16
      $region15: #{forward.7} parent=11 // pred_region
        _
      $region16: #{forward.7} parent=11 // pred_fallthru
        _
      // Predicated region
      $region17: #{forward.7} parent=11 // pred_check
        %p165 = pneg %p79
      $region18: #{forward.7} parent=11 // pred_check_branch
        %167 = sbr.rel (%p165) target = $region20
      $region19: #{forward.7} parent=11 // pred_region
        _
      $region20: #{forward.7} parent=11 // pred_fallthru
        _
      // Predicated region
      $region21: #{forward.7} parent=11 // pred_check
        %p168 = pneg %p100
      $region22: #{forward.7} parent=11 // pred_check_branch
        %170 = sbr.rel (%p168) target = $region24
      $region23: #{forward.7} parent=11 // pred_region
        _
      $region24: #{forward.7} parent=11 // pred_fallthru
        _
      // Predicated region
      $region25: #{forward.7} parent=11 // pred_check
        %p171 = pneg %p121
      $region26: #{forward.7} parent=11 // pred_check_branch
        %173 = sbr.rel (%p171) target = $region28
      $region27: #{forward.7} parent=11 // pred_region
        _
      $region28: #{forward.7} parent=11 // pred_fallthru
        _
    $region12: #{forward.7} parent=5 // pred_fallthru
      _
    %p174 = scmp.lt.s32.totalorder %s11, 2
    // Predicated region
    $region29: #{forward.7} parent=5 // pred_check
      %p175 = pneg %p174
    $region30: #{forward.7} parent=5 // pred_check_branch
      %177 = sbr.rel (%p175) target = $region32
    $region31: #{forward.7} parent=5 // pred_region
      // Predicated region
      $region33: #{forward.7} parent=31 // pred_check
        %p178 = pneg %p31
      $region34: #{forward.7} parent=31 // pred_check_branch
        %180 = sbr.rel (%p178) target = $region36
      $region35: #{forward.7} parent=31 // pred_region
        %p181 = scmp.lt.s32.totalorder %s11, 1
        %s182 = scalar_select %p181, %s11, 1
        %s183 = smul.addr %s182, 256
        %s184 = smul.addr %s183, 8
        %s185 = scalar_lea.vmem %s0, %s184
      $region36: #{forward.7} parent=31 // pred_fallthru
        _
    $region32: #{forward.7} parent=5 // pred_fallthru
      _
    %p186 = scmp.le.s32.totalorder 1, %s11
    %p187 = scmp.lt.s32.totalorder %s11, 3
    %p188 = pnand %p186, %p187
    %p189 = pneg %p188
    // Predicated region
    $region37: #{forward.7} parent=5 // pred_check
      _
    $region38: #{forward.7} parent=5 // pred_check_branch
      %191 = sbr.rel (%p188) target = $region40
    $region39: #{forward.7} parent=5 // pred_region
      %s192 = ssub.s32 %s11, 1
      %p193 = scmp.lt.s32.totalorder %s16, 1
      %s194 = scalar_select %p193, %s16, 1
      %s195 = smul.addr %s194, 256
      %s196 = smul.addr %s195, 8
      %s197 = scalar_lea.vmem %s0, %s196
      %p198 = pneg %p37
      %p199 = pneg %p34
      %p200 = pneg %p58
      %p201 = pneg %p55
      %p202 = pneg %p79
      %p203 = pneg %p76
      %p204 = pneg %p100
      %p205 = pneg %p97
      %p206 = pneg %p121
      %p207 = pneg %p118
      %p208 = pneg %p147
      %p209 = pneg %p144
      %p210 = scmp.lt.s32.totalorder %s16, 1
      %s211 = scalar_select %p210, %s16, 1
      %s212 = smul.addr %s211, 256
      %s213 = smul.addr %s212, 8
      %s214 = scalar_lea.vmem %s5, %s213
      %p215 = scmp.lt.s32.totalorder %s16, 1
      %s216 = scalar_select %p215, %s16, 1
      %s217 = smul.addr %s216, 256
      %s218 = smul.addr %s217, 8
      %s219 = scalar_lea.vmem %s0, %s218
      %p220 = scmp.lt.s32.totalorder %s16, 1
      %s221 = scalar_select %p220, %s16, 1
      %s222 = smul.addr %s221, 256
      %s223 = smul.addr %s222, 8
      %s224 = scalar_lea.vmem %s5, %s223
      %v226 = vld [vmem:[%s1] sm:$0xff]
      %v227 = vld [vmem:[%s1 + $0x8] sm:$0xff]
      %v228 = vld [vmem:[%s1 + $0x10] sm:$0xff]
      %v229 = vld [vmem:[%s1 + $0x18] sm:$0xff]
      %v230 = vld [vmem:[%s2] sm:$0xff]
      %v231 = vld [vmem:[%s2 + $0x8] sm:$0xff]
      %v232 = vld [vmem:[%s2 + $0x10] sm:$0xff]
      %v233 = vld [vmem:[%s2 + $0x18] sm:$0xff]
      %v234 = vld [vmem:[%s3] sm:$0xff]
      %v235 = vld [vmem:[%s3 + $0x8] sm:$0xff]
      %v236 = vld [vmem:[%s4] sm:$0xff]
      %v237 = vld [vmem:[%s4 + $0x8] sm:$0xff]
      %v238 = vlaneseq
      %v239 = vand.u32 %v238, 127
      %vm240 = vcmp.ne.s32.totalorder %v239, 0
      %vm241 = vcmp.ne.s32.totalorder %v239, 127
      %v242 = vlaneseq
      %v243 = vshrl.u32 %v242, 7
      %v244 = vadd.s32 %v243, 8
      %v245 = vadd.s32 %v243, 16
      %v246 = vadd.s32 %v243, 24
      %v247 = vadd.s32 %v243, 32
      %v248 = vadd.s32 %v243, 40
      %v249 = vadd.s32 %v243, 48
      %v250 = vadd.s32 %v243, 56
      %v251 = vadd.s32 %v243, 64
      %v252 = vadd.s32 %v243, 72
      %v253 = vadd.s32 %v243, 80
      %v254 = vadd.s32 %v243, 88
      %v255 = vadd.s32 %v243, 96
      %v256 = vadd.s32 %v243, 104
      %v257 = vadd.s32 %v243, 112
      %v258 = vadd.s32 %v243, 120
      %v259 = vmul.u32 %v239, 2
      %vm260 = vcmp.eq.s32.totalorder %v243, %v259
      %vm261 = vcmp.eq.s32.totalorder %v244, %v259
      %vm262 = vcmp.eq.s32.totalorder %v245, %v259
      %vm263 = vcmp.eq.s32.totalorder %v246, %v259
      %vm264 = vcmp.eq.s32.totalorder %v247, %v259
      %vm265 = vcmp.eq.s32.totalorder %v248, %v259
      %vm266 = vcmp.eq.s32.totalorder %v249, %v259
      %vm267 = vcmp.eq.s32.totalorder %v250, %v259
      %vm268 = vcmp.eq.s32.totalorder %v251, %v259
      %vm269 = vcmp.eq.s32.totalorder %v252, %v259
      %vm270 = vcmp.eq.s32.totalorder %v253, %v259
      %vm271 = vcmp.eq.s32.totalorder %v254, %v259
      %vm272 = vcmp.eq.s32.totalorder %v255, %v259
      %vm273 = vcmp.eq.s32.totalorder %v256, %v259
      %vm274 = vcmp.eq.s32.totalorder %v257, %v259
      %vm275 = vcmp.eq.s32.totalorder %v258, %v259
      %v276 = vsel %vm260, 1, 0
      %v277 = vsel %vm261, 1, 0
      %v278 = vsel %vm262, 1, 0
      %v279 = vsel %vm263, 1, 0
      %v280 = vsel %vm264, 1, 0
      %v281 = vsel %vm265, 1, 0
      %v282 = vsel %vm266, 1, 0
      %v283 = vsel %vm267, 1, 0
      %v284 = vsel %vm268, 1, 0
      %v285 = vsel %vm269, 1, 0
      %v286 = vsel %vm270, 1, 0
      %v287 = vsel %vm271, 1, 0
      %v288 = vsel %vm272, 1, 0
      %v289 = vsel %vm273, 1, 0
      %v290 = vsel %vm274, 1, 0
      %v291 = vsel %vm275, 1, 0
      %v292 = vcvt.s32.f32 %v276
      %v293 = vcvt.s32.f32 %v277
      %v294 = vcvt.s32.f32 %v278
      %v295 = vcvt.s32.f32 %v279
      %v296 = vcvt.s32.f32 %v280
      %v297 = vcvt.s32.f32 %v281
      %v298 = vcvt.s32.f32 %v282
      %v299 = vcvt.s32.f32 %v283
      %v300 = vcvt.s32.f32 %v284
      %v301 = vcvt.s32.f32 %v285
      %v302 = vcvt.s32.f32 %v286
      %v303 = vcvt.s32.f32 %v287
      %v304 = vcvt.s32.f32 %v288
      %v305 = vcvt.s32.f32 %v289
      %v306 = vcvt.s32.f32 %v290
      %v307 = vcvt.s32.f32 %v291
      %v308 = vpack.c.bf16 %v293, %v292
      %v309 = vpack.c.bf16 %v295, %v294
      %v310 = vpack.c.bf16 %v297, %v296
      %v311 = vpack.c.bf16 %v299, %v298
      %v312 = vpack.c.bf16 %v301, %v300
      %v313 = vpack.c.bf16 %v303, %v302
      %v314 = vpack.c.bf16 %v305, %v304
      %v315 = vpack.c.bf16 %v307, %v306
      loop: start=0, step=1, limit=64
      $region41: #{forward.7} parent=39 // loop_pre_header
        _
      $region42: #{forward.7} parent=39 // loop_header
        %s317 = sphi 0, %s321
        %p318 = scmp.ge.s32.totalorder %s317, 64
      $region43: #{forward.7} parent=39 // loop_header_branch
        %320 = sbr.rel (%p318) target = $region47
      $region44: #{forward.7} parent=39 // loop_body
        %s322 = smul.u32 %s317, 2
        %p323 = scmp.gt.s32.totalorder %s317, 0
        %s324 = scalar_select %p323, 1, 0
        %s325 = scvt.s32.f32 %s324
        %p326 = scmp.lt.s32.totalorder %s317, 63
        %s327 = scalar_select %p326, 1, 0
        %s328 = scvt.s32.f32 %s327
        %s329 = ssub.s32 %s322, 1
        %p330 = scmp.gt.s32.totalorder %s329, 0
        %s331 = scalar_select %p330, %s329, 0
        %s332 = smul.u32 %s331, 16
        %s333 = scalar_lea.vmem %s219, %s332
        %v334 = vld [vmem:[%s333] sm:$0xff]
        %v335 = vld [vmem:[%s333 + $0x8] sm:$0xff]
        %v336 = vstv %s325
        %v337 = vmul.f32 %v234, %v336
        %v338 = vmul.f32 %v235, %v336
        %340 = vset.pattern.permute.xlu0 0
        %341 = vperm.xlu0 %340, %v337
        %v342 = vpop.permute.xlu0 %341
        %345 = vset.pattern.permute.xlu0 0
        %346 = vperm.xlu0 %345, %v338
        %v347 = vpop.permute.xlu0 %346
        %v349 = vmul.f32 %v334, %v342
        %v350 = vmul.f32 %v335, %v347
        %v351 = vmul.f32 %v236, %v336
        %v352 = vmul.f32 %v237, %v336
        %354 = vset.pattern.permute.xlu0 0
        %355 = vperm.xlu0 %354, %v351
        %v356 = vpop.permute.xlu0 %355
        %359 = vset.pattern.permute.xlu0 0
        %360 = vperm.xlu0 %359, %v352
        %v361 = vpop.permute.xlu0 %360
        %v363 = vadd.f32 %v349, %v356
        %v364 = vadd.f32 %v350, %v361
        %s365 = smul.u32 %s322, 16
        %s366 = scalar_lea.vmem %s219, %s365
        %v367 = vld [vmem:[%s366] sm:$0xff]
        %v368 = vld [vmem:[%s366 + $0x8] sm:$0xff]
        %370 = vset.pattern.permute.xlu0 0
        %371 = vperm.xlu0 %370, %v234
        %v372 = vpop.permute.xlu0 %371
        %375 = vset.pattern.permute.xlu0 0
        %376 = vperm.xlu0 %375, %v235
        %v377 = vpop.permute.xlu0 %376
        %v379 = vmul.f32 %v367, %v372
        %v380 = vmul.f32 %v368, %v377
        %382 = vset.pattern.permute.xlu0 0
        %383 = vperm.xlu0 %382, %v236
        %v384 = vpop.permute.xlu0 %383
        %387 = vset.pattern.permute.xlu0 0
        %388 = vperm.xlu0 %387, %v237
        %v389 = vpop.permute.xlu0 %388
        %v391 = vadd.f32 %v379, %v384
        %v392 = vadd.f32 %v380, %v389
        %s393 = sadd.s32 %s322, 1
        %s394 = smul.u32 %s393, 16
        %s395 = scalar_lea.vmem %s219, %s394
        %v396 = vld [vmem:[%s395] sm:$0xff]
        %v397 = vld [vmem:[%s395 + $0x8] sm:$0xff]
        %v398 = vmul.f32 %v396, %v372
        %v399 = vmul.f32 %v397, %v377
        %v400 = vadd.f32 %v398, %v384
        %v401 = vadd.f32 %v399, %v389
        %s402 = sadd.s32 %s322, 2
        %p403 = scmp.lt.s32.totalorder %s402, 127
        %s404 = scalar_select %p403, %s402, 127
        %s405 = smul.u32 %s404, 16
        %s406 = scalar_lea.vmem %s219, %s405
        %v407 = vld [vmem:[%s406] sm:$0xff]
        %v408 = vld [vmem:[%s406 + $0x8] sm:$0xff]
        %v409 = vstv %s328
        %v410 = vmul.f32 %v234, %v409
        %v411 = vmul.f32 %v235, %v409
        %413 = vset.pattern.permute.xlu0 0
        %414 = vperm.xlu0 %413, %v410
        %v415 = vpop.permute.xlu0 %414
        %418 = vset.pattern.permute.xlu0 0
        %419 = vperm.xlu0 %418, %v411
        %v420 = vpop.permute.xlu0 %419
        %v422 = vmul.f32 %v407, %v415
        %v423 = vmul.f32 %v408, %v420
        %v424 = vmul.f32 %v236, %v409
        %v425 = vmul.f32 %v237, %v409
        %427 = vset.pattern.permute.xlu0 0
        %428 = vperm.xlu0 %427, %v424
        %v429 = vpop.permute.xlu0 %428
        %432 = vset.pattern.permute.xlu0 0
        %433 = vperm.xlu0 %432, %v425
        %v434 = vpop.permute.xlu0 %433
        %v436 = vadd.f32 %v422, %v429
        %v437 = vadd.f32 %v423, %v434
        %438 = vrot.lane.b32.xlu0 %v363, 1
        %v439 = vpop.permute.xlu0 %438
        %440 = vrot.lane.b32.xlu0 %v364, 1
        %v441 = vpop.permute.xlu0 %440
        %442 = vrot.lane.b32.xlu0 %v391, 1
        %v443 = vpop.permute.xlu0 %442
        %444 = vrot.lane.b32.xlu0 %v392, 1
        %v445 = vpop.permute.xlu0 %444
        %446 = vrot.lane.b32.xlu0 %v400, 1
        %v447 = vpop.permute.xlu0 %446
        %448 = vrot.lane.b32.xlu0 %v401, 1
        %v449 = vpop.permute.xlu0 %448
        %v450 = vsel %vm240, 1, 0
        %vm451 = vcmp.eq.s32.totalorder %v450, 1
        %v452 = vsel %vm451, %v439, 0.0
        %v453 = vsel %vm451, %v441, 0.0
        %v454 = vsel %vm451, %v443, 0.0
        %v455 = vsel %vm451, %v445, 0.0
        %v456 = vsel %vm451, %v447, 0.0
        %v457 = vsel %vm451, %v449, 0.0
        %458 = vrot.lane.b32.xlu0 %v363, 127
        %v459 = vpop.permute.xlu0 %458
        %460 = vrot.lane.b32.xlu0 %v364, 127
        %v461 = vpop.permute.xlu0 %460
        %462 = vrot.lane.b32.xlu0 %v391, 127
        %v463 = vpop.permute.xlu0 %462
        %464 = vrot.lane.b32.xlu0 %v392, 127
        %v465 = vpop.permute.xlu0 %464
        %466 = vrot.lane.b32.xlu0 %v400, 127
        %v467 = vpop.permute.xlu0 %466
        %468 = vrot.lane.b32.xlu0 %v401, 127
        %v469 = vpop.permute.xlu0 %468
        %v470 = vsel %vm241, 1, 0
        %vm471 = vcmp.eq.s32.totalorder %v470, 1
        %v472 = vsel %vm471, %v459, 0.0
        %v473 = vsel %vm471, %v461, 0.0
        %v474 = vsel %vm471, %v463, 0.0
        %v475 = vsel %vm471, %v465, 0.0
        %v476 = vsel %vm471, %v467, 0.0
        %v477 = vsel %vm471, %v469, 0.0
        %v478 = vpack.c.bf16 %v453, %v452
        %v479 = vpack.c.bf16 %v455, %v454
        %v480 = vpack.c.bf16 %v457, %v456
        %v481 = vpack.c.bf16 %v364, %v363
        %v482 = vpack.c.bf16 %v392, %v391
        %v483 = vpack.c.bf16 %v401, %v400
        %v484 = vpack.c.bf16 %v473, %v472
        %v485 = vpack.c.bf16 %v475, %v474
        %v486 = vpack.c.bf16 %v477, %v476
        %v491 = vunpack.c.l.b16 %v226
        %v492 = vunpack.c.h.b16 %v226
        %v493 = vunpack.c.l.b16 %v227
        %v494 = vunpack.c.h.b16 %v227
        %v495 = vunpack.c.l.b16 %v228
        %v496 = vunpack.c.h.b16 %v228
        %v497 = vunpack.c.l.b16 %v229
        %v498 = vunpack.c.h.b16 %v229
        %v499 = vpack.c.b16 %v493, %v491
        %v500 = vpack.c.b16 %v494, %v492
        %v501 = vpack.c.b16 %v497, %v495
        %v502 = vpack.c.b16 %v498, %v496
        %vm505 = vcmask 130048
        %v507 = vsel %vm505, %v500, 0
        %v510 = vsel %vm505, %v502, 0
        %512 = vmatpush.bf16.msra.mxu0 %v485
        %513 = vmatpush.bf16.msra.mxu0 %v484
        %514 = vmatpush.bf16.msra.mxu0 %v483
        %515 = vmatpush.bf16.msra.mxu0 %v482
        %516 = vmatpush.bf16.msra.mxu0 %v481
        %517 = vmatpush.bf16.msra.mxu0 %v480
        %518 = vmatpush.bf16.msra.mxu0 %v479
        %519 = vmatpush.bf16.msra.mxu0 %v478
        %520 = vmatmul.bf16.gmra.mxu0 %v499
        %v521 = vpop.f32.mrf.mxu0
        %v522 = vadd.f32 0.0, %v521
        %v523 = vpop.f32.mrf.mxu0
        %v524 = vadd.f32 0.0, %v523
        %525 = vmatmul.bf16.gmra.mxu0 %v501
        %v526 = vpop.f32.mrf.mxu0
        %v527 = vadd.f32 0.0, %v526
        %v528 = vpop.f32.mrf.mxu0
        %v529 = vadd.f32 0.0, %v528
        %530 = vdwg.mxu0
        %531 = vmatpush.bf16.msra.mxu0 0
        %532 = vmatpush.bf16.msra.mxu0 0
        %533 = vmatpush.bf16.msra.mxu0 0
        %534 = vmatpush.bf16.msra.mxu0 0
        %535 = vmatpush.bf16.msra.mxu0 0
        %536 = vmatpush.bf16.msra.mxu0 0
        %537 = vmatpush.bf16.msra.mxu0 0
        %538 = vmatpush.bf16.msra.mxu0 %v486
        %539 = vmatmul.bf16.gmra.mxu0 %v507
        %v540 = vpop.f32.mrf.mxu0
        %v541 = vadd.f32 %v522, %v540
        %v542 = vpop.f32.mrf.mxu0
        %v543 = vadd.f32 %v524, %v542
        %544 = vmatmul.bf16.gmra.mxu0 %v510
        %v545 = vpop.f32.mrf.mxu0
        %v546 = vadd.f32 %v527, %v545
        %v547 = vpop.f32.mrf.mxu0
        %v548 = vadd.f32 %v529, %v547
        %549 = vdwg.mxu0
        %550 = vrot.lane.b32.xlu0 %v436, 1
        %v551 = vpop.permute.xlu0 %550
        %552 = vrot.lane.b32.xlu0 %v437, 1
        %v553 = vpop.permute.xlu0 %552
        %v554 = vsel %vm451, %v551, 0.0
        %v555 = vsel %vm451, %v553, 0.0
        %556 = vrot.lane.b32.xlu0 %v436, 127
        %v557 = vpop.permute.xlu0 %556
        %558 = vrot.lane.b32.xlu0 %v437, 127
        %v559 = vpop.permute.xlu0 %558
        %v560 = vsel %vm471, %v557, 0.0
        %v561 = vsel %vm471, %v559, 0.0
        %v562 = vpack.c.bf16 %v555, %v554
        %v563 = vpack.c.bf16 %v437, %v436
        %v564 = vpack.c.bf16 %v561, %v560
        %565 = vmatpush.bf16.msra.mxu0 %v486
        %566 = vmatpush.bf16.msra.mxu0 %v485
        %567 = vmatpush.bf16.msra.mxu0 %v563
        %568 = vmatpush.bf16.msra.mxu0 %v483
        %569 = vmatpush.bf16.msra.mxu0 %v482
        %570 = vmatpush.bf16.msra.mxu0 %v562
        %571 = vmatpush.bf16.msra.mxu0 %v480
        %572 = vmatpush.bf16.msra.mxu0 %v479
        %573 = vmatmul.bf16.gmra.mxu0 %v499
        %v574 = vpop.f32.mrf.mxu0
        %v575 = vadd.f32 0.0, %v574
        %v576 = vpop.f32.mrf.mxu0
        %v577 = vadd.f32 0.0, %v576
        %578 = vmatmul.bf16.gmra.mxu0 %v501
        %v579 = vpop.f32.mrf.mxu0
        %v580 = vadd.f32 0.0, %v579
        %v581 = vpop.f32.mrf.mxu0
        %v582 = vadd.f32 0.0, %v581
        %583 = vdwg.mxu0
        %584 = vmatpush.bf16.msra.mxu0 0
        %585 = vmatpush.bf16.msra.mxu0 0
        %586 = vmatpush.bf16.msra.mxu0 0
        %587 = vmatpush.bf16.msra.mxu0 0
        %588 = vmatpush.bf16.msra.mxu0 0
        %589 = vmatpush.bf16.msra.mxu0 0
        %590 = vmatpush.bf16.msra.mxu0 0
        %591 = vmatpush.bf16.msra.mxu0 %v564
        %592 = vmatmul.bf16.gmra.mxu0 %v507
        %v593 = vpop.f32.mrf.mxu0
        %v594 = vadd.f32 %v575, %v593
        %v595 = vpop.f32.mrf.mxu0
        %v596 = vadd.f32 %v577, %v595
        %597 = vmatmul.bf16.gmra.mxu0 %v510
        %v598 = vpop.f32.mrf.mxu0
        %v599 = vadd.f32 %v580, %v598
        %v600 = vpop.f32.mrf.mxu0
        %v601 = vadd.f32 %v582, %v600
        %602 = vdwg.mxu0
        %v603 = vmax.f32 %v541, %v594
        %v604 = vmax.f32 %v543, %v596
        %v605 = vmax.f32 %v546, %v599
        %v606 = vmax.f32 %v548, %v601
        %608 = vset.pattern.permute.xlu0 0
        %609 = vperm.xlu0 %608, %v230
        %v610 = vpop.permute.xlu0 %609
        %613 = vset.pattern.permute.xlu0 0
        %614 = vperm.xlu0 %613, %v231
        %v615 = vpop.permute.xlu0 %614
        %618 = vset.pattern.permute.xlu0 0
        %619 = vperm.xlu0 %618, %v232
        %v620 = vpop.permute.xlu0 %619
        %623 = vset.pattern.permute.xlu0 0
        %624 = vperm.xlu0 %623, %v233
        %v625 = vpop.permute.xlu0 %624
        %v627 = vadd.f32 %v603, %v610
        %v628 = vadd.f32 %v604, %v615
        %v629 = vadd.f32 %v605, %v620
        %v630 = vadd.f32 %v606, %v625
        %v631 = vmax.f32 %v627, 0.0
        %v632 = vmax.f32 %v628, 0.0
        %v633 = vmax.f32 %v629, 0.0
        %v634 = vmax.f32 %v630, 0.0
        %635 = vrot.lane.b32.xlu0 %v631, 127
        %v636 = vpop.permute.xlu0 %635
        %637 = vrot.lane.b32.xlu0 %v632, 127
        %v638 = vpop.permute.xlu0 %637
        %639 = vrot.lane.b32.xlu0 %v633, 127
        %v640 = vpop.permute.xlu0 %639
        %641 = vrot.lane.b32.xlu0 %v634, 127
        %v642 = vpop.permute.xlu0 %641
        %v643 = vmax.f32 %v631, %v636
        %v644 = vmax.f32 %v632, %v638
        %v645 = vmax.f32 %v633, %v640
        %v646 = vmax.f32 %v634, %v642
        %v647 = vpack.c.bf16 %v644, %v643
        %v648 = vpack.c.bf16 %v646, %v645
        %649 = vmatpush.bf16.msra.mxu0 %v315
        %650 = vmatpush.bf16.msra.mxu0 %v314
        %651 = vmatpush.bf16.msra.mxu0 %v313
        %652 = vmatpush.bf16.msra.mxu0 %v312
        %653 = vmatpush.bf16.msra.mxu0 %v311
        %654 = vmatpush.bf16.msra.mxu0 %v310
        %655 = vmatpush.bf16.msra.mxu0 %v309
        %656 = vmatpush.bf16.msra.mxu0 %v308
        %657 = vmatmul.bf16.gmra.mxu0 %v647
        %v658 = vpop.f32.mrf.mxu0
        %v659 = vadd.f32 0.0, %v658
        %v660 = vpop.f32.mrf.mxu0
        %v661 = vadd.f32 0.0, %v660
        %662 = vmatmul.bf16.gmra.mxu0 %v648
        %v663 = vpop.f32.mrf.mxu0
        %v664 = vadd.f32 0.0, %v663
        %v665 = vpop.f32.mrf.mxu0
        %v666 = vadd.f32 0.0, %v665
        %667 = vdwg.mxu0
        %s668 = smul.u32 %s317, 32
        %s669 = scalar_lea.vmem %s224, %s668
        %vm670 = vcmask 523264
        %671 = vst.msk [vmem:[%s669] sm:$0xff] %vm670, %v659
        %672 = vst.msk [vmem:[%s669 + $0x8] sm:$0xff] %vm670, %v661
        %673 = vst.msk [vmem:[%s669 + $0x10] sm:$0xff] %vm670, %v664
        %674 = vst.msk [vmem:[%s669 + $0x18] sm:$0xff] %vm670, %v666
      $region45: #{forward.7} parent=39 // loop_footer
        %s321 = sadd.s32 1, %s317
      $region46: #{forward.7} parent=39 // loop_footer_branch
        %316 = sbr.rel target = $region42
      $region47: #{forward.7} parent=39 // loop_exit
        _
      %p675 = scmp.lt.s32.totalorder %s16, 1
      %s676 = scalar_select %p675, %s16, 1
      %s677 = smul.addr %s676, 256
      %s678 = smul.addr %s677, 8
      %s679 = scalar_lea.vmem %s5, %s678
      // Predicated region
      $region48: #{forward.7} parent=39 // pred_check
        %p680 = pneg %p144
      $region49: #{forward.7} parent=39 // pred_check_branch
        %682 = sbr.rel (%p680) target = $region51
      $region50: #{forward.7} parent=39 // pred_region
        _
      $region51: #{forward.7} parent=39 // pred_fallthru
        _
    $region40: #{forward.7} parent=5 // pred_fallthru
      _
    %p683 = scmp.le.s32.totalorder 2, %s11
    // Predicated region
    $region52: #{forward.7} parent=5 // pred_check
      %p684 = pneg %p683
    $region53: #{forward.7} parent=5 // pred_check_branch
      %686 = sbr.rel (%p684) target = $region55
    $region54: #{forward.7} parent=5 // pred_region
      %s687 = ssub.s32 %s11, 2
      // Predicated region
      $region56: #{forward.7} parent=54 // pred_check
        %p688 = pneg %p150
      $region57: #{forward.7} parent=54 // pred_check_branch
        %690 = sbr.rel (%p688) target = $region59
      $region58: #{forward.7} parent=54 // pred_region
        %p691 = scmp.lt.s32.totalorder %s17, 1
        %s692 = scalar_select %p691, %s17, 1
        %s693 = smul.addr %s692, 256
        %s694 = smul.addr %s693, 8
        %s695 = scalar_lea.vmem %s5, %s694
      $region59: #{forward.7} parent=54 // pred_fallthru
        _
    $region55: #{forward.7} parent=5 // pred_fallthru
      _
  $region6: #{forward.7} parent=0 // loop_footer
    %s15 = sadd.s32 1, %s11
  $region7: #{forward.7} parent=0 // loop_footer_branch
    %10 = sbr.rel target = $region3
  $region8: #{forward.7} parent=0 // loop_exit
    _

// kernel: forward.8
$region0: #{forward.8}
  #allocation0 [shape = 'u32[]', space=smem, size = 0x4, offset = 0x4, fixed_abs, tag = 'smem constant byte address 0x4 - core index']
  #allocation1 [shape = 'u32[72,128]{1,0:T(1,128)}', space=vmem, size = 0x9000, scoped, tag = 'internal scratch']
  %s0 = inlined_call_operand.vmem [shape: f32[2,64,32,64], index: 0, kind: input, shape index: {}]
  %s1 = inlined_call_operand.vmem [shape: bf16[64,288], index: 1, kind: input, shape index: {}]
  %s2 = inlined_call_operand.vmem [shape: f32[64,1], index: 2, kind: input, shape index: {}]
  %s3 = inlined_call_operand.vmem [shape: f32[32,1], index: 3, kind: input, shape index: {}]
  %s4 = inlined_call_operand.vmem [shape: f32[32,1], index: 4, kind: input, shape index: {}]
  %s5 = inlined_call_operand.vmem [shape: f32[2,32,64,32], index: 5, kind: output, shape index: {}]
  %s6 = sld [smem:[#allocation0]]
  $region60: #{forward.8} parent=0
    _
  %s8 = ssub.s32 1, %s6
  %s9 = scalar_select 0, %s8, %s6
  loop: start=0, step=1, limit=4
  $region2: #{forward.8} parent=0 // loop_pre_header
    _
  $region3: #{forward.8} parent=0 // loop_header
    %s11 = sphi 0, %s15
    %p12 = scmp.ge.s32.totalorder %s11, 4
    %s21 = sphi 0, %s23
    %s24 = sphi 0, %s21
    %s25 = sphi 0, %s24
    %s41 = sphi 0, %s25
    %s45 = sphi 0, %s45
    %s47 = sphi 0, %s45
    %s48 = sphi 0, %s47
    %s62 = sphi 0, %s48
    %s66 = sphi 0, %s66
    %s68 = sphi 0, %s66
    %s69 = sphi 0, %s68
    %s83 = sphi 0, %s69
    %s87 = sphi 0, %s87
    %s89 = sphi 0, %s87
    %s90 = sphi 0, %s89
    %s104 = sphi 0, %s90
    %s108 = sphi 0, %s108
    %s110 = sphi 0, %s108
    %s111 = sphi 0, %s110
    %s125 = sphi 0, %s111
    %s131 = sphi 0, %s133
    %s134 = sphi 0, %s131
    %s135 = sphi 0, %s134
    %s151 = sphi 0, %s135
  $region4: #{forward.8} parent=0 // loop_header_branch
    %14 = sbr.rel (%p12) target = $region8
  $region5: #{forward.8} parent=0 // loop_body
    %s16 = ssub.s32 %s11, 1
    %s17 = ssub.s32 %s11, 2
    %s18 = sadd.s32 %s11, 1
    %s19 = ssub.s32 %s11, %s18
    %p20 = scmp.eq.s32.totalorder %s19, 0
    %s22 = sadd.s32 %s21, 1
    %s23 = scalar_select %p20, %s21, %s22
    %p26 = pneg %p20
    %p27 = scmp.eq.s32.totalorder %s11, 1
    %p28 = por %p26, %p27
    %p29 = scmp.ne.s32.totalorder %s21, %s24
    %p30 = scmp.eq.s32.totalorder %s11, 0
    %p31 = por %p29, %p30
    %p32 = scmp.ne.s32.totalorder %s21, %s24
    %p33 = scmp.eq.s32.totalorder %s16, 1
    %p34 = por %p32, %p33
    %p35 = scmp.ne.s32.totalorder %s24, %s25
    %p36 = scmp.eq.s32.totalorder %s16, 0
    %p37 = por %p35, %p36
    %p38 = scmp.ne.s32.totalorder %s24, %s25
    %p39 = scmp.eq.s32.totalorder %s17, 1
    %p40 = por %p38, %p39
    %p42 = scmp.ne.s32.totalorder %s25, %s41
    %p43 = scmp.eq.s32.totalorder %s17, 0
    %p44 = por %p42, %p43
    %s46 = sadd.s32 %s45, 1
    %p49 = scmp.eq.s32.totalorder %s11, 1
    %p50 = scmp.ne.s32.totalorder %s45, %s47
    %p51 = scmp.eq.s32.totalorder %s11, 0
    %p52 = por %p50, %p51
    %p53 = scmp.ne.s32.totalorder %s45, %s47
    %p54 = scmp.eq.s32.totalorder %s16, 1
    %p55 = por %p53, %p54
    %p56 = scmp.ne.s32.totalorder %s47, %s48
    %p57 = scmp.eq.s32.totalorder %s16, 0
    %p58 = por %p56, %p57
    %p59 = scmp.ne.s32.totalorder %s47, %s48
    %p60 = scmp.eq.s32.totalorder %s17, 1
    %p61 = por %p59, %p60
    %p63 = scmp.ne.s32.totalorder %s48, %s62
    %p64 = scmp.eq.s32.totalorder %s17, 0
    %p65 = por %p63, %p64
    %s67 = sadd.s32 %s66, 1
    %p70 = scmp.eq.s32.totalorder %s11, 1
    %p71 = scmp.ne.s32.totalorder %s66, %s68
    %p72 = scmp.eq.s32.totalorder %s11, 0
    %p73 = por %p71, %p72
    %p74 = scmp.ne.s32.totalorder %s66, %s68
    %p75 = scmp.eq.s32.totalorder %s16, 1
    %p76 = por %p74, %p75
    %p77 = scmp.ne.s32.totalorder %s68, %s69
    %p78 = scmp.eq.s32.totalorder %s16, 0
    %p79 = por %p77, %p78
    %p80 = scmp.ne.s32.totalorder %s68, %s69
    %p81 = scmp.eq.s32.totalorder %s17, 1
    %p82 = por %p80, %p81
    %p84 = scmp.ne.s32.totalorder %s69, %s83
    %p85 = scmp.eq.s32.totalorder %s17, 0
    %p86 = por %p84, %p85
    %s88 = sadd.s32 %s87, 1
    %p91 = scmp.eq.s32.totalorder %s11, 1
    %p92 = scmp.ne.s32.totalorder %s87, %s89
    %p93 = scmp.eq.s32.totalorder %s11, 0
    %p94 = por %p92, %p93
    %p95 = scmp.ne.s32.totalorder %s87, %s89
    %p96 = scmp.eq.s32.totalorder %s16, 1
    %p97 = por %p95, %p96
    %p98 = scmp.ne.s32.totalorder %s89, %s90
    %p99 = scmp.eq.s32.totalorder %s16, 0
    %p100 = por %p98, %p99
    %p101 = scmp.ne.s32.totalorder %s89, %s90
    %p102 = scmp.eq.s32.totalorder %s17, 1
    %p103 = por %p101, %p102
    %p105 = scmp.ne.s32.totalorder %s90, %s104
    %p106 = scmp.eq.s32.totalorder %s17, 0
    %p107 = por %p105, %p106
    %s109 = sadd.s32 %s108, 1
    %p112 = scmp.eq.s32.totalorder %s11, 1
    %p113 = scmp.ne.s32.totalorder %s108, %s110
    %p114 = scmp.eq.s32.totalorder %s11, 0
    %p115 = por %p113, %p114
    %p116 = scmp.ne.s32.totalorder %s108, %s110
    %p117 = scmp.eq.s32.totalorder %s16, 1
    %p118 = por %p116, %p117
    %p119 = scmp.ne.s32.totalorder %s110, %s111
    %p120 = scmp.eq.s32.totalorder %s16, 0
    %p121 = por %p119, %p120
    %p122 = scmp.ne.s32.totalorder %s110, %s111
    %p123 = scmp.eq.s32.totalorder %s17, 1
    %p124 = por %p122, %p123
    %p126 = scmp.ne.s32.totalorder %s111, %s125
    %p127 = scmp.eq.s32.totalorder %s17, 0
    %p128 = por %p126, %p127
    %s129 = ssub.s32 %s11, %s18
    %p130 = scmp.eq.s32.totalorder %s129, 0
    %s132 = sadd.s32 %s131, 1
    %s133 = scalar_select %p130, %s131, %s132
    %p136 = pneg %p130
    %p137 = scmp.eq.s32.totalorder %s11, 1
    %p138 = por %p136, %p137
    %p139 = scmp.ne.s32.totalorder %s131, %s134
    %p140 = scmp.eq.s32.totalorder %s11, 0
    %p141 = por %p139, %p140
    %p142 = scmp.ne.s32.totalorder %s131, %s134
    %p143 = scmp.eq.s32.totalorder %s16, 1
    %p144 = por %p142, %p143
    %p145 = scmp.ne.s32.totalorder %s134, %s135
    %p146 = scmp.eq.s32.totalorder %s16, 0
    %p147 = por %p145, %p146
    %p148 = scmp.ne.s32.totalorder %s134, %s135
    %p149 = scmp.eq.s32.totalorder %s17, 1
    %p150 = por %p148, %p149
    %p152 = scmp.ne.s32.totalorder %s135, %s151
    %p153 = scmp.eq.s32.totalorder %s17, 0
    %p154 = por %p152, %p153
    %p155 = scmp.le.s32.totalorder 1, %s11
    %p156 = scmp.lt.s32.totalorder %s11, 3
    %p157 = pnand %p155, %p156
    %p158 = pneg %p157
    // Predicated region
    $region9: #{forward.8} parent=5 // pred_check
      _
    $region10: #{forward.8} parent=5 // pred_check_branch
      %160 = sbr.rel (%p157) target = $region12
    $region11: #{forward.8} parent=5 // pred_region
      %s161 = ssub.s32 %s11, 1
      // Predicated region
      $region13: #{forward.8} parent=11 // pred_check
        %p162 = pneg %p58
      $region14: #{forward.8} parent=11 // pred_check_branch
        %164 = sbr.rel (%p162) target = $region16
      $region15: #{forward.8} parent=11 // pred_region
        _
      $region16: #{forward.8} parent=11 // pred_fallthru
        _
      // Predicated region
      $region17: #{forward.8} parent=11 // pred_check
        %p165 = pneg %p79
      $region18: #{forward.8} parent=11 // pred_check_branch
        %167 = sbr.rel (%p165) target = $region20
      $region19: #{forward.8} parent=11 // pred_region
        _
      $region20: #{forward.8} parent=11 // pred_fallthru
        _
      // Predicated region
      $region21: #{forward.8} parent=11 // pred_check
        %p168 = pneg %p100
      $region22: #{forward.8} parent=11 // pred_check_branch
        %170 = sbr.rel (%p168) target = $region24
      $region23: #{forward.8} parent=11 // pred_region
        _
      $region24: #{forward.8} parent=11 // pred_fallthru
        _
      // Predicated region
      $region25: #{forward.8} parent=11 // pred_check
        %p171 = pneg %p121
      $region26: #{forward.8} parent=11 // pred_check_branch
        %173 = sbr.rel (%p171) target = $region28
      $region27: #{forward.8} parent=11 // pred_region
        _
      $region28: #{forward.8} parent=11 // pred_fallthru
        _
    $region12: #{forward.8} parent=5 // pred_fallthru
      _
    %p174 = scmp.lt.s32.totalorder %s11, 2
    // Predicated region
    $region29: #{forward.8} parent=5 // pred_check
      %p175 = pneg %p174
    $region30: #{forward.8} parent=5 // pred_check_branch
      %177 = sbr.rel (%p175) target = $region32
    $region31: #{forward.8} parent=5 // pred_region
      // Predicated region
      $region33: #{forward.8} parent=31 // pred_check
        %p178 = pneg %p31
      $region34: #{forward.8} parent=31 // pred_check_branch
        %180 = sbr.rel (%p178) target = $region36
      $region35: #{forward.8} parent=31 // pred_region
        %p181 = scmp.lt.s32.totalorder %s11, 1
        %s182 = scalar_select %p181, %s11, 1
        %s183 = smul.addr %s182, 256
        %s184 = smul.addr %s183, 8
        %s185 = scalar_lea.vmem %s0, %s184
      $region36: #{forward.8} parent=31 // pred_fallthru
        _
    $region32: #{forward.8} parent=5 // pred_fallthru
      _
    %p186 = scmp.le.s32.totalorder 1, %s11
    %p187 = scmp.lt.s32.totalorder %s11, 3
    %p188 = pnand %p186, %p187
    %p189 = pneg %p188
    // Predicated region
    $region37: #{forward.8} parent=5 // pred_check
      _
    $region38: #{forward.8} parent=5 // pred_check_branch
      %191 = sbr.rel (%p188) target = $region40
    $region39: #{forward.8} parent=5 // pred_region
      %s192 = ssub.s32 %s11, 1
      %p193 = scmp.lt.s32.totalorder %s16, 1
      %s194 = scalar_select %p193, %s16, 1
      %s195 = smul.addr %s194, 256
      %s196 = smul.addr %s195, 8
      %s197 = scalar_lea.vmem %s0, %s196
      %p198 = pneg %p37
      %p199 = pneg %p34
      %p200 = pneg %p58
      %p201 = pneg %p55
      %p202 = pneg %p79
      %p203 = pneg %p76
      %p204 = pneg %p100
      %p205 = pneg %p97
      %p206 = pneg %p121
      %p207 = pneg %p118
      %p208 = pneg %p147
      %p209 = pneg %p144
      %p210 = scmp.lt.s32.totalorder %s16, 1
      %s211 = scalar_select %p210, %s16, 1
      %s212 = smul.addr %s211, 256
      %s213 = smul.addr %s212, 8
      %s214 = scalar_lea.vmem %s5, %s213
      %p215 = scmp.lt.s32.totalorder %s16, 1
      %s216 = scalar_select %p215, %s16, 1
      %s217 = smul.addr %s216, 256
      %s218 = smul.addr %s217, 8
      %s219 = scalar_lea.vmem %s0, %s218
      %p220 = scmp.lt.s32.totalorder %s16, 1
      %s221 = scalar_select %p220, %s16, 1
      %s222 = smul.addr %s221, 256
      %s223 = smul.addr %s222, 8
      %s224 = scalar_lea.vmem %s5, %s223
      %v226 = vld [vmem:[%s1] sm:$0xff]
      %v227 = vld [vmem:[%s1 + $0x8] sm:$0xf]
      %v228 = vld [vmem:[%s1 + $0xc] sm:$0xff]
      %v229 = vld [vmem:[%s1 + $0x14] sm:$0xf]
      %v230 = vld [vmem:[%s1 + $0x18] sm:$0xff]
      %v231 = vld [vmem:[%s1 + $0x20] sm:$0xf]
      %v232 = vld [vmem:[%s1 + $0x24] sm:$0xff]
      %v233 = vld [vmem:[%s1 + $0x2c] sm:$0xf]
      %v234 = vld [vmem:[%s1 + $0x30] sm:$0xff]
      %v235 = vld [vmem:[%s1 + $0x38] sm:$0xf]
      %v236 = vld [vmem:[%s1 + $0x3c] sm:$0xff]
      %v237 = vld [vmem:[%s1 + $0x44] sm:$0xf]
      %v238 = vld [vmem:[%s1 + $0x48] sm:$0xff]
      %v239 = vld [vmem:[%s1 + $0x50] sm:$0xf]
      %v240 = vld [vmem:[%s1 + $0x54] sm:$0xff]
      %v241 = vld [vmem:[%s1 + $0x5c] sm:$0xf]
      %v242 = vld [vmem:[%s2] sm:$0xff]
      %v243 = vld [vmem:[%s2 + $0x8] sm:$0xff]
      %v244 = vld [vmem:[%s2 + $0x10] sm:$0xff]
      %v245 = vld [vmem:[%s2 + $0x18] sm:$0xff]
      %v246 = vld [vmem:[%s2 + $0x20] sm:$0xff]
      %v247 = vld [vmem:[%s2 + $0x28] sm:$0xff]
      %v248 = vld [vmem:[%s2 + $0x30] sm:$0xff]
      %v249 = vld [vmem:[%s2 + $0x38] sm:$0xff]
      %v250 = vld [vmem:[%s3] sm:$0xff]
      %v251 = vld [vmem:[%s3 + $0x8] sm:$0xff]
      %v252 = vld [vmem:[%s3 + $0x10] sm:$0xff]
      %v253 = vld [vmem:[%s3 + $0x18] sm:$0xff]
      %v254 = vld [vmem:[%s4] sm:$0xff]
      %v255 = vld [vmem:[%s4 + $0x8] sm:$0xff]
      %v256 = vld [vmem:[%s4 + $0x10] sm:$0xff]
      %v257 = vld [vmem:[%s4 + $0x18] sm:$0xff]
      %v258 = vlaneseq
      %v259 = vand.u32 %v258, 127
      %vm260 = vcmp.ne.s32.totalorder %v259, 0
      %vm261 = vcmp.ne.s32.totalorder %v259, 63
      %v262 = vlaneseq
      %v263 = vshrl.u32 %v262, 7
      %v264 = vadd.s32 %v263, 8
      %v265 = vadd.s32 %v263, 16
      %v266 = vadd.s32 %v263, 24
      %v267 = vadd.s32 %v263, 32
      %v268 = vadd.s32 %v263, 40
      %v269 = vadd.s32 %v263, 48
      %v270 = vadd.s32 %v263, 56
      %v271 = vmul.u32 %v259, 2
      %vm272 = vcmp.eq.s32.totalorder %v263, %v271
      %vm273 = vcmp.eq.s32.totalorder %v264, %v271
      %vm274 = vcmp.eq.s32.totalorder %v265, %v271
      %vm275 = vcmp.eq.s32.totalorder %v266, %v271
      %vm276 = vcmp.eq.s32.totalorder %v267, %v271
      %vm277 = vcmp.eq.s32.totalorder %v268, %v271
      %vm278 = vcmp.eq.s32.totalorder %v269, %v271
      %vm279 = vcmp.eq.s32.totalorder %v270, %v271
      %v280 = vsel %vm272, 1, 0
      %v281 = vsel %vm273, 1, 0
      %v282 = vsel %vm274, 1, 0
      %v283 = vsel %vm275, 1, 0
      %v284 = vsel %vm276, 1, 0
      %v285 = vsel %vm277, 1, 0
      %v286 = vsel %vm278, 1, 0
      %v287 = vsel %vm279, 1, 0
      %v288 = vcvt.s32.f32 %v280
      %v289 = vcvt.s32.f32 %v281
      %v290 = vcvt.s32.f32 %v282
      %v291 = vcvt.s32.f32 %v283
      %v292 = vcvt.s32.f32 %v284
      %v293 = vcvt.s32.f32 %v285
      %v294 = vcvt.s32.f32 %v286
      %v295 = vcvt.s32.f32 %v287
      %v296 = vpack.c.bf16 %v289, %v288
      %v297 = vpack.c.bf16 %v291, %v290
      %v298 = vpack.c.bf16 %v293, %v292
      %v299 = vpack.c.bf16 %v295, %v294
      loop: start=0, step=1, limit=32
      $region41: #{forward.8} parent=39 // loop_pre_header
        _
      $region42: #{forward.8} parent=39 // loop_header
        %s301 = sphi 0, %s305
        %p302 = scmp.ge.s32.totalorder %s301, 32
      $region43: #{forward.8} parent=39 // loop_header_branch
        %304 = sbr.rel (%p302) target = $region47
      $region44: #{forward.8} parent=39 // loop_body
        %s306 = smul.u32 %s301, 2
        %p307 = scmp.gt.s32.totalorder %s301, 0
        %s308 = scalar_select %p307, 1, 0
        %s309 = scvt.s32.f32 %s308
        %p310 = scmp.lt.s32.totalorder %s301, 31
        %s311 = scalar_select %p310, 1, 0
        %s312 = scvt.s32.f32 %s311
        %s313 = ssub.s32 %s306, 1
        %p314 = scmp.gt.s32.totalorder %s313, 0
        %s315 = scalar_select %p314, %s313, 0
        %s316 = smul.u32 %s315, 32
        %s317 = scalar_lea.vmem %s219, %s316
        %v318 = vld [vmem:[%s317] sm:$0xff]
        %v319 = vld [vmem:[%s317 + $0x8] sm:$0xff]
        %v320 = vld [vmem:[%s317 + $0x10] sm:$0xff]
        %v321 = vld [vmem:[%s317 + $0x18] sm:$0xff]
        %v322 = vstv %s309
        %v323 = vmul.f32 %v250, %v322
        %v324 = vmul.f32 %v251, %v322
        %v325 = vmul.f32 %v252, %v322
        %v326 = vmul.f32 %v253, %v322
        %328 = vset.pattern.permute.xlu0 0
        %329 = vperm.xlu0 %328, %v323
        %v330 = vpop.permute.xlu0 %329
        %333 = vset.pattern.permute.xlu0 0
        %334 = vperm.xlu0 %333, %v324
        %v335 = vpop.permute.xlu0 %334
        %338 = vset.pattern.permute.xlu0 0
        %339 = vperm.xlu0 %338, %v325
        %v340 = vpop.permute.xlu0 %339
        %343 = vset.pattern.permute.xlu0 0
        %344 = vperm.xlu0 %343, %v326
        %v345 = vpop.permute.xlu0 %344
        %v347 = vmul.f32 %v318, %v330
        %v348 = vmul.f32 %v319, %v335
        %v349 = vmul.f32 %v320, %v340
        %v350 = vmul.f32 %v321, %v345
        %v351 = vmul.f32 %v254, %v322
        %v352 = vmul.f32 %v255, %v322
        %v353 = vmul.f32 %v256, %v322
        %v354 = vmul.f32 %v257, %v322
        %356 = vset.pattern.permute.xlu0 0
        %357 = vperm.xlu0 %356, %v351
        %v358 = vpop.permute.xlu0 %357
        %361 = vset.pattern.permute.xlu0 0
        %362 = vperm.xlu0 %361, %v352
        %v363 = vpop.permute.xlu0 %362
        %366 = vset.pattern.permute.xlu0 0
        %367 = vperm.xlu0 %366, %v353
        %v368 = vpop.permute.xlu0 %367
        %371 = vset.pattern.permute.xlu0 0
        %372 = vperm.xlu0 %371, %v354
        %v373 = vpop.permute.xlu0 %372
        %v375 = vadd.f32 %v347, %v358
        %v376 = vadd.f32 %v348, %v363
        %v377 = vadd.f32 %v349, %v368
        %v378 = vadd.f32 %v350, %v373
        %s379 = smul.u32 %s306, 32
        %s380 = scalar_lea.vmem %s219, %s379
        %v381 = vld [vmem:[%s380] sm:$0xff]
        %v382 = vld [vmem:[%s380 + $0x8] sm:$0xff]
        %v383 = vld [vmem:[%s380 + $0x10] sm:$0xff]
        %v384 = vld [vmem:[%s380 + $0x18] sm:$0xff]
        %386 = vset.pattern.permute.xlu0 0
        %387 = vperm.xlu0 %386, %v250
        %v388 = vpop.permute.xlu0 %387
        %391 = vset.pattern.permute.xlu0 0
        %392 = vperm.xlu0 %391, %v251
        %v393 = vpop.permute.xlu0 %392
        %396 = vset.pattern.permute.xlu0 0
        %397 = vperm.xlu0 %396, %v252
        %v398 = vpop.permute.xlu0 %397
        %401 = vset.pattern.permute.xlu0 0
        %402 = vperm.xlu0 %401, %v253
        %v403 = vpop.permute.xlu0 %402
        %v405 = vmul.f32 %v381, %v388
        %v406 = vmul.f32 %v382, %v393
        %v407 = vmul.f32 %v383, %v398
        %v408 = vmul.f32 %v384, %v403
        %410 = vset.pattern.permute.xlu0 0
        %411 = vperm.xlu0 %410, %v254
        %v412 = vpop.permute.xlu0 %411
        %415 = vset.pattern.permute.xlu0 0
        %416 = vperm.xlu0 %415, %v255
        %v417 = vpop.permute.xlu0 %416
        %420 = vset.pattern.permute.xlu0 0
        %421 = vperm.xlu0 %420, %v256
        %v422 = vpop.permute.xlu0 %421
        %425 = vset.pattern.permute.xlu0 0
        %426 = vperm.xlu0 %425, %v257
        %v427 = vpop.permute.xlu0 %426
        %v429 = vadd.f32 %v405, %v412
        %v430 = vadd.f32 %v406, %v417
        %v431 = vadd.f32 %v407, %v422
        %v432 = vadd.f32 %v408, %v427
        %s433 = sadd.s32 %s306, 1
        %s434 = smul.u32 %s433, 32
        %s435 = scalar_lea.vmem %s219, %s434
        %v436 = vld [vmem:[%s435] sm:$0xff]
        %v437 = vld [vmem:[%s435 + $0x8] sm:$0xff]
        %v438 = vld [vmem:[%s435 + $0x10] sm:$0xff]
        %v439 = vld [vmem:[%s435 + $0x18] sm:$0xff]
        %v440 = vmul.f32 %v436, %v388
        %v441 = vmul.f32 %v437, %v393
        %v442 = vmul.f32 %v438, %v398
        %v443 = vmul.f32 %v439, %v403
        %v444 = vadd.f32 %v440, %v412
        %v445 = vadd.f32 %v441, %v417
        %v446 = vadd.f32 %v442, %v422
        %v447 = vadd.f32 %v443, %v427
        %s448 = sadd.s32 %s306, 2
        %p449 = scmp.lt.s32.totalorder %s448, 63
        %s450 = scalar_select %p449, %s448, 63
        %s451 = smul.u32 %s450, 32
        %s452 = scalar_lea.vmem %s219, %s451
        %v453 = vld [vmem:[%s452] sm:$0xff]
        %v454 = vld [vmem:[%s452 + $0x8] sm:$0xff]
        %v455 = vld [vmem:[%s452 + $0x10] sm:$0xff]
        %v456 = vld [vmem:[%s452 + $0x18] sm:$0xff]
        %v457 = vstv %s312
        %v458 = vmul.f32 %v250, %v457
        %v459 = vmul.f32 %v251, %v457
        %v460 = vmul.f32 %v252, %v457
        %v461 = vmul.f32 %v253, %v457
        %463 = vset.pattern.permute.xlu0 0
        %464 = vperm.xlu0 %463, %v458
        %v465 = vpop.permute.xlu0 %464
        %468 = vset.pattern.permute.xlu0 0
        %469 = vperm.xlu0 %468, %v459
        %v470 = vpop.permute.xlu0 %469
        %473 = vset.pattern.permute.xlu0 0
        %474 = vperm.xlu0 %473, %v460
        %v475 = vpop.permute.xlu0 %474
        %478 = vset.pattern.permute.xlu0 0
        %479 = vperm.xlu0 %478, %v461
        %v480 = vpop.permute.xlu0 %479
        %v482 = vmul.f32 %v453, %v465
        %v483 = vmul.f32 %v454, %v470
        %v484 = vmul.f32 %v455, %v475
        %v485 = vmul.f32 %v456, %v480
        %v486 = vmul.f32 %v254, %v457
        %v487 = vmul.f32 %v255, %v457
        %v488 = vmul.f32 %v256, %v457
        %v489 = vmul.f32 %v257, %v457
        %491 = vset.pattern.permute.xlu0 0
        %492 = vperm.xlu0 %491, %v486
        %v493 = vpop.permute.xlu0 %492
        %496 = vset.pattern.permute.xlu0 0
        %497 = vperm.xlu0 %496, %v487
        %v498 = vpop.permute.xlu0 %497
        %501 = vset.pattern.permute.xlu0 0
        %502 = vperm.xlu0 %501, %v488
        %v503 = vpop.permute.xlu0 %502
        %506 = vset.pattern.permute.xlu0 0
        %507 = vperm.xlu0 %506, %v489
        %v508 = vpop.permute.xlu0 %507
        %v510 = vadd.f32 %v482, %v493
        %v511 = vadd.f32 %v483, %v498
        %v512 = vadd.f32 %v484, %v503
        %v513 = vadd.f32 %v485, %v508
        %vm514 = vcmask 1048064
        %515 = vrot.lane.b32.xlu0 %v375, 64
        %v516 = vpop.permute.xlu0 %515
        %v517 = vsel %vm514, %v516, %v375
        %518 = vrot.lane.b32.xlu0 %v376, 64
        %v519 = vpop.permute.xlu0 %518
        %v520 = vsel %vm514, %v519, %v376
        %521 = vrot.lane.b32.xlu0 %v377, 64
        %v522 = vpop.permute.xlu0 %521
        %v523 = vsel %vm514, %v522, %v377
        %524 = vrot.lane.b32.xlu0 %v378, 64
        %v525 = vpop.permute.xlu0 %524
        %v526 = vsel %vm514, %v525, %v378
        %527 = vrot.lane.b32.xlu0 %v429, 64
        %v528 = vpop.permute.xlu0 %527
        %v529 = vsel %vm514, %v528, %v429
        %530 = vrot.lane.b32.xlu0 %v430, 64
        %v531 = vpop.permute.xlu0 %530
        %v532 = vsel %vm514, %v531, %v430
        %533 = vrot.lane.b32.xlu0 %v431, 64
        %v534 = vpop.permute.xlu0 %533
        %v535 = vsel %vm514, %v534, %v431
        %536 = vrot.lane.b32.xlu0 %v432, 64
        %v537 = vpop.permute.xlu0 %536
        %v538 = vsel %vm514, %v537, %v432
        %539 = vrot.lane.b32.xlu0 %v444, 64
        %v540 = vpop.permute.xlu0 %539
        %v541 = vsel %vm514, %v540, %v444
        %542 = vrot.lane.b32.xlu0 %v445, 64
        %v543 = vpop.permute.xlu0 %542
        %v544 = vsel %vm514, %v543, %v445
        %545 = vrot.lane.b32.xlu0 %v446, 64
        %v546 = vpop.permute.xlu0 %545
        %v547 = vsel %vm514, %v546, %v446
        %548 = vrot.lane.b32.xlu0 %v447, 64
        %v549 = vpop.permute.xlu0 %548
        %v550 = vsel %vm514, %v549, %v447
        %551 = vrot.lane.b32.xlu0 %v517, 64
        %v552 = vpop.permute.xlu0 %551
        %553 = vrot.lane.b32.xlu0 %v520, 64
        %v554 = vpop.permute.xlu0 %553
        %555 = vrot.lane.b32.xlu0 %v523, 64
        %v556 = vpop.permute.xlu0 %555
        %557 = vrot.lane.b32.xlu0 %v526, 64
        %v558 = vpop.permute.xlu0 %557
        %559 = vrot.lane.b32.xlu0 %v529, 64
        %v560 = vpop.permute.xlu0 %559
        %561 = vrot.lane.b32.xlu0 %v532, 64
        %v562 = vpop.permute.xlu0 %561
        %563 = vrot.lane.b32.xlu0 %v535, 64
        %v564 = vpop.permute.xlu0 %563
        %565 = vrot.lane.b32.xlu0 %v538, 64
        %v566 = vpop.permute.xlu0 %565
        %567 = vrot.lane.b32.xlu0 %v541, 64
        %v568 = vpop.permute.xlu0 %567
        %569 = vrot.lane.b32.xlu0 %v544, 64
        %v570 = vpop.permute.xlu0 %569
        %571 = vrot.lane.b32.xlu0 %v547, 64
        %v572 = vpop.permute.xlu0 %571
        %573 = vrot.lane.b32.xlu0 %v550, 64
        %v574 = vpop.permute.xlu0 %573
        %v575 = vsel %vm514, %v552, %v375
        %v576 = vsel %vm514, %v554, %v376
        %v577 = vsel %vm514, %v556, %v377
        %v578 = vsel %vm514, %v558, %v378
        %v579 = vsel %vm514, %v560, %v429
        %v580 = vsel %vm514, %v562, %v430
        %v581 = vsel %vm514, %v564, %v431
        %v582 = vsel %vm514, %v566, %v432
        %v583 = vsel %vm514, %v568, %v444
        %v584 = vsel %vm514, %v570, %v445
        %v585 = vsel %vm514, %v572, %v446
        %v586 = vsel %vm514, %v574, %v447
        %v587 = vsel %vm260, 1, 0
        %vm588 = vcmp.eq.s32.totalorder %v587, 1
        %601 = vrot.lane.b32.xlu0 %v575, 65
        %v602 = vpop.permute.xlu0 %601
        %603 = vrot.lane.b32.xlu0 %v576, 65
        %v604 = vpop.permute.xlu0 %603
        %605 = vrot.lane.b32.xlu0 %v577, 65
        %v606 = vpop.permute.xlu0 %605
        %607 = vrot.lane.b32.xlu0 %v578, 65
        %v608 = vpop.permute.xlu0 %607
        %609 = vrot.lane.b32.xlu0 %v579, 65
        %v610 = vpop.permute.xlu0 %609
        %611 = vrot.lane.b32.xlu0 %v580, 65
        %v612 = vpop.permute.xlu0 %611
        %613 = vrot.lane.b32.xlu0 %v581, 65
        %v614 = vpop.permute.xlu0 %613
        %615 = vrot.lane.b32.xlu0 %v582, 65
        %v616 = vpop.permute.xlu0 %615
        %617 = vrot.lane.b32.xlu0 %v583, 65
        %v618 = vpop.permute.xlu0 %617
        %619 = vrot.lane.b32.xlu0 %v584, 65
        %v620 = vpop.permute.xlu0 %619
        %621 = vrot.lane.b32.xlu0 %v585, 65
        %v622 = vpop.permute.xlu0 %621
        %623 = vrot.lane.b32.xlu0 %v586, 65
        %v624 = vpop.permute.xlu0 %623
        %v637 = vsel %vm588, %v602, 0.0
        %v638 = vsel %vm588, %v604, 0.0
        %v639 = vsel %vm588, %v606, 0.0
        %v640 = vsel %vm588, %v608, 0.0
        %v641 = vsel %vm588, %v610, 0.0
        %v642 = vsel %vm588, %v612, 0.0
        %v643 = vsel %vm588, %v614, 0.0
        %v644 = vsel %vm588, %v616, 0.0
        %v645 = vsel %vm588, %v618, 0.0
        %v646 = vsel %vm588, %v620, 0.0
        %v647 = vsel %vm588, %v622, 0.0
        %v648 = vsel %vm588, %v624, 0.0
        %v649 = vsel %vm261, 1, 0
        %vm650 = vcmp.eq.s32.totalorder %v649, 1
        %651 = vrot.lane.b32.xlu0 %v575, 127
        %v652 = vpop.permute.xlu0 %651
        %653 = vrot.lane.b32.xlu0 %v576, 127
        %v654 = vpop.permute.xlu0 %653
        %655 = vrot.lane.b32.xlu0 %v577, 127
        %v656 = vpop.permute.xlu0 %655
        %657 = vrot.lane.b32.xlu0 %v578, 127
        %v658 = vpop.permute.xlu0 %657
        %659 = vrot.lane.b32.xlu0 %v579, 127
        %v660 = vpop.permute.xlu0 %659
        %661 = vrot.lane.b32.xlu0 %v580, 127
        %v662 = vpop.permute.xlu0 %661
        %663 = vrot.lane.b32.xlu0 %v581, 127
        %v664 = vpop.permute.xlu0 %663
        %665 = vrot.lane.b32.xlu0 %v582, 127
        %v666 = vpop.permute.xlu0 %665
        %667 = vrot.lane.b32.xlu0 %v583, 127
        %v668 = vpop.permute.xlu0 %667
        %669 = vrot.lane.b32.xlu0 %v584, 127
        %v670 = vpop.permute.xlu0 %669
        %671 = vrot.lane.b32.xlu0 %v585, 127
        %v672 = vpop.permute.xlu0 %671
        %673 = vrot.lane.b32.xlu0 %v586, 127
        %v674 = vpop.permute.xlu0 %673
        %v687 = vsel %vm650, %v652, 0.0
        %v688 = vsel %vm650, %v654, 0.0
        %v689 = vsel %vm650, %v656, 0.0
        %v690 = vsel %vm650, %v658, 0.0
        %v691 = vsel %vm650, %v660, 0.0
        %v692 = vsel %vm650, %v662, 0.0
        %v693 = vsel %vm650, %v664, 0.0
        %v694 = vsel %vm650, %v666, 0.0
        %v695 = vsel %vm650, %v668, 0.0
        %v696 = vsel %vm650, %v670, 0.0
        %v697 = vsel %vm650, %v672, 0.0
        %v698 = vsel %vm650, %v674, 0.0
        %v699 = vpack.c.bf16 %v638, %v637
        %v700 = vpack.c.bf16 %v640, %v639
        %v701 = vpack.c.bf16 %v642, %v641
        %v702 = vpack.c.bf16 %v644, %v643
        %v703 = vpack.c.bf16 %v646, %v645
        %v704 = vpack.c.bf16 %v648, %v647
        %v705 = vpack.c.bf16 %v376, %v375
        %v706 = vpack.c.bf16 %v378, %v377
        %v707 = vpack.c.bf16 %v430, %v429
        %v708 = vpack.c.bf16 %v432, %v431
        %v709 = vpack.c.bf16 %v445, %v444
        %v710 = vpack.c.bf16 %v447, %v446
        %v711 = vpack.c.bf16 %v688, %v687
        %v712 = vpack.c.bf16 %v690, %v689
        %v713 = vpack.c.bf16 %v692, %v691
        %v714 = vpack.c.bf16 %v694, %v693
        %v715 = vpack.c.bf16 %v696, %v695
        %v716 = vpack.c.bf16 %v698, %v697
        %v733 = vunpack.c.l.b16 %v226
        %v734 = vunpack.c.h.b16 %v226
        %v735 = vunpack.c.l.b16 %v227
        %v736 = vunpack.c.l.b16 %v228
        %v737 = vunpack.c.h.b16 %v228
        %v738 = vunpack.c.l.b16 %v229
        %v739 = vunpack.c.l.b16 %v230
        %v740 = vunpack.c.h.b16 %v230
        %v741 = vunpack.c.l.b16 %v231
        %v742 = vunpack.c.l.b16 %v232
        %v743 = vunpack.c.h.b16 %v232
        %v744 = vunpack.c.l.b16 %v233
        %v745 = vunpack.c.l.b16 %v234
        %v746 = vunpack.c.h.b16 %v234
        %v747 = vunpack.c.l.b16 %v235
        %v748 = vunpack.c.l.b16 %v236
        %v749 = vunpack.c.h.b16 %v236
        %v750 = vunpack.c.l.b16 %v237
        %v751 = vunpack.c.l.b16 %v238
        %v752 = vunpack.c.h.b16 %v238
        %v753 = vunpack.c.l.b16 %v239
        %v754 = vunpack.c.l.b16 %v240
        %v755 = vunpack.c.h.b16 %v240
        %v756 = vunpack.c.l.b16 %v241
        %v757 = vpack.c.b16 %v736, %v733
        %v758 = vpack.c.b16 %v737, %v734
        %v759 = vpack.c.b16 %v738, %v735
        %v760 = vpack.c.b16 %v742, %v739
        %v761 = vpack.c.b16 %v743, %v740
        %v762 = vpack.c.b16 %v744, %v741
        %v763 = vpack.c.b16 %v748, %v745
        %v764 = vpack.c.b16 %v749, %v746
        %v765 = vpack.c.b16 %v750, %v747
        %v766 = vpack.c.b16 %v754, %v751
        %v767 = vpack.c.b16 %v755, %v752
        %v768 = vpack.c.b16 %v756, %v753
        %vm777 = vcmask 261120
        %v779 = vsel %vm777, %v759, 0
        %v782 = vsel %vm777, %v762, 0
        %v785 = vsel %vm777, %v765, 0
        %v788 = vsel %vm777, %v768, 0
        %790 = vmatpush.bf16.msra.mxu0 %v706
        %791 = vmatpush.bf16.msra.mxu0 %v705
        %792 = vmatpush.bf16.msra.mxu0 %v704
        %793 = vmatpush.bf16.msra.mxu0 %v703
        %794 = vmatpush.bf16.msra.mxu0 %v702
        %795 = vmatpush.bf16.msra.mxu0 %v701
        %796 = vmatpush.bf16.msra.mxu0 %v700
        %797 = vmatpush.bf16.msra.mxu0 %v699
        %798 = vmatmul.bf16.gmra.mxu0 %v757
        %v799 = vpop.f32.mrf.mxu0
        %v800 = vadd.f32 0.0, %v799
        %v801 = vpop.f32.mrf.mxu0
        %v802 = vadd.f32 0.0, %v801
        %803 = vmatmul.bf16.gmra.mxu0 %v760
        %v804 = vpop.f32.mrf.mxu0
        %v805 = vadd.f32 0.0, %v804
        %v806 = vpop.f32.mrf.mxu0
        %v807 = vadd.f32 0.0, %v806
        %808 = vmatmul.bf16.gmra.mxu0 %v763
        %v809 = vpop.f32.mrf.mxu0
        %v810 = vadd.f32 0.0, %v809
        %v811 = vpop.f32.mrf.mxu0
        %v812 = vadd.f32 0.0, %v811
        %813 = vmatmul.bf16.gmra.mxu0 %v766
        %v814 = vpop.f32.mrf.mxu0
        %v815 = vadd.f32 0.0, %v814
        %v816 = vpop.f32.mrf.mxu0
        %v817 = vadd.f32 0.0, %v816
        %818 = vdwg.mxu0
        %819 = vmatpush.bf16.msra.mxu0 %v714
        %820 = vmatpush.bf16.msra.mxu0 %v713
        %821 = vmatpush.bf16.msra.mxu0 %v712
        %822 = vmatpush.bf16.msra.mxu0 %v711
        %823 = vmatpush.bf16.msra.mxu0 %v710
        %824 = vmatpush.bf16.msra.mxu0 %v709
        %825 = vmatpush.bf16.msra.mxu0 %v708
        %826 = vmatpush.bf16.msra.mxu0 %v707
        %827 = vmatmul.bf16.gmra.mxu0 %v758
        %v828 = vpop.f32.mrf.mxu0
        %v829 = vadd.f32 %v800, %v828
        %v830 = vpop.f32.mrf.mxu0
        %v831 = vadd.f32 %v802, %v830
        %832 = vmatmul.bf16.gmra.mxu0 %v761
        %v833 = vpop.f32.mrf.mxu0
        %v834 = vadd.f32 %v805, %v833
        %v835 = vpop.f32.mrf.mxu0
        %v836 = vadd.f32 %v807, %v835
        %837 = vmatmul.bf16.gmra.mxu0 %v764
        %v838 = vpop.f32.mrf.mxu0
        %v839 = vadd.f32 %v810, %v838
        %v840 = vpop.f32.mrf.mxu0
        %v841 = vadd.f32 %v812, %v840
        %842 = vmatmul.bf16.gmra.mxu0 %v767
        %v843 = vpop.f32.mrf.mxu0
        %v844 = vadd.f32 %v815, %v843
        %v845 = vpop.f32.mrf.mxu0
        %v846 = vadd.f32 %v817, %v845
        %847 = vdwg.mxu0
        %848 = vmatpush.bf16.msra.mxu0 0
        %849 = vmatpush.bf16.msra.mxu0 0
        %850 = vmatpush.bf16.msra.mxu0 0
        %851 = vmatpush.bf16.msra.mxu0 0
        %852 = vmatpush.bf16.msra.mxu0 0
        %853 = vmatpush.bf16.msra.mxu0 0
        %854 = vmatpush.bf16.msra.mxu0 %v716
        %855 = vmatpush.bf16.msra.mxu0 %v715
        %856 = vmatmul.bf16.gmra.mxu0 %v779
        %v857 = vpop.f32.mrf.mxu0
        %v858 = vadd.f32 %v829, %v857
        %v859 = vpop.f32.mrf.mxu0
        %v860 = vadd.f32 %v831, %v859
        %861 = vmatmul.bf16.gmra.mxu0 %v782
        %v862 = vpop.f32.mrf.mxu0
        %v863 = vadd.f32 %v834, %v862
        %v864 = vpop.f32.mrf.mxu0
        %v865 = vadd.f32 %v836, %v864
        %866 = vmatmul.bf16.gmra.mxu0 %v785
        %v867 = vpop.f32.mrf.mxu0
        %v868 = vadd.f32 %v839, %v867
        %v869 = vpop.f32.mrf.mxu0
        %v870 = vadd.f32 %v841, %v869
        %871 = vmatmul.bf16.gmra.mxu0 %v788
        %v872 = vpop.f32.mrf.mxu0
        %v873 = vadd.f32 %v844, %v872
        %v874 = vpop.f32.mrf.mxu0
        %v875 = vadd.f32 %v846, %v874
        %876 = vdwg.mxu0
        %877 = vrot.lane.b32.xlu0 %v510, 64
        %v878 = vpop.permute.xlu0 %877
        %v879 = vsel %vm514, %v878, %v510
        %880 = vrot.lane.b32.xlu0 %v511, 64
        %v881 = vpop.permute.xlu0 %880
        %v882 = vsel %vm514, %v881, %v511
        %883 = vrot.lane.b32.xlu0 %v512, 64
        %v884 = vpop.permute.xlu0 %883
        %v885 = vsel %vm514, %v884, %v512
        %886 = vrot.lane.b32.xlu0 %v513, 64
        %v887 = vpop.permute.xlu0 %886
        %v888 = vsel %vm514, %v887, %v513
        %889 = vrot.lane.b32.xlu0 %v879, 64
        %v890 = vpop.permute.xlu0 %889
        %891 = vrot.lane.b32.xlu0 %v882, 64
        %v892 = vpop.permute.xlu0 %891
        %893 = vrot.lane.b32.xlu0 %v885, 64
        %v894 = vpop.permute.xlu0 %893
        %895 = vrot.lane.b32.xlu0 %v888, 64
        %v896 = vpop.permute.xlu0 %895
        %v897 = vsel %vm514, %v890, %v510
        %v898 = vsel %vm514, %v892, %v511
        %v899 = vsel %vm514, %v894, %v512
        %v900 = vsel %vm514, %v896, %v513
        %905 = vrot.lane.b32.xlu0 %v897, 65
        %v906 = vpop.permute.xlu0 %905
        %907 = vrot.lane.b32.xlu0 %v898, 65
        %v908 = vpop.permute.xlu0 %907
        %909 = vrot.lane.b32.xlu0 %v899, 65
        %v910 = vpop.permute.xlu0 %909
        %911 = vrot.lane.b32.xlu0 %v900, 65
        %v912 = vpop.permute.xlu0 %911
        %v917 = vsel %vm588, %v906, 0.0
        %v918 = vsel %vm588, %v908, 0.0
        %v919 = vsel %vm588, %v910, 0.0
        %v920 = vsel %vm588, %v912, 0.0
        %921 = vrot.lane.b32.xlu0 %v897, 127
        %v922 = vpop.permute.xlu0 %921
        %923 = vrot.lane.b32.xlu0 %v898, 127
        %v924 = vpop.permute.xlu0 %923
        %925 = vrot.lane.b32.xlu0 %v899, 127
        %v926 = vpop.permute.xlu0 %925
        %927 = vrot.lane.b32.xlu0 %v900, 127
        %v928 = vpop.permute.xlu0 %927
        %v933 = vsel %vm650, %v922, 0.0
        %v934 = vsel %vm650, %v924, 0.0
        %v935 = vsel %vm650, %v926, 0.0
        %v936 = vsel %vm650, %v928, 0.0
        %v937 = vpack.c.bf16 %v918, %v917
        %v938 = vpack.c.bf16 %v920, %v919
        %v939 = vpack.c.bf16 %v511, %v510
        %v940 = vpack.c.bf16 %v513, %v512
        %v941 = vpack.c.bf16 %v934, %v933
        %v942 = vpack.c.bf16 %v936, %v935
        %943 = vmatpush.bf16.msra.mxu0 %v708
        %944 = vmatpush.bf16.msra.mxu0 %v707
        %945 = vmatpush.bf16.msra.mxu0 %v938
        %946 = vmatpush.bf16.msra.mxu0 %v937
        %947 = vmatpush.bf16.msra.mxu0 %v704
        %948 = vmatpush.bf16.msra.mxu0 %v703
        %949 = vmatpush.bf16.msra.mxu0 %v702
        %950 = vmatpush.bf16.msra.mxu0 %v701
        %951 = vmatmul.bf16.gmra.mxu0 %v757
        %v952 = vpop.f32.mrf.mxu0
        %v953 = vadd.f32 0.0, %v952
        %v954 = vpop.f32.mrf.mxu0
        %v955 = vadd.f32 0.0, %v954
        %956 = vmatmul.bf16.gmra.mxu0 %v760
        %v957 = vpop.f32.mrf.mxu0
        %v958 = vadd.f32 0.0, %v957
        %v959 = vpop.f32.mrf.mxu0
        %v960 = vadd.f32 0.0, %v959
        %961 = vmatmul.bf16.gmra.mxu0 %v763
        %v962 = vpop.f32.mrf.mxu0
        %v963 = vadd.f32 0.0, %v962
        %v964 = vpop.f32.mrf.mxu0
        %v965 = vadd.f32 0.0, %v964
        %966 = vmatmul.bf16.gmra.mxu0 %v766
        %v967 = vpop.f32.mrf.mxu0
        %v968 = vadd.f32 0.0, %v967
        %v969 = vpop.f32.mrf.mxu0
        %v970 = vadd.f32 0.0, %v969
        %971 = vdwg.mxu0
        %972 = vmatpush.bf16.msra.mxu0 %v716
        %973 = vmatpush.bf16.msra.mxu0 %v715
        %974 = vmatpush.bf16.msra.mxu0 %v714
        %975 = vmatpush.bf16.msra.mxu0 %v713
        %976 = vmatpush.bf16.msra.mxu0 %v940
        %977 = vmatpush.bf16.msra.mxu0 %v939
        %978 = vmatpush.bf16.msra.mxu0 %v710
        %979 = vmatpush.bf16.msra.mxu0 %v709
        %980 = vmatmul.bf16.gmra.mxu0 %v758
        %v981 = vpop.f32.mrf.mxu0
        %v982 = vadd.f32 %v953, %v981
        %v983 = vpop.f32.mrf.mxu0
        %v984 = vadd.f32 %v955, %v983
        %985 = vmatmul.bf16.gmra.mxu0 %v761
        %v986 = vpop.f32.mrf.mxu0
        %v987 = vadd.f32 %v958, %v986
        %v988 = vpop.f32.mrf.mxu0
        %v989 = vadd.f32 %v960, %v988
        %990 = vmatmul.bf16.gmra.mxu0 %v764
        %v991 = vpop.f32.mrf.mxu0
        %v992 = vadd.f32 %v963, %v991
        %v993 = vpop.f32.mrf.mxu0
        %v994 = vadd.f32 %v965, %v993
        %995 = vmatmul.bf16.gmra.mxu0 %v767
        %v996 = vpop.f32.mrf.mxu0
        %v997 = vadd.f32 %v968, %v996
        %v998 = vpop.f32.mrf.mxu0
        %v999 = vadd.f32 %v970, %v998
        %1000 = vdwg.mxu0
        %1001 = vmatpush.bf16.msra.mxu0 0
        %1002 = vmatpush.bf16.msra.mxu0 0
        %1003 = vmatpush.bf16.msra.mxu0 0
        %1004 = vmatpush.bf16.msra.mxu0 0
        %1005 = vmatpush.bf16.msra.mxu0 0
        %1006 = vmatpush.bf16.msra.mxu0 0
        %1007 = vmatpush.bf16.msra.mxu0 %v942
        %1008 = vmatpush.bf16.msra.mxu0 %v941
        %1009 = vmatmul.bf16.gmra.mxu0 %v779
        %v1010 = vpop.f32.mrf.mxu0
        %v1011 = vadd.f32 %v982, %v1010
        %v1012 = vpop.f32.mrf.mxu0
        %v1013 = vadd.f32 %v984, %v1012
        %1014 = vmatmul.bf16.gmra.mxu0 %v782
        %v1015 = vpop.f32.mrf.mxu0
        %v1016 = vadd.f32 %v987, %v1015
        %v1017 = vpop.f32.mrf.mxu0
        %v1018 = vadd.f32 %v989, %v1017
        %1019 = vmatmul.bf16.gmra.mxu0 %v785
        %v1020 = vpop.f32.mrf.mxu0
        %v1021 = vadd.f32 %v992, %v1020
        %v1022 = vpop.f32.mrf.mxu0
        %v1023 = vadd.f32 %v994, %v1022
        %1024 = vmatmul.bf16.gmra.mxu0 %v788
        %v1025 = vpop.f32.mrf.mxu0
        %v1026 = vadd.f32 %v997, %v1025
        %v1027 = vpop.f32.mrf.mxu0
        %v1028 = vadd.f32 %v999, %v1027
        %1029 = vdwg.mxu0
        %v1030 = vmax.f32 %v858, %v1011
        %v1031 = vmax.f32 %v860, %v1013
        %v1032 = vmax.f32 %v863, %v1016
        %v1033 = vmax.f32 %v865, %v1018
        %v1034 = vmax.f32 %v868, %v1021
        %v1035 = vmax.f32 %v870, %v1023
        %v1036 = vmax.f32 %v873, %v1026
        %v1037 = vmax.f32 %v875, %v1028
        %1039 = vset.pattern.permute.xlu0 0
        %1040 = vperm.xlu0 %1039, %v242
        %v1041 = vpop.permute.xlu0 %1040
        %1044 = vset.pattern.permute.xlu0 0
        %1045 = vperm.xlu0 %1044, %v243
        %v1046 = vpop.permute.xlu0 %1045
        %1049 = vset.pattern.permute.xlu0 0
        %1050 = vperm.xlu0 %1049, %v244
        %v1051 = vpop.permute.xlu0 %1050
        %1054 = vset.pattern.permute.xlu0 0
        %1055 = vperm.xlu0 %1054, %v245
        %v1056 = vpop.permute.xlu0 %1055
        %1059 = vset.pattern.permute.xlu0 0
        %1060 = vperm.xlu0 %1059, %v246
        %v1061 = vpop.permute.xlu0 %1060
        %1064 = vset.pattern.permute.xlu0 0
        %1065 = vperm.xlu0 %1064, %v247
        %v1066 = vpop.permute.xlu0 %1065
        %1069 = vset.pattern.permute.xlu0 0
        %1070 = vperm.xlu0 %1069, %v248
        %v1071 = vpop.permute.xlu0 %1070
        %1074 = vset.pattern.permute.xlu0 0
        %1075 = vperm.xlu0 %1074, %v249
        %v1076 = vpop.permute.xlu0 %1075
        %v1078 = vadd.f32 %v1030, %v1041
        %v1079 = vadd.f32 %v1031, %v1046
        %v1080 = vadd.f32 %v1032, %v1051
        %v1081 = vadd.f32 %v1033, %v1056
        %v1082 = vadd.f32 %v1034, %v1061
        %v1083 = vadd.f32 %v1035, %v1066
        %v1084 = vadd.f32 %v1036, %v1071
        %v1085 = vadd.f32 %v1037, %v1076
        %v1086 = vmax.f32 %v1078, 0.0
        %v1087 = vmax.f32 %v1079, 0.0
        %v1088 = vmax.f32 %v1080, 0.0
        %v1089 = vmax.f32 %v1081, 0.0
        %v1090 = vmax.f32 %v1082, 0.0
        %v1091 = vmax.f32 %v1083, 0.0
        %v1092 = vmax.f32 %v1084, 0.0
        %v1093 = vmax.f32 %v1085, 0.0
        %1094 = vrot.lane.b32.xlu0 %v1086, 64
        %v1095 = vpop.permute.xlu0 %1094
        %v1096 = vsel %vm514, %v1095, %v1086
        %1097 = vrot.lane.b32.xlu0 %v1087, 64
        %v1098 = vpop.permute.xlu0 %1097
        %v1099 = vsel %vm514, %v1098, %v1087
        %1100 = vrot.lane.b32.xlu0 %v1088, 64
        %v1101 = vpop.permute.xlu0 %1100
        %v1102 = vsel %vm514, %v1101, %v1088
        %1103 = vrot.lane.b32.xlu0 %v1089, 64
        %v1104 = vpop.permute.xlu0 %1103
        %v1105 = vsel %vm514, %v1104, %v1089
        %1106 = vrot.lane.b32.xlu0 %v1090, 64
        %v1107 = vpop.permute.xlu0 %1106
        %v1108 = vsel %vm514, %v1107, %v1090
        %1109 = vrot.lane.b32.xlu0 %v1091, 64
        %v1110 = vpop.permute.xlu0 %1109
        %v1111 = vsel %vm514, %v1110, %v1091
        %1112 = vrot.lane.b32.xlu0 %v1092, 64
        %v1113 = vpop.permute.xlu0 %1112
        %v1114 = vsel %vm514, %v1113, %v1092
        %1115 = vrot.lane.b32.xlu0 %v1093, 64
        %v1116 = vpop.permute.xlu0 %1115
        %v1117 = vsel %vm514, %v1116, %v1093
        %1118 = vrot.lane.b32.xlu0 %v1096, 64
        %v1119 = vpop.permute.xlu0 %1118
        %1120 = vrot.lane.b32.xlu0 %v1099, 64
        %v1121 = vpop.permute.xlu0 %1120
        %1122 = vrot.lane.b32.xlu0 %v1102, 64
        %v1123 = vpop.permute.xlu0 %1122
        %1124 = vrot.lane.b32.xlu0 %v1105, 64
        %v1125 = vpop.permute.xlu0 %1124
        %1126 = vrot.lane.b32.xlu0 %v1108, 64
        %v1127 = vpop.permute.xlu0 %1126
        %1128 = vrot.lane.b32.xlu0 %v1111, 64
        %v1129 = vpop.permute.xlu0 %1128
        %1130 = vrot.lane.b32.xlu0 %v1114, 64
        %v1131 = vpop.permute.xlu0 %1130
        %1132 = vrot.lane.b32.xlu0 %v1117, 64
        %v1133 = vpop.permute.xlu0 %1132
        %v1134 = vsel %vm514, %v1119, %v1086
        %v1135 = vsel %vm514, %v1121, %v1087
        %v1136 = vsel %vm514, %v1123, %v1088
        %v1137 = vsel %vm514, %v1125, %v1089
        %v1138 = vsel %vm514, %v1127, %v1090
        %v1139 = vsel %vm514, %v1129, %v1091
        %v1140 = vsel %vm514, %v1131, %v1092
        %v1141 = vsel %vm514, %v1133, %v1093
        %1150 = vrot.lane.b32.xlu0 %v1134, 127
        %v1151 = vpop.permute.xlu0 %1150
        %1152 = vrot.lane.b32.xlu0 %v1135, 127
        %v1153 = vpop.permute.xlu0 %1152
        %1154 = vrot.lane.b32.xlu0 %v1136, 127
        %v1155 = vpop.permute.xlu0 %1154
        %1156 = vrot.lane.b32.xlu0 %v1137, 127
        %v1157 = vpop.permute.xlu0 %1156
        %1158 = vrot.lane.b32.xlu0 %v1138, 127
        %v1159 = vpop.permute.xlu0 %1158
        %1160 = vrot.lane.b32.xlu0 %v1139, 127
        %v1161 = vpop.permute.xlu0 %1160
        %1162 = vrot.lane.b32.xlu0 %v1140, 127
        %v1163 = vpop.permute.xlu0 %1162
        %1164 = vrot.lane.b32.xlu0 %v1141, 127
        %v1165 = vpop.permute.xlu0 %1164
        %v1174 = vmax.f32 %v1086, %v1151
        %v1175 = vmax.f32 %v1087, %v1153
        %v1176 = vmax.f32 %v1088, %v1155
        %v1177 = vmax.f32 %v1089, %v1157
        %v1178 = vmax.f32 %v1090, %v1159
        %v1179 = vmax.f32 %v1091, %v1161
        %v1180 = vmax.f32 %v1092, %v1163
        %v1181 = vmax.f32 %v1093, %v1165
        %v1182 = vpack.c.bf16 %v1175, %v1174
        %v1183 = vpack.c.bf16 %v1177, %v1176
        %v1184 = vpack.c.bf16 %v1179, %v1178
        %v1185 = vpack.c.bf16 %v1181, %v1180
        %vm1186 = vcmask 523264
        %v1188 = vsel %vm1186, %v1182, 0
        %v1191 = vsel %vm1186, %v1183, 0
        %v1194 = vsel %vm1186, %v1184, 0
        %v1197 = vsel %vm1186, %v1185, 0
        %1199 = vmatpush.bf16.msra.mxu0 0
        %1200 = vmatpush.bf16.msra.mxu0 0
        %1201 = vmatpush.bf16.msra.mxu0 0
        %1202 = vmatpush.bf16.msra.mxu0 0
        %1203 = vmatpush.bf16.msra.mxu0 %v299
        %1204 = vmatpush.bf16.msra.mxu0 %v298
        %1205 = vmatpush.bf16.msra.mxu0 %v297
        %1206 = vmatpush.bf16.msra.mxu0 %v296
        %1207 = vmatmul.bf16.gmra.mxu0 %v1188
        %v1208 = vpop.f32.mrf.mxu0
        %v1209 = vadd.f32 0.0, %v1208
        %v1210 = vpop.f32.mrf.mxu0
        %v1211 = vadd.f32 0.0, %v1210
        %1212 = vmatmul.bf16.gmra.mxu0 %v1191
        %v1213 = vpop.f32.mrf.mxu0
        %v1214 = vadd.f32 0.0, %v1213
        %v1215 = vpop.f32.mrf.mxu0
        %v1216 = vadd.f32 0.0, %v1215
        %1217 = vmatmul.bf16.gmra.mxu0 %v1194
        %v1218 = vpop.f32.mrf.mxu0
        %v1219 = vadd.f32 0.0, %v1218
        %v1220 = vpop.f32.mrf.mxu0
        %v1221 = vadd.f32 0.0, %v1220
        %1222 = vmatmul.bf16.gmra.mxu0 %v1197
        %v1223 = vpop.f32.mrf.mxu0
        %v1224 = vadd.f32 0.0, %v1223
        %v1225 = vpop.f32.mrf.mxu0
        %v1226 = vadd.f32 0.0, %v1225
        %1227 = vdwg.mxu0
        %s1228 = smul.u32 %s301, 64
        %s1229 = scalar_lea.vmem %s224, %s1228
        %1230 = vst.msk [vmem:[%s1229] sm:$0xff] %vm777, %v1209
        %1231 = vst.msk [vmem:[%s1229 + $0x8] sm:$0xff] %vm777, %v1211
        %1232 = vst.msk [vmem:[%s1229 + $0x10] sm:$0xff] %vm777, %v1214
        %1233 = vst.msk [vmem:[%s1229 + $0x18] sm:$0xff] %vm777, %v1216
        %1234 = vst.msk [vmem:[%s1229 + $0x20] sm:$0xff] %vm777, %v1219
        %1235 = vst.msk [vmem:[%s1229 + $0x28] sm:$0xff] %vm777, %v1221
        %1236 = vst.msk [vmem:[%s1229 + $0x30] sm:$0xff] %vm777, %v1224
        %1237 = vst.msk [vmem:[%s1229 + $0x38] sm:$0xff] %vm777, %v1226
      $region45: #{forward.8} parent=39 // loop_footer
        %s305 = sadd.s32 1, %s301
      $region46: #{forward.8} parent=39 // loop_footer_branch
        %300 = sbr.rel target = $region42
      $region47: #{forward.8} parent=39 // loop_exit
        _
      %p1238 = scmp.lt.s32.totalorder %s16, 1
      %s1239 = scalar_select %p1238, %s16, 1
      %s1240 = smul.addr %s1239, 256
      %s1241 = smul.addr %s1240, 8
      %s1242 = scalar_lea.vmem %s5, %s1241
      // Predicated region
      $region48: #{forward.8} parent=39 // pred_check
        %p1243 = pneg %p144
      $region49: #{forward.8} parent=39 // pred_check_branch
        %1245 = sbr.rel (%p1243) target = $region51
      $region50: #{forward.8} parent=39 // pred_region
        _
      $region51: #{forward.8} parent=39 // pred_fallthru
        _
    $region40: #{forward.8} parent=5 // pred_fallthru
      _
    %p1246 = scmp.le.s32.totalorder 2, %s11
    // Predicated region
    $region52: #{forward.8} parent=5 // pred_check
      %p1247 = pneg %p1246
    $region53: #{forward.8} parent=5 // pred_check_branch
      %1249 = sbr.rel (%p1247) target = $region55
    $region54: #{forward.8} parent=5 // pred_region
      %s1250 = ssub.s32 %s11, 2
      // Predicated region
      $region56: #{forward.8} parent=54 // pred_check
        %p1251 = pneg %p150
      $region57: #{forward.8} parent=54 // pred_check_branch
        %1253 = sbr.rel (%p1251) target = $region59
      $region58: #{forward.8} parent=54 // pred_region
        %p1254 = scmp.lt.s32.totalorder %s17, 1
        %s1255 = scalar_select %p1254, %s17, 1
        %s1256 = smul.addr %s1255, 256
        %s1257 = smul.addr %s1256, 8
        %s1258 = scalar_lea.vmem %s5, %s1257
      $region59: #{forward.8} parent=54 // pred_fallthru
        _
    $region55: #{forward.8} parent=5 // pred_fallthru
      _
  $region6: #{forward.8} parent=0 // loop_footer
    %s15 = sadd.s32 1, %s11
  $region7: #{forward.8} parent=0 // loop_footer_branch
    %10 = sbr.rel target = $region3
  $region8: #{forward.8} parent=0 // loop_exit
    _

// kernel: forward.9
$region0: #{forward.9}
  #allocation0 [shape = 'u32[]', space=smem, size = 0x4, offset = 0x4, fixed_abs, tag = 'smem constant byte address 0x4 - core index']
  #allocation1 [shape = 'u32[72,128]{1,0:T(1,128)}', space=vmem, size = 0x9000, scoped, tag = 'internal scratch']
  %s0 = inlined_call_operand.vmem [shape: f32[2,32,64,32], index: 0, kind: input, shape index: {}]
  %s1 = inlined_call_operand.vmem [shape: bf16[64,576], index: 1, kind: input, shape index: {}]
  %s2 = inlined_call_operand.vmem [shape: f32[64,1], index: 2, kind: input, shape index: {}]
  %s3 = inlined_call_operand.vmem [shape: f32[64,1], index: 3, kind: input, shape index: {}]
  %s4 = inlined_call_operand.vmem [shape: f32[64,1], index: 4, kind: input, shape index: {}]
  %s5 = inlined_call_operand.vmem [shape: f32[2,16,64,16], index: 5, kind: output, shape index: {}]
  %s6 = sld [smem:[#allocation0]]
  $region60: #{forward.9} parent=0
    _
  %s8 = ssub.s32 1, %s6
  %s9 = scalar_select 0, %s8, %s6
  loop: start=0, step=1, limit=4
  $region2: #{forward.9} parent=0 // loop_pre_header
    _
  $region3: #{forward.9} parent=0 // loop_header
    %s11 = sphi 0, %s15
    %p12 = scmp.ge.s32.totalorder %s11, 4
    %s21 = sphi 0, %s23
    %s24 = sphi 0, %s21
    %s25 = sphi 0, %s24
    %s41 = sphi 0, %s25
    %s45 = sphi 0, %s45
    %s47 = sphi 0, %s45
    %s48 = sphi 0, %s47
    %s62 = sphi 0, %s48
    %s66 = sphi 0, %s66
    %s68 = sphi 0, %s66
    %s69 = sphi 0, %s68
    %s83 = sphi 0, %s69
    %s87 = sphi 0, %s87
    %s89 = sphi 0, %s87
    %s90 = sphi 0, %s89
    %s104 = sphi 0, %s90
    %s108 = sphi 0, %s108
    %s110 = sphi 0, %s108
    %s111 = sphi 0, %s110
    %s125 = sphi 0, %s111
    %s131 = sphi 0, %s133
    %s134 = sphi 0, %s131
    %s135 = sphi 0, %s134
    %s151 = sphi 0, %s135
  $region4: #{forward.9} parent=0 // loop_header_branch
    %14 = sbr.rel (%p12) target = $region8
  $region5: #{forward.9} parent=0 // loop_body
    %s16 = ssub.s32 %s11, 1
    %s17 = ssub.s32 %s11, 2
    %s18 = sadd.s32 %s11, 1
    %s19 = ssub.s32 %s11, %s18
    %p20 = scmp.eq.s32.totalorder %s19, 0
    %s22 = sadd.s32 %s21, 1
    %s23 = scalar_select %p20, %s21, %s22
    %p26 = pneg %p20
    %p27 = scmp.eq.s32.totalorder %s11, 1
    %p28 = por %p26, %p27
    %p29 = scmp.ne.s32.totalorder %s21, %s24
    %p30 = scmp.eq.s32.totalorder %s11, 0
    %p31 = por %p29, %p30
    %p32 = scmp.ne.s32.totalorder %s21, %s24
    %p33 = scmp.eq.s32.totalorder %s16, 1
    %p34 = por %p32, %p33
    %p35 = scmp.ne.s32.totalorder %s24, %s25
    %p36 = scmp.eq.s32.totalorder %s16, 0
    %p37 = por %p35, %p36
    %p38 = scmp.ne.s32.totalorder %s24, %s25
    %p39 = scmp.eq.s32.totalorder %s17, 1
    %p40 = por %p38, %p39
    %p42 = scmp.ne.s32.totalorder %s25, %s41
    %p43 = scmp.eq.s32.totalorder %s17, 0
    %p44 = por %p42, %p43
    %s46 = sadd.s32 %s45, 1
    %p49 = scmp.eq.s32.totalorder %s11, 1
    %p50 = scmp.ne.s32.totalorder %s45, %s47
    %p51 = scmp.eq.s32.totalorder %s11, 0
    %p52 = por %p50, %p51
    %p53 = scmp.ne.s32.totalorder %s45, %s47
    %p54 = scmp.eq.s32.totalorder %s16, 1
    %p55 = por %p53, %p54
    %p56 = scmp.ne.s32.totalorder %s47, %s48
    %p57 = scmp.eq.s32.totalorder %s16, 0
    %p58 = por %p56, %p57
    %p59 = scmp.ne.s32.totalorder %s47, %s48
    %p60 = scmp.eq.s32.totalorder %s17, 1
    %p61 = por %p59, %p60
    %p63 = scmp.ne.s32.totalorder %s48, %s62
    %p64 = scmp.eq.s32.totalorder %s17, 0
    %p65 = por %p63, %p64
    %s67 = sadd.s32 %s66, 1
    %p70 = scmp.eq.s32.totalorder %s11, 1
    %p71 = scmp.ne.s32.totalorder %s66, %s68
    %p72 = scmp.eq.s32.totalorder %s11, 0
    %p73 = por %p71, %p72
    %p74 = scmp.ne.s32.totalorder %s66, %s68
    %p75 = scmp.eq.s32.totalorder %s16, 1
    %p76 = por %p74, %p75
    %p77 = scmp.ne.s32.totalorder %s68, %s69
    %p78 = scmp.eq.s32.totalorder %s16, 0
    %p79 = por %p77, %p78
    %p80 = scmp.ne.s32.totalorder %s68, %s69
    %p81 = scmp.eq.s32.totalorder %s17, 1
    %p82 = por %p80, %p81
    %p84 = scmp.ne.s32.totalorder %s69, %s83
    %p85 = scmp.eq.s32.totalorder %s17, 0
    %p86 = por %p84, %p85
    %s88 = sadd.s32 %s87, 1
    %p91 = scmp.eq.s32.totalorder %s11, 1
    %p92 = scmp.ne.s32.totalorder %s87, %s89
    %p93 = scmp.eq.s32.totalorder %s11, 0
    %p94 = por %p92, %p93
    %p95 = scmp.ne.s32.totalorder %s87, %s89
    %p96 = scmp.eq.s32.totalorder %s16, 1
    %p97 = por %p95, %p96
    %p98 = scmp.ne.s32.totalorder %s89, %s90
    %p99 = scmp.eq.s32.totalorder %s16, 0
    %p100 = por %p98, %p99
    %p101 = scmp.ne.s32.totalorder %s89, %s90
    %p102 = scmp.eq.s32.totalorder %s17, 1
    %p103 = por %p101, %p102
    %p105 = scmp.ne.s32.totalorder %s90, %s104
    %p106 = scmp.eq.s32.totalorder %s17, 0
    %p107 = por %p105, %p106
    %s109 = sadd.s32 %s108, 1
    %p112 = scmp.eq.s32.totalorder %s11, 1
    %p113 = scmp.ne.s32.totalorder %s108, %s110
    %p114 = scmp.eq.s32.totalorder %s11, 0
    %p115 = por %p113, %p114
    %p116 = scmp.ne.s32.totalorder %s108, %s110
    %p117 = scmp.eq.s32.totalorder %s16, 1
    %p118 = por %p116, %p117
    %p119 = scmp.ne.s32.totalorder %s110, %s111
    %p120 = scmp.eq.s32.totalorder %s16, 0
    %p121 = por %p119, %p120
    %p122 = scmp.ne.s32.totalorder %s110, %s111
    %p123 = scmp.eq.s32.totalorder %s17, 1
    %p124 = por %p122, %p123
    %p126 = scmp.ne.s32.totalorder %s111, %s125
    %p127 = scmp.eq.s32.totalorder %s17, 0
    %p128 = por %p126, %p127
    %s129 = ssub.s32 %s11, %s18
    %p130 = scmp.eq.s32.totalorder %s129, 0
    %s132 = sadd.s32 %s131, 1
    %s133 = scalar_select %p130, %s131, %s132
    %p136 = pneg %p130
    %p137 = scmp.eq.s32.totalorder %s11, 1
    %p138 = por %p136, %p137
    %p139 = scmp.ne.s32.totalorder %s131, %s134
    %p140 = scmp.eq.s32.totalorder %s11, 0
    %p141 = por %p139, %p140
    %p142 = scmp.ne.s32.totalorder %s131, %s134
    %p143 = scmp.eq.s32.totalorder %s16, 1
    %p144 = por %p142, %p143
    %p145 = scmp.ne.s32.totalorder %s134, %s135
    %p146 = scmp.eq.s32.totalorder %s16, 0
    %p147 = por %p145, %p146
    %p148 = scmp.ne.s32.totalorder %s134, %s135
    %p149 = scmp.eq.s32.totalorder %s17, 1
    %p150 = por %p148, %p149
    %p152 = scmp.ne.s32.totalorder %s135, %s151
    %p153 = scmp.eq.s32.totalorder %s17, 0
    %p154 = por %p152, %p153
    %p155 = scmp.le.s32.totalorder 1, %s11
    %p156 = scmp.lt.s32.totalorder %s11, 3
    %p157 = pnand %p155, %p156
    %p158 = pneg %p157
    // Predicated region
    $region9: #{forward.9} parent=5 // pred_check
      _
    $region10: #{forward.9} parent=5 // pred_check_branch
      %160 = sbr.rel (%p157) target = $region12
    $region11: #{forward.9} parent=5 // pred_region
      %s161 = ssub.s32 %s11, 1
      // Predicated region
      $region13: #{forward.9} parent=11 // pred_check
        %p162 = pneg %p58
      $region14: #{forward.9} parent=11 // pred_check_branch
        %164 = sbr.rel (%p162) target = $region16
      $region15: #{forward.9} parent=11 // pred_region
        _
      $region16: #{forward.9} parent=11 // pred_fallthru
        _
      // Predicated region
      $region17: #{forward.9} parent=11 // pred_check
        %p165 = pneg %p79
      $region18: #{forward.9} parent=11 // pred_check_branch
        %167 = sbr.rel (%p165) target = $region20
      $region19: #{forward.9} parent=11 // pred_region
        _
      $region20: #{forward.9} parent=11 // pred_fallthru
        _
      // Predicated region
      $region21: #{forward.9} parent=11 // pred_check
        %p168 = pneg %p100
      $region22: #{forward.9} parent=11 // pred_check_branch
        %170 = sbr.rel (%p168) target = $region24
      $region23: #{forward.9} parent=11 // pred_region
        _
      $region24: #{forward.9} parent=11 // pred_fallthru
        _
      // Predicated region
      $region25: #{forward.9} parent=11 // pred_check
        %p171 = pneg %p121
      $region26: #{forward.9} parent=11 // pred_check_branch
        %173 = sbr.rel (%p171) target = $region28
      $region27: #{forward.9} parent=11 // pred_region
        _
      $region28: #{forward.9} parent=11 // pred_fallthru
        _
    $region12: #{forward.9} parent=5 // pred_fallthru
      _
    %p174 = scmp.lt.s32.totalorder %s11, 2
    // Predicated region
    $region29: #{forward.9} parent=5 // pred_check
      %p175 = pneg %p174
    $region30: #{forward.9} parent=5 // pred_check_branch
      %177 = sbr.rel (%p175) target = $region32
    $region31: #{forward.9} parent=5 // pred_region
      // Predicated region
      $region33: #{forward.9} parent=31 // pred_check
        %p178 = pneg %p31
      $region34: #{forward.9} parent=31 // pred_check_branch
        %180 = sbr.rel (%p178) target = $region36
      $region35: #{forward.9} parent=31 // pred_region
        %p181 = scmp.lt.s32.totalorder %s11, 1
        %s182 = scalar_select %p181, %s11, 1
        %s183 = smul.addr %s182, 256
        %s184 = smul.addr %s183, 8
        %s185 = scalar_lea.vmem %s0, %s184
      $region36: #{forward.9} parent=31 // pred_fallthru
        _
    $region32: #{forward.9} parent=5 // pred_fallthru
      _
    %p186 = scmp.le.s32.totalorder 1, %s11
    %p187 = scmp.lt.s32.totalorder %s11, 3
    %p188 = pnand %p186, %p187
    %p189 = pneg %p188
    // Predicated region
    $region37: #{forward.9} parent=5 // pred_check
      _
    $region38: #{forward.9} parent=5 // pred_check_branch
      %191 = sbr.rel (%p188) target = $region40
    $region39: #{forward.9} parent=5 // pred_region
      %s192 = ssub.s32 %s11, 1
      %p193 = scmp.lt.s32.totalorder %s16, 1
      %s194 = scalar_select %p193, %s16, 1
      %s195 = smul.addr %s194, 256
      %s196 = smul.addr %s195, 8
      %s197 = scalar_lea.vmem %s0, %s196
      %p198 = pneg %p37
      %p199 = pneg %p34
      %p200 = pneg %p58
      %p201 = pneg %p55
      %p202 = pneg %p79
      %p203 = pneg %p76
      %p204 = pneg %p100
      %p205 = pneg %p97
      %p206 = pneg %p121
      %p207 = pneg %p118
      %p208 = pneg %p147
      %p209 = pneg %p144
      %p210 = scmp.lt.s32.totalorder %s16, 1
      %s211 = scalar_select %p210, %s16, 1
      %s212 = smul.addr %s211, 128
      %s213 = smul.addr %s212, 8
      %s214 = scalar_lea.vmem %s5, %s213
      %p215 = scmp.lt.s32.totalorder %s16, 1
      %s216 = scalar_select %p215, %s16, 1
      %s217 = smul.addr %s216, 256
      %s218 = smul.addr %s217, 8
      %s219 = scalar_lea.vmem %s0, %s218
      %p220 = scmp.lt.s32.totalorder %s16, 1
      %s221 = scalar_select %p220, %s16, 1
      %s222 = smul.addr %s221, 128
      %s223 = smul.addr %s222, 8
      %s224 = scalar_lea.vmem %s5, %s223
      %v226 = vld [vmem:[%s1] sm:$0xff]
      %v227 = vld [vmem:[%s1 + $0x8] sm:$0xff]
      %v228 = vld [vmem:[%s1 + $0x10] sm:$0xf]
      %v229 = vld [vmem:[%s1 + $0x14] sm:$0xff]
      %v230 = vld [vmem:[%s1 + $0x1c] sm:$0xff]
      %v231 = vld [vmem:[%s1 + $0x24] sm:$0xf]
      %v232 = vld [vmem:[%s1 + $0x28] sm:$0xff]
      %v233 = vld [vmem:[%s1 + $0x30] sm:$0xff]
      %v234 = vld [vmem:[%s1 + $0x38] sm:$0xf]
      %v235 = vld [vmem:[%s1 + $0x3c] sm:$0xff]
      %v236 = vld [vmem:[%s1 + $0x44] sm:$0xff]
      %v237 = vld [vmem:[%s1 + $0x4c] sm:$0xf]
      %v238 = vld [vmem:[%s1 + $0x50] sm:$0xff]
      %v239 = vld [vmem:[%s1 + $0x58] sm:$0xff]
      %v240 = vld [vmem:[%s1 + $0x60] sm:$0xf]
      %v241 = vld [vmem:[%s1 + $0x64] sm:$0xff]
      %v242 = vld [vmem:[%s1 + $0x6c] sm:$0xff]
      %v243 = vld [vmem:[%s1 + $0x74] sm:$0xf]
      %v244 = vld [vmem:[%s1 + $0x78] sm:$0xff]
      %v245 = vld [vmem:[%s1 + $0x80] sm:$0xff]
      %v246 = vld [vmem:[%s1 + $0x88] sm:$0xf]
      %v247 = vld [vmem:[%s1 + $0x8c] sm:$0xff]
      %v248 = vld [vmem:[%s1 + $0x94] sm:$0xff]
      %v249 = vld [vmem:[%s1 + $0x9c] sm:$0xf]
      %v250 = vld [vmem:[%s2] sm:$0xff]
      %v251 = vld [vmem:[%s2 + $0x8] sm:$0xff]
      %v252 = vld [vmem:[%s2 + $0x10] sm:$0xff]
      %v253 = vld [vmem:[%s2 + $0x18] sm:$0xff]
      %v254 = vld [vmem:[%s2 + $0x20] sm:$0xff]
      %v255 = vld [vmem:[%s2 + $0x28] sm:$0xff]
      %v256 = vld [vmem:[%s2 + $0x30] sm:$0xff]
      %v257 = vld [vmem:[%s2 + $0x38] sm:$0xff]
      %v258 = vld [vmem:[%s3] sm:$0xff]
      %v259 = vld [vmem:[%s3 + $0x8] sm:$0xff]
      %v260 = vld [vmem:[%s3 + $0x10] sm:$0xff]
      %v261 = vld [vmem:[%s3 + $0x18] sm:$0xff]
      %v262 = vld [vmem:[%s3 + $0x20] sm:$0xff]
      %v263 = vld [vmem:[%s3 + $0x28] sm:$0xff]
      %v264 = vld [vmem:[%s3 + $0x30] sm:$0xff]
      %v265 = vld [vmem:[%s3 + $0x38] sm:$0xff]
      %v266 = vld [vmem:[%s4] sm:$0xff]
      %v267 = vld [vmem:[%s4 + $0x8] sm:$0xff]
      %v268 = vld [vmem:[%s4 + $0x10] sm:$0xff]
      %v269 = vld [vmem:[%s4 + $0x18] sm:$0xff]
      %v270 = vld [vmem:[%s4 + $0x20] sm:$0xff]
      %v271 = vld [vmem:[%s4 + $0x28] sm:$0xff]
      %v272 = vld [vmem:[%s4 + $0x30] sm:$0xff]
      %v273 = vld [vmem:[%s4 + $0x38] sm:$0xff]
      %v274 = vlaneseq
      %v275 = vand.u32 %v274, 127
      %vm276 = vcmp.ne.s32.totalorder %v275, 0
      %vm277 = vcmp.ne.s32.totalorder %v275, 31
      %v278 = vlaneseq
      %v279 = vshrl.u32 %v278, 7
      %v280 = vadd.s32 %v279, 8
      %v281 = vadd.s32 %v279, 16
      %v282 = vadd.s32 %v279, 24
      %v283 = vmul.u32 %v275, 2
      %vm284 = vcmp.eq.s32.totalorder %v279, %v283
      %vm285 = vcmp.eq.s32.totalorder %v280, %v283
      %vm286 = vcmp.eq.s32.totalorder %v281, %v283
      %vm287 = vcmp.eq.s32.totalorder %v282, %v283
      %v288 = vsel %vm284, 1, 0
      %v289 = vsel %vm285, 1, 0
      %v290 = vsel %vm286, 1, 0
      %v291 = vsel %vm287, 1, 0
      %v292 = vcvt.s32.f32 %v288
      %v293 = vcvt.s32.f32 %v289
      %v294 = vcvt.s32.f32 %v290
      %v295 = vcvt.s32.f32 %v291
      %v296 = vpack.c.bf16 %v293, %v292
      %v297 = vpack.c.bf16 %v295, %v294
      loop: start=0, step=1, limit=16
      $region41: #{forward.9} parent=39 // loop_pre_header
        _
      $region42: #{forward.9} parent=39 // loop_header
        %s299 = sphi 0, %s303
        %p300 = scmp.ge.s32.totalorder %s299, 16
      $region43: #{forward.9} parent=39 // loop_header_branch
        %302 = sbr.rel (%p300) target = $region47
      $region44: #{forward.9} parent=39 // loop_body
        %s304 = smul.u32 %s299, 2
        %p305 = scmp.gt.s32.totalorder %s299, 0
        %s306 = scalar_select %p305, 1, 0
        %s307 = scvt.s32.f32 %s306
        %p308 = scmp.lt.s32.totalorder %s299, 15
        %s309 = scalar_select %p308, 1, 0
        %s310 = scvt.s32.f32 %s309
        %s311 = ssub.s32 %s304, 1
        %p312 = scmp.gt.s32.totalorder %s311, 0
        %s313 = scalar_select %p312, %s311, 0
        %s314 = smul.u32 %s313, 64
        %s315 = scalar_lea.vmem %s219, %s314
        %v316 = vld [vmem:[%s315] sm:$0xff]
        %v317 = vld [vmem:[%s315 + $0x8] sm:$0xff]
        %v318 = vld [vmem:[%s315 + $0x10] sm:$0xff]
        %v319 = vld [vmem:[%s315 + $0x18] sm:$0xff]
        %v320 = vld [vmem:[%s315 + $0x20] sm:$0xff]
        %v321 = vld [vmem:[%s315 + $0x28] sm:$0xff]
        %v322 = vld [vmem:[%s315 + $0x30] sm:$0xff]
        %v323 = vld [vmem:[%s315 + $0x38] sm:$0xff]
        %v324 = vstv %s307
        %v325 = vmul.f32 %v258, %v324
        %v326 = vmul.f32 %v259, %v324
        %v327 = vmul.f32 %v260, %v324
        %v328 = vmul.f32 %v261, %v324
        %v329 = vmul.f32 %v262, %v324
        %v330 = vmul.f32 %v263, %v324
        %v331 = vmul.f32 %v264, %v324
        %v332 = vmul.f32 %v265, %v324
        %334 = vset.pattern.permute.xlu0 0
        %335 = vperm.xlu0 %334, %v325
        %v336 = vpop.permute.xlu0 %335
        %339 = vset.pattern.permute.xlu0 0
        %340 = vperm.xlu0 %339, %v326
        %v341 = vpop.permute.xlu0 %340
        %344 = vset.pattern.permute.xlu0 0
        %345 = vperm.xlu0 %344, %v327
        %v346 = vpop.permute.xlu0 %345
        %349 = vset.pattern.permute.xlu0 0
        %350 = vperm.xlu0 %349, %v328
        %v351 = vpop.permute.xlu0 %350
        %354 = vset.pattern.permute.xlu0 0
        %355 = vperm.xlu0 %354, %v329
        %v356 = vpop.permute.xlu0 %355
        %359 = vset.pattern.permute.xlu0 0
        %360 = vperm.xlu0 %359, %v330
        %v361 = vpop.permute.xlu0 %360
        %364 = vset.pattern.permute.xlu0 0
        %365 = vperm.xlu0 %364, %v331
        %v366 = vpop.permute.xlu0 %365
        %369 = vset.pattern.permute.xlu0 0
        %370 = vperm.xlu0 %369, %v332
        %v371 = vpop.permute.xlu0 %370
        %v373 = vmul.f32 %v316, %v336
        %v374 = vmul.f32 %v317, %v341
        %v375 = vmul.f32 %v318, %v346
        %v376 = vmul.f32 %v319, %v351
        %v377 = vmul.f32 %v320, %v356
        %v378 = vmul.f32 %v321, %v361
        %v379 = vmul.f32 %v322, %v366
        %v380 = vmul.f32 %v323, %v371
        %v381 = vmul.f32 %v266, %v324
        %v382 = vmul.f32 %v267, %v324
        %v383 = vmul.f32 %v268, %v324
        %v384 = vmul.f32 %v269, %v324
        %v385 = vmul.f32 %v270, %v324
        %v386 = vmul.f32 %v271, %v324
        %v387 = vmul.f32 %v272, %v324
        %v388 = vmul.f32 %v273, %v324
        %390 = vset.pattern.permute.xlu0 0
        %391 = vperm.xlu0 %390, %v381
        %v392 = vpop.permute.xlu0 %391
        %395 = vset.pattern.permute.xlu0 0
        %396 = vperm.xlu0 %395, %v382
        %v397 = vpop.permute.xlu0 %396
        %400 = vset.pattern.permute.xlu0 0
        %401 = vperm.xlu0 %400, %v383
        %v402 = vpop.permute.xlu0 %401
        %405 = vset.pattern.permute.xlu0 0
        %406 = vperm.xlu0 %405, %v384
        %v407 = vpop.permute.xlu0 %406
        %410 = vset.pattern.permute.xlu0 0
        %411 = vperm.xlu0 %410, %v385
        %v412 = vpop.permute.xlu0 %411
        %415 = vset.pattern.permute.xlu0 0
        %416 = vperm.xlu0 %415, %v386
        %v417 = vpop.permute.xlu0 %416
        %420 = vset.pattern.permute.xlu0 0
        %421 = vperm.xlu0 %420, %v387
        %v422 = vpop.permute.xlu0 %421
        %425 = vset.pattern.permute.xlu0 0
        %426 = vperm.xlu0 %425, %v388
        %v427 = vpop.permute.xlu0 %426
        %v429 = vadd.f32 %v373, %v392
        %v430 = vadd.f32 %v374, %v397
        %v431 = vadd.f32 %v375, %v402
        %v432 = vadd.f32 %v376, %v407
        %v433 = vadd.f32 %v377, %v412
        %v434 = vadd.f32 %v378, %v417
        %v435 = vadd.f32 %v379, %v422
        %v436 = vadd.f32 %v380, %v427
        %s437 = smul.u32 %s304, 64
        %s438 = scalar_lea.vmem %s219, %s437
        %v439 = vld [vmem:[%s438] sm:$0xff]
        %v440 = vld [vmem:[%s438 + $0x8] sm:$0xff]
        %v441 = vld [vmem:[%s438 + $0x10] sm:$0xff]
        %v442 = vld [vmem:[%s438 + $0x18] sm:$0xff]
        %v443 = vld [vmem:[%s438 + $0x20] sm:$0xff]
        %v444 = vld [vmem:[%s438 + $0x28] sm:$0xff]
        %v445 = vld [vmem:[%s438 + $0x30] sm:$0xff]
        %v446 = vld [vmem:[%s438 + $0x38] sm:$0xff]
        %448 = vset.pattern.permute.xlu0 0
        %449 = vperm.xlu0 %448, %v258
        %v450 = vpop.permute.xlu0 %449
        %453 = vset.pattern.permute.xlu0 0
        %454 = vperm.xlu0 %453, %v259
        %v455 = vpop.permute.xlu0 %454
        %458 = vset.pattern.permute.xlu0 0
        %459 = vperm.xlu0 %458, %v260
        %v460 = vpop.permute.xlu0 %459
        %463 = vset.pattern.permute.xlu0 0
        %464 = vperm.xlu0 %463, %v261
        %v465 = vpop.permute.xlu0 %464
        %468 = vset.pattern.permute.xlu0 0
        %469 = vperm.xlu0 %468, %v262
        %v470 = vpop.permute.xlu0 %469
        %473 = vset.pattern.permute.xlu0 0
        %474 = vperm.xlu0 %473, %v263
        %v475 = vpop.permute.xlu0 %474
        %478 = vset.pattern.permute.xlu0 0
        %479 = vperm.xlu0 %478, %v264
        %v480 = vpop.permute.xlu0 %479
        %483 = vset.pattern.permute.xlu0 0
        %484 = vperm.xlu0 %483, %v265
        %v485 = vpop.permute.xlu0 %484
        %v487 = vmul.f32 %v439, %v450
        %v488 = vmul.f32 %v440, %v455
        %v489 = vmul.f32 %v441, %v460
        %v490 = vmul.f32 %v442, %v465
        %v491 = vmul.f32 %v443, %v470
        %v492 = vmul.f32 %v444, %v475
        %v493 = vmul.f32 %v445, %v480
        %v494 = vmul.f32 %v446, %v485
        %496 = vset.pattern.permute.xlu0 0
        %497 = vperm.xlu0 %496, %v266
        %v498 = vpop.permute.xlu0 %497
        %501 = vset.pattern.permute.xlu0 0
        %502 = vperm.xlu0 %501, %v267
        %v503 = vpop.permute.xlu0 %502
        %506 = vset.pattern.permute.xlu0 0
        %507 = vperm.xlu0 %506, %v268
        %v508 = vpop.permute.xlu0 %507
        %511 = vset.pattern.permute.xlu0 0
        %512 = vperm.xlu0 %511, %v269
        %v513 = vpop.permute.xlu0 %512
        %516 = vset.pattern.permute.xlu0 0
        %517 = vperm.xlu0 %516, %v270
        %v518 = vpop.permute.xlu0 %517
        %521 = vset.pattern.permute.xlu0 0
        %522 = vperm.xlu0 %521, %v271
        %v523 = vpop.permute.xlu0 %522
        %526 = vset.pattern.permute.xlu0 0
        %527 = vperm.xlu0 %526, %v272
        %v528 = vpop.permute.xlu0 %527
        %531 = vset.pattern.permute.xlu0 0
        %532 = vperm.xlu0 %531, %v273
        %v533 = vpop.permute.xlu0 %532
        %v535 = vadd.f32 %v487, %v498
        %v536 = vadd.f32 %v488, %v503
        %v537 = vadd.f32 %v489, %v508
        %v538 = vadd.f32 %v490, %v513
        %v539 = vadd.f32 %v491, %v518
        %v540 = vadd.f32 %v492, %v523
        %v541 = vadd.f32 %v493, %v528
        %v542 = vadd.f32 %v494, %v533
        %s543 = sadd.s32 %s304, 1
        %s544 = smul.u32 %s543, 64
        %s545 = scalar_lea.vmem %s219, %s544
        %v546 = vld [vmem:[%s545] sm:$0xff]
        %v547 = vld [vmem:[%s545 + $0x8] sm:$0xff]
        %v548 = vld [vmem:[%s545 + $0x10] sm:$0xff]
        %v549 = vld [vmem:[%s545 + $0x18] sm:$0xff]
        %v550 = vld [vmem:[%s545 + $0x20] sm:$0xff]
        %v551 = vld [vmem:[%s545 + $0x28] sm:$0xff]
        %v552 = vld [vmem:[%s545 + $0x30] sm:$0xff]
        %v553 = vld [vmem:[%s545 + $0x38] sm:$0xff]
        %v554 = vmul.f32 %v546, %v450
        %v555 = vmul.f32 %v547, %v455
        %v556 = vmul.f32 %v548, %v460
        %v557 = vmul.f32 %v549, %v465
        %v558 = vmul.f32 %v550, %v470
        %v559 = vmul.f32 %v551, %v475
        %v560 = vmul.f32 %v552, %v480
        %v561 = vmul.f32 %v553, %v485
        %v562 = vadd.f32 %v554, %v498
        %v563 = vadd.f32 %v555, %v503
        %v564 = vadd.f32 %v556, %v508
        %v565 = vadd.f32 %v557, %v513
        %v566 = vadd.f32 %v558, %v518
        %v567 = vadd.f32 %v559, %v523
        %v568 = vadd.f32 %v560, %v528
        %v569 = vadd.f32 %v561, %v533
        %s570 = sadd.s32 %s304, 2
        %p571 = scmp.lt.s32.totalorder %s570, 31
        %s572 = scalar_select %p571, %s570, 31
        %s573 = smul.u32 %s572, 64
        %s574 = scalar_lea.vmem %s219, %s573
        %v575 = vld [vmem:[%s574] sm:$0xff]
        %v576 = vld [vmem:[%s574 + $0x8] sm:$0xff]
        %v577 = vld [vmem:[%s574 + $0x10] sm:$0xff]
        %v578 = vld [vmem:[%s574 + $0x18] sm:$0xff]
        %v579 = vld [vmem:[%s574 + $0x20] sm:$0xff]
        %v580 = vld [vmem:[%s574 + $0x28] sm:$0xff]
        %v581 = vld [vmem:[%s574 + $0x30] sm:$0xff]
        %v582 = vld [vmem:[%s574 + $0x38] sm:$0xff]
        %v583 = vstv %s310
        %v584 = vmul.f32 %v258, %v583
        %v585 = vmul.f32 %v259, %v583
        %v586 = vmul.f32 %v260, %v583
        %v587 = vmul.f32 %v261, %v583
        %v588 = vmul.f32 %v262, %v583
        %v589 = vmul.f32 %v263, %v583
        %v590 = vmul.f32 %v264, %v583
        %v591 = vmul.f32 %v265, %v583
        %593 = vset.pattern.permute.xlu0 0
        %594 = vperm.xlu0 %593, %v584
        %v595 = vpop.permute.xlu0 %594
        %598 = vset.pattern.permute.xlu0 0
        %599 = vperm.xlu0 %598, %v585
        %v600 = vpop.permute.xlu0 %599
        %603 = vset.pattern.permute.xlu0 0
        %604 = vperm.xlu0 %603, %v586
        %v605 = vpop.permute.xlu0 %604
        %608 = vset.pattern.permute.xlu0 0
        %609 = vperm.xlu0 %608, %v587
        %v610 = vpop.permute.xlu0 %609
        %613 = vset.pattern.permute.xlu0 0
        %614 = vperm.xlu0 %613, %v588
        %v615 = vpop.permute.xlu0 %614
        %618 = vset.pattern.permute.xlu0 0
        %619 = vperm.xlu0 %618, %v589
        %v620 = vpop.permute.xlu0 %619
        %623 = vset.pattern.permute.xlu0 0
        %624 = vperm.xlu0 %623, %v590
        %v625 = vpop.permute.xlu0 %624
        %628 = vset.pattern.permute.xlu0 0
        %629 = vperm.xlu0 %628, %v591
        %v630 = vpop.permute.xlu0 %629
        %v632 = vmul.f32 %v575, %v595
        %v633 = vmul.f32 %v576, %v600
        %v634 = vmul.f32 %v577, %v605
        %v635 = vmul.f32 %v578, %v610
        %v636 = vmul.f32 %v579, %v615
        %v637 = vmul.f32 %v580, %v620
        %v638 = vmul.f32 %v581, %v625
        %v639 = vmul.f32 %v582, %v630
        %v640 = vmul.f32 %v266, %v583
        %v641 = vmul.f32 %v267, %v583
        %v642 = vmul.f32 %v268, %v583
        %v643 = vmul.f32 %v269, %v583
        %v644 = vmul.f32 %v270, %v583
        %v645 = vmul.f32 %v271, %v583
        %v646 = vmul.f32 %v272, %v583
        %v647 = vmul.f32 %v273, %v583
        %649 = vset.pattern.permute.xlu0 0
        %650 = vperm.xlu0 %649, %v640
        %v651 = vpop.permute.xlu0 %650
        %654 = vset.pattern.permute.xlu0 0
        %655 = vperm.xlu0 %654, %v641
        %v656 = vpop.permute.xlu0 %655
        %659 = vset.pattern.permute.xlu0 0
        %660 = vperm.xlu0 %659, %v642
        %v661 = vpop.permute.xlu0 %660
        %664 = vset.pattern.permute.xlu0 0
        %665 = vperm.xlu0 %664, %v643
        %v666 = vpop.permute.xlu0 %665
        %669 = vset.pattern.permute.xlu0 0
        %670 = vperm.xlu0 %669, %v644
        %v671 = vpop.permute.xlu0 %670
        %674 = vset.pattern.permute.xlu0 0
        %675 = vperm.xlu0 %674, %v645
        %v676 = vpop.permute.xlu0 %675
        %679 = vset.pattern.permute.xlu0 0
        %680 = vperm.xlu0 %679, %v646
        %v681 = vpop.permute.xlu0 %680
        %684 = vset.pattern.permute.xlu0 0
        %685 = vperm.xlu0 %684, %v647
        %v686 = vpop.permute.xlu0 %685
        %v688 = vadd.f32 %v632, %v651
        %v689 = vadd.f32 %v633, %v656
        %v690 = vadd.f32 %v634, %v661
        %v691 = vadd.f32 %v635, %v666
        %v692 = vadd.f32 %v636, %v671
        %v693 = vadd.f32 %v637, %v676
        %v694 = vadd.f32 %v638, %v681
        %v695 = vadd.f32 %v639, %v686
        %vm696 = vcmask 1047808
        %697 = vrot.lane.b32.xlu0 %v429, 32
        %v698 = vpop.permute.xlu0 %697
        %v699 = vsel %vm696, %v698, %v429
        %700 = vrot.lane.b32.xlu0 %v430, 32
        %v701 = vpop.permute.xlu0 %700
        %v702 = vsel %vm696, %v701, %v430
        %703 = vrot.lane.b32.xlu0 %v431, 32
        %v704 = vpop.permute.xlu0 %703
        %v705 = vsel %vm696, %v704, %v431
        %706 = vrot.lane.b32.xlu0 %v432, 32
        %v707 = vpop.permute.xlu0 %706
        %v708 = vsel %vm696, %v707, %v432
        %709 = vrot.lane.b32.xlu0 %v433, 32
        %v710 = vpop.permute.xlu0 %709
        %v711 = vsel %vm696, %v710, %v433
        %712 = vrot.lane.b32.xlu0 %v434, 32
        %v713 = vpop.permute.xlu0 %712
        %v714 = vsel %vm696, %v713, %v434
        %715 = vrot.lane.b32.xlu0 %v435, 32
        %v716 = vpop.permute.xlu0 %715
        %v717 = vsel %vm696, %v716, %v435
        %718 = vrot.lane.b32.xlu0 %v436, 32
        %v719 = vpop.permute.xlu0 %718
        %v720 = vsel %vm696, %v719, %v436
        %721 = vrot.lane.b32.xlu0 %v535, 32
        %v722 = vpop.permute.xlu0 %721
        %v723 = vsel %vm696, %v722, %v535
        %724 = vrot.lane.b32.xlu0 %v536, 32
        %v725 = vpop.permute.xlu0 %724
        %v726 = vsel %vm696, %v725, %v536
        %727 = vrot.lane.b32.xlu0 %v537, 32
        %v728 = vpop.permute.xlu0 %727
        %v729 = vsel %vm696, %v728, %v537
        %730 = vrot.lane.b32.xlu0 %v538, 32
        %v731 = vpop.permute.xlu0 %730
        %v732 = vsel %vm696, %v731, %v538
        %733 = vrot.lane.b32.xlu0 %v539, 32
        %v734 = vpop.permute.xlu0 %733
        %v735 = vsel %vm696, %v734, %v539
        %736 = vrot.lane.b32.xlu0 %v540, 32
        %v737 = vpop.permute.xlu0 %736
        %v738 = vsel %vm696, %v737, %v540
        %739 = vrot.lane.b32.xlu0 %v541, 32
        %v740 = vpop.permute.xlu0 %739
        %v741 = vsel %vm696, %v740, %v541
        %742 = vrot.lane.b32.xlu0 %v542, 32
        %v743 = vpop.permute.xlu0 %742
        %v744 = vsel %vm696, %v743, %v542
        %745 = vrot.lane.b32.xlu0 %v562, 32
        %v746 = vpop.permute.xlu0 %745
        %v747 = vsel %vm696, %v746, %v562
        %748 = vrot.lane.b32.xlu0 %v563, 32
        %v749 = vpop.permute.xlu0 %748
        %v750 = vsel %vm696, %v749, %v563
        %751 = vrot.lane.b32.xlu0 %v564, 32
        %v752 = vpop.permute.xlu0 %751
        %v753 = vsel %vm696, %v752, %v564
        %754 = vrot.lane.b32.xlu0 %v565, 32
        %v755 = vpop.permute.xlu0 %754
        %v756 = vsel %vm696, %v755, %v565
        %757 = vrot.lane.b32.xlu0 %v566, 32
        %v758 = vpop.permute.xlu0 %757
        %v759 = vsel %vm696, %v758, %v566
        %760 = vrot.lane.b32.xlu0 %v567, 32
        %v761 = vpop.permute.xlu0 %760
        %v762 = vsel %vm696, %v761, %v567
        %763 = vrot.lane.b32.xlu0 %v568, 32
        %v764 = vpop.permute.xlu0 %763
        %v765 = vsel %vm696, %v764, %v568
        %766 = vrot.lane.b32.xlu0 %v569, 32
        %v767 = vpop.permute.xlu0 %766
        %v768 = vsel %vm696, %v767, %v569
        %769 = vrot.lane.b32.xlu0 %v699, 32
        %v770 = vpop.permute.xlu0 %769
        %771 = vrot.lane.b32.xlu0 %v702, 32
        %v772 = vpop.permute.xlu0 %771
        %773 = vrot.lane.b32.xlu0 %v705, 32
        %v774 = vpop.permute.xlu0 %773
        %775 = vrot.lane.b32.xlu0 %v708, 32
        %v776 = vpop.permute.xlu0 %775
        %777 = vrot.lane.b32.xlu0 %v711, 32
        %v778 = vpop.permute.xlu0 %777
        %779 = vrot.lane.b32.xlu0 %v714, 32
        %v780 = vpop.permute.xlu0 %779
        %781 = vrot.lane.b32.xlu0 %v717, 32
        %v782 = vpop.permute.xlu0 %781
        %783 = vrot.lane.b32.xlu0 %v720, 32
        %v784 = vpop.permute.xlu0 %783
        %785 = vrot.lane.b32.xlu0 %v723, 32
        %v786 = vpop.permute.xlu0 %785
        %787 = vrot.lane.b32.xlu0 %v726, 32
        %v788 = vpop.permute.xlu0 %787
        %789 = vrot.lane.b32.xlu0 %v729, 32
        %v790 = vpop.permute.xlu0 %789
        %791 = vrot.lane.b32.xlu0 %v732, 32
        %v792 = vpop.permute.xlu0 %791
        %793 = vrot.lane.b32.xlu0 %v735, 32
        %v794 = vpop.permute.xlu0 %793
        %795 = vrot.lane.b32.xlu0 %v738, 32
        %v796 = vpop.permute.xlu0 %795
        %797 = vrot.lane.b32.xlu0 %v741, 32
        %v798 = vpop.permute.xlu0 %797
        %799 = vrot.lane.b32.xlu0 %v744, 32
        %v800 = vpop.permute.xlu0 %799
        %801 = vrot.lane.b32.xlu0 %v747, 32
        %v802 = vpop.permute.xlu0 %801
        %803 = vrot.lane.b32.xlu0 %v750, 32
        %v804 = vpop.permute.xlu0 %803
        %805 = vrot.lane.b32.xlu0 %v753, 32
        %v806 = vpop.permute.xlu0 %805
        %807 = vrot.lane.b32.xlu0 %v756, 32
        %v808 = vpop.permute.xlu0 %807
        %809 = vrot.lane.b32.xlu0 %v759, 32
        %v810 = vpop.permute.xlu0 %809
        %811 = vrot.lane.b32.xlu0 %v762, 32
        %v812 = vpop.permute.xlu0 %811
        %813 = vrot.lane.b32.xlu0 %v765, 32
        %v814 = vpop.permute.xlu0 %813
        %815 = vrot.lane.b32.xlu0 %v768, 32
        %v816 = vpop.permute.xlu0 %815
        %v817 = vsel %vm696, %v770, %v429
        %v818 = vsel %vm696, %v772, %v430
        %v819 = vsel %vm696, %v774, %v431
        %v820 = vsel %vm696, %v776, %v432
        %v821 = vsel %vm696, %v778, %v433
        %v822 = vsel %vm696, %v780, %v434
        %v823 = vsel %vm696, %v782, %v435
        %v824 = vsel %vm696, %v784, %v436
        %v825 = vsel %vm696, %v786, %v535
        %v826 = vsel %vm696, %v788, %v536
        %v827 = vsel %vm696, %v790, %v537
        %v828 = vsel %vm696, %v792, %v538
        %v829 = vsel %vm696, %v794, %v539
        %v830 = vsel %vm696, %v796, %v540
        %v831 = vsel %vm696, %v798, %v541
        %v832 = vsel %vm696, %v800, %v542
        %v833 = vsel %vm696, %v802, %v562
        %v834 = vsel %vm696, %v804, %v563
        %v835 = vsel %vm696, %v806, %v564
        %v836 = vsel %vm696, %v808, %v565
        %v837 = vsel %vm696, %v810, %v566
        %v838 = vsel %vm696, %v812, %v567
        %v839 = vsel %vm696, %v814, %v568
        %v840 = vsel %vm696, %v816, %v569
        %v841 = vsel %vm276, 1, 0
        %vm842 = vcmp.eq.s32.totalorder %v841, 1
        %867 = vrot.lane.b32.xlu0 %v817, 97
        %v868 = vpop.permute.xlu0 %867
        %869 = vrot.lane.b32.xlu0 %v818, 97
        %v870 = vpop.permute.xlu0 %869
        %871 = vrot.lane.b32.xlu0 %v819, 97
        %v872 = vpop.permute.xlu0 %871
        %873 = vrot.lane.b32.xlu0 %v820, 97
        %v874 = vpop.permute.xlu0 %873
        %875 = vrot.lane.b32.xlu0 %v821, 97
        %v876 = vpop.permute.xlu0 %875
        %877 = vrot.lane.b32.xlu0 %v822, 97
        %v878 = vpop.permute.xlu0 %877
        %879 = vrot.lane.b32.xlu0 %v823, 97
        %v880 = vpop.permute.xlu0 %879
        %881 = vrot.lane.b32.xlu0 %v824, 97
        %v882 = vpop.permute.xlu0 %881
        %883 = vrot.lane.b32.xlu0 %v825, 97
        %v884 = vpop.permute.xlu0 %883
        %885 = vrot.lane.b32.xlu0 %v826, 97
        %v886 = vpop.permute.xlu0 %885
        %887 = vrot.lane.b32.xlu0 %v827, 97
        %v888 = vpop.permute.xlu0 %887
        %889 = vrot.lane.b32.xlu0 %v828, 97
        %v890 = vpop.permute.xlu0 %889
        %891 = vrot.lane.b32.xlu0 %v829, 97
        %v892 = vpop.permute.xlu0 %891
        %893 = vrot.lane.b32.xlu0 %v830, 97
        %v894 = vpop.permute.xlu0 %893
        %895 = vrot.lane.b32.xlu0 %v831, 97
        %v896 = vpop.permute.xlu0 %895
        %897 = vrot.lane.b32.xlu0 %v832, 97
        %v898 = vpop.permute.xlu0 %897
        %899 = vrot.lane.b32.xlu0 %v833, 97
        %v900 = vpop.permute.xlu0 %899
        %901 = vrot.lane.b32.xlu0 %v834, 97
        %v902 = vpop.permute.xlu0 %901
        %903 = vrot.lane.b32.xlu0 %v835, 97
        %v904 = vpop.permute.xlu0 %903
        %905 = vrot.lane.b32.xlu0 %v836, 97
        %v906 = vpop.permute.xlu0 %905
        %907 = vrot.lane.b32.xlu0 %v837, 97
        %v908 = vpop.permute.xlu0 %907
        %909 = vrot.lane.b32.xlu0 %v838, 97
        %v910 = vpop.permute.xlu0 %909
        %911 = vrot.lane.b32.xlu0 %v839, 97
        %v912 = vpop.permute.xlu0 %911
        %913 = vrot.lane.b32.xlu0 %v840, 97
        %v914 = vpop.permute.xlu0 %913
        %v939 = vsel %vm842, %v868, 0.0
        %v940 = vsel %vm842, %v870, 0.0
        %v941 = vsel %vm842, %v872, 0.0
        %v942 = vsel %vm842, %v874, 0.0
        %v943 = vsel %vm842, %v876, 0.0
        %v944 = vsel %vm842, %v878, 0.0
        %v945 = vsel %vm842, %v880, 0.0
        %v946 = vsel %vm842, %v882, 0.0
        %v947 = vsel %vm842, %v884, 0.0
        %v948 = vsel %vm842, %v886, 0.0
        %v949 = vsel %vm842, %v888, 0.0
        %v950 = vsel %vm842, %v890, 0.0
        %v951 = vsel %vm842, %v892, 0.0
        %v952 = vsel %vm842, %v894, 0.0
        %v953 = vsel %vm842, %v896, 0.0
        %v954 = vsel %vm842, %v898, 0.0
        %v955 = vsel %vm842, %v900, 0.0
        %v956 = vsel %vm842, %v902, 0.0
        %v957 = vsel %vm842, %v904, 0.0
        %v958 = vsel %vm842, %v906, 0.0
        %v959 = vsel %vm842, %v908, 0.0
        %v960 = vsel %vm842, %v910, 0.0
        %v961 = vsel %vm842, %v912, 0.0
        %v962 = vsel %vm842, %v914, 0.0
        %v963 = vsel %vm277, 1, 0
        %vm964 = vcmp.eq.s32.totalorder %v963, 1
        %965 = vrot.lane.b32.xlu0 %v817, 127
        %v966 = vpop.permute.xlu0 %965
        %967 = vrot.lane.b32.xlu0 %v818, 127
        %v968 = vpop.permute.xlu0 %967
        %969 = vrot.lane.b32.xlu0 %v819, 127
        %v970 = vpop.permute.xlu0 %969
        %971 = vrot.lane.b32.xlu0 %v820, 127
        %v972 = vpop.permute.xlu0 %971
        %973 = vrot.lane.b32.xlu0 %v821, 127
        %v974 = vpop.permute.xlu0 %973
        %975 = vrot.lane.b32.xlu0 %v822, 127
        %v976 = vpop.permute.xlu0 %975
        %977 = vrot.lane.b32.xlu0 %v823, 127
        %v978 = vpop.permute.xlu0 %977
        %979 = vrot.lane.b32.xlu0 %v824, 127
        %v980 = vpop.permute.xlu0 %979
        %981 = vrot.lane.b32.xlu0 %v825, 127
        %v982 = vpop.permute.xlu0 %981
        %983 = vrot.lane.b32.xlu0 %v826, 127
        %v984 = vpop.permute.xlu0 %983
        %985 = vrot.lane.b32.xlu0 %v827, 127
        %v986 = vpop.permute.xlu0 %985
        %987 = vrot.lane.b32.xlu0 %v828, 127
        %v988 = vpop.permute.xlu0 %987
        %989 = vrot.lane.b32.xlu0 %v829, 127
        %v990 = vpop.permute.xlu0 %989
        %991 = vrot.lane.b32.xlu0 %v830, 127
        %v992 = vpop.permute.xlu0 %991
        %993 = vrot.lane.b32.xlu0 %v831, 127
        %v994 = vpop.permute.xlu0 %993
        %995 = vrot.lane.b32.xlu0 %v832, 127
        %v996 = vpop.permute.xlu0 %995
        %997 = vrot.lane.b32.xlu0 %v833, 127
        %v998 = vpop.permute.xlu0 %997
        %999 = vrot.lane.b32.xlu0 %v834, 127
        %v1000 = vpop.permute.xlu0 %999
        %1001 = vrot.lane.b32.xlu0 %v835, 127
        %v1002 = vpop.permute.xlu0 %1001
        %1003 = vrot.lane.b32.xlu0 %v836, 127
        %v1004 = vpop.permute.xlu0 %1003
        %1005 = vrot.lane.b32.xlu0 %v837, 127
        %v1006 = vpop.permute.xlu0 %1005
        %1007 = vrot.lane.b32.xlu0 %v838, 127
        %v1008 = vpop.permute.xlu0 %1007
        %1009 = vrot.lane.b32.xlu0 %v839, 127
        %v1010 = vpop.permute.xlu0 %1009
        %1011 = vrot.lane.b32.xlu0 %v840, 127
        %v1012 = vpop.permute.xlu0 %1011
        %v1037 = vsel %vm964, %v966, 0.0
        %v1038 = vsel %vm964, %v968, 0.0
        %v1039 = vsel %vm964, %v970, 0.0
        %v1040 = vsel %vm964, %v972, 0.0
        %v1041 = vsel %vm964, %v974, 0.0
        %v1042 = vsel %vm964, %v976, 0.0
        %v1043 = vsel %vm964, %v978, 0.0
        %v1044 = vsel %vm964, %v980, 0.0
        %v1045 = vsel %vm964, %v982, 0.0
        %v1046 = vsel %vm964, %v984, 0.0
        %v1047 = vsel %vm964, %v986, 0.0
        %v1048 = vsel %vm964, %v988, 0.0
        %v1049 = vsel %vm964, %v990, 0.0
        %v1050 = vsel %vm964, %v992, 0.0
        %v1051 = vsel %vm964, %v994, 0.0
        %v1052 = vsel %vm964, %v996, 0.0
        %v1053 = vsel %vm964, %v998, 0.0
        %v1054 = vsel %vm964, %v1000, 0.0
        %v1055 = vsel %vm964, %v1002, 0.0
        %v1056 = vsel %vm964, %v1004, 0.0
        %v1057 = vsel %vm964, %v1006, 0.0
        %v1058 = vsel %vm964, %v1008, 0.0
        %v1059 = vsel %vm964, %v1010, 0.0
        %v1060 = vsel %vm964, %v1012, 0.0
        %v1061 = vpack.c.bf16 %v940, %v939
        %v1062 = vpack.c.bf16 %v942, %v941
        %v1063 = vpack.c.bf16 %v944, %v943
        %v1064 = vpack.c.bf16 %v946, %v945
        %v1065 = vpack.c.bf16 %v948, %v947
        %v1066 = vpack.c.bf16 %v950, %v949
        %v1067 = vpack.c.bf16 %v952, %v951
        %v1068 = vpack.c.bf16 %v954, %v953
        %v1069 = vpack.c.bf16 %v956, %v955
        %v1070 = vpack.c.bf16 %v958, %v957
        %v1071 = vpack.c.bf16 %v960, %v959
        %v1072 = vpack.c.bf16 %v962, %v961
        %v1073 = vpack.c.bf16 %v430, %v429
        %v1074 = vpack.c.bf16 %v432, %v431
        %v1075 = vpack.c.bf16 %v434, %v433
        %v1076 = vpack.c.bf16 %v436, %v435
        %v1077 = vpack.c.bf16 %v536, %v535
        %v1078 = vpack.c.bf16 %v538, %v537
        %v1079 = vpack.c.bf16 %v540, %v539
        %v1080 = vpack.c.bf16 %v542, %v541
        %v1081 = vpack.c.bf16 %v563, %v562
        %v1082 = vpack.c.bf16 %v565, %v564
        %v1083 = vpack.c.bf16 %v567, %v566
        %v1084 = vpack.c.bf16 %v569, %v568
        %v1085 = vpack.c.bf16 %v1038, %v1037
        %v1086 = vpack.c.bf16 %v1040, %v1039
        %v1087 = vpack.c.bf16 %v1042, %v1041
        %v1088 = vpack.c.bf16 %v1044, %v1043
        %v1089 = vpack.c.bf16 %v1046, %v1045
        %v1090 = vpack.c.bf16 %v1048, %v1047
        %v1091 = vpack.c.bf16 %v1050, %v1049
        %v1092 = vpack.c.bf16 %v1052, %v1051
        %v1093 = vpack.c.bf16 %v1054, %v1053
        %v1094 = vpack.c.bf16 %v1056, %v1055
        %v1095 = vpack.c.bf16 %v1058, %v1057
        %v1096 = vpack.c.bf16 %v1060, %v1059
        %v1121 = vunpack.c.l.b16 %v226
        %v1122 = vunpack.c.h.b16 %v226
        %v1123 = vunpack.c.l.b16 %v227
        %v1124 = vunpack.c.h.b16 %v227
        %v1125 = vunpack.c.l.b16 %v228
        %v1126 = vunpack.c.l.b16 %v229
        %v1127 = vunpack.c.h.b16 %v229
        %v1128 = vunpack.c.l.b16 %v230
        %v1129 = vunpack.c.h.b16 %v230
        %v1130 = vunpack.c.l.b16 %v231
        %v1131 = vunpack.c.l.b16 %v232
        %v1132 = vunpack.c.h.b16 %v232
        %v1133 = vunpack.c.l.b16 %v233
        %v1134 = vunpack.c.h.b16 %v233
        %v1135 = vunpack.c.l.b16 %v234
        %v1136 = vunpack.c.l.b16 %v235
        %v1137 = vunpack.c.h.b16 %v235
        %v1138 = vunpack.c.l.b16 %v236
        %v1139 = vunpack.c.h.b16 %v236
        %v1140 = vunpack.c.l.b16 %v237
        %v1141 = vunpack.c.l.b16 %v238
        %v1142 = vunpack.c.h.b16 %v238
        %v1143 = vunpack.c.l.b16 %v239
        %v1144 = vunpack.c.h.b16 %v239
        %v1145 = vunpack.c.l.b16 %v240
        %v1146 = vunpack.c.l.b16 %v241
        %v1147 = vunpack.c.h.b16 %v241
        %v1148 = vunpack.c.l.b16 %v242
        %v1149 = vunpack.c.h.b16 %v242
        %v1150 = vunpack.c.l.b16 %v243
        %v1151 = vunpack.c.l.b16 %v244
        %v1152 = vunpack.c.h.b16 %v244
        %v1153 = vunpack.c.l.b16 %v245
        %v1154 = vunpack.c.h.b16 %v245
        %v1155 = vunpack.c.l.b16 %v246
        %v1156 = vunpack.c.l.b16 %v247
        %v1157 = vunpack.c.h.b16 %v247
        %v1158 = vunpack.c.l.b16 %v248
        %v1159 = vunpack.c.h.b16 %v248
        %v1160 = vunpack.c.l.b16 %v249
        %v1161 = vpack.c.b16 %v1126, %v1121
        %v1162 = vpack.c.b16 %v1127, %v1122
        %v1163 = vpack.c.b16 %v1128, %v1123
        %v1164 = vpack.c.b16 %v1129, %v1124
        %v1165 = vpack.c.b16 %v1130, %v1125
        %v1166 = vpack.c.b16 %v1136, %v1131
        %v1167 = vpack.c.b16 %v1137, %v1132
        %v1168 = vpack.c.b16 %v1138, %v1133
        %v1169 = vpack.c.b16 %v1139, %v1134
        %v1170 = vpack.c.b16 %v1140, %v1135
        %v1171 = vpack.c.b16 %v1146, %v1141
        %v1172 = vpack.c.b16 %v1147, %v1142
        %v1173 = vpack.c.b16 %v1148, %v1143
        %v1174 = vpack.c.b16 %v1149, %v1144
        %v1175 = vpack.c.b16 %v1150, %v1145
        %v1176 = vpack.c.b16 %v1156, %v1151
        %v1177 = vpack.c.b16 %v1157, %v1152
        %v1178 = vpack.c.b16 %v1158, %v1153
        %v1179 = vpack.c.b16 %v1159, %v1154
        %v1180 = vpack.c.b16 %v1160, %v1155
        %vm1197 = vcmask 523264
        %v1199 = vsel %vm1197, %v1165, 0
        %v1202 = vsel %vm1197, %v1170, 0
        %v1205 = vsel %vm1197, %v1175, 0
        %v1208 = vsel %vm1197, %v1180, 0
        %1210 = vmatpush.bf16.msra.mxu0 %v1068
        %1211 = vmatpush.bf16.msra.mxu0 %v1067
        %1212 = vmatpush.bf16.msra.mxu0 %v1066
        %1213 = vmatpush.bf16.msra.mxu0 %v1065
        %1214 = vmatpush.bf16.msra.mxu0 %v1064
        %1215 = vmatpush.bf16.msra.mxu0 %v1063
        %1216 = vmatpush.bf16.msra.mxu0 %v1062
        %1217 = vmatpush.bf16.msra.mxu0 %v1061
        %1218 = vmatmul.bf16.gmra.mxu0 %v1161
        %v1219 = vpop.f32.mrf.mxu0
        %v1220 = vadd.f32 0.0, %v1219
        %v1221 = vpop.f32.mrf.mxu0
        %v1222 = vadd.f32 0.0, %v1221
        %1223 = vmatmul.bf16.gmra.mxu0 %v1166
        %v1224 = vpop.f32.mrf.mxu0
        %v1225 = vadd.f32 0.0, %v1224
        %v1226 = vpop.f32.mrf.mxu0
        %v1227 = vadd.f32 0.0, %v1226
        %1228 = vmatmul.bf16.gmra.mxu0 %v1171
        %v1229 = vpop.f32.mrf.mxu0
        %v1230 = vadd.f32 0.0, %v1229
        %v1231 = vpop.f32.mrf.mxu0
        %v1232 = vadd.f32 0.0, %v1231
        %1233 = vmatmul.bf16.gmra.mxu0 %v1176
        %v1234 = vpop.f32.mrf.mxu0
        %v1235 = vadd.f32 0.0, %v1234
        %v1236 = vpop.f32.mrf.mxu0
        %v1237 = vadd.f32 0.0, %v1236
        %1238 = vdwg.mxu0
        %1239 = vmatpush.bf16.msra.mxu0 %v1076
        %1240 = vmatpush.bf16.msra.mxu0 %v1075
        %1241 = vmatpush.bf16.msra.mxu0 %v1074
        %1242 = vmatpush.bf16.msra.mxu0 %v1073
        %1243 = vmatpush.bf16.msra.mxu0 %v1072
        %1244 = vmatpush.bf16.msra.mxu0 %v1071
        %1245 = vmatpush.bf16.msra.mxu0 %v1070
        %1246 = vmatpush.bf16.msra.mxu0 %v1069
        %1247 = vmatmul.bf16.gmra.mxu0 %v1162
        %v1248 = vpop.f32.mrf.mxu0
        %v1249 = vadd.f32 %v1220, %v1248
        %v1250 = vpop.f32.mrf.mxu0
        %v1251 = vadd.f32 %v1222, %v1250
        %1252 = vmatmul.bf16.gmra.mxu0 %v1167
        %v1253 = vpop.f32.mrf.mxu0
        %v1254 = vadd.f32 %v1225, %v1253
        %v1255 = vpop.f32.mrf.mxu0
        %v1256 = vadd.f32 %v1227, %v1255
        %1257 = vmatmul.bf16.gmra.mxu0 %v1172
        %v1258 = vpop.f32.mrf.mxu0
        %v1259 = vadd.f32 %v1230, %v1258
        %v1260 = vpop.f32.mrf.mxu0
        %v1261 = vadd.f32 %v1232, %v1260
        %1262 = vmatmul.bf16.gmra.mxu0 %v1177
        %v1263 = vpop.f32.mrf.mxu0
        %v1264 = vadd.f32 %v1235, %v1263
        %v1265 = vpop.f32.mrf.mxu0
        %v1266 = vadd.f32 %v1237, %v1265
        %1267 = vdwg.mxu0
        %1268 = vmatpush.bf16.msra.mxu0 %v1084
        %1269 = vmatpush.bf16.msra.mxu0 %v1083
        %1270 = vmatpush.bf16.msra.mxu0 %v1082
        %1271 = vmatpush.bf16.msra.mxu0 %v1081
        %1272 = vmatpush.bf16.msra.mxu0 %v1080
        %1273 = vmatpush.bf16.msra.mxu0 %v1079
        %1274 = vmatpush.bf16.msra.mxu0 %v1078
        %1275 = vmatpush.bf16.msra.mxu0 %v1077
        %1276 = vmatmul.bf16.gmra.mxu0 %v1163
        %v1277 = vpop.f32.mrf.mxu0
        %v1278 = vadd.f32 %v1249, %v1277
        %v1279 = vpop.f32.mrf.mxu0
        %v1280 = vadd.f32 %v1251, %v1279
        %1281 = vmatmul.bf16.gmra.mxu0 %v1168
        %v1282 = vpop.f32.mrf.mxu0
        %v1283 = vadd.f32 %v1254, %v1282
        %v1284 = vpop.f32.mrf.mxu0
        %v1285 = vadd.f32 %v1256, %v1284
        %1286 = vmatmul.bf16.gmra.mxu0 %v1173
        %v1287 = vpop.f32.mrf.mxu0
        %v1288 = vadd.f32 %v1259, %v1287
        %v1289 = vpop.f32.mrf.mxu0
        %v1290 = vadd.f32 %v1261, %v1289
        %1291 = vmatmul.bf16.gmra.mxu0 %v1178
        %v1292 = vpop.f32.mrf.mxu0
        %v1293 = vadd.f32 %v1264, %v1292
        %v1294 = vpop.f32.mrf.mxu0
        %v1295 = vadd.f32 %v1266, %v1294
        %1296 = vdwg.mxu0
        %1297 = vmatpush.bf16.msra.mxu0 %v1092
        %1298 = vmatpush.bf16.msra.mxu0 %v1091
        %1299 = vmatpush.bf16.msra.mxu0 %v1090
        %1300 = vmatpush.bf16.msra.mxu0 %v1089
        %1301 = vmatpush.bf16.msra.mxu0 %v1088
        %1302 = vmatpush.bf16.msra.mxu0 %v1087
        %1303 = vmatpush.bf16.msra.mxu0 %v1086
        %1304 = vmatpush.bf16.msra.mxu0 %v1085
        %1305 = vmatmul.bf16.gmra.mxu0 %v1164
        %v1306 = vpop.f32.mrf.mxu0
        %v1307 = vadd.f32 %v1278, %v1306
        %v1308 = vpop.f32.mrf.mxu0
        %v1309 = vadd.f32 %v1280, %v1308
        %1310 = vmatmul.bf16.gmra.mxu0 %v1169
        %v1311 = vpop.f32.mrf.mxu0
        %v1312 = vadd.f32 %v1283, %v1311
        %v1313 = vpop.f32.mrf.mxu0
        %v1314 = vadd.f32 %v1285, %v1313
        %1315 = vmatmul.bf16.gmra.mxu0 %v1174
        %v1316 = vpop.f32.mrf.mxu0
        %v1317 = vadd.f32 %v1288, %v1316
        %v1318 = vpop.f32.mrf.mxu0
        %v1319 = vadd.f32 %v1290, %v1318
        %1320 = vmatmul.bf16.gmra.mxu0 %v1179
        %v1321 = vpop.f32.mrf.mxu0
        %v1322 = vadd.f32 %v1293, %v1321
        %v1323 = vpop.f32.mrf.mxu0
        %v1324 = vadd.f32 %v1295, %v1323
        %1325 = vdwg.mxu0
        %1326 = vmatpush.bf16.msra.mxu0 0
        %1327 = vmatpush.bf16.msra.mxu0 0
        %1328 = vmatpush.bf16.msra.mxu0 0
        %1329 = vmatpush.bf16.msra.mxu0 0
        %1330 = vmatpush.bf16.msra.mxu0 %v1096
        %1331 = vmatpush.bf16.msra.mxu0 %v1095
        %1332 = vmatpush.bf16.msra.mxu0 %v1094
        %1333 = vmatpush.bf16.msra.mxu0 %v1093
        %1334 = vmatmul.bf16.gmra.mxu0 %v1199
        %v1335 = vpop.f32.mrf.mxu0
        %v1336 = vadd.f32 %v1307, %v1335
        %v1337 = vpop.f32.mrf.mxu0
        %v1338 = vadd.f32 %v1309, %v1337
        %1339 = vmatmul.bf16.gmra.mxu0 %v1202
        %v1340 = vpop.f32.mrf.mxu0
        %v1341 = vadd.f32 %v1312, %v1340
        %v1342 = vpop.f32.mrf.mxu0
        %v1343 = vadd.f32 %v1314, %v1342
        %1344 = vmatmul.bf16.gmra.mxu0 %v1205
        %v1345 = vpop.f32.mrf.mxu0
        %v1346 = vadd.f32 %v1317, %v1345
        %v1347 = vpop.f32.mrf.mxu0
        %v1348 = vadd.f32 %v1319, %v1347
        %1349 = vmatmul.bf16.gmra.mxu0 %v1208
        %v1350 = vpop.f32.mrf.mxu0
        %v1351 = vadd.f32 %v1322, %v1350
        %v1352 = vpop.f32.mrf.mxu0
        %v1353 = vadd.f32 %v1324, %v1352
        %1354 = vdwg.mxu0
        %1355 = vrot.lane.b32.xlu0 %v688, 32
        %v1356 = vpop.permute.xlu0 %1355
        %v1357 = vsel %vm696, %v1356, %v688
        %1358 = vrot.lane.b32.xlu0 %v689, 32
        %v1359 = vpop.permute.xlu0 %1358
        %v1360 = vsel %vm696, %v1359, %v689
        %1361 = vrot.lane.b32.xlu0 %v690, 32
        %v1362 = vpop.permute.xlu0 %1361
        %v1363 = vsel %vm696, %v1362, %v690
        %1364 = vrot.lane.b32.xlu0 %v691, 32
        %v1365 = vpop.permute.xlu0 %1364
        %v1366 = vsel %vm696, %v1365, %v691
        %1367 = vrot.lane.b32.xlu0 %v692, 32
        %v1368 = vpop.permute.xlu0 %1367
        %v1369 = vsel %vm696, %v1368, %v692
        %1370 = vrot.lane.b32.xlu0 %v693, 32
        %v1371 = vpop.permute.xlu0 %1370
        %v1372 = vsel %vm696, %v1371, %v693
        %1373 = vrot.lane.b32.xlu0 %v694, 32
        %v1374 = vpop.permute.xlu0 %1373
        %v1375 = vsel %vm696, %v1374, %v694
        %1376 = vrot.lane.b32.xlu0 %v695, 32
        %v1377 = vpop.permute.xlu0 %1376
        %v1378 = vsel %vm696, %v1377, %v695
        %1379 = vrot.lane.b32.xlu0 %v1357, 32
        %v1380 = vpop.permute.xlu0 %1379
        %1381 = vrot.lane.b32.xlu0 %v1360, 32
        %v1382 = vpop.permute.xlu0 %1381
        %1383 = vrot.lane.b32.xlu0 %v1363, 32
        %v1384 = vpop.permute.xlu0 %1383
        %1385 = vrot.lane.b32.xlu0 %v1366, 32
        %v1386 = vpop.permute.xlu0 %1385
        %1387 = vrot.lane.b32.xlu0 %v1369, 32
        %v1388 = vpop.permute.xlu0 %1387
        %1389 = vrot.lane.b32.xlu0 %v1372, 32
        %v1390 = vpop.permute.xlu0 %1389
        %1391 = vrot.lane.b32.xlu0 %v1375, 32
        %v1392 = vpop.permute.xlu0 %1391
        %1393 = vrot.lane.b32.xlu0 %v1378, 32
        %v1394 = vpop.permute.xlu0 %1393
        %v1395 = vsel %vm696, %v1380, %v688
        %v1396 = vsel %vm696, %v1382, %v689
        %v1397 = vsel %vm696, %v1384, %v690
        %v1398 = vsel %vm696, %v1386, %v691
        %v1399 = vsel %vm696, %v1388, %v692
        %v1400 = vsel %vm696, %v1390, %v693
        %v1401 = vsel %vm696, %v1392, %v694
        %v1402 = vsel %vm696, %v1394, %v695
        %1411 = vrot.lane.b32.xlu0 %v1395, 97
        %v1412 = vpop.permute.xlu0 %1411
        %1413 = vrot.lane.b32.xlu0 %v1396, 97
        %v1414 = vpop.permute.xlu0 %1413
        %1415 = vrot.lane.b32.xlu0 %v1397, 97
        %v1416 = vpop.permute.xlu0 %1415
        %1417 = vrot.lane.b32.xlu0 %v1398, 97
        %v1418 = vpop.permute.xlu0 %1417
        %1419 = vrot.lane.b32.xlu0 %v1399, 97
        %v1420 = vpop.permute.xlu0 %1419
        %1421 = vrot.lane.b32.xlu0 %v1400, 97
        %v1422 = vpop.permute.xlu0 %1421
        %1423 = vrot.lane.b32.xlu0 %v1401, 97
        %v1424 = vpop.permute.xlu0 %1423
        %1425 = vrot.lane.b32.xlu0 %v1402, 97
        %v1426 = vpop.permute.xlu0 %1425
        %v1435 = vsel %vm842, %v1412, 0.0
        %v1436 = vsel %vm842, %v1414, 0.0
        %v1437 = vsel %vm842, %v1416, 0.0
        %v1438 = vsel %vm842, %v1418, 0.0
        %v1439 = vsel %vm842, %v1420, 0.0
        %v1440 = vsel %vm842, %v1422, 0.0
        %v1441 = vsel %vm842, %v1424, 0.0
        %v1442 = vsel %vm842, %v1426, 0.0
        %1443 = vrot.lane.b32.xlu0 %v1395, 127
        %v1444 = vpop.permute.xlu0 %1443
        %1445 = vrot.lane.b32.xlu0 %v1396, 127
        %v1446 = vpop.permute.xlu0 %1445
        %1447 = vrot.lane.b32.xlu0 %v1397, 127
        %v1448 = vpop.permute.xlu0 %1447
        %1449 = vrot.lane.b32.xlu0 %v1398, 127
        %v1450 = vpop.permute.xlu0 %1449
        %1451 = vrot.lane.b32.xlu0 %v1399, 127
        %v1452 = vpop.permute.xlu0 %1451
        %1453 = vrot.lane.b32.xlu0 %v1400, 127
        %v1454 = vpop.permute.xlu0 %1453
        %1455 = vrot.lane.b32.xlu0 %v1401, 127
        %v1456 = vpop.permute.xlu0 %1455
        %1457 = vrot.lane.b32.xlu0 %v1402, 127
        %v1458 = vpop.permute.xlu0 %1457
        %v1467 = vsel %vm964, %v1444, 0.0
        %v1468 = vsel %vm964, %v1446, 0.0
        %v1469 = vsel %vm964, %v1448, 0.0
        %v1470 = vsel %vm964, %v1450, 0.0
        %v1471 = vsel %vm964, %v1452, 0.0
        %v1472 = vsel %vm964, %v1454, 0.0
        %v1473 = vsel %vm964, %v1456, 0.0
        %v1474 = vsel %vm964, %v1458, 0.0
        %v1475 = vpack.c.bf16 %v1436, %v1435
        %v1476 = vpack.c.bf16 %v1438, %v1437
        %v1477 = vpack.c.bf16 %v1440, %v1439
        %v1478 = vpack.c.bf16 %v1442, %v1441
        %v1479 = vpack.c.bf16 %v689, %v688
        %v1480 = vpack.c.bf16 %v691, %v690
        %v1481 = vpack.c.bf16 %v693, %v692
        %v1482 = vpack.c.bf16 %v695, %v694
        %v1483 = vpack.c.bf16 %v1468, %v1467
        %v1484 = vpack.c.bf16 %v1470, %v1469
        %v1485 = vpack.c.bf16 %v1472, %v1471
        %v1486 = vpack.c.bf16 %v1474, %v1473
        %1487 = vmatpush.bf16.msra.mxu0 %v1072
        %1488 = vmatpush.bf16.msra.mxu0 %v1071
        %1489 = vmatpush.bf16.msra.mxu0 %v1070
        %1490 = vmatpush.bf16.msra.mxu0 %v1069
        %1491 = vmatpush.bf16.msra.mxu0 %v1068
        %1492 = vmatpush.bf16.msra.mxu0 %v1067
        %1493 = vmatpush.bf16.msra.mxu0 %v1066
        %1494 = vmatpush.bf16.msra.mxu0 %v1065
        %1495 = vmatmul.bf16.gmra.mxu0 %v1161
        %v1496 = vpop.f32.mrf.mxu0
        %v1497 = vadd.f32 0.0, %v1496
        %v1498 = vpop.f32.mrf.mxu0
        %v1499 = vadd.f32 0.0, %v1498
        %1500 = vmatmul.bf16.gmra.mxu0 %v1166
        %v1501 = vpop.f32.mrf.mxu0
        %v1502 = vadd.f32 0.0, %v1501
        %v1503 = vpop.f32.mrf.mxu0
        %v1504 = vadd.f32 0.0, %v1503
        %1505 = vmatmul.bf16.gmra.mxu0 %v1171
        %v1506 = vpop.f32.mrf.mxu0
        %v1507 = vadd.f32 0.0, %v1506
        %v1508 = vpop.f32.mrf.mxu0
        %v1509 = vadd.f32 0.0, %v1508
        %1510 = vmatmul.bf16.gmra.mxu0 %v1176
        %v1511 = vpop.f32.mrf.mxu0
        %v1512 = vadd.f32 0.0, %v1511
        %v1513 = vpop.f32.mrf.mxu0
        %v1514 = vadd.f32 0.0, %v1513
        %1515 = vdwg.mxu0
        %1516 = vmatpush.bf16.msra.mxu0 %v1080
        %1517 = vmatpush.bf16.msra.mxu0 %v1079
        %1518 = vmatpush.bf16.msra.mxu0 %v1078
        %1519 = vmatpush.bf16.msra.mxu0 %v1077
        %1520 = vmatpush.bf16.msra.mxu0 %v1478
        %1521 = vmatpush.bf16.msra.mxu0 %v1477
        %1522 = vmatpush.bf16.msra.mxu0 %v1476
        %1523 = vmatpush.bf16.msra.mxu0 %v1475
        %1524 = vmatmul.bf16.gmra.mxu0 %v1162
        %v1525 = vpop.f32.mrf.mxu0
        %v1526 = vadd.f32 %v1497, %v1525
        %v1527 = vpop.f32.mrf.mxu0
        %v1528 = vadd.f32 %v1499, %v1527
        %1529 = vmatmul.bf16.gmra.mxu0 %v1167
        %v1530 = vpop.f32.mrf.mxu0
        %v1531 = vadd.f32 %v1502, %v1530
        %v1532 = vpop.f32.mrf.mxu0
        %v1533 = vadd.f32 %v1504, %v1532
        %1534 = vmatmul.bf16.gmra.mxu0 %v1172
        %v1535 = vpop.f32.mrf.mxu0
        %v1536 = vadd.f32 %v1507, %v1535
        %v1537 = vpop.f32.mrf.mxu0
        %v1538 = vadd.f32 %v1509, %v1537
        %1539 = vmatmul.bf16.gmra.mxu0 %v1177
        %v1540 = vpop.f32.mrf.mxu0
        %v1541 = vadd.f32 %v1512, %v1540
        %v1542 = vpop.f32.mrf.mxu0
        %v1543 = vadd.f32 %v1514, %v1542
        %1544 = vdwg.mxu0
        %1545 = vmatpush.bf16.msra.mxu0 %v1482
        %1546 = vmatpush.bf16.msra.mxu0 %v1481
        %1547 = vmatpush.bf16.msra.mxu0 %v1480
        %1548 = vmatpush.bf16.msra.mxu0 %v1479
        %1549 = vmatpush.bf16.msra.mxu0 %v1084
        %1550 = vmatpush.bf16.msra.mxu0 %v1083
        %1551 = vmatpush.bf16.msra.mxu0 %v1082
        %1552 = vmatpush.bf16.msra.mxu0 %v1081
        %1553 = vmatmul.bf16.gmra.mxu0 %v1163
        %v1554 = vpop.f32.mrf.mxu0
        %v1555 = vadd.f32 %v1526, %v1554
        %v1556 = vpop.f32.mrf.mxu0
        %v1557 = vadd.f32 %v1528, %v1556
        %1558 = vmatmul.bf16.gmra.mxu0 %v1168
        %v1559 = vpop.f32.mrf.mxu0
        %v1560 = vadd.f32 %v1531, %v1559
        %v1561 = vpop.f32.mrf.mxu0
        %v1562 = vadd.f32 %v1533, %v1561
        %1563 = vmatmul.bf16.gmra.mxu0 %v1173
        %v1564 = vpop.f32.mrf.mxu0
        %v1565 = vadd.f32 %v1536, %v1564
        %v1566 = vpop.f32.mrf.mxu0
        %v1567 = vadd.f32 %v1538, %v1566
        %1568 = vmatmul.bf16.gmra.mxu0 %v1178
        %v1569 = vpop.f32.mrf.mxu0
        %v1570 = vadd.f32 %v1541, %v1569
        %v1571 = vpop.f32.mrf.mxu0
        %v1572 = vadd.f32 %v1543, %v1571
        %1573 = vdwg.mxu0
        %1574 = vmatpush.bf16.msra.mxu0 %v1096
        %1575 = vmatpush.bf16.msra.mxu0 %v1095
        %1576 = vmatpush.bf16.msra.mxu0 %v1094
        %1577 = vmatpush.bf16.msra.mxu0 %v1093
        %1578 = vmatpush.bf16.msra.mxu0 %v1092
        %1579 = vmatpush.bf16.msra.mxu0 %v1091
        %1580 = vmatpush.bf16.msra.mxu0 %v1090
        %1581 = vmatpush.bf16.msra.mxu0 %v1089
        %1582 = vmatmul.bf16.gmra.mxu0 %v1164
        %v1583 = vpop.f32.mrf.mxu0
        %v1584 = vadd.f32 %v1555, %v1583
        %v1585 = vpop.f32.mrf.mxu0
        %v1586 = vadd.f32 %v1557, %v1585
        %1587 = vmatmul.bf16.gmra.mxu0 %v1169
        %v1588 = vpop.f32.mrf.mxu0
        %v1589 = vadd.f32 %v1560, %v1588
        %v1590 = vpop.f32.mrf.mxu0
        %v1591 = vadd.f32 %v1562, %v1590
        %1592 = vmatmul.bf16.gmra.mxu0 %v1174
        %v1593 = vpop.f32.mrf.mxu0
        %v1594 = vadd.f32 %v1565, %v1593
        %v1595 = vpop.f32.mrf.mxu0
        %v1596 = vadd.f32 %v1567, %v1595
        %1597 = vmatmul.bf16.gmra.mxu0 %v1179
        %v1598 = vpop.f32.mrf.mxu0
        %v1599 = vadd.f32 %v1570, %v1598
        %v1600 = vpop.f32.mrf.mxu0
        %v1601 = vadd.f32 %v1572, %v1600
        %1602 = vdwg.mxu0
        %1603 = vmatpush.bf16.msra.mxu0 0
        %1604 = vmatpush.bf16.msra.mxu0 0
        %1605 = vmatpush.bf16.msra.mxu0 0
        %1606 = vmatpush.bf16.msra.mxu0 0
        %1607 = vmatpush.bf16.msra.mxu0 %v1486
        %1608 = vmatpush.bf16.msra.mxu0 %v1485
        %1609 = vmatpush.bf16.msra.mxu0 %v1484
        %1610 = vmatpush.bf16.msra.mxu0 %v1483
        %1611 = vmatmul.bf16.gmra.mxu0 %v1199
        %v1612 = vpop.f32.mrf.mxu0
        %v1613 = vadd.f32 %v1584, %v1612
        %v1614 = vpop.f32.mrf.mxu0
        %v1615 = vadd.f32 %v1586, %v1614
        %1616 = vmatmul.bf16.gmra.mxu0 %v1202
        %v1617 = vpop.f32.mrf.mxu0
        %v1618 = vadd.f32 %v1589, %v1617
        %v1619 = vpop.f32.mrf.mxu0
        %v1620 = vadd.f32 %v1591, %v1619
        %1621 = vmatmul.bf16.gmra.mxu0 %v1205
        %v1622 = vpop.f32.mrf.mxu0
        %v1623 = vadd.f32 %v1594, %v1622
        %v1624 = vpop.f32.mrf.mxu0
        %v1625 = vadd.f32 %v1596, %v1624
        %1626 = vmatmul.bf16.gmra.mxu0 %v1208
        %v1627 = vpop.f32.mrf.mxu0
        %v1628 = vadd.f32 %v1599, %v1627
        %v1629 = vpop.f32.mrf.mxu0
        %v1630 = vadd.f32 %v1601, %v1629
        %1631 = vdwg.mxu0
        %v1632 = vmax.f32 %v1336, %v1613
        %v1633 = vmax.f32 %v1338, %v1615
        %v1634 = vmax.f32 %v1341, %v1618
        %v1635 = vmax.f32 %v1343, %v1620
        %v1636 = vmax.f32 %v1346, %v1623
        %v1637 = vmax.f32 %v1348, %v1625
        %v1638 = vmax.f32 %v1351, %v1628
        %v1639 = vmax.f32 %v1353, %v1630
        %1641 = vset.pattern.permute.xlu0 0
        %1642 = vperm.xlu0 %1641, %v250
        %v1643 = vpop.permute.xlu0 %1642
        %1646 = vset.pattern.permute.xlu0 0
        %1647 = vperm.xlu0 %1646, %v251
        %v1648 = vpop.permute.xlu0 %1647
        %1651 = vset.pattern.permute.xlu0 0
        %1652 = vperm.xlu0 %1651, %v252
        %v1653 = vpop.permute.xlu0 %1652
        %1656 = vset.pattern.permute.xlu0 0
        %1657 = vperm.xlu0 %1656, %v253
        %v1658 = vpop.permute.xlu0 %1657
        %1661 = vset.pattern.permute.xlu0 0
        %1662 = vperm.xlu0 %1661, %v254
        %v1663 = vpop.permute.xlu0 %1662
        %1666 = vset.pattern.permute.xlu0 0
        %1667 = vperm.xlu0 %1666, %v255
        %v1668 = vpop.permute.xlu0 %1667
        %1671 = vset.pattern.permute.xlu0 0
        %1672 = vperm.xlu0 %1671, %v256
        %v1673 = vpop.permute.xlu0 %1672
        %1676 = vset.pattern.permute.xlu0 0
        %1677 = vperm.xlu0 %1676, %v257
        %v1678 = vpop.permute.xlu0 %1677
        %v1680 = vadd.f32 %v1632, %v1643
        %v1681 = vadd.f32 %v1633, %v1648
        %v1682 = vadd.f32 %v1634, %v1653
        %v1683 = vadd.f32 %v1635, %v1658
        %v1684 = vadd.f32 %v1636, %v1663
        %v1685 = vadd.f32 %v1637, %v1668
        %v1686 = vadd.f32 %v1638, %v1673
        %v1687 = vadd.f32 %v1639, %v1678
        %v1688 = vmax.f32 %v1680, 0.0
        %v1689 = vmax.f32 %v1681, 0.0
        %v1690 = vmax.f32 %v1682, 0.0
        %v1691 = vmax.f32 %v1683, 0.0
        %v1692 = vmax.f32 %v1684, 0.0
        %v1693 = vmax.f32 %v1685, 0.0
        %v1694 = vmax.f32 %v1686, 0.0
        %v1695 = vmax.f32 %v1687, 0.0
        %1696 = vrot.lane.b32.xlu0 %v1688, 32
        %v1697 = vpop.permute.xlu0 %1696
        %v1698 = vsel %vm696, %v1697, %v1688
        %1699 = vrot.lane.b32.xlu0 %v1689, 32
        %v1700 = vpop.permute.xlu0 %1699
        %v1701 = vsel %vm696, %v1700, %v1689
        %1702 = vrot.lane.b32.xlu0 %v1690, 32
        %v1703 = vpop.permute.xlu0 %1702
        %v1704 = vsel %vm696, %v1703, %v1690
        %1705 = vrot.lane.b32.xlu0 %v1691, 32
        %v1706 = vpop.permute.xlu0 %1705
        %v1707 = vsel %vm696, %v1706, %v1691
        %1708 = vrot.lane.b32.xlu0 %v1692, 32
        %v1709 = vpop.permute.xlu0 %1708
        %v1710 = vsel %vm696, %v1709, %v1692
        %1711 = vrot.lane.b32.xlu0 %v1693, 32
        %v1712 = vpop.permute.xlu0 %1711
        %v1713 = vsel %vm696, %v1712, %v1693
        %1714 = vrot.lane.b32.xlu0 %v1694, 32
        %v1715 = vpop.permute.xlu0 %1714
        %v1716 = vsel %vm696, %v1715, %v1694
        %1717 = vrot.lane.b32.xlu0 %v1695, 32
        %v1718 = vpop.permute.xlu0 %1717
        %v1719 = vsel %vm696, %v1718, %v1695
        %1720 = vrot.lane.b32.xlu0 %v1698, 32
        %v1721 = vpop.permute.xlu0 %1720
        %1722 = vrot.lane.b32.xlu0 %v1701, 32
        %v1723 = vpop.permute.xlu0 %1722
        %1724 = vrot.lane.b32.xlu0 %v1704, 32
        %v1725 = vpop.permute.xlu0 %1724
        %1726 = vrot.lane.b32.xlu0 %v1707, 32
        %v1727 = vpop.permute.xlu0 %1726
        %1728 = vrot.lane.b32.xlu0 %v1710, 32
        %v1729 = vpop.permute.xlu0 %1728
        %1730 = vrot.lane.b32.xlu0 %v1713, 32
        %v1731 = vpop.permute.xlu0 %1730
        %1732 = vrot.lane.b32.xlu0 %v1716, 32
        %v1733 = vpop.permute.xlu0 %1732
        %1734 = vrot.lane.b32.xlu0 %v1719, 32
        %v1735 = vpop.permute.xlu0 %1734
        %v1736 = vsel %vm696, %v1721, %v1688
        %v1737 = vsel %vm696, %v1723, %v1689
        %v1738 = vsel %vm696, %v1725, %v1690
        %v1739 = vsel %vm696, %v1727, %v1691
        %v1740 = vsel %vm696, %v1729, %v1692
        %v1741 = vsel %vm696, %v1731, %v1693
        %v1742 = vsel %vm696, %v1733, %v1694
        %v1743 = vsel %vm696, %v1735, %v1695
        %1752 = vrot.lane.b32.xlu0 %v1736, 127
        %v1753 = vpop.permute.xlu0 %1752
        %1754 = vrot.lane.b32.xlu0 %v1737, 127
        %v1755 = vpop.permute.xlu0 %1754
        %1756 = vrot.lane.b32.xlu0 %v1738, 127
        %v1757 = vpop.permute.xlu0 %1756
        %1758 = vrot.lane.b32.xlu0 %v1739, 127
        %v1759 = vpop.permute.xlu0 %1758
        %1760 = vrot.lane.b32.xlu0 %v1740, 127
        %v1761 = vpop.permute.xlu0 %1760
        %1762 = vrot.lane.b32.xlu0 %v1741, 127
        %v1763 = vpop.permute.xlu0 %1762
        %1764 = vrot.lane.b32.xlu0 %v1742, 127
        %v1765 = vpop.permute.xlu0 %1764
        %1766 = vrot.lane.b32.xlu0 %v1743, 127
        %v1767 = vpop.permute.xlu0 %1766
        %v1776 = vmax.f32 %v1688, %v1753
        %v1777 = vmax.f32 %v1689, %v1755
        %v1778 = vmax.f32 %v1690, %v1757
        %v1779 = vmax.f32 %v1691, %v1759
        %v1780 = vmax.f32 %v1692, %v1761
        %v1781 = vmax.f32 %v1693, %v1763
        %v1782 = vmax.f32 %v1694, %v1765
        %v1783 = vmax.f32 %v1695, %v1767
        %v1784 = vpack.c.bf16 %v1777, %v1776
        %v1785 = vpack.c.bf16 %v1779, %v1778
        %v1786 = vpack.c.bf16 %v1781, %v1780
        %v1787 = vpack.c.bf16 %v1783, %v1782
        %vm1788 = vcmask 261120
        %v1790 = vsel %vm1788, %v1784, 0
        %v1793 = vsel %vm1788, %v1785, 0
        %v1796 = vsel %vm1788, %v1786, 0
        %v1799 = vsel %vm1788, %v1787, 0
        %1801 = vmatpush.bf16.msra.mxu0 0
        %1802 = vmatpush.bf16.msra.mxu0 0
        %1803 = vmatpush.bf16.msra.mxu0 0
        %1804 = vmatpush.bf16.msra.mxu0 0
        %1805 = vmatpush.bf16.msra.mxu0 0
        %1806 = vmatpush.bf16.msra.mxu0 0
        %1807 = vmatpush.bf16.msra.mxu0 %v297
        %1808 = vmatpush.bf16.msra.mxu0 %v296
        %1809 = vmatmul.bf16.gmra.mxu0 %v1790
        %v1810 = vpop.f32.mrf.mxu0
        %v1811 = vadd.f32 0.0, %v1810
        %v1812 = vpop.f32.mrf.mxu0
        %v1813 = vadd.f32 0.0, %v1812
        %1814 = vmatmul.bf16.gmra.mxu0 %v1793
        %v1815 = vpop.f32.mrf.mxu0
        %v1816 = vadd.f32 0.0, %v1815
        %v1817 = vpop.f32.mrf.mxu0
        %v1818 = vadd.f32 0.0, %v1817
        %1819 = vmatmul.bf16.gmra.mxu0 %v1796
        %v1820 = vpop.f32.mrf.mxu0
        %v1821 = vadd.f32 0.0, %v1820
        %v1822 = vpop.f32.mrf.mxu0
        %v1823 = vadd.f32 0.0, %v1822
        %1824 = vmatmul.bf16.gmra.mxu0 %v1799
        %v1825 = vpop.f32.mrf.mxu0
        %v1826 = vadd.f32 0.0, %v1825
        %v1827 = vpop.f32.mrf.mxu0
        %v1828 = vadd.f32 0.0, %v1827
        %1829 = vdwg.mxu0
        %s1830 = smul.u32 %s299, 64
        %s1831 = scalar_lea.vmem %s224, %s1830
        %vm1832 = vcmask 130048
        %1833 = vst.msk [vmem:[%s1831] sm:$0xff] %vm1832, %v1811
        %1834 = vst.msk [vmem:[%s1831 + $0x8] sm:$0xff] %vm1832, %v1813
        %1835 = vst.msk [vmem:[%s1831 + $0x10] sm:$0xff] %vm1832, %v1816
        %1836 = vst.msk [vmem:[%s1831 + $0x18] sm:$0xff] %vm1832, %v1818
        %1837 = vst.msk [vmem:[%s1831 + $0x20] sm:$0xff] %vm1832, %v1821
        %1838 = vst.msk [vmem:[%s1831 + $0x28] sm:$0xff] %vm1832, %v1823
        %1839 = vst.msk [vmem:[%s1831 + $0x30] sm:$0xff] %vm1832, %v1826
        %1840 = vst.msk [vmem:[%s1831 + $0x38] sm:$0xff] %vm1832, %v1828
      $region45: #{forward.9} parent=39 // loop_footer
        %s303 = sadd.s32 1, %s299
      $region46: #{forward.9} parent=39 // loop_footer_branch
        %298 = sbr.rel target = $region42
      $region47: #{forward.9} parent=39 // loop_exit
        _
      %p1841 = scmp.lt.s32.totalorder %s16, 1
      %s1842 = scalar_select %p1841, %s16, 1
      %s1843 = smul.addr %s1842, 128
      %s1844 = smul.addr %s1843, 8
      %s1845 = scalar_lea.vmem %s5, %s1844
      // Predicated region
      $region48: #{forward.9} parent=39 // pred_check
        %p1846 = pneg %p144
      $region49: #{forward.9} parent=39 // pred_check_branch
        %1848 = sbr.rel (%p1846) target = $region51
      $region50: #{forward.9} parent=39 // pred_region
        _
      $region51: #{forward.9} parent=39 // pred_fallthru
        _
    $region40: #{forward.9} parent=5 // pred_fallthru
      _
    %p1849 = scmp.le.s32.totalorder 2, %s11
    // Predicated region
    $region52: #{forward.9} parent=5 // pred_check
      %p1850 = pneg %p1849
    $region53: #{forward.9} parent=5 // pred_check_branch
      %1852 = sbr.rel (%p1850) target = $region55
    $region54: #{forward.9} parent=5 // pred_region
      %s1853 = ssub.s32 %s11, 2
      // Predicated region
      $region56: #{forward.9} parent=54 // pred_check
        %p1854 = pneg %p150
      $region57: #{forward.9} parent=54 // pred_check_branch
        %1856 = sbr.rel (%p1854) target = $region59
      $region58: #{forward.9} parent=54 // pred_region
        %p1857 = scmp.lt.s32.totalorder %s17, 1
        %s1858 = scalar_select %p1857, %s17, 1
        %s1859 = smul.addr %s1858, 128
        %s1860 = smul.addr %s1859, 8
        %s1861 = scalar_lea.vmem %s5, %s1860
      $region59: #{forward.9} parent=54 // pred_fallthru
        _
    $region55: #{forward.9} parent=5 // pred_fallthru
      _
  $region6: #{forward.9} parent=0 // loop_footer
    %s15 = sadd.s32 1, %s11
  $region7: #{forward.9} parent=0 // loop_footer_branch
    %10 = sbr.rel target = $region3
  $region8: #{forward.9} parent=0 // loop_exit
    _

// kernel: forward.10
$region0: #{forward.10}
  #allocation0 [shape = 'u32[]', space=smem, size = 0x4, offset = 0x4, fixed_abs, tag = 'smem constant byte address 0x4 - core index']
  #allocation1 [shape = 'u32[72,128]{1,0:T(1,128)}', space=vmem, size = 0x9000, scoped, tag = 'internal scratch']
  %s0 = inlined_call_operand.vmem [shape: f32[2,16,64,16], index: 0, kind: input, shape index: {}]
  %s1 = inlined_call_operand.vmem [shape: bf16[64,576], index: 1, kind: input, shape index: {}]
  %s2 = inlined_call_operand.vmem [shape: f32[64,1], index: 2, kind: input, shape index: {}]
  %s3 = inlined_call_operand.vmem [shape: f32[64,1], index: 3, kind: input, shape index: {}]
  %s4 = inlined_call_operand.vmem [shape: f32[64,1], index: 4, kind: input, shape index: {}]
  %s5 = inlined_call_operand.vmem [shape: f32[2,8,64,8], index: 5, kind: output, shape index: {}]
  %s6 = sld [smem:[#allocation0]]
  $region60: #{forward.10} parent=0
    _
  %s8 = ssub.s32 1, %s6
  %s9 = scalar_select 0, %s8, %s6
  loop: start=0, step=1, limit=4
  $region2: #{forward.10} parent=0 // loop_pre_header
    _
  $region3: #{forward.10} parent=0 // loop_header
    %s11 = sphi 0, %s15
    %p12 = scmp.ge.s32.totalorder %s11, 4
    %s21 = sphi 0, %s23
    %s24 = sphi 0, %s21
    %s25 = sphi 0, %s24
    %s41 = sphi 0, %s25
    %s45 = sphi 0, %s45
    %s47 = sphi 0, %s45
    %s48 = sphi 0, %s47
    %s62 = sphi 0, %s48
    %s66 = sphi 0, %s66
    %s68 = sphi 0, %s66
    %s69 = sphi 0, %s68
    %s83 = sphi 0, %s69
    %s87 = sphi 0, %s87
    %s89 = sphi 0, %s87
    %s90 = sphi 0, %s89
    %s104 = sphi 0, %s90
    %s108 = sphi 0, %s108
    %s110 = sphi 0, %s108
    %s111 = sphi 0, %s110
    %s125 = sphi 0, %s111
    %s131 = sphi 0, %s133
    %s134 = sphi 0, %s131
    %s135 = sphi 0, %s134
    %s151 = sphi 0, %s135
  $region4: #{forward.10} parent=0 // loop_header_branch
    %14 = sbr.rel (%p12) target = $region8
  $region5: #{forward.10} parent=0 // loop_body
    %s16 = ssub.s32 %s11, 1
    %s17 = ssub.s32 %s11, 2
    %s18 = sadd.s32 %s11, 1
    %s19 = ssub.s32 %s11, %s18
    %p20 = scmp.eq.s32.totalorder %s19, 0
    %s22 = sadd.s32 %s21, 1
    %s23 = scalar_select %p20, %s21, %s22
    %p26 = pneg %p20
    %p27 = scmp.eq.s32.totalorder %s11, 1
    %p28 = por %p26, %p27
    %p29 = scmp.ne.s32.totalorder %s21, %s24
    %p30 = scmp.eq.s32.totalorder %s11, 0
    %p31 = por %p29, %p30
    %p32 = scmp.ne.s32.totalorder %s21, %s24
    %p33 = scmp.eq.s32.totalorder %s16, 1
    %p34 = por %p32, %p33
    %p35 = scmp.ne.s32.totalorder %s24, %s25
    %p36 = scmp.eq.s32.totalorder %s16, 0
    %p37 = por %p35, %p36
    %p38 = scmp.ne.s32.totalorder %s24, %s25
    %p39 = scmp.eq.s32.totalorder %s17, 1
    %p40 = por %p38, %p39
    %p42 = scmp.ne.s32.totalorder %s25, %s41
    %p43 = scmp.eq.s32.totalorder %s17, 0
    %p44 = por %p42, %p43
    %s46 = sadd.s32 %s45, 1
    %p49 = scmp.eq.s32.totalorder %s11, 1
    %p50 = scmp.ne.s32.totalorder %s45, %s47
    %p51 = scmp.eq.s32.totalorder %s11, 0
    %p52 = por %p50, %p51
    %p53 = scmp.ne.s32.totalorder %s45, %s47
    %p54 = scmp.eq.s32.totalorder %s16, 1
    %p55 = por %p53, %p54
    %p56 = scmp.ne.s32.totalorder %s47, %s48
    %p57 = scmp.eq.s32.totalorder %s16, 0
    %p58 = por %p56, %p57
    %p59 = scmp.ne.s32.totalorder %s47, %s48
    %p60 = scmp.eq.s32.totalorder %s17, 1
    %p61 = por %p59, %p60
    %p63 = scmp.ne.s32.totalorder %s48, %s62
    %p64 = scmp.eq.s32.totalorder %s17, 0
    %p65 = por %p63, %p64
    %s67 = sadd.s32 %s66, 1
    %p70 = scmp.eq.s32.totalorder %s11, 1
    %p71 = scmp.ne.s32.totalorder %s66, %s68
    %p72 = scmp.eq.s32.totalorder %s11, 0
    %p73 = por %p71, %p72
    %p74 = scmp.ne.s32.totalorder %s66, %s68
    %p75 = scmp.eq.s32.totalorder %s16, 1
    %p76 = por %p74, %p75
    %p77 = scmp.ne.s32.totalorder %s68, %s69
    %p78 = scmp.eq.s32.totalorder %s16, 0
    %p79 = por %p77, %p78
    %p80 = scmp.ne.s32.totalorder %s68, %s69
    %p81 = scmp.eq.s32.totalorder %s17, 1
    %p82 = por %p80, %p81
    %p84 = scmp.ne.s32.totalorder %s69, %s83
    %p85 = scmp.eq.s32.totalorder %s17, 0
    %p86 = por %p84, %p85
    %s88 = sadd.s32 %s87, 1
    %p91 = scmp.eq.s32.totalorder %s11, 1
    %p92 = scmp.ne.s32.totalorder %s87, %s89
    %p93 = scmp.eq.s32.totalorder %s11, 0
    %p94 = por %p92, %p93
    %p95 = scmp.ne.s32.totalorder %s87, %s89
    %p96 = scmp.eq.s32.totalorder %s16, 1
    %p97 = por %p95, %p96
    %p98 = scmp.ne.s32.totalorder %s89, %s90
    %p99 = scmp.eq.s32.totalorder %s16, 0
    %p100 = por %p98, %p99
    %p101 = scmp.ne.s32.totalorder %s89, %s90
    %p102 = scmp.eq.s32.totalorder %s17, 1
    %p103 = por %p101, %p102
    %p105 = scmp.ne.s32.totalorder %s90, %s104
    %p106 = scmp.eq.s32.totalorder %s17, 0
    %p107 = por %p105, %p106
    %s109 = sadd.s32 %s108, 1
    %p112 = scmp.eq.s32.totalorder %s11, 1
    %p113 = scmp.ne.s32.totalorder %s108, %s110
    %p114 = scmp.eq.s32.totalorder %s11, 0
    %p115 = por %p113, %p114
    %p116 = scmp.ne.s32.totalorder %s108, %s110
    %p117 = scmp.eq.s32.totalorder %s16, 1
    %p118 = por %p116, %p117
    %p119 = scmp.ne.s32.totalorder %s110, %s111
    %p120 = scmp.eq.s32.totalorder %s16, 0
    %p121 = por %p119, %p120
    %p122 = scmp.ne.s32.totalorder %s110, %s111
    %p123 = scmp.eq.s32.totalorder %s17, 1
    %p124 = por %p122, %p123
    %p126 = scmp.ne.s32.totalorder %s111, %s125
    %p127 = scmp.eq.s32.totalorder %s17, 0
    %p128 = por %p126, %p127
    %s129 = ssub.s32 %s11, %s18
    %p130 = scmp.eq.s32.totalorder %s129, 0
    %s132 = sadd.s32 %s131, 1
    %s133 = scalar_select %p130, %s131, %s132
    %p136 = pneg %p130
    %p137 = scmp.eq.s32.totalorder %s11, 1
    %p138 = por %p136, %p137
    %p139 = scmp.ne.s32.totalorder %s131, %s134
    %p140 = scmp.eq.s32.totalorder %s11, 0
    %p141 = por %p139, %p140
    %p142 = scmp.ne.s32.totalorder %s131, %s134
    %p143 = scmp.eq.s32.totalorder %s16, 1
    %p144 = por %p142, %p143
    %p145 = scmp.ne.s32.totalorder %s134, %s135
    %p146 = scmp.eq.s32.totalorder %s16, 0
    %p147 = por %p145, %p146
    %p148 = scmp.ne.s32.totalorder %s134, %s135
    %p149 = scmp.eq.s32.totalorder %s17, 1
    %p150 = por %p148, %p149
    %p152 = scmp.ne.s32.totalorder %s135, %s151
    %p153 = scmp.eq.s32.totalorder %s17, 0
    %p154 = por %p152, %p153
    %p155 = scmp.le.s32.totalorder 1, %s11
    %p156 = scmp.lt.s32.totalorder %s11, 3
    %p157 = pnand %p155, %p156
    %p158 = pneg %p157
    // Predicated region
    $region9: #{forward.10} parent=5 // pred_check
      _
    $region10: #{forward.10} parent=5 // pred_check_branch
      %160 = sbr.rel (%p157) target = $region12
    $region11: #{forward.10} parent=5 // pred_region
      %s161 = ssub.s32 %s11, 1
      // Predicated region
      $region13: #{forward.10} parent=11 // pred_check
        %p162 = pneg %p58
      $region14: #{forward.10} parent=11 // pred_check_branch
        %164 = sbr.rel (%p162) target = $region16
      $region15: #{forward.10} parent=11 // pred_region
        _
      $region16: #{forward.10} parent=11 // pred_fallthru
        _
      // Predicated region
      $region17: #{forward.10} parent=11 // pred_check
        %p165 = pneg %p79
      $region18: #{forward.10} parent=11 // pred_check_branch
        %167 = sbr.rel (%p165) target = $region20
      $region19: #{forward.10} parent=11 // pred_region
        _
      $region20: #{forward.10} parent=11 // pred_fallthru
        _
      // Predicated region
      $region21: #{forward.10} parent=11 // pred_check
        %p168 = pneg %p100
      $region22: #{forward.10} parent=11 // pred_check_branch
        %170 = sbr.rel (%p168) target = $region24
      $region23: #{forward.10} parent=11 // pred_region
        _
      $region24: #{forward.10} parent=11 // pred_fallthru
        _
      // Predicated region
      $region25: #{forward.10} parent=11 // pred_check
        %p171 = pneg %p121
      $region26: #{forward.10} parent=11 // pred_check_branch
        %173 = sbr.rel (%p171) target = $region28
      $region27: #{forward.10} parent=11 // pred_region
        _
      $region28: #{forward.10} parent=11 // pred_fallthru
        _
    $region12: #{forward.10} parent=5 // pred_fallthru
      _
    %p174 = scmp.lt.s32.totalorder %s11, 2
    // Predicated region
    $region29: #{forward.10} parent=5 // pred_check
      %p175 = pneg %p174
    $region30: #{forward.10} parent=5 // pred_check_branch
      %177 = sbr.rel (%p175) target = $region32
    $region31: #{forward.10} parent=5 // pred_region
      // Predicated region
      $region33: #{forward.10} parent=31 // pred_check
        %p178 = pneg %p31
      $region34: #{forward.10} parent=31 // pred_check_branch
        %180 = sbr.rel (%p178) target = $region36
      $region35: #{forward.10} parent=31 // pred_region
        %p181 = scmp.lt.s32.totalorder %s11, 1
        %s182 = scalar_select %p181, %s11, 1
        %s183 = smul.addr %s182, 128
        %s184 = smul.addr %s183, 8
        %s185 = scalar_lea.vmem %s0, %s184
      $region36: #{forward.10} parent=31 // pred_fallthru
        _
    $region32: #{forward.10} parent=5 // pred_fallthru
      _
    %p186 = scmp.le.s32.totalorder 1, %s11
    %p187 = scmp.lt.s32.totalorder %s11, 3
    %p188 = pnand %p186, %p187
    %p189 = pneg %p188
    // Predicated region
    $region37: #{forward.10} parent=5 // pred_check
      _
    $region38: #{forward.10} parent=5 // pred_check_branch
      %191 = sbr.rel (%p188) target = $region40
    $region39: #{forward.10} parent=5 // pred_region
      %s192 = ssub.s32 %s11, 1
      %p193 = scmp.lt.s32.totalorder %s16, 1
      %s194 = scalar_select %p193, %s16, 1
      %s195 = smul.addr %s194, 128
      %s196 = smul.addr %s195, 8
      %s197 = scalar_lea.vmem %s0, %s196
      %p198 = pneg %p37
      %p199 = pneg %p34
      %p200 = pneg %p58
      %p201 = pneg %p55
      %p202 = pneg %p79
      %p203 = pneg %p76
      %p204 = pneg %p100
      %p205 = pneg %p97
      %p206 = pneg %p121
      %p207 = pneg %p118
      %p208 = pneg %p147
      %p209 = pneg %p144
      %p210 = scmp.lt.s32.totalorder %s16, 1
      %s211 = scalar_select %p210, %s16, 1
      %s212 = smul.addr %s211, 64
      %s213 = smul.addr %s212, 8
      %s214 = scalar_lea.vmem %s5, %s213
      %p215 = scmp.lt.s32.totalorder %s16, 1
      %s216 = scalar_select %p215, %s16, 1
      %s217 = smul.addr %s216, 128
      %s218 = smul.addr %s217, 8
      %s219 = scalar_lea.vmem %s0, %s218
      %p220 = scmp.lt.s32.totalorder %s16, 1
      %s221 = scalar_select %p220, %s16, 1
      %s222 = smul.addr %s221, 64
      %s223 = smul.addr %s222, 8
      %s224 = scalar_lea.vmem %s5, %s223
      %v226 = vld [vmem:[%s1] sm:$0xff]
      %v227 = vld [vmem:[%s1 + $0x8] sm:$0xff]
      %v228 = vld [vmem:[%s1 + $0x10] sm:$0xf]
      %v229 = vld [vmem:[%s1 + $0x14] sm:$0xff]
      %v230 = vld [vmem:[%s1 + $0x1c] sm:$0xff]
      %v231 = vld [vmem:[%s1 + $0x24] sm:$0xf]
      %v232 = vld [vmem:[%s1 + $0x28] sm:$0xff]
      %v233 = vld [vmem:[%s1 + $0x30] sm:$0xff]
      %v234 = vld [vmem:[%s1 + $0x38] sm:$0xf]
      %v235 = vld [vmem:[%s1 + $0x3c] sm:$0xff]
      %v236 = vld [vmem:[%s1 + $0x44] sm:$0xff]
      %v237 = vld [vmem:[%s1 + $0x4c] sm:$0xf]
      %v238 = vld [vmem:[%s1 + $0x50] sm:$0xff]
      %v239 = vld [vmem:[%s1 + $0x58] sm:$0xff]
      %v240 = vld [vmem:[%s1 + $0x60] sm:$0xf]
      %v241 = vld [vmem:[%s1 + $0x64] sm:$0xff]
      %v242 = vld [vmem:[%s1 + $0x6c] sm:$0xff]
      %v243 = vld [vmem:[%s1 + $0x74] sm:$0xf]
      %v244 = vld [vmem:[%s1 + $0x78] sm:$0xff]
      %v245 = vld [vmem:[%s1 + $0x80] sm:$0xff]
      %v246 = vld [vmem:[%s1 + $0x88] sm:$0xf]
      %v247 = vld [vmem:[%s1 + $0x8c] sm:$0xff]
      %v248 = vld [vmem:[%s1 + $0x94] sm:$0xff]
      %v249 = vld [vmem:[%s1 + $0x9c] sm:$0xf]
      %v250 = vld [vmem:[%s2] sm:$0xff]
      %v251 = vld [vmem:[%s2 + $0x8] sm:$0xff]
      %v252 = vld [vmem:[%s2 + $0x10] sm:$0xff]
      %v253 = vld [vmem:[%s2 + $0x18] sm:$0xff]
      %v254 = vld [vmem:[%s2 + $0x20] sm:$0xff]
      %v255 = vld [vmem:[%s2 + $0x28] sm:$0xff]
      %v256 = vld [vmem:[%s2 + $0x30] sm:$0xff]
      %v257 = vld [vmem:[%s2 + $0x38] sm:$0xff]
      %v258 = vld [vmem:[%s3] sm:$0xff]
      %v259 = vld [vmem:[%s3 + $0x8] sm:$0xff]
      %v260 = vld [vmem:[%s3 + $0x10] sm:$0xff]
      %v261 = vld [vmem:[%s3 + $0x18] sm:$0xff]
      %v262 = vld [vmem:[%s3 + $0x20] sm:$0xff]
      %v263 = vld [vmem:[%s3 + $0x28] sm:$0xff]
      %v264 = vld [vmem:[%s3 + $0x30] sm:$0xff]
      %v265 = vld [vmem:[%s3 + $0x38] sm:$0xff]
      %v266 = vld [vmem:[%s4] sm:$0xff]
      %v267 = vld [vmem:[%s4 + $0x8] sm:$0xff]
      %v268 = vld [vmem:[%s4 + $0x10] sm:$0xff]
      %v269 = vld [vmem:[%s4 + $0x18] sm:$0xff]
      %v270 = vld [vmem:[%s4 + $0x20] sm:$0xff]
      %v271 = vld [vmem:[%s4 + $0x28] sm:$0xff]
      %v272 = vld [vmem:[%s4 + $0x30] sm:$0xff]
      %v273 = vld [vmem:[%s4 + $0x38] sm:$0xff]
      %v274 = vlaneseq
      %v275 = vand.u32 %v274, 127
      %vm276 = vcmp.ne.s32.totalorder %v275, 0
      %vm277 = vcmp.ne.s32.totalorder %v275, 15
      %v278 = vlaneseq
      %v279 = vshrl.u32 %v278, 7
      %v280 = vadd.s32 %v279, 8
      %v281 = vmul.u32 %v275, 2
      %vm282 = vcmp.eq.s32.totalorder %v279, %v281
      %vm283 = vcmp.eq.s32.totalorder %v280, %v281
      %v284 = vsel %vm282, 1, 0
      %v285 = vsel %vm283, 1, 0
      %v286 = vcvt.s32.f32 %v284
      %v287 = vcvt.s32.f32 %v285
      %v288 = vpack.c.bf16 %v287, %v286
      loop: start=0, step=1, limit=8
      $region41: #{forward.10} parent=39 // loop_pre_header
        _
      $region42: #{forward.10} parent=39 // loop_header
        %s290 = sphi 0, %s294
        %p291 = scmp.ge.s32.totalorder %s290, 8
      $region43: #{forward.10} parent=39 // loop_header_branch
        %293 = sbr.rel (%p291) target = $region47
      $region44: #{forward.10} parent=39 // loop_body
        %s295 = smul.u32 %s290, 2
        %p296 = scmp.gt.s32.totalorder %s290, 0
        %s297 = scalar_select %p296, 1, 0
        %s298 = scvt.s32.f32 %s297
        %p299 = scmp.lt.s32.totalorder %s290, 7
        %s300 = scalar_select %p299, 1, 0
        %s301 = scvt.s32.f32 %s300
        %s302 = ssub.s32 %s295, 1
        %p303 = scmp.gt.s32.totalorder %s302, 0
        %s304 = scalar_select %p303, %s302, 0
        %s305 = smul.u32 %s304, 64
        %s306 = scalar_lea.vmem %s219, %s305
        %v307 = vld [vmem:[%s306] sm:$0xff]
        %v308 = vld [vmem:[%s306 + $0x8] sm:$0xff]
        %v309 = vld [vmem:[%s306 + $0x10] sm:$0xff]
        %v310 = vld [vmem:[%s306 + $0x18] sm:$0xff]
        %v311 = vld [vmem:[%s306 + $0x20] sm:$0xff]
        %v312 = vld [vmem:[%s306 + $0x28] sm:$0xff]
        %v313 = vld [vmem:[%s306 + $0x30] sm:$0xff]
        %v314 = vld [vmem:[%s306 + $0x38] sm:$0xff]
        %v315 = vstv %s298
        %v316 = vmul.f32 %v258, %v315
        %v317 = vmul.f32 %v259, %v315
        %v318 = vmul.f32 %v260, %v315
        %v319 = vmul.f32 %v261, %v315
        %v320 = vmul.f32 %v262, %v315
        %v321 = vmul.f32 %v263, %v315
        %v322 = vmul.f32 %v264, %v315
        %v323 = vmul.f32 %v265, %v315
        %325 = vset.pattern.permute.xlu0 0
        %326 = vperm.xlu0 %325, %v316
        %v327 = vpop.permute.xlu0 %326
        %330 = vset.pattern.permute.xlu0 0
        %331 = vperm.xlu0 %330, %v317
        %v332 = vpop.permute.xlu0 %331
        %335 = vset.pattern.permute.xlu0 0
        %336 = vperm.xlu0 %335, %v318
        %v337 = vpop.permute.xlu0 %336
        %340 = vset.pattern.permute.xlu0 0
        %341 = vperm.xlu0 %340, %v319
        %v342 = vpop.permute.xlu0 %341
        %345 = vset.pattern.permute.xlu0 0
        %346 = vperm.xlu0 %345, %v320
        %v347 = vpop.permute.xlu0 %346
        %350 = vset.pattern.permute.xlu0 0
        %351 = vperm.xlu0 %350, %v321
        %v352 = vpop.permute.xlu0 %351
        %355 = vset.pattern.permute.xlu0 0
        %356 = vperm.xlu0 %355, %v322
        %v357 = vpop.permute.xlu0 %356
        %360 = vset.pattern.permute.xlu0 0
        %361 = vperm.xlu0 %360, %v323
        %v362 = vpop.permute.xlu0 %361
        %v364 = vmul.f32 %v307, %v327
        %v365 = vmul.f32 %v308, %v332
        %v366 = vmul.f32 %v309, %v337
        %v367 = vmul.f32 %v310, %v342
        %v368 = vmul.f32 %v311, %v347
        %v369 = vmul.f32 %v312, %v352
        %v370 = vmul.f32 %v313, %v357
        %v371 = vmul.f32 %v314, %v362
        %v372 = vmul.f32 %v266, %v315
        %v373 = vmul.f32 %v267, %v315
        %v374 = vmul.f32 %v268, %v315
        %v375 = vmul.f32 %v269, %v315
        %v376 = vmul.f32 %v270, %v315
        %v377 = vmul.f32 %v271, %v315
        %v378 = vmul.f32 %v272, %v315
        %v379 = vmul.f32 %v273, %v315
        %381 = vset.pattern.permute.xlu0 0
        %382 = vperm.xlu0 %381, %v372
        %v383 = vpop.permute.xlu0 %382
        %386 = vset.pattern.permute.xlu0 0
        %387 = vperm.xlu0 %386, %v373
        %v388 = vpop.permute.xlu0 %387
        %391 = vset.pattern.permute.xlu0 0
        %392 = vperm.xlu0 %391, %v374
        %v393 = vpop.permute.xlu0 %392
        %396 = vset.pattern.permute.xlu0 0
        %397 = vperm.xlu0 %396, %v375
        %v398 = vpop.permute.xlu0 %397
        %401 = vset.pattern.permute.xlu0 0
        %402 = vperm.xlu0 %401, %v376
        %v403 = vpop.permute.xlu0 %402
        %406 = vset.pattern.permute.xlu0 0
        %407 = vperm.xlu0 %406, %v377
        %v408 = vpop.permute.xlu0 %407
        %411 = vset.pattern.permute.xlu0 0
        %412 = vperm.xlu0 %411, %v378
        %v413 = vpop.permute.xlu0 %412
        %416 = vset.pattern.permute.xlu0 0
        %417 = vperm.xlu0 %416, %v379
        %v418 = vpop.permute.xlu0 %417
        %v420 = vadd.f32 %v364, %v383
        %v421 = vadd.f32 %v365, %v388
        %v422 = vadd.f32 %v366, %v393
        %v423 = vadd.f32 %v367, %v398
        %v424 = vadd.f32 %v368, %v403
        %v425 = vadd.f32 %v369, %v408
        %v426 = vadd.f32 %v370, %v413
        %v427 = vadd.f32 %v371, %v418
        %s428 = smul.u32 %s295, 64
        %s429 = scalar_lea.vmem %s219, %s428
        %v430 = vld [vmem:[%s429] sm:$0xff]
        %v431 = vld [vmem:[%s429 + $0x8] sm:$0xff]
        %v432 = vld [vmem:[%s429 + $0x10] sm:$0xff]
        %v433 = vld [vmem:[%s429 + $0x18] sm:$0xff]
        %v434 = vld [vmem:[%s429 + $0x20] sm:$0xff]
        %v435 = vld [vmem:[%s429 + $0x28] sm:$0xff]
        %v436 = vld [vmem:[%s429 + $0x30] sm:$0xff]
        %v437 = vld [vmem:[%s429 + $0x38] sm:$0xff]
        %439 = vset.pattern.permute.xlu0 0
        %440 = vperm.xlu0 %439, %v258
        %v441 = vpop.permute.xlu0 %440
        %444 = vset.pattern.permute.xlu0 0
        %445 = vperm.xlu0 %444, %v259
        %v446 = vpop.permute.xlu0 %445
        %449 = vset.pattern.permute.xlu0 0
        %450 = vperm.xlu0 %449, %v260
        %v451 = vpop.permute.xlu0 %450
        %454 = vset.pattern.permute.xlu0 0
        %455 = vperm.xlu0 %454, %v261
        %v456 = vpop.permute.xlu0 %455
        %459 = vset.pattern.permute.xlu0 0
        %460 = vperm.xlu0 %459, %v262
        %v461 = vpop.permute.xlu0 %460
        %464 = vset.pattern.permute.xlu0 0
        %465 = vperm.xlu0 %464, %v263
        %v466 = vpop.permute.xlu0 %465
        %469 = vset.pattern.permute.xlu0 0
        %470 = vperm.xlu0 %469, %v264
        %v471 = vpop.permute.xlu0 %470
        %474 = vset.pattern.permute.xlu0 0
        %475 = vperm.xlu0 %474, %v265
        %v476 = vpop.permute.xlu0 %475
        %v478 = vmul.f32 %v430, %v441
        %v479 = vmul.f32 %v431, %v446
        %v480 = vmul.f32 %v432, %v451
        %v481 = vmul.f32 %v433, %v456
        %v482 = vmul.f32 %v434, %v461
        %v483 = vmul.f32 %v435, %v466
        %v484 = vmul.f32 %v436, %v471
        %v485 = vmul.f32 %v437, %v476
        %487 = vset.pattern.permute.xlu0 0
        %488 = vperm.xlu0 %487, %v266
        %v489 = vpop.permute.xlu0 %488
        %492 = vset.pattern.permute.xlu0 0
        %493 = vperm.xlu0 %492, %v267
        %v494 = vpop.permute.xlu0 %493
        %497 = vset.pattern.permute.xlu0 0
        %498 = vperm.xlu0 %497, %v268
        %v499 = vpop.permute.xlu0 %498
        %502 = vset.pattern.permute.xlu0 0
        %503 = vperm.xlu0 %502, %v269
        %v504 = vpop.permute.xlu0 %503
        %507 = vset.pattern.permute.xlu0 0
        %508 = vperm.xlu0 %507, %v270
        %v509 = vpop.permute.xlu0 %508
        %512 = vset.pattern.permute.xlu0 0
        %513 = vperm.xlu0 %512, %v271
        %v514 = vpop.permute.xlu0 %513
        %517 = vset.pattern.permute.xlu0 0
        %518 = vperm.xlu0 %517, %v272
        %v519 = vpop.permute.xlu0 %518
        %522 = vset.pattern.permute.xlu0 0
        %523 = vperm.xlu0 %522, %v273
        %v524 = vpop.permute.xlu0 %523
        %v526 = vadd.f32 %v478, %v489
        %v527 = vadd.f32 %v479, %v494
        %v528 = vadd.f32 %v480, %v499
        %v529 = vadd.f32 %v481, %v504
        %v530 = vadd.f32 %v482, %v509
        %v531 = vadd.f32 %v483, %v514
        %v532 = vadd.f32 %v484, %v519
        %v533 = vadd.f32 %v485, %v524
        %s534 = sadd.s32 %s295, 1
        %s535 = smul.u32 %s534, 64
        %s536 = scalar_lea.vmem %s219, %s535
        %v537 = vld [vmem:[%s536] sm:$0xff]
        %v538 = vld [vmem:[%s536 + $0x8] sm:$0xff]
        %v539 = vld [vmem:[%s536 + $0x10] sm:$0xff]
        %v540 = vld [vmem:[%s536 + $0x18] sm:$0xff]
        %v541 = vld [vmem:[%s536 + $0x20] sm:$0xff]
        %v542 = vld [vmem:[%s536 + $0x28] sm:$0xff]
        %v543 = vld [vmem:[%s536 + $0x30] sm:$0xff]
        %v544 = vld [vmem:[%s536 + $0x38] sm:$0xff]
        %v545 = vmul.f32 %v537, %v441
        %v546 = vmul.f32 %v538, %v446
        %v547 = vmul.f32 %v539, %v451
        %v548 = vmul.f32 %v540, %v456
        %v549 = vmul.f32 %v541, %v461
        %v550 = vmul.f32 %v542, %v466
        %v551 = vmul.f32 %v543, %v471
        %v552 = vmul.f32 %v544, %v476
        %v553 = vadd.f32 %v545, %v489
        %v554 = vadd.f32 %v546, %v494
        %v555 = vadd.f32 %v547, %v499
        %v556 = vadd.f32 %v548, %v504
        %v557 = vadd.f32 %v549, %v509
        %v558 = vadd.f32 %v550, %v514
        %v559 = vadd.f32 %v551, %v519
        %v560 = vadd.f32 %v552, %v524
        %s561 = sadd.s32 %s295, 2
        %p562 = scmp.lt.s32.totalorder %s561, 15
        %s563 = scalar_select %p562, %s561, 15
        %s564 = smul.u32 %s563, 64
        %s565 = scalar_lea.vmem %s219, %s564
        %v566 = vld [vmem:[%s565] sm:$0xff]
        %v567 = vld [vmem:[%s565 + $0x8] sm:$0xff]
        %v568 = vld [vmem:[%s565 + $0x10] sm:$0xff]
        %v569 = vld [vmem:[%s565 + $0x18] sm:$0xff]
        %v570 = vld [vmem:[%s565 + $0x20] sm:$0xff]
        %v571 = vld [vmem:[%s565 + $0x28] sm:$0xff]
        %v572 = vld [vmem:[%s565 + $0x30] sm:$0xff]
        %v573 = vld [vmem:[%s565 + $0x38] sm:$0xff]
        %v574 = vstv %s301
        %v575 = vmul.f32 %v258, %v574
        %v576 = vmul.f32 %v259, %v574
        %v577 = vmul.f32 %v260, %v574
        %v578 = vmul.f32 %v261, %v574
        %v579 = vmul.f32 %v262, %v574
        %v580 = vmul.f32 %v263, %v574
        %v581 = vmul.f32 %v264, %v574
        %v582 = vmul.f32 %v265, %v574
        %584 = vset.pattern.permute.xlu0 0
        %585 = vperm.xlu0 %584, %v575
        %v586 = vpop.permute.xlu0 %585
        %589 = vset.pattern.permute.xlu0 0
        %590 = vperm.xlu0 %589, %v576
        %v591 = vpop.permute.xlu0 %590
        %594 = vset.pattern.permute.xlu0 0
        %595 = vperm.xlu0 %594, %v577
        %v596 = vpop.permute.xlu0 %595
        %599 = vset.pattern.permute.xlu0 0
        %600 = vperm.xlu0 %599, %v578
        %v601 = vpop.permute.xlu0 %600
        %604 = vset.pattern.permute.xlu0 0
        %605 = vperm.xlu0 %604, %v579
        %v606 = vpop.permute.xlu0 %605
        %609 = vset.pattern.permute.xlu0 0
        %610 = vperm.xlu0 %609, %v580
        %v611 = vpop.permute.xlu0 %610
        %614 = vset.pattern.permute.xlu0 0
        %615 = vperm.xlu0 %614, %v581
        %v616 = vpop.permute.xlu0 %615
        %619 = vset.pattern.permute.xlu0 0
        %620 = vperm.xlu0 %619, %v582
        %v621 = vpop.permute.xlu0 %620
        %v623 = vmul.f32 %v566, %v586
        %v624 = vmul.f32 %v567, %v591
        %v625 = vmul.f32 %v568, %v596
        %v626 = vmul.f32 %v569, %v601
        %v627 = vmul.f32 %v570, %v606
        %v628 = vmul.f32 %v571, %v611
        %v629 = vmul.f32 %v572, %v616
        %v630 = vmul.f32 %v573, %v621
        %v631 = vmul.f32 %v266, %v574
        %v632 = vmul.f32 %v267, %v574
        %v633 = vmul.f32 %v268, %v574
        %v634 = vmul.f32 %v269, %v574
        %v635 = vmul.f32 %v270, %v574
        %v636 = vmul.f32 %v271, %v574
        %v637 = vmul.f32 %v272, %v574
        %v638 = vmul.f32 %v273, %v574
        %640 = vset.pattern.permute.xlu0 0
        %641 = vperm.xlu0 %640, %v631
        %v642 = vpop.permute.xlu0 %641
        %645 = vset.pattern.permute.xlu0 0
        %646 = vperm.xlu0 %645, %v632
        %v647 = vpop.permute.xlu0 %646
        %650 = vset.pattern.permute.xlu0 0
        %651 = vperm.xlu0 %650, %v633
        %v652 = vpop.permute.xlu0 %651
        %655 = vset.pattern.permute.xlu0 0
        %656 = vperm.xlu0 %655, %v634
        %v657 = vpop.permute.xlu0 %656
        %660 = vset.pattern.permute.xlu0 0
        %661 = vperm.xlu0 %660, %v635
        %v662 = vpop.permute.xlu0 %661
        %665 = vset.pattern.permute.xlu0 0
        %666 = vperm.xlu0 %665, %v636
        %v667 = vpop.permute.xlu0 %666
        %670 = vset.pattern.permute.xlu0 0
        %671 = vperm.xlu0 %670, %v637
        %v672 = vpop.permute.xlu0 %671
        %675 = vset.pattern.permute.xlu0 0
        %676 = vperm.xlu0 %675, %v638
        %v677 = vpop.permute.xlu0 %676
        %v679 = vadd.f32 %v623, %v642
        %v680 = vadd.f32 %v624, %v647
        %v681 = vadd.f32 %v625, %v652
        %v682 = vadd.f32 %v626, %v657
        %v683 = vadd.f32 %v627, %v662
        %v684 = vadd.f32 %v628, %v667
        %v685 = vadd.f32 %v629, %v672
        %v686 = vadd.f32 %v630, %v677
        %vm687 = vcmask 1047680
        %688 = vrot.lane.b32.xlu0 %v420, 16
        %v689 = vpop.permute.xlu0 %688
        %v690 = vsel %vm687, %v689, %v420
        %691 = vrot.lane.b32.xlu0 %v421, 16
        %v692 = vpop.permute.xlu0 %691
        %v693 = vsel %vm687, %v692, %v421
        %694 = vrot.lane.b32.xlu0 %v422, 16
        %v695 = vpop.permute.xlu0 %694
        %v696 = vsel %vm687, %v695, %v422
        %697 = vrot.lane.b32.xlu0 %v423, 16
        %v698 = vpop.permute.xlu0 %697
        %v699 = vsel %vm687, %v698, %v423
        %700 = vrot.lane.b32.xlu0 %v424, 16
        %v701 = vpop.permute.xlu0 %700
        %v702 = vsel %vm687, %v701, %v424
        %703 = vrot.lane.b32.xlu0 %v425, 16
        %v704 = vpop.permute.xlu0 %703
        %v705 = vsel %vm687, %v704, %v425
        %706 = vrot.lane.b32.xlu0 %v426, 16
        %v707 = vpop.permute.xlu0 %706
        %v708 = vsel %vm687, %v707, %v426
        %709 = vrot.lane.b32.xlu0 %v427, 16
        %v710 = vpop.permute.xlu0 %709
        %v711 = vsel %vm687, %v710, %v427
        %712 = vrot.lane.b32.xlu0 %v526, 16
        %v713 = vpop.permute.xlu0 %712
        %v714 = vsel %vm687, %v713, %v526
        %715 = vrot.lane.b32.xlu0 %v527, 16
        %v716 = vpop.permute.xlu0 %715
        %v717 = vsel %vm687, %v716, %v527
        %718 = vrot.lane.b32.xlu0 %v528, 16
        %v719 = vpop.permute.xlu0 %718
        %v720 = vsel %vm687, %v719, %v528
        %721 = vrot.lane.b32.xlu0 %v529, 16
        %v722 = vpop.permute.xlu0 %721
        %v723 = vsel %vm687, %v722, %v529
        %724 = vrot.lane.b32.xlu0 %v530, 16
        %v725 = vpop.permute.xlu0 %724
        %v726 = vsel %vm687, %v725, %v530
        %727 = vrot.lane.b32.xlu0 %v531, 16
        %v728 = vpop.permute.xlu0 %727
        %v729 = vsel %vm687, %v728, %v531
        %730 = vrot.lane.b32.xlu0 %v532, 16
        %v731 = vpop.permute.xlu0 %730
        %v732 = vsel %vm687, %v731, %v532
        %733 = vrot.lane.b32.xlu0 %v533, 16
        %v734 = vpop.permute.xlu0 %733
        %v735 = vsel %vm687, %v734, %v533
        %736 = vrot.lane.b32.xlu0 %v553, 16
        %v737 = vpop.permute.xlu0 %736
        %v738 = vsel %vm687, %v737, %v553
        %739 = vrot.lane.b32.xlu0 %v554, 16
        %v740 = vpop.permute.xlu0 %739
        %v741 = vsel %vm687, %v740, %v554
        %742 = vrot.lane.b32.xlu0 %v555, 16
        %v743 = vpop.permute.xlu0 %742
        %v744 = vsel %vm687, %v743, %v555
        %745 = vrot.lane.b32.xlu0 %v556, 16
        %v746 = vpop.permute.xlu0 %745
        %v747 = vsel %vm687, %v746, %v556
        %748 = vrot.lane.b32.xlu0 %v557, 16
        %v749 = vpop.permute.xlu0 %748
        %v750 = vsel %vm687, %v749, %v557
        %751 = vrot.lane.b32.xlu0 %v558, 16
        %v752 = vpop.permute.xlu0 %751
        %v753 = vsel %vm687, %v752, %v558
        %754 = vrot.lane.b32.xlu0 %v559, 16
        %v755 = vpop.permute.xlu0 %754
        %v756 = vsel %vm687, %v755, %v559
        %757 = vrot.lane.b32.xlu0 %v560, 16
        %v758 = vpop.permute.xlu0 %757
        %v759 = vsel %vm687, %v758, %v560
        %760 = vrot.lane.b32.xlu0 %v690, 16
        %v761 = vpop.permute.xlu0 %760
        %762 = vrot.lane.b32.xlu0 %v693, 16
        %v763 = vpop.permute.xlu0 %762
        %764 = vrot.lane.b32.xlu0 %v696, 16
        %v765 = vpop.permute.xlu0 %764
        %766 = vrot.lane.b32.xlu0 %v699, 16
        %v767 = vpop.permute.xlu0 %766
        %768 = vrot.lane.b32.xlu0 %v702, 16
        %v769 = vpop.permute.xlu0 %768
        %770 = vrot.lane.b32.xlu0 %v705, 16
        %v771 = vpop.permute.xlu0 %770
        %772 = vrot.lane.b32.xlu0 %v708, 16
        %v773 = vpop.permute.xlu0 %772
        %774 = vrot.lane.b32.xlu0 %v711, 16
        %v775 = vpop.permute.xlu0 %774
        %776 = vrot.lane.b32.xlu0 %v714, 16
        %v777 = vpop.permute.xlu0 %776
        %778 = vrot.lane.b32.xlu0 %v717, 16
        %v779 = vpop.permute.xlu0 %778
        %780 = vrot.lane.b32.xlu0 %v720, 16
        %v781 = vpop.permute.xlu0 %780
        %782 = vrot.lane.b32.xlu0 %v723, 16
        %v783 = vpop.permute.xlu0 %782
        %784 = vrot.lane.b32.xlu0 %v726, 16
        %v785 = vpop.permute.xlu0 %784
        %786 = vrot.lane.b32.xlu0 %v729, 16
        %v787 = vpop.permute.xlu0 %786
        %788 = vrot.lane.b32.xlu0 %v732, 16
        %v789 = vpop.permute.xlu0 %788
        %790 = vrot.lane.b32.xlu0 %v735, 16
        %v791 = vpop.permute.xlu0 %790
        %792 = vrot.lane.b32.xlu0 %v738, 16
        %v793 = vpop.permute.xlu0 %792
        %794 = vrot.lane.b32.xlu0 %v741, 16
        %v795 = vpop.permute.xlu0 %794
        %796 = vrot.lane.b32.xlu0 %v744, 16
        %v797 = vpop.permute.xlu0 %796
        %798 = vrot.lane.b32.xlu0 %v747, 16
        %v799 = vpop.permute.xlu0 %798
        %800 = vrot.lane.b32.xlu0 %v750, 16
        %v801 = vpop.permute.xlu0 %800
        %802 = vrot.lane.b32.xlu0 %v753, 16
        %v803 = vpop.permute.xlu0 %802
        %804 = vrot.lane.b32.xlu0 %v756, 16
        %v805 = vpop.permute.xlu0 %804
        %806 = vrot.lane.b32.xlu0 %v759, 16
        %v807 = vpop.permute.xlu0 %806
        %v808 = vsel %vm687, %v761, %v420
        %v809 = vsel %vm687, %v763, %v421
        %v810 = vsel %vm687, %v765, %v422
        %v811 = vsel %vm687, %v767, %v423
        %v812 = vsel %vm687, %v769, %v424
        %v813 = vsel %vm687, %v771, %v425
        %v814 = vsel %vm687, %v773, %v426
        %v815 = vsel %vm687, %v775, %v427
        %v816 = vsel %vm687, %v777, %v526
        %v817 = vsel %vm687, %v779, %v527
        %v818 = vsel %vm687, %v781, %v528
        %v819 = vsel %vm687, %v783, %v529
        %v820 = vsel %vm687, %v785, %v530
        %v821 = vsel %vm687, %v787, %v531
        %v822 = vsel %vm687, %v789, %v532
        %v823 = vsel %vm687, %v791, %v533
        %v824 = vsel %vm687, %v793, %v553
        %v825 = vsel %vm687, %v795, %v554
        %v826 = vsel %vm687, %v797, %v555
        %v827 = vsel %vm687, %v799, %v556
        %v828 = vsel %vm687, %v801, %v557
        %v829 = vsel %vm687, %v803, %v558
        %v830 = vsel %vm687, %v805, %v559
        %v831 = vsel %vm687, %v807, %v560
        %v832 = vsel %vm276, 1, 0
        %vm833 = vcmp.eq.s32.totalorder %v832, 1
        %858 = vrot.lane.b32.xlu0 %v808, 113
        %v859 = vpop.permute.xlu0 %858
        %860 = vrot.lane.b32.xlu0 %v809, 113
        %v861 = vpop.permute.xlu0 %860
        %862 = vrot.lane.b32.xlu0 %v810, 113
        %v863 = vpop.permute.xlu0 %862
        %864 = vrot.lane.b32.xlu0 %v811, 113
        %v865 = vpop.permute.xlu0 %864
        %866 = vrot.lane.b32.xlu0 %v812, 113
        %v867 = vpop.permute.xlu0 %866
        %868 = vrot.lane.b32.xlu0 %v813, 113
        %v869 = vpop.permute.xlu0 %868
        %870 = vrot.lane.b32.xlu0 %v814, 113
        %v871 = vpop.permute.xlu0 %870
        %872 = vrot.lane.b32.xlu0 %v815, 113
        %v873 = vpop.permute.xlu0 %872
        %874 = vrot.lane.b32.xlu0 %v816, 113
        %v875 = vpop.permute.xlu0 %874
        %876 = vrot.lane.b32.xlu0 %v817, 113
        %v877 = vpop.permute.xlu0 %876
        %878 = vrot.lane.b32.xlu0 %v818, 113
        %v879 = vpop.permute.xlu0 %878
        %880 = vrot.lane.b32.xlu0 %v819, 113
        %v881 = vpop.permute.xlu0 %880
        %882 = vrot.lane.b32.xlu0 %v820, 113
        %v883 = vpop.permute.xlu0 %882
        %884 = vrot.lane.b32.xlu0 %v821, 113
        %v885 = vpop.permute.xlu0 %884
        %886 = vrot.lane.b32.xlu0 %v822, 113
        %v887 = vpop.permute.xlu0 %886
        %888 = vrot.lane.b32.xlu0 %v823, 113
        %v889 = vpop.permute.xlu0 %888
        %890 = vrot.lane.b32.xlu0 %v824, 113
        %v891 = vpop.permute.xlu0 %890
        %892 = vrot.lane.b32.xlu0 %v825, 113
        %v893 = vpop.permute.xlu0 %892
        %894 = vrot.lane.b32.xlu0 %v826, 113
        %v895 = vpop.permute.xlu0 %894
        %896 = vrot.lane.b32.xlu0 %v827, 113
        %v897 = vpop.permute.xlu0 %896
        %898 = vrot.lane.b32.xlu0 %v828, 113
        %v899 = vpop.permute.xlu0 %898
        %900 = vrot.lane.b32.xlu0 %v829, 113
        %v901 = vpop.permute.xlu0 %900
        %902 = vrot.lane.b32.xlu0 %v830, 113
        %v903 = vpop.permute.xlu0 %902
        %904 = vrot.lane.b32.xlu0 %v831, 113
        %v905 = vpop.permute.xlu0 %904
        %v930 = vsel %vm833, %v859, 0.0
        %v931 = vsel %vm833, %v861, 0.0
        %v932 = vsel %vm833, %v863, 0.0
        %v933 = vsel %vm833, %v865, 0.0
        %v934 = vsel %vm833, %v867, 0.0
        %v935 = vsel %vm833, %v869, 0.0
        %v936 = vsel %vm833, %v871, 0.0
        %v937 = vsel %vm833, %v873, 0.0
        %v938 = vsel %vm833, %v875, 0.0
        %v939 = vsel %vm833, %v877, 0.0
        %v940 = vsel %vm833, %v879, 0.0
        %v941 = vsel %vm833, %v881, 0.0
        %v942 = vsel %vm833, %v883, 0.0
        %v943 = vsel %vm833, %v885, 0.0
        %v944 = vsel %vm833, %v887, 0.0
        %v945 = vsel %vm833, %v889, 0.0
        %v946 = vsel %vm833, %v891, 0.0
        %v947 = vsel %vm833, %v893, 0.0
        %v948 = vsel %vm833, %v895, 0.0
        %v949 = vsel %vm833, %v897, 0.0
        %v950 = vsel %vm833, %v899, 0.0
        %v951 = vsel %vm833, %v901, 0.0
        %v952 = vsel %vm833, %v903, 0.0
        %v953 = vsel %vm833, %v905, 0.0
        %v954 = vsel %vm277, 1, 0
        %vm955 = vcmp.eq.s32.totalorder %v954, 1
        %956 = vrot.lane.b32.xlu0 %v808, 127
        %v957 = vpop.permute.xlu0 %956
        %958 = vrot.lane.b32.xlu0 %v809, 127
        %v959 = vpop.permute.xlu0 %958
        %960 = vrot.lane.b32.xlu0 %v810, 127
        %v961 = vpop.permute.xlu0 %960
        %962 = vrot.lane.b32.xlu0 %v811, 127
        %v963 = vpop.permute.xlu0 %962
        %964 = vrot.lane.b32.xlu0 %v812, 127
        %v965 = vpop.permute.xlu0 %964
        %966 = vrot.lane.b32.xlu0 %v813, 127
        %v967 = vpop.permute.xlu0 %966
        %968 = vrot.lane.b32.xlu0 %v814, 127
        %v969 = vpop.permute.xlu0 %968
        %970 = vrot.lane.b32.xlu0 %v815, 127
        %v971 = vpop.permute.xlu0 %970
        %972 = vrot.lane.b32.xlu0 %v816, 127
        %v973 = vpop.permute.xlu0 %972
        %974 = vrot.lane.b32.xlu0 %v817, 127
        %v975 = vpop.permute.xlu0 %974
        %976 = vrot.lane.b32.xlu0 %v818, 127
        %v977 = vpop.permute.xlu0 %976
        %978 = vrot.lane.b32.xlu0 %v819, 127
        %v979 = vpop.permute.xlu0 %978
        %980 = vrot.lane.b32.xlu0 %v820, 127
        %v981 = vpop.permute.xlu0 %980
        %982 = vrot.lane.b32.xlu0 %v821, 127
        %v983 = vpop.permute.xlu0 %982
        %984 = vrot.lane.b32.xlu0 %v822, 127
        %v985 = vpop.permute.xlu0 %984
        %986 = vrot.lane.b32.xlu0 %v823, 127
        %v987 = vpop.permute.xlu0 %986
        %988 = vrot.lane.b32.xlu0 %v824, 127
        %v989 = vpop.permute.xlu0 %988
        %990 = vrot.lane.b32.xlu0 %v825, 127
        %v991 = vpop.permute.xlu0 %990
        %992 = vrot.lane.b32.xlu0 %v826, 127
        %v993 = vpop.permute.xlu0 %992
        %994 = vrot.lane.b32.xlu0 %v827, 127
        %v995 = vpop.permute.xlu0 %994
        %996 = vrot.lane.b32.xlu0 %v828, 127
        %v997 = vpop.permute.xlu0 %996
        %998 = vrot.lane.b32.xlu0 %v829, 127
        %v999 = vpop.permute.xlu0 %998
        %1000 = vrot.lane.b32.xlu0 %v830, 127
        %v1001 = vpop.permute.xlu0 %1000
        %1002 = vrot.lane.b32.xlu0 %v831, 127
        %v1003 = vpop.permute.xlu0 %1002
        %v1028 = vsel %vm955, %v957, 0.0
        %v1029 = vsel %vm955, %v959, 0.0
        %v1030 = vsel %vm955, %v961, 0.0
        %v1031 = vsel %vm955, %v963, 0.0
        %v1032 = vsel %vm955, %v965, 0.0
        %v1033 = vsel %vm955, %v967, 0.0
        %v1034 = vsel %vm955, %v969, 0.0
        %v1035 = vsel %vm955, %v971, 0.0
        %v1036 = vsel %vm955, %v973, 0.0
        %v1037 = vsel %vm955, %v975, 0.0
        %v1038 = vsel %vm955, %v977, 0.0
        %v1039 = vsel %vm955, %v979, 0.0
        %v1040 = vsel %vm955, %v981, 0.0
        %v1041 = vsel %vm955, %v983, 0.0
        %v1042 = vsel %vm955, %v985, 0.0
        %v1043 = vsel %vm955, %v987, 0.0
        %v1044 = vsel %vm955, %v989, 0.0
        %v1045 = vsel %vm955, %v991, 0.0
        %v1046 = vsel %vm955, %v993, 0.0
        %v1047 = vsel %vm955, %v995, 0.0
        %v1048 = vsel %vm955, %v997, 0.0
        %v1049 = vsel %vm955, %v999, 0.0
        %v1050 = vsel %vm955, %v1001, 0.0
        %v1051 = vsel %vm955, %v1003, 0.0
        %v1052 = vpack.c.bf16 %v931, %v930
        %v1053 = vpack.c.bf16 %v933, %v932
        %v1054 = vpack.c.bf16 %v935, %v934
        %v1055 = vpack.c.bf16 %v937, %v936
        %v1056 = vpack.c.bf16 %v939, %v938
        %v1057 = vpack.c.bf16 %v941, %v940
        %v1058 = vpack.c.bf16 %v943, %v942
        %v1059 = vpack.c.bf16 %v945, %v944
        %v1060 = vpack.c.bf16 %v947, %v946
        %v1061 = vpack.c.bf16 %v949, %v948
        %v1062 = vpack.c.bf16 %v951, %v950
        %v1063 = vpack.c.bf16 %v953, %v952
        %v1064 = vpack.c.bf16 %v421, %v420
        %v1065 = vpack.c.bf16 %v423, %v422
        %v1066 = vpack.c.bf16 %v425, %v424
        %v1067 = vpack.c.bf16 %v427, %v426
        %v1068 = vpack.c.bf16 %v527, %v526
        %v1069 = vpack.c.bf16 %v529, %v528
        %v1070 = vpack.c.bf16 %v531, %v530
        %v1071 = vpack.c.bf16 %v533, %v532
        %v1072 = vpack.c.bf16 %v554, %v553
        %v1073 = vpack.c.bf16 %v556, %v555
        %v1074 = vpack.c.bf16 %v558, %v557
        %v1075 = vpack.c.bf16 %v560, %v559
        %v1076 = vpack.c.bf16 %v1029, %v1028
        %v1077 = vpack.c.bf16 %v1031, %v1030
        %v1078 = vpack.c.bf16 %v1033, %v1032
        %v1079 = vpack.c.bf16 %v1035, %v1034
        %v1080 = vpack.c.bf16 %v1037, %v1036
        %v1081 = vpack.c.bf16 %v1039, %v1038
        %v1082 = vpack.c.bf16 %v1041, %v1040
        %v1083 = vpack.c.bf16 %v1043, %v1042
        %v1084 = vpack.c.bf16 %v1045, %v1044
        %v1085 = vpack.c.bf16 %v1047, %v1046
        %v1086 = vpack.c.bf16 %v1049, %v1048
        %v1087 = vpack.c.bf16 %v1051, %v1050
        %v1112 = vunpack.c.l.b16 %v226
        %v1113 = vunpack.c.h.b16 %v226
        %v1114 = vunpack.c.l.b16 %v227
        %v1115 = vunpack.c.h.b16 %v227
        %v1116 = vunpack.c.l.b16 %v228
        %v1117 = vunpack.c.l.b16 %v229
        %v1118 = vunpack.c.h.b16 %v229
        %v1119 = vunpack.c.l.b16 %v230
        %v1120 = vunpack.c.h.b16 %v230
        %v1121 = vunpack.c.l.b16 %v231
        %v1122 = vunpack.c.l.b16 %v232
        %v1123 = vunpack.c.h.b16 %v232
        %v1124 = vunpack.c.l.b16 %v233
        %v1125 = vunpack.c.h.b16 %v233
        %v1126 = vunpack.c.l.b16 %v234
        %v1127 = vunpack.c.l.b16 %v235
        %v1128 = vunpack.c.h.b16 %v235
        %v1129 = vunpack.c.l.b16 %v236
        %v1130 = vunpack.c.h.b16 %v236
        %v1131 = vunpack.c.l.b16 %v237
        %v1132 = vunpack.c.l.b16 %v238
        %v1133 = vunpack.c.h.b16 %v238
        %v1134 = vunpack.c.l.b16 %v239
        %v1135 = vunpack.c.h.b16 %v239
        %v1136 = vunpack.c.l.b16 %v240
        %v1137 = vunpack.c.l.b16 %v241
        %v1138 = vunpack.c.h.b16 %v241
        %v1139 = vunpack.c.l.b16 %v242
        %v1140 = vunpack.c.h.b16 %v242
        %v1141 = vunpack.c.l.b16 %v243
        %v1142 = vunpack.c.l.b16 %v244
        %v1143 = vunpack.c.h.b16 %v244
        %v1144 = vunpack.c.l.b16 %v245
        %v1145 = vunpack.c.h.b16 %v245
        %v1146 = vunpack.c.l.b16 %v246
        %v1147 = vunpack.c.l.b16 %v247
        %v1148 = vunpack.c.h.b16 %v247
        %v1149 = vunpack.c.l.b16 %v248
        %v1150 = vunpack.c.h.b16 %v248
        %v1151 = vunpack.c.l.b16 %v249
        %v1152 = vpack.c.b16 %v1117, %v1112
        %v1153 = vpack.c.b16 %v1118, %v1113
        %v1154 = vpack.c.b16 %v1119, %v1114
        %v1155 = vpack.c.b16 %v1120, %v1115
        %v1156 = vpack.c.b16 %v1121, %v1116
        %v1157 = vpack.c.b16 %v1127, %v1122
        %v1158 = vpack.c.b16 %v1128, %v1123
        %v1159 = vpack.c.b16 %v1129, %v1124
        %v1160 = vpack.c.b16 %v1130, %v1125
        %v1161 = vpack.c.b16 %v1131, %v1126
        %v1162 = vpack.c.b16 %v1137, %v1132
        %v1163 = vpack.c.b16 %v1138, %v1133
        %v1164 = vpack.c.b16 %v1139, %v1134
        %v1165 = vpack.c.b16 %v1140, %v1135
        %v1166 = vpack.c.b16 %v1141, %v1136
        %v1167 = vpack.c.b16 %v1147, %v1142
        %v1168 = vpack.c.b16 %v1148, %v1143
        %v1169 = vpack.c.b16 %v1149, %v1144
        %v1170 = vpack.c.b16 %v1150, %v1145
        %v1171 = vpack.c.b16 %v1151, %v1146
        %vm1188 = vcmask 523264
        %v1190 = vsel %vm1188, %v1156, 0
        %v1193 = vsel %vm1188, %v1161, 0
        %v1196 = vsel %vm1188, %v1166, 0
        %v1199 = vsel %vm1188, %v1171, 0
        %1201 = vmatpush.bf16.msra.mxu0 %v1059
        %1202 = vmatpush.bf16.msra.mxu0 %v1058
        %1203 = vmatpush.bf16.msra.mxu0 %v1057
        %1204 = vmatpush.bf16.msra.mxu0 %v1056
        %1205 = vmatpush.bf16.msra.mxu0 %v1055
        %1206 = vmatpush.bf16.msra.mxu0 %v1054
        %1207 = vmatpush.bf16.msra.mxu0 %v1053
        %1208 = vmatpush.bf16.msra.mxu0 %v1052
        %1209 = vmatmul.bf16.gmra.mxu0 %v1152
        %v1210 = vpop.f32.mrf.mxu0
        %v1211 = vadd.f32 0.0, %v1210
        %v1212 = vpop.f32.mrf.mxu0
        %v1213 = vadd.f32 0.0, %v1212
        %1214 = vmatmul.bf16.gmra.mxu0 %v1157
        %v1215 = vpop.f32.mrf.mxu0
        %v1216 = vadd.f32 0.0, %v1215
        %v1217 = vpop.f32.mrf.mxu0
        %v1218 = vadd.f32 0.0, %v1217
        %1219 = vmatmul.bf16.gmra.mxu0 %v1162
        %v1220 = vpop.f32.mrf.mxu0
        %v1221 = vadd.f32 0.0, %v1220
        %v1222 = vpop.f32.mrf.mxu0
        %v1223 = vadd.f32 0.0, %v1222
        %1224 = vmatmul.bf16.gmra.mxu0 %v1167
        %v1225 = vpop.f32.mrf.mxu0
        %v1226 = vadd.f32 0.0, %v1225
        %v1227 = vpop.f32.mrf.mxu0
        %v1228 = vadd.f32 0.0, %v1227
        %1229 = vdwg.mxu0
        %1230 = vmatpush.bf16.msra.mxu0 %v1067
        %1231 = vmatpush.bf16.msra.mxu0 %v1066
        %1232 = vmatpush.bf16.msra.mxu0 %v1065
        %1233 = vmatpush.bf16.msra.mxu0 %v1064
        %1234 = vmatpush.bf16.msra.mxu0 %v1063
        %1235 = vmatpush.bf16.msra.mxu0 %v1062
        %1236 = vmatpush.bf16.msra.mxu0 %v1061
        %1237 = vmatpush.bf16.msra.mxu0 %v1060
        %1238 = vmatmul.bf16.gmra.mxu0 %v1153
        %v1239 = vpop.f32.mrf.mxu0
        %v1240 = vadd.f32 %v1211, %v1239
        %v1241 = vpop.f32.mrf.mxu0
        %v1242 = vadd.f32 %v1213, %v1241
        %1243 = vmatmul.bf16.gmra.mxu0 %v1158
        %v1244 = vpop.f32.mrf.mxu0
        %v1245 = vadd.f32 %v1216, %v1244
        %v1246 = vpop.f32.mrf.mxu0
        %v1247 = vadd.f32 %v1218, %v1246
        %1248 = vmatmul.bf16.gmra.mxu0 %v1163
        %v1249 = vpop.f32.mrf.mxu0
        %v1250 = vadd.f32 %v1221, %v1249
        %v1251 = vpop.f32.mrf.mxu0
        %v1252 = vadd.f32 %v1223, %v1251
        %1253 = vmatmul.bf16.gmra.mxu0 %v1168
        %v1254 = vpop.f32.mrf.mxu0
        %v1255 = vadd.f32 %v1226, %v1254
        %v1256 = vpop.f32.mrf.mxu0
        %v1257 = vadd.f32 %v1228, %v1256
        %1258 = vdwg.mxu0
        %1259 = vmatpush.bf16.msra.mxu0 %v1075
        %1260 = vmatpush.bf16.msra.mxu0 %v1074
        %1261 = vmatpush.bf16.msra.mxu0 %v1073
        %1262 = vmatpush.bf16.msra.mxu0 %v1072
        %1263 = vmatpush.bf16.msra.mxu0 %v1071
        %1264 = vmatpush.bf16.msra.mxu0 %v1070
        %1265 = vmatpush.bf16.msra.mxu0 %v1069
        %1266 = vmatpush.bf16.msra.mxu0 %v1068
        %1267 = vmatmul.bf16.gmra.mxu0 %v1154
        %v1268 = vpop.f32.mrf.mxu0
        %v1269 = vadd.f32 %v1240, %v1268
        %v1270 = vpop.f32.mrf.mxu0
        %v1271 = vadd.f32 %v1242, %v1270
        %1272 = vmatmul.bf16.gmra.mxu0 %v1159
        %v1273 = vpop.f32.mrf.mxu0
        %v1274 = vadd.f32 %v1245, %v1273
        %v1275 = vpop.f32.mrf.mxu0
        %v1276 = vadd.f32 %v1247, %v1275
        %1277 = vmatmul.bf16.gmra.mxu0 %v1164
        %v1278 = vpop.f32.mrf.mxu0
        %v1279 = vadd.f32 %v1250, %v1278
        %v1280 = vpop.f32.mrf.mxu0
        %v1281 = vadd.f32 %v1252, %v1280
        %1282 = vmatmul.bf16.gmra.mxu0 %v1169
        %v1283 = vpop.f32.mrf.mxu0
        %v1284 = vadd.f32 %v1255, %v1283
        %v1285 = vpop.f32.mrf.mxu0
        %v1286 = vadd.f32 %v1257, %v1285
        %1287 = vdwg.mxu0
        %1288 = vmatpush.bf16.msra.mxu0 %v1083
        %1289 = vmatpush.bf16.msra.mxu0 %v1082
        %1290 = vmatpush.bf16.msra.mxu0 %v1081
        %1291 = vmatpush.bf16.msra.mxu0 %v1080
        %1292 = vmatpush.bf16.msra.mxu0 %v1079
        %1293 = vmatpush.bf16.msra.mxu0 %v1078
        %1294 = vmatpush.bf16.msra.mxu0 %v1077
        %1295 = vmatpush.bf16.msra.mxu0 %v1076
        %1296 = vmatmul.bf16.gmra.mxu0 %v1155
        %v1297 = vpop.f32.mrf.mxu0
        %v1298 = vadd.f32 %v1269, %v1297
        %v1299 = vpop.f32.mrf.mxu0
        %v1300 = vadd.f32 %v1271, %v1299
        %1301 = vmatmul.bf16.gmra.mxu0 %v1160
        %v1302 = vpop.f32.mrf.mxu0
        %v1303 = vadd.f32 %v1274, %v1302
        %v1304 = vpop.f32.mrf.mxu0
        %v1305 = vadd.f32 %v1276, %v1304
        %1306 = vmatmul.bf16.gmra.mxu0 %v1165
        %v1307 = vpop.f32.mrf.mxu0
        %v1308 = vadd.f32 %v1279, %v1307
        %v1309 = vpop.f32.mrf.mxu0
        %v1310 = vadd.f32 %v1281, %v1309
        %1311 = vmatmul.bf16.gmra.mxu0 %v1170
        %v1312 = vpop.f32.mrf.mxu0
        %v1313 = vadd.f32 %v1284, %v1312
        %v1314 = vpop.f32.mrf.mxu0
        %v1315 = vadd.f32 %v1286, %v1314
        %1316 = vdwg.mxu0
        %1317 = vmatpush.bf16.msra.mxu0 0
        %1318 = vmatpush.bf16.msra.mxu0 0
        %1319 = vmatpush.bf16.msra.mxu0 0
        %1320 = vmatpush.bf16.msra.mxu0 0
        %1321 = vmatpush.bf16.msra.mxu0 %v1087
        %1322 = vmatpush.bf16.msra.mxu0 %v1086
        %1323 = vmatpush.bf16.msra.mxu0 %v1085
        %1324 = vmatpush.bf16.msra.mxu0 %v1084
        %1325 = vmatmul.bf16.gmra.mxu0 %v1190
        %v1326 = vpop.f32.mrf.mxu0
        %v1327 = vadd.f32 %v1298, %v1326
        %v1328 = vpop.f32.mrf.mxu0
        %v1329 = vadd.f32 %v1300, %v1328
        %1330 = vmatmul.bf16.gmra.mxu0 %v1193
        %v1331 = vpop.f32.mrf.mxu0
        %v1332 = vadd.f32 %v1303, %v1331
        %v1333 = vpop.f32.mrf.mxu0
        %v1334 = vadd.f32 %v1305, %v1333
        %1335 = vmatmul.bf16.gmra.mxu0 %v1196
        %v1336 = vpop.f32.mrf.mxu0
        %v1337 = vadd.f32 %v1308, %v1336
        %v1338 = vpop.f32.mrf.mxu0
        %v1339 = vadd.f32 %v1310, %v1338
        %1340 = vmatmul.bf16.gmra.mxu0 %v1199
        %v1341 = vpop.f32.mrf.mxu0
        %v1342 = vadd.f32 %v1313, %v1341
        %v1343 = vpop.f32.mrf.mxu0
        %v1344 = vadd.f32 %v1315, %v1343
        %1345 = vdwg.mxu0
        %1346 = vrot.lane.b32.xlu0 %v679, 16
        %v1347 = vpop.permute.xlu0 %1346
        %v1348 = vsel %vm687, %v1347, %v679
        %1349 = vrot.lane.b32.xlu0 %v680, 16
        %v1350 = vpop.permute.xlu0 %1349
        %v1351 = vsel %vm687, %v1350, %v680
        %1352 = vrot.lane.b32.xlu0 %v681, 16
        %v1353 = vpop.permute.xlu0 %1352
        %v1354 = vsel %vm687, %v1353, %v681
        %1355 = vrot.lane.b32.xlu0 %v682, 16
        %v1356 = vpop.permute.xlu0 %1355
        %v1357 = vsel %vm687, %v1356, %v682
        %1358 = vrot.lane.b32.xlu0 %v683, 16
        %v1359 = vpop.permute.xlu0 %1358
        %v1360 = vsel %vm687, %v1359, %v683
        %1361 = vrot.lane.b32.xlu0 %v684, 16
        %v1362 = vpop.permute.xlu0 %1361
        %v1363 = vsel %vm687, %v1362, %v684
        %1364 = vrot.lane.b32.xlu0 %v685, 16
        %v1365 = vpop.permute.xlu0 %1364
        %v1366 = vsel %vm687, %v1365, %v685
        %1367 = vrot.lane.b32.xlu0 %v686, 16
        %v1368 = vpop.permute.xlu0 %1367
        %v1369 = vsel %vm687, %v1368, %v686
        %1370 = vrot.lane.b32.xlu0 %v1348, 16
        %v1371 = vpop.permute.xlu0 %1370
        %1372 = vrot.lane.b32.xlu0 %v1351, 16
        %v1373 = vpop.permute.xlu0 %1372
        %1374 = vrot.lane.b32.xlu0 %v1354, 16
        %v1375 = vpop.permute.xlu0 %1374
        %1376 = vrot.lane.b32.xlu0 %v1357, 16
        %v1377 = vpop.permute.xlu0 %1376
        %1378 = vrot.lane.b32.xlu0 %v1360, 16
        %v1379 = vpop.permute.xlu0 %1378
        %1380 = vrot.lane.b32.xlu0 %v1363, 16
        %v1381 = vpop.permute.xlu0 %1380
        %1382 = vrot.lane.b32.xlu0 %v1366, 16
        %v1383 = vpop.permute.xlu0 %1382
        %1384 = vrot.lane.b32.xlu0 %v1369, 16
        %v1385 = vpop.permute.xlu0 %1384
        %v1386 = vsel %vm687, %v1371, %v679
        %v1387 = vsel %vm687, %v1373, %v680
        %v1388 = vsel %vm687, %v1375, %v681
        %v1389 = vsel %vm687, %v1377, %v682
        %v1390 = vsel %vm687, %v1379, %v683
        %v1391 = vsel %vm687, %v1381, %v684
        %v1392 = vsel %vm687, %v1383, %v685
        %v1393 = vsel %vm687, %v1385, %v686
        %1402 = vrot.lane.b32.xlu0 %v1386, 113
        %v1403 = vpop.permute.xlu0 %1402
        %1404 = vrot.lane.b32.xlu0 %v1387, 113
        %v1405 = vpop.permute.xlu0 %1404
        %1406 = vrot.lane.b32.xlu0 %v1388, 113
        %v1407 = vpop.permute.xlu0 %1406
        %1408 = vrot.lane.b32.xlu0 %v1389, 113
        %v1409 = vpop.permute.xlu0 %1408
        %1410 = vrot.lane.b32.xlu0 %v1390, 113
        %v1411 = vpop.permute.xlu0 %1410
        %1412 = vrot.lane.b32.xlu0 %v1391, 113
        %v1413 = vpop.permute.xlu0 %1412
        %1414 = vrot.lane.b32.xlu0 %v1392, 113
        %v1415 = vpop.permute.xlu0 %1414
        %1416 = vrot.lane.b32.xlu0 %v1393, 113
        %v1417 = vpop.permute.xlu0 %1416
        %v1426 = vsel %vm833, %v1403, 0.0
        %v1427 = vsel %vm833, %v1405, 0.0
        %v1428 = vsel %vm833, %v1407, 0.0
        %v1429 = vsel %vm833, %v1409, 0.0
        %v1430 = vsel %vm833, %v1411, 0.0
        %v1431 = vsel %vm833, %v1413, 0.0
        %v1432 = vsel %vm833, %v1415, 0.0
        %v1433 = vsel %vm833, %v1417, 0.0
        %1434 = vrot.lane.b32.xlu0 %v1386, 127
        %v1435 = vpop.permute.xlu0 %1434
        %1436 = vrot.lane.b32.xlu0 %v1387, 127
        %v1437 = vpop.permute.xlu0 %1436
        %1438 = vrot.lane.b32.xlu0 %v1388, 127
        %v1439 = vpop.permute.xlu0 %1438
        %1440 = vrot.lane.b32.xlu0 %v1389, 127
        %v1441 = vpop.permute.xlu0 %1440
        %1442 = vrot.lane.b32.xlu0 %v1390, 127
        %v1443 = vpop.permute.xlu0 %1442
        %1444 = vrot.lane.b32.xlu0 %v1391, 127
        %v1445 = vpop.permute.xlu0 %1444
        %1446 = vrot.lane.b32.xlu0 %v1392, 127
        %v1447 = vpop.permute.xlu0 %1446
        %1448 = vrot.lane.b32.xlu0 %v1393, 127
        %v1449 = vpop.permute.xlu0 %1448
        %v1458 = vsel %vm955, %v1435, 0.0
        %v1459 = vsel %vm955, %v1437, 0.0
        %v1460 = vsel %vm955, %v1439, 0.0
        %v1461 = vsel %vm955, %v1441, 0.0
        %v1462 = vsel %vm955, %v1443, 0.0
        %v1463 = vsel %vm955, %v1445, 0.0
        %v1464 = vsel %vm955, %v1447, 0.0
        %v1465 = vsel %vm955, %v1449, 0.0
        %v1466 = vpack.c.bf16 %v1427, %v1426
        %v1467 = vpack.c.bf16 %v1429, %v1428
        %v1468 = vpack.c.bf16 %v1431, %v1430
        %v1469 = vpack.c.bf16 %v1433, %v1432
        %v1470 = vpack.c.bf16 %v680, %v679
        %v1471 = vpack.c.bf16 %v682, %v681
        %v1472 = vpack.c.bf16 %v684, %v683
        %v1473 = vpack.c.bf16 %v686, %v685
        %v1474 = vpack.c.bf16 %v1459, %v1458
        %v1475 = vpack.c.bf16 %v1461, %v1460
        %v1476 = vpack.c.bf16 %v1463, %v1462
        %v1477 = vpack.c.bf16 %v1465, %v1464
        %1478 = vmatpush.bf16.msra.mxu0 %v1063
        %1479 = vmatpush.bf16.msra.mxu0 %v1062
        %1480 = vmatpush.bf16.msra.mxu0 %v1061
        %1481 = vmatpush.bf16.msra.mxu0 %v1060
        %1482 = vmatpush.bf16.msra.mxu0 %v1059
        %1483 = vmatpush.bf16.msra.mxu0 %v1058
        %1484 = vmatpush.bf16.msra.mxu0 %v1057
        %1485 = vmatpush.bf16.msra.mxu0 %v1056
        %1486 = vmatmul.bf16.gmra.mxu0 %v1152
        %v1487 = vpop.f32.mrf.mxu0
        %v1488 = vadd.f32 0.0, %v1487
        %v1489 = vpop.f32.mrf.mxu0
        %v1490 = vadd.f32 0.0, %v1489
        %1491 = vmatmul.bf16.gmra.mxu0 %v1157
        %v1492 = vpop.f32.mrf.mxu0
        %v1493 = vadd.f32 0.0, %v1492
        %v1494 = vpop.f32.mrf.mxu0
        %v1495 = vadd.f32 0.0, %v1494
        %1496 = vmatmul.bf16.gmra.mxu0 %v1162
        %v1497 = vpop.f32.mrf.mxu0
        %v1498 = vadd.f32 0.0, %v1497
        %v1499 = vpop.f32.mrf.mxu0
        %v1500 = vadd.f32 0.0, %v1499
        %1501 = vmatmul.bf16.gmra.mxu0 %v1167
        %v1502 = vpop.f32.mrf.mxu0
        %v1503 = vadd.f32 0.0, %v1502
        %v1504 = vpop.f32.mrf.mxu0
        %v1505 = vadd.f32 0.0, %v1504
        %1506 = vdwg.mxu0
        %1507 = vmatpush.bf16.msra.mxu0 %v1071
        %1508 = vmatpush.bf16.msra.mxu0 %v1070
        %1509 = vmatpush.bf16.msra.mxu0 %v1069
        %1510 = vmatpush.bf16.msra.mxu0 %v1068
        %1511 = vmatpush.bf16.msra.mxu0 %v1469
        %1512 = vmatpush.bf16.msra.mxu0 %v1468
        %1513 = vmatpush.bf16.msra.mxu0 %v1467
        %1514 = vmatpush.bf16.msra.mxu0 %v1466
        %1515 = vmatmul.bf16.gmra.mxu0 %v1153
        %v1516 = vpop.f32.mrf.mxu0
        %v1517 = vadd.f32 %v1488, %v1516
        %v1518 = vpop.f32.mrf.mxu0
        %v1519 = vadd.f32 %v1490, %v1518
        %1520 = vmatmul.bf16.gmra.mxu0 %v1158
        %v1521 = vpop.f32.mrf.mxu0
        %v1522 = vadd.f32 %v1493, %v1521
        %v1523 = vpop.f32.mrf.mxu0
        %v1524 = vadd.f32 %v1495, %v1523
        %1525 = vmatmul.bf16.gmra.mxu0 %v1163
        %v1526 = vpop.f32.mrf.mxu0
        %v1527 = vadd.f32 %v1498, %v1526
        %v1528 = vpop.f32.mrf.mxu0
        %v1529 = vadd.f32 %v1500, %v1528
        %1530 = vmatmul.bf16.gmra.mxu0 %v1168
        %v1531 = vpop.f32.mrf.mxu0
        %v1532 = vadd.f32 %v1503, %v1531
        %v1533 = vpop.f32.mrf.mxu0
        %v1534 = vadd.f32 %v1505, %v1533
        %1535 = vdwg.mxu0
        %1536 = vmatpush.bf16.msra.mxu0 %v1473
        %1537 = vmatpush.bf16.msra.mxu0 %v1472
        %1538 = vmatpush.bf16.msra.mxu0 %v1471
        %1539 = vmatpush.bf16.msra.mxu0 %v1470
        %1540 = vmatpush.bf16.msra.mxu0 %v1075
        %1541 = vmatpush.bf16.msra.mxu0 %v1074
        %1542 = vmatpush.bf16.msra.mxu0 %v1073
        %1543 = vmatpush.bf16.msra.mxu0 %v1072
        %1544 = vmatmul.bf16.gmra.mxu0 %v1154
        %v1545 = vpop.f32.mrf.mxu0
        %v1546 = vadd.f32 %v1517, %v1545
        %v1547 = vpop.f32.mrf.mxu0
        %v1548 = vadd.f32 %v1519, %v1547
        %1549 = vmatmul.bf16.gmra.mxu0 %v1159
        %v1550 = vpop.f32.mrf.mxu0
        %v1551 = vadd.f32 %v1522, %v1550
        %v1552 = vpop.f32.mrf.mxu0
        %v1553 = vadd.f32 %v1524, %v1552
        %1554 = vmatmul.bf16.gmra.mxu0 %v1164
        %v1555 = vpop.f32.mrf.mxu0
        %v1556 = vadd.f32 %v1527, %v1555
        %v1557 = vpop.f32.mrf.mxu0
        %v1558 = vadd.f32 %v1529, %v1557
        %1559 = vmatmul.bf16.gmra.mxu0 %v1169
        %v1560 = vpop.f32.mrf.mxu0
        %v1561 = vadd.f32 %v1532, %v1560
        %v1562 = vpop.f32.mrf.mxu0
        %v1563 = vadd.f32 %v1534, %v1562
        %1564 = vdwg.mxu0
        %1565 = vmatpush.bf16.msra.mxu0 %v1087
        %1566 = vmatpush.bf16.msra.mxu0 %v1086
        %1567 = vmatpush.bf16.msra.mxu0 %v1085
        %1568 = vmatpush.bf16.msra.mxu0 %v1084
        %1569 = vmatpush.bf16.msra.mxu0 %v1083
        %1570 = vmatpush.bf16.msra.mxu0 %v1082
        %1571 = vmatpush.bf16.msra.mxu0 %v1081
        %1572 = vmatpush.bf16.msra.mxu0 %v1080
        %1573 = vmatmul.bf16.gmra.mxu0 %v1155
        %v1574 = vpop.f32.mrf.mxu0
        %v1575 = vadd.f32 %v1546, %v1574
        %v1576 = vpop.f32.mrf.mxu0
        %v1577 = vadd.f32 %v1548, %v1576
        %1578 = vmatmul.bf16.gmra.mxu0 %v1160
        %v1579 = vpop.f32.mrf.mxu0
        %v1580 = vadd.f32 %v1551, %v1579
        %v1581 = vpop.f32.mrf.mxu0
        %v1582 = vadd.f32 %v1553, %v1581
        %1583 = vmatmul.bf16.gmra.mxu0 %v1165
        %v1584 = vpop.f32.mrf.mxu0
        %v1585 = vadd.f32 %v1556, %v1584
        %v1586 = vpop.f32.mrf.mxu0
        %v1587 = vadd.f32 %v1558, %v1586
        %1588 = vmatmul.bf16.gmra.mxu0 %v1170
        %v1589 = vpop.f32.mrf.mxu0
        %v1590 = vadd.f32 %v1561, %v1589
        %v1591 = vpop.f32.mrf.mxu0
        %v1592 = vadd.f32 %v1563, %v1591
        %1593 = vdwg.mxu0
        %1594 = vmatpush.bf16.msra.mxu0 0
        %1595 = vmatpush.bf16.msra.mxu0 0
        %1596 = vmatpush.bf16.msra.mxu0 0
        %1597 = vmatpush.bf16.msra.mxu0 0
        %1598 = vmatpush.bf16.msra.mxu0 %v1477
        %1599 = vmatpush.bf16.msra.mxu0 %v1476
        %1600 = vmatpush.bf16.msra.mxu0 %v1475
        %1601 = vmatpush.bf16.msra.mxu0 %v1474
        %1602 = vmatmul.bf16.gmra.mxu0 %v1190
        %v1603 = vpop.f32.mrf.mxu0
        %v1604 = vadd.f32 %v1575, %v1603
        %v1605 = vpop.f32.mrf.mxu0
        %v1606 = vadd.f32 %v1577, %v1605
        %1607 = vmatmul.bf16.gmra.mxu0 %v1193
        %v1608 = vpop.f32.mrf.mxu0
        %v1609 = vadd.f32 %v1580, %v1608
        %v1610 = vpop.f32.mrf.mxu0
        %v1611 = vadd.f32 %v1582, %v1610
        %1612 = vmatmul.bf16.gmra.mxu0 %v1196
        %v1613 = vpop.f32.mrf.mxu0
        %v1614 = vadd.f32 %v1585, %v1613
        %v1615 = vpop.f32.mrf.mxu0
        %v1616 = vadd.f32 %v1587, %v1615
        %1617 = vmatmul.bf16.gmra.mxu0 %v1199
        %v1618 = vpop.f32.mrf.mxu0
        %v1619 = vadd.f32 %v1590, %v1618
        %v1620 = vpop.f32.mrf.mxu0
        %v1621 = vadd.f32 %v1592, %v1620
        %1622 = vdwg.mxu0
        %v1623 = vmax.f32 %v1327, %v1604
        %v1624 = vmax.f32 %v1329, %v1606
        %v1625 = vmax.f32 %v1332, %v1609
        %v1626 = vmax.f32 %v1334, %v1611
        %v1627 = vmax.f32 %v1337, %v1614
        %v1628 = vmax.f32 %v1339, %v1616
        %v1629 = vmax.f32 %v1342, %v1619
        %v1630 = vmax.f32 %v1344, %v1621
        %1632 = vset.pattern.permute.xlu0 0
        %1633 = vperm.xlu0 %1632, %v250
        %v1634 = vpop.permute.xlu0 %1633
        %1637 = vset.pattern.permute.xlu0 0
        %1638 = vperm.xlu0 %1637, %v251
        %v1639 = vpop.permute.xlu0 %1638
        %1642 = vset.pattern.permute.xlu0 0
        %1643 = vperm.xlu0 %1642, %v252
        %v1644 = vpop.permute.xlu0 %1643
        %1647 = vset.pattern.permute.xlu0 0
        %1648 = vperm.xlu0 %1647, %v253
        %v1649 = vpop.permute.xlu0 %1648
        %1652 = vset.pattern.permute.xlu0 0
        %1653 = vperm.xlu0 %1652, %v254
        %v1654 = vpop.permute.xlu0 %1653
        %1657 = vset.pattern.permute.xlu0 0
        %1658 = vperm.xlu0 %1657, %v255
        %v1659 = vpop.permute.xlu0 %1658
        %1662 = vset.pattern.permute.xlu0 0
        %1663 = vperm.xlu0 %1662, %v256
        %v1664 = vpop.permute.xlu0 %1663
        %1667 = vset.pattern.permute.xlu0 0
        %1668 = vperm.xlu0 %1667, %v257
        %v1669 = vpop.permute.xlu0 %1668
        %v1671 = vadd.f32 %v1623, %v1634
        %v1672 = vadd.f32 %v1624, %v1639
        %v1673 = vadd.f32 %v1625, %v1644
        %v1674 = vadd.f32 %v1626, %v1649
        %v1675 = vadd.f32 %v1627, %v1654
        %v1676 = vadd.f32 %v1628, %v1659
        %v1677 = vadd.f32 %v1629, %v1664
        %v1678 = vadd.f32 %v1630, %v1669
        %v1679 = vmax.f32 %v1671, 0.0
        %v1680 = vmax.f32 %v1672, 0.0
        %v1681 = vmax.f32 %v1673, 0.0
        %v1682 = vmax.f32 %v1674, 0.0
        %v1683 = vmax.f32 %v1675, 0.0
        %v1684 = vmax.f32 %v1676, 0.0
        %v1685 = vmax.f32 %v1677, 0.0
        %v1686 = vmax.f32 %v1678, 0.0
        %1687 = vrot.lane.b32.xlu0 %v1679, 16
        %v1688 = vpop.permute.xlu0 %1687
        %v1689 = vsel %vm687, %v1688, %v1679
        %1690 = vrot.lane.b32.xlu0 %v1680, 16
        %v1691 = vpop.permute.xlu0 %1690
        %v1692 = vsel %vm687, %v1691, %v1680
        %1693 = vrot.lane.b32.xlu0 %v1681, 16
        %v1694 = vpop.permute.xlu0 %1693
        %v1695 = vsel %vm687, %v1694, %v1681
        %1696 = vrot.lane.b32.xlu0 %v1682, 16
        %v1697 = vpop.permute.xlu0 %1696
        %v1698 = vsel %vm687, %v1697, %v1682
        %1699 = vrot.lane.b32.xlu0 %v1683, 16
        %v1700 = vpop.permute.xlu0 %1699
        %v1701 = vsel %vm687, %v1700, %v1683
        %1702 = vrot.lane.b32.xlu0 %v1684, 16
        %v1703 = vpop.permute.xlu0 %1702
        %v1704 = vsel %vm687, %v1703, %v1684
        %1705 = vrot.lane.b32.xlu0 %v1685, 16
        %v1706 = vpop.permute.xlu0 %1705
        %v1707 = vsel %vm687, %v1706, %v1685
        %1708 = vrot.lane.b32.xlu0 %v1686, 16
        %v1709 = vpop.permute.xlu0 %1708
        %v1710 = vsel %vm687, %v1709, %v1686
        %1711 = vrot.lane.b32.xlu0 %v1689, 16
        %v1712 = vpop.permute.xlu0 %1711
        %1713 = vrot.lane.b32.xlu0 %v1692, 16
        %v1714 = vpop.permute.xlu0 %1713
        %1715 = vrot.lane.b32.xlu0 %v1695, 16
        %v1716 = vpop.permute.xlu0 %1715
        %1717 = vrot.lane.b32.xlu0 %v1698, 16
        %v1718 = vpop.permute.xlu0 %1717
        %1719 = vrot.lane.b32.xlu0 %v1701, 16
        %v1720 = vpop.permute.xlu0 %1719
        %1721 = vrot.lane.b32.xlu0 %v1704, 16
        %v1722 = vpop.permute.xlu0 %1721
        %1723 = vrot.lane.b32.xlu0 %v1707, 16
        %v1724 = vpop.permute.xlu0 %1723
        %1725 = vrot.lane.b32.xlu0 %v1710, 16
        %v1726 = vpop.permute.xlu0 %1725
        %v1727 = vsel %vm687, %v1712, %v1679
        %v1728 = vsel %vm687, %v1714, %v1680
        %v1729 = vsel %vm687, %v1716, %v1681
        %v1730 = vsel %vm687, %v1718, %v1682
        %v1731 = vsel %vm687, %v1720, %v1683
        %v1732 = vsel %vm687, %v1722, %v1684
        %v1733 = vsel %vm687, %v1724, %v1685
        %v1734 = vsel %vm687, %v1726, %v1686
        %1743 = vrot.lane.b32.xlu0 %v1727, 127
        %v1744 = vpop.permute.xlu0 %1743
        %1745 = vrot.lane.b32.xlu0 %v1728, 127
        %v1746 = vpop.permute.xlu0 %1745
        %1747 = vrot.lane.b32.xlu0 %v1729, 127
        %v1748 = vpop.permute.xlu0 %1747
        %1749 = vrot.lane.b32.xlu0 %v1730, 127
        %v1750 = vpop.permute.xlu0 %1749
        %1751 = vrot.lane.b32.xlu0 %v1731, 127
        %v1752 = vpop.permute.xlu0 %1751
        %1753 = vrot.lane.b32.xlu0 %v1732, 127
        %v1754 = vpop.permute.xlu0 %1753
        %1755 = vrot.lane.b32.xlu0 %v1733, 127
        %v1756 = vpop.permute.xlu0 %1755
        %1757 = vrot.lane.b32.xlu0 %v1734, 127
        %v1758 = vpop.permute.xlu0 %1757
        %v1767 = vmax.f32 %v1679, %v1744
        %v1768 = vmax.f32 %v1680, %v1746
        %v1769 = vmax.f32 %v1681, %v1748
        %v1770 = vmax.f32 %v1682, %v1750
        %v1771 = vmax.f32 %v1683, %v1752
        %v1772 = vmax.f32 %v1684, %v1754
        %v1773 = vmax.f32 %v1685, %v1756
        %v1774 = vmax.f32 %v1686, %v1758
        %v1775 = vpack.c.bf16 %v1768, %v1767
        %v1776 = vpack.c.bf16 %v1770, %v1769
        %v1777 = vpack.c.bf16 %v1772, %v1771
        %v1778 = vpack.c.bf16 %v1774, %v1773
        %vm1779 = vcmask 130048
        %v1781 = vsel %vm1779, %v1775, 0
        %v1784 = vsel %vm1779, %v1776, 0
        %v1787 = vsel %vm1779, %v1777, 0
        %v1790 = vsel %vm1779, %v1778, 0
        %1792 = vmatpush.bf16.msra.mxu0 0
        %1793 = vmatpush.bf16.msra.mxu0 0
        %1794 = vmatpush.bf16.msra.mxu0 0
        %1795 = vmatpush.bf16.msra.mxu0 0
        %1796 = vmatpush.bf16.msra.mxu0 0
        %1797 = vmatpush.bf16.msra.mxu0 0
        %1798 = vmatpush.bf16.msra.mxu0 0
        %1799 = vmatpush.bf16.msra.mxu0 %v288
        %1800 = vmatmul.bf16.gmra.mxu0 %v1781
        %v1801 = vpop.f32.mrf.mxu0
        %v1802 = vadd.f32 0.0, %v1801
        %v1803 = vpop.f32.mrf.mxu0
        %v1804 = vadd.f32 0.0, %v1803
        %1805 = vmatmul.bf16.gmra.mxu0 %v1784
        %v1806 = vpop.f32.mrf.mxu0
        %v1807 = vadd.f32 0.0, %v1806
        %v1808 = vpop.f32.mrf.mxu0
        %v1809 = vadd.f32 0.0, %v1808
        %1810 = vmatmul.bf16.gmra.mxu0 %v1787
        %v1811 = vpop.f32.mrf.mxu0
        %v1812 = vadd.f32 0.0, %v1811
        %v1813 = vpop.f32.mrf.mxu0
        %v1814 = vadd.f32 0.0, %v1813
        %1815 = vmatmul.bf16.gmra.mxu0 %v1790
        %v1816 = vpop.f32.mrf.mxu0
        %v1817 = vadd.f32 0.0, %v1816
        %v1818 = vpop.f32.mrf.mxu0
        %v1819 = vadd.f32 0.0, %v1818
        %1820 = vdwg.mxu0
        %s1821 = smul.u32 %s290, 64
        %s1822 = scalar_lea.vmem %s224, %s1821
        %vm1823 = vcmask 64512
        %1824 = vst.msk [vmem:[%s1822] sm:$0xff] %vm1823, %v1802
        %1825 = vst.msk [vmem:[%s1822 + $0x8] sm:$0xff] %vm1823, %v1804
        %1826 = vst.msk [vmem:[%s1822 + $0x10] sm:$0xff] %vm1823, %v1807
        %1827 = vst.msk [vmem:[%s1822 + $0x18] sm:$0xff] %vm1823, %v1809
        %1828 = vst.msk [vmem:[%s1822 + $0x20] sm:$0xff] %vm1823, %v1812
        %1829 = vst.msk [vmem:[%s1822 + $0x28] sm:$0xff] %vm1823, %v1814
        %1830 = vst.msk [vmem:[%s1822 + $0x30] sm:$0xff] %vm1823, %v1817
        %1831 = vst.msk [vmem:[%s1822 + $0x38] sm:$0xff] %vm1823, %v1819
      $region45: #{forward.10} parent=39 // loop_footer
        %s294 = sadd.s32 1, %s290
      $region46: #{forward.10} parent=39 // loop_footer_branch
        %289 = sbr.rel target = $region42
      $region47: #{forward.10} parent=39 // loop_exit
        _
      %p1832 = scmp.lt.s32.totalorder %s16, 1
      %s1833 = scalar_select %p1832, %s16, 1
      %s1834 = smul.addr %s1833, 64
      %s1835 = smul.addr %s1834, 8
      %s1836 = scalar_lea.vmem %s5, %s1835
      // Predicated region
      $region48: #{forward.10} parent=39 // pred_check
        %p1837 = pneg %p144
      $region49: #{forward.10} parent=39 // pred_check_branch
        %1839 = sbr.rel (%p1837) target = $region51
      $region50: #{forward.10} parent=39 // pred_region
        _
      $region51: #{forward.10} parent=39 // pred_fallthru
        _
    $region40: #{forward.10} parent=5 // pred_fallthru
      _
    %p1840 = scmp.le.s32.totalorder 2, %s11
    // Predicated region
    $region52: #{forward.10} parent=5 // pred_check
      %p1841 = pneg %p1840
    $region53: #{forward.10} parent=5 // pred_check_branch
      %1843 = sbr.rel (%p1841) target = $region55
    $region54: #{forward.10} parent=5 // pred_region
      %s1844 = ssub.s32 %s11, 2
      // Predicated region
      $region56: #{forward.10} parent=54 // pred_check
        %p1845 = pneg %p150
      $region57: #{forward.10} parent=54 // pred_check_branch
        %1847 = sbr.rel (%p1845) target = $region59
      $region58: #{forward.10} parent=54 // pred_region
        %p1848 = scmp.lt.s32.totalorder %s17, 1
        %s1849 = scalar_select %p1848, %s17, 1
        %s1850 = smul.addr %s1849, 64
        %s1851 = smul.addr %s1850, 8
        %s1852 = scalar_lea.vmem %s5, %s1851
      $region59: #{forward.10} parent=54 // pred_fallthru
        _
    $region55: #{forward.10} parent=5 // pred_fallthru
      _
  $region6: #{forward.10} parent=0 // loop_footer
    %s15 = sadd.s32 1, %s11
  $region7: #{forward.10} parent=0 // loop_footer_branch
    %10 = sbr.rel target = $region3
  $region8: #{forward.10} parent=0 // loop_exit
    _

// kernel: forward.11
$region0: #{forward.11}
  #allocation0 [shape = 'u32[]', space=smem, size = 0x4, offset = 0x4, fixed_abs, tag = 'smem constant byte address 0x4 - core index']
  #allocation1 [shape = 'u32[72,128]{1,0:T(1,128)}', space=vmem, size = 0x9000, scoped, tag = 'internal scratch']
  %s0 = inlined_call_operand.vmem [shape: f32[2,4096], index: 0, kind: input, shape index: {}]
  %s1 = inlined_call_operand.vmem [shape: bf16[4096,256], index: 1, kind: input, shape index: {}]
  %s2 = inlined_call_operand.vmem [shape: f32[1,256], index: 2, kind: input, shape index: {}]
  %s3 = inlined_call_operand.vmem [shape: bf16[256,64], index: 3, kind: input, shape index: {}]
  %s4 = inlined_call_operand.vmem [shape: f32[1,64], index: 4, kind: input, shape index: {}]
  %s5 = inlined_call_operand.hbm [shape: f32[2,64], index: 5, kind: output, shape index: {}]
  %s6 = sld [smem:[#allocation0]]
  $region30: #{forward.11} parent=0
    _
  %s8 = ssub.s32 1, %s6
  %s9 = scalar_select 0, %s8, %s6
  $region1: #{forward.11} parent=0
    #allocation2 [shape = 'u8[1024]{0}', space=vmem, size = 0x400, scoped, tag = 'output window, operand 0, single buffered']
    #allocation3 [shape = 's32[1]{0}', space=sflag, size = 0x4, scoped, tag = 'scoped memory for forward.11']
    %10 = vsyncpa [#allocation3], 0
    // Predicated region
    $region2: #{forward.11} parent=1 // pred_check
      _
    $region3: #{forward.11} parent=1 // pred_check_branch
      %12 = sbr.rel (0) target = $region5
    $region4: #{forward.11} parent=1 // pred_region
      _
    $region5: #{forward.11} parent=1 // pred_fallthru
      _
    // Predicated region
    $region6: #{forward.11} parent=1 // pred_check
      _
    $region7: #{forward.11} parent=1 // pred_check_branch
      %14 = sbr.rel (0) target = $region9
    $region8: #{forward.11} parent=1 // pred_region
      _
    $region9: #{forward.11} parent=1 // pred_fallthru
      _
    // Predicated region
    $region10: #{forward.11} parent=1 // pred_check
      _
    $region11: #{forward.11} parent=1 // pred_check_branch
      %16 = sbr.rel (0) target = $region13
    $region12: #{forward.11} parent=1 // pred_region
      _
    $region13: #{forward.11} parent=1 // pred_fallthru
      _
    // Predicated region
    $region14: #{forward.11} parent=1 // pred_check
      _
    $region15: #{forward.11} parent=1 // pred_check_branch
      %18 = sbr.rel (0) target = $region17
    $region16: #{forward.11} parent=1 // pred_region
      _
    $region17: #{forward.11} parent=1 // pred_fallthru
      _
    // Predicated region
    $region18: #{forward.11} parent=1 // pred_check
      _
    $region19: #{forward.11} parent=1 // pred_check_branch
      %20 = sbr.rel (0) target = $region21
    $region20: #{forward.11} parent=1 // pred_region
      _
    $region21: #{forward.11} parent=1 // pred_fallthru
      _
    %v21 = vld [vmem:[%s0] sm:$0xff]
    %v22 = vld [vmem:[%s0 + $0x8] sm:$0xff]
    %v23 = vld [vmem:[%s0 + $0x10] sm:$0xff]
    %v24 = vld [vmem:[%s0 + $0x18] sm:$0xff]
    %v25 = vld [vmem:[%s0 + $0x20] sm:$0xff]
    %v26 = vld [vmem:[%s0 + $0x28] sm:$0xff]
    %v27 = vld [vmem:[%s0 + $0x30] sm:$0xff]
    %v28 = vld [vmem:[%s0 + $0x38] sm:$0xff]
    %37 = vst [vmem:[#allocation1] ss:$4 sm:$0xff] %v21
    %s38 = scalar_lea.vmem [#allocation1], 32
    %39 = vst [vmem:[%s38] ss:$4 sm:$0xff] %v22
    %v40 = vld.sshfl [vmem:[#allocation1] sm:$0xff pattern:$0x73625140]
    %v41 = vld.sshfl [vmem:[#allocation1 + $0x8] sm:$0xff pattern:$0x73625140]
    %v42 = vld.sshfl [vmem:[#allocation1 + $0x10] sm:$0xff pattern:$0x73625140]
    %v43 = vld.sshfl [vmem:[#allocation1 + $0x18] sm:$0xff pattern:$0x73625140]
    %v44 = vld.sshfl [vmem:[#allocation1 + $0x20] sm:$0xff pattern:$0x73625140]
    %v45 = vld.sshfl [vmem:[#allocation1 + $0x28] sm:$0xff pattern:$0x73625140]
    %v46 = vld.sshfl [vmem:[#allocation1 + $0x30] sm:$0xff pattern:$0x73625140]
    %v47 = vld.sshfl [vmem:[#allocation1 + $0x38] sm:$0xff pattern:$0x73625140]
    %48 = vst [vmem:[#allocation1] ss:$4 sm:$0xff] %v23
    %49 = vst [vmem:[%s38] ss:$4 sm:$0xff] %v24
    %v50 = vld.sshfl [vmem:[#allocation1] sm:$0xff pattern:$0x73625140]
    %v51 = vld.sshfl [vmem:[#allocation1 + $0x8] sm:$0xff pattern:$0x73625140]
    %v52 = vld.sshfl [vmem:[#allocation1 + $0x10] sm:$0xff pattern:$0x73625140]
    %v53 = vld.sshfl [vmem:[#allocation1 + $0x18] sm:$0xff pattern:$0x73625140]
    %v54 = vld.sshfl [vmem:[#allocation1 + $0x20] sm:$0xff pattern:$0x73625140]
    %v55 = vld.sshfl [vmem:[#allocation1 + $0x28] sm:$0xff pattern:$0x73625140]
    %v56 = vld.sshfl [vmem:[#allocation1 + $0x30] sm:$0xff pattern:$0x73625140]
    %v57 = vld.sshfl [vmem:[#allocation1 + $0x38] sm:$0xff pattern:$0x73625140]
    %58 = vst [vmem:[#allocation1] ss:$4 sm:$0xff] %v25
    %59 = vst [vmem:[%s38] ss:$4 sm:$0xff] %v26
    %v60 = vld.sshfl [vmem:[#allocation1] sm:$0xff pattern:$0x73625140]
    %v61 = vld.sshfl [vmem:[#allocation1 + $0x8] sm:$0xff pattern:$0x73625140]
    %v62 = vld.sshfl [vmem:[#allocation1 + $0x10] sm:$0xff pattern:$0x73625140]
    %v63 = vld.sshfl [vmem:[#allocation1 + $0x18] sm:$0xff pattern:$0x73625140]
    %v64 = vld.sshfl [vmem:[#allocation1 + $0x20] sm:$0xff pattern:$0x73625140]
    %v65 = vld.sshfl [vmem:[#allocation1 + $0x28] sm:$0xff pattern:$0x73625140]
    %v66 = vld.sshfl [vmem:[#allocation1 + $0x30] sm:$0xff pattern:$0x73625140]
    %v67 = vld.sshfl [vmem:[#allocation1 + $0x38] sm:$0xff pattern:$0x73625140]
    %68 = vst [vmem:[#allocation1] ss:$4 sm:$0xff] %v27
    %69 = vst [vmem:[%s38] ss:$4 sm:$0xff] %v28
    %v70 = vld.sshfl [vmem:[#allocation1] sm:$0xff pattern:$0x73625140]
    %v71 = vld.sshfl [vmem:[#allocation1 + $0x8] sm:$0xff pattern:$0x73625140]
    %v72 = vld.sshfl [vmem:[#allocation1 + $0x10] sm:$0xff pattern:$0x73625140]
    %v73 = vld.sshfl [vmem:[#allocation1 + $0x18] sm:$0xff pattern:$0x73625140]
    %v74 = vld.sshfl [vmem:[#allocation1 + $0x20] sm:$0xff pattern:$0x73625140]
    %v75 = vld.sshfl [vmem:[#allocation1 + $0x28] sm:$0xff pattern:$0x73625140]
    %v76 = vld.sshfl [vmem:[#allocation1 + $0x30] sm:$0xff pattern:$0x73625140]
    %v77 = vld.sshfl [vmem:[#allocation1 + $0x38] sm:$0xff pattern:$0x73625140]
    %v110 = vpack.c.bf16 %v40, %v40
    %v111 = vpack.c.bf16 %v41, %v41
    %v112 = vpack.c.bf16 %v42, %v42
    %v113 = vpack.c.bf16 %v43, %v43
    %v114 = vpack.c.bf16 %v44, %v44
    %v115 = vpack.c.bf16 %v45, %v45
    %v116 = vpack.c.bf16 %v46, %v46
    %v117 = vpack.c.bf16 %v47, %v47
    %v118 = vpack.c.bf16 %v50, %v50
    %v119 = vpack.c.bf16 %v51, %v51
    %v120 = vpack.c.bf16 %v52, %v52
    %v121 = vpack.c.bf16 %v53, %v53
    %v122 = vpack.c.bf16 %v54, %v54
    %v123 = vpack.c.bf16 %v55, %v55
    %v124 = vpack.c.bf16 %v56, %v56
    %v125 = vpack.c.bf16 %v57, %v57
    %v126 = vpack.c.bf16 %v60, %v60
    %v127 = vpack.c.bf16 %v61, %v61
    %v128 = vpack.c.bf16 %v62, %v62
    %v129 = vpack.c.bf16 %v63, %v63
    %v130 = vpack.c.bf16 %v64, %v64
    %v131 = vpack.c.bf16 %v65, %v65
    %v132 = vpack.c.bf16 %v66, %v66
    %v133 = vpack.c.bf16 %v67, %v67
    %v134 = vpack.c.bf16 %v70, %v70
    %v135 = vpack.c.bf16 %v71, %v71
    %v136 = vpack.c.bf16 %v72, %v72
    %v137 = vpack.c.bf16 %v73, %v73
    %v138 = vpack.c.bf16 %v74, %v74
    %v139 = vpack.c.bf16 %v75, %v75
    %v140 = vpack.c.bf16 %v76, %v76
    %v141 = vpack.c.bf16 %v77, %v77
    %v142 = vld [vmem:[%s1] sm:$0xff]
    %v143 = vld [vmem:[%s1 + $0x8] sm:$0xff]
    %v144 = vld [vmem:[%s1 + $0x10] sm:$0xff]
    %v145 = vld [vmem:[%s1 + $0x18] sm:$0xff]
    %v146 = vld [vmem:[%s1 + $0x20] sm:$0xff]
    %v147 = vld [vmem:[%s1 + $0x28] sm:$0xff]
    %v148 = vld [vmem:[%s1 + $0x30] sm:$0xff]
    %v149 = vld [vmem:[%s1 + $0x38] sm:$0xff]
    %v150 = vld [vmem:[%s1 + $0x40] sm:$0xff]
    %v151 = vld [vmem:[%s1 + $0x48] sm:$0xff]
    %v152 = vld [vmem:[%s1 + $0x50] sm:$0xff]
    %v153 = vld [vmem:[%s1 + $0x58] sm:$0xff]
    %v154 = vld [vmem:[%s1 + $0x60] sm:$0xff]
    %v155 = vld [vmem:[%s1 + $0x68] sm:$0xff]
    %v156 = vld [vmem:[%s1 + $0x70] sm:$0xff]
    %v157 = vld [vmem:[%s1 + $0x78] sm:$0xff]
    %v158 = vld [vmem:[%s1 + $0x80] sm:$0xff]
    %v159 = vld [vmem:[%s1 + $0x88] sm:$0xff]
    %v160 = vld [vmem:[%s1 + $0x90] sm:$0xff]
    %v161 = vld [vmem:[%s1 + $0x98] sm:$0xff]
    %v162 = vld [vmem:[%s1 + $0xa0] sm:$0xff]
    %v163 = vld [vmem:[%s1 + $0xa8] sm:$0xff]
    %v164 = vld [vmem:[%s1 + $0xb0] sm:$0xff]
    %v165 = vld [vmem:[%s1 + $0xb8] sm:$0xff]
    %v166 = vld [vmem:[%s1 + $0xc0] sm:$0xff]
    %v167 = vld [vmem:[%s1 + $0xc8] sm:$0xff]
    %v168 = vld [vmem:[%s1 + $0xd0] sm:$0xff]
    %v169 = vld [vmem:[%s1 + $0xd8] sm:$0xff]
    %v170 = vld [vmem:[%s1 + $0xe0] sm:$0xff]
    %v171 = vld [vmem:[%s1 + $0xe8] sm:$0xff]
    %v172 = vld [vmem:[%s1 + $0xf0] sm:$0xff]
    %v173 = vld [vmem:[%s1 + $0xf8] sm:$0xff]
    %v174 = vld [vmem:[%s1 + $0x100] sm:$0xff]
    %v175 = vld [vmem:[%s1 + $0x108] sm:$0xff]
    %v176 = vld [vmem:[%s1 + $0x110] sm:$0xff]
    %v177 = vld [vmem:[%s1 + $0x118] sm:$0xff]
    %v178 = vld [vmem:[%s1 + $0x120] sm:$0xff]
    %v179 = vld [vmem:[%s1 + $0x128] sm:$0xff]
    %v180 = vld [vmem:[%s1 + $0x130] sm:$0xff]
    %v181 = vld [vmem:[%s1 + $0x138] sm:$0xff]
    %v182 = vld [vmem:[%s1 + $0x140] sm:$0xff]
    %v183 = vld [vmem:[%s1 + $0x148] sm:$0xff]
    %v184 = vld [vmem:[%s1 + $0x150] sm:$0xff]
    %v185 = vld [vmem:[%s1 + $0x158] sm:$0xff]
    %v186 = vld [vmem:[%s1 + $0x160] sm:$0xff]
    %v187 = vld [vmem:[%s1 + $0x168] sm:$0xff]
    %v188 = vld [vmem:[%s1 + $0x170] sm:$0xff]
    %v189 = vld [vmem:[%s1 + $0x178] sm:$0xff]
    %v190 = vld [vmem:[%s1 + $0x180] sm:$0xff]
    %v191 = vld [vmem:[%s1 + $0x188] sm:$0xff]
    %v192 = vld [vmem:[%s1 + $0x190] sm:$0xff]
    %v193 = vld [vmem:[%s1 + $0x198] sm:$0xff]
    %v194 = vld [vmem:[%s1 + $0x1a0] sm:$0xff]
    %v195 = vld [vmem:[%s1 + $0x1a8] sm:$0xff]
    %v196 = vld [vmem:[%s1 + $0x1b0] sm:$0xff]
    %v197 = vld [vmem:[%s1 + $0x1b8] sm:$0xff]
    %v198 = vld [vmem:[%s1 + $0x1c0] sm:$0xff]
    %v199 = vld [vmem:[%s1 + $0x1c8] sm:$0xff]
    %v200 = vld [vmem:[%s1 + $0x1d0] sm:$0xff]
    %v201 = vld [vmem:[%s1 + $0x1d8] sm:$0xff]
    %v202 = vld [vmem:[%s1 + $0x1e0] sm:$0xff]
    %v203 = vld [vmem:[%s1 + $0x1e8] sm:$0xff]
    %v204 = vld [vmem:[%s1 + $0x1f0] sm:$0xff]
    %v205 = vld [vmem:[%s1 + $0x1f8] sm:$0xff]
    %v206 = vld [vmem:[%s1 + $0x200] sm:$0xff]
    %v207 = vld [vmem:[%s1 + $0x208] sm:$0xff]
    %v208 = vld [vmem:[%s1 + $0x210] sm:$0xff]
    %v209 = vld [vmem:[%s1 + $0x218] sm:$0xff]
    %v210 = vld [vmem:[%s1 + $0x220] sm:$0xff]
    %v211 = vld [vmem:[%s1 + $0x228] sm:$0xff]
    %v212 = vld [vmem:[%s1 + $0x230] sm:$0xff]
    %v213 = vld [vmem:[%s1 + $0x238] sm:$0xff]
    %v214 = vld [vmem:[%s1 + $0x240] sm:$0xff]
    %v215 = vld [vmem:[%s1 + $0x248] sm:$0xff]
    %v216 = vld [vmem:[%s1 + $0x250] sm:$0xff]
    %v217 = vld [vmem:[%s1 + $0x258] sm:$0xff]
    %v218 = vld [vmem:[%s1 + $0x260] sm:$0xff]
    %v219 = vld [vmem:[%s1 + $0x268] sm:$0xff]
    %v220 = vld [vmem:[%s1 + $0x270] sm:$0xff]
    %v221 = vld [vmem:[%s1 + $0x278] sm:$0xff]
    %v222 = vld [vmem:[%s1 + $0x280] sm:$0xff]
    %v223 = vld [vmem:[%s1 + $0x288] sm:$0xff]
    %v224 = vld [vmem:[%s1 + $0x290] sm:$0xff]
    %v225 = vld [vmem:[%s1 + $0x298] sm:$0xff]
    %v226 = vld [vmem:[%s1 + $0x2a0] sm:$0xff]
    %v227 = vld [vmem:[%s1 + $0x2a8] sm:$0xff]
    %v228 = vld [vmem:[%s1 + $0x2b0] sm:$0xff]
    %v229 = vld [vmem:[%s1 + $0x2b8] sm:$0xff]
    %v230 = vld [vmem:[%s1 + $0x2c0] sm:$0xff]
    %v231 = vld [vmem:[%s1 + $0x2c8] sm:$0xff]
    %v232 = vld [vmem:[%s1 + $0x2d0] sm:$0xff]
    %v233 = vld [vmem:[%s1 + $0x2d8] sm:$0xff]
    %v234 = vld [vmem:[%s1 + $0x2e0] sm:$0xff]
    %v235 = vld [vmem:[%s1 + $0x2e8] sm:$0xff]
    %v236 = vld [vmem:[%s1 + $0x2f0] sm:$0xff]
    %v237 = vld [vmem:[%s1 + $0x2f8] sm:$0xff]
    %v238 = vld [vmem:[%s1 + $0x300] sm:$0xff]
    %v239 = vld [vmem:[%s1 + $0x308] sm:$0xff]
    %v240 = vld [vmem:[%s1 + $0x310] sm:$0xff]
    %v241 = vld [vmem:[%s1 + $0x318] sm:$0xff]
    %v242 = vld [vmem:[%s1 + $0x320] sm:$0xff]
    %v243 = vld [vmem:[%s1 + $0x328] sm:$0xff]
    %v244 = vld [vmem:[%s1 + $0x330] sm:$0xff]
    %v245 = vld [vmem:[%s1 + $0x338] sm:$0xff]
    %v246 = vld [vmem:[%s1 + $0x340] sm:$0xff]
    %v247 = vld [vmem:[%s1 + $0x348] sm:$0xff]
    %v248 = vld [vmem:[%s1 + $0x350] sm:$0xff]
    %v249 = vld [vmem:[%s1 + $0x358] sm:$0xff]
    %v250 = vld [vmem:[%s1 + $0x360] sm:$0xff]
    %v251 = vld [vmem:[%s1 + $0x368] sm:$0xff]
    %v252 = vld [vmem:[%s1 + $0x370] sm:$0xff]
    %v253 = vld [vmem:[%s1 + $0x378] sm:$0xff]
    %v254 = vld [vmem:[%s1 + $0x380] sm:$0xff]
    %v255 = vld [vmem:[%s1 + $0x388] sm:$0xff]
    %v256 = vld [vmem:[%s1 + $0x390] sm:$0xff]
    %v257 = vld [vmem:[%s1 + $0x398] sm:$0xff]
    %v258 = vld [vmem:[%s1 + $0x3a0] sm:$0xff]
    %v259 = vld [vmem:[%s1 + $0x3a8] sm:$0xff]
    %v260 = vld [vmem:[%s1 + $0x3b0] sm:$0xff]
    %v261 = vld [vmem:[%s1 + $0x3b8] sm:$0xff]
    %v262 = vld [vmem:[%s1 + $0x3c0] sm:$0xff]
    %v263 = vld [vmem:[%s1 + $0x3c8] sm:$0xff]
    %v264 = vld [vmem:[%s1 + $0x3d0] sm:$0xff]
    %v265 = vld [vmem:[%s1 + $0x3d8] sm:$0xff]
    %v266 = vld [vmem:[%s1 + $0x3e0] sm:$0xff]
    %v267 = vld [vmem:[%s1 + $0x3e8] sm:$0xff]
    %v268 = vld [vmem:[%s1 + $0x3f0] sm:$0xff]
    %v269 = vld [vmem:[%s1 + $0x3f8] sm:$0xff]
    %v270 = vld [vmem:[%s1 + $0x400] sm:$0xff]
    %v271 = vld [vmem:[%s1 + $0x408] sm:$0xff]
    %v272 = vld [vmem:[%s1 + $0x410] sm:$0xff]
    %v273 = vld [vmem:[%s1 + $0x418] sm:$0xff]
    %v274 = vld [vmem:[%s1 + $0x420] sm:$0xff]
    %v275 = vld [vmem:[%s1 + $0x428] sm:$0xff]
    %v276 = vld [vmem:[%s1 + $0x430] sm:$0xff]
    %v277 = vld [vmem:[%s1 + $0x438] sm:$0xff]
    %v278 = vld [vmem:[%s1 + $0x440] sm:$0xff]
    %v279 = vld [vmem:[%s1 + $0x448] sm:$0xff]
    %v280 = vld [vmem:[%s1 + $0x450] sm:$0xff]
    %v281 = vld [vmem:[%s1 + $0x458] sm:$0xff]
    %v282 = vld [vmem:[%s1 + $0x460] sm:$0xff]
    %v283 = vld [vmem:[%s1 + $0x468] sm:$0xff]
    %v284 = vld [vmem:[%s1 + $0x470] sm:$0xff]
    %v285 = vld [vmem:[%s1 + $0x478] sm:$0xff]
    %v286 = vld [vmem:[%s1 + $0x480] sm:$0xff]
    %v287 = vld [vmem:[%s1 + $0x488] sm:$0xff]
    %v288 = vld [vmem:[%s1 + $0x490] sm:$0xff]
    %v289 = vld [vmem:[%s1 + $0x498] sm:$0xff]
    %v290 = vld [vmem:[%s1 + $0x4a0] sm:$0xff]
    %v291 = vld [vmem:[%s1 + $0x4a8] sm:$0xff]
    %v292 = vld [vmem:[%s1 + $0x4b0] sm:$0xff]
    %v293 = vld [vmem:[%s1 + $0x4b8] sm:$0xff]
    %v294 = vld [vmem:[%s1 + $0x4c0] sm:$0xff]
    %v295 = vld [vmem:[%s1 + $0x4c8] sm:$0xff]
    %v296 = vld [vmem:[%s1 + $0x4d0] sm:$0xff]
    %v297 = vld [vmem:[%s1 + $0x4d8] sm:$0xff]
    %v298 = vld [vmem:[%s1 + $0x4e0] sm:$0xff]
    %v299 = vld [vmem:[%s1 + $0x4e8] sm:$0xff]
    %v300 = vld [vmem:[%s1 + $0x4f0] sm:$0xff]
    %v301 = vld [vmem:[%s1 + $0x4f8] sm:$0xff]
    %v302 = vld [vmem:[%s1 + $0x500] sm:$0xff]
    %v303 = vld [vmem:[%s1 + $0x508] sm:$0xff]
    %v304 = vld [vmem:[%s1 + $0x510] sm:$0xff]
    %v305 = vld [vmem:[%s1 + $0x518] sm:$0xff]
    %v306 = vld [vmem:[%s1 + $0x520] sm:$0xff]
    %v307 = vld [vmem:[%s1 + $0x528] sm:$0xff]
    %v308 = vld [vmem:[%s1 + $0x530] sm:$0xff]
    %v309 = vld [vmem:[%s1 + $0x538] sm:$0xff]
    %v310 = vld [vmem:[%s1 + $0x540] sm:$0xff]
    %v311 = vld [vmem:[%s1 + $0x548] sm:$0xff]
    %v312 = vld [vmem:[%s1 + $0x550] sm:$0xff]
    %v313 = vld [vmem:[%s1 + $0x558] sm:$0xff]
    %v314 = vld [vmem:[%s1 + $0x560] sm:$0xff]
    %v315 = vld [vmem:[%s1 + $0x568] sm:$0xff]
    %v316 = vld [vmem:[%s1 + $0x570] sm:$0xff]
    %v317 = vld [vmem:[%s1 + $0x578] sm:$0xff]
    %v318 = vld [vmem:[%s1 + $0x580] sm:$0xff]
    %v319 = vld [vmem:[%s1 + $0x588] sm:$0xff]
    %v320 = vld [vmem:[%s1 + $0x590] sm:$0xff]
    %v321 = vld [vmem:[%s1 + $0x598] sm:$0xff]
    %v322 = vld [vmem:[%s1 + $0x5a0] sm:$0xff]
    %v323 = vld [vmem:[%s1 + $0x5a8] sm:$0xff]
    %v324 = vld [vmem:[%s1 + $0x5b0] sm:$0xff]
    %v325 = vld [vmem:[%s1 + $0x5b8] sm:$0xff]
    %v326 = vld [vmem:[%s1 + $0x5c0] sm:$0xff]
    %v327 = vld [vmem:[%s1 + $0x5c8] sm:$0xff]
    %v328 = vld [vmem:[%s1 + $0x5d0] sm:$0xff]
    %v329 = vld [vmem:[%s1 + $0x5d8] sm:$0xff]
    %v330 = vld [vmem:[%s1 + $0x5e0] sm:$0xff]
    %v331 = vld [vmem:[%s1 + $0x5e8] sm:$0xff]
    %v332 = vld [vmem:[%s1 + $0x5f0] sm:$0xff]
    %v333 = vld [vmem:[%s1 + $0x5f8] sm:$0xff]
    %v334 = vld [vmem:[%s1 + $0x600] sm:$0xff]
    %v335 = vld [vmem:[%s1 + $0x608] sm:$0xff]
    %v336 = vld [vmem:[%s1 + $0x610] sm:$0xff]
    %v337 = vld [vmem:[%s1 + $0x618] sm:$0xff]
    %v338 = vld [vmem:[%s1 + $0x620] sm:$0xff]
    %v339 = vld [vmem:[%s1 + $0x628] sm:$0xff]
    %v340 = vld [vmem:[%s1 + $0x630] sm:$0xff]
    %v341 = vld [vmem:[%s1 + $0x638] sm:$0xff]
    %v342 = vld [vmem:[%s1 + $0x640] sm:$0xff]
    %v343 = vld [vmem:[%s1 + $0x648] sm:$0xff]
    %v344 = vld [vmem:[%s1 + $0x650] sm:$0xff]
    %v345 = vld [vmem:[%s1 + $0x658] sm:$0xff]
    %v346 = vld [vmem:[%s1 + $0x660] sm:$0xff]
    %v347 = vld [vmem:[%s1 + $0x668] sm:$0xff]
    %v348 = vld [vmem:[%s1 + $0x670] sm:$0xff]
    %v349 = vld [vmem:[%s1 + $0x678] sm:$0xff]
    %v350 = vld [vmem:[%s1 + $0x680] sm:$0xff]
    %v351 = vld [vmem:[%s1 + $0x688] sm:$0xff]
    %v352 = vld [vmem:[%s1 + $0x690] sm:$0xff]
    %v353 = vld [vmem:[%s1 + $0x698] sm:$0xff]
    %v354 = vld [vmem:[%s1 + $0x6a0] sm:$0xff]
    %v355 = vld [vmem:[%s1 + $0x6a8] sm:$0xff]
    %v356 = vld [vmem:[%s1 + $0x6b0] sm:$0xff]
    %v357 = vld [vmem:[%s1 + $0x6b8] sm:$0xff]
    %v358 = vld [vmem:[%s1 + $0x6c0] sm:$0xff]
    %v359 = vld [vmem:[%s1 + $0x6c8] sm:$0xff]
    %v360 = vld [vmem:[%s1 + $0x6d0] sm:$0xff]
    %v361 = vld [vmem:[%s1 + $0x6d8] sm:$0xff]
    %v362 = vld [vmem:[%s1 + $0x6e0] sm:$0xff]
    %v363 = vld [vmem:[%s1 + $0x6e8] sm:$0xff]
    %v364 = vld [vmem:[%s1 + $0x6f0] sm:$0xff]
    %v365 = vld [vmem:[%s1 + $0x6f8] sm:$0xff]
    %v366 = vld [vmem:[%s1 + $0x700] sm:$0xff]
    %v367 = vld [vmem:[%s1 + $0x708] sm:$0xff]
    %v368 = vld [vmem:[%s1 + $0x710] sm:$0xff]
    %v369 = vld [vmem:[%s1 + $0x718] sm:$0xff]
    %v370 = vld [vmem:[%s1 + $0x720] sm:$0xff]
    %v371 = vld [vmem:[%s1 + $0x728] sm:$0xff]
    %v372 = vld [vmem:[%s1 + $0x730] sm:$0xff]
    %v373 = vld [vmem:[%s1 + $0x738] sm:$0xff]
    %v374 = vld [vmem:[%s1 + $0x740] sm:$0xff]
    %v375 = vld [vmem:[%s1 + $0x748] sm:$0xff]
    %v376 = vld [vmem:[%s1 + $0x750] sm:$0xff]
    %v377 = vld [vmem:[%s1 + $0x758] sm:$0xff]
    %v378 = vld [vmem:[%s1 + $0x760] sm:$0xff]
    %v379 = vld [vmem:[%s1 + $0x768] sm:$0xff]
    %v380 = vld [vmem:[%s1 + $0x770] sm:$0xff]
    %v381 = vld [vmem:[%s1 + $0x778] sm:$0xff]
    %v382 = vld [vmem:[%s1 + $0x780] sm:$0xff]
    %v383 = vld [vmem:[%s1 + $0x788] sm:$0xff]
    %v384 = vld [vmem:[%s1 + $0x790] sm:$0xff]
    %v385 = vld [vmem:[%s1 + $0x798] sm:$0xff]
    %v386 = vld [vmem:[%s1 + $0x7a0] sm:$0xff]
    %v387 = vld [vmem:[%s1 + $0x7a8] sm:$0xff]
    %v388 = vld [vmem:[%s1 + $0x7b0] sm:$0xff]
    %v389 = vld [vmem:[%s1 + $0x7b8] sm:$0xff]
    %v390 = vld [vmem:[%s1 + $0x7c0] sm:$0xff]
    %v391 = vld [vmem:[%s1 + $0x7c8] sm:$0xff]
    %v392 = vld [vmem:[%s1 + $0x7d0] sm:$0xff]
    %v393 = vld [vmem:[%s1 + $0x7d8] sm:$0xff]
    %v394 = vld [vmem:[%s1 + $0x7e0] sm:$0xff]
    %v395 = vld [vmem:[%s1 + $0x7e8] sm:$0xff]
    %v396 = vld [vmem:[%s1 + $0x7f0] sm:$0xff]
    %v397 = vld [vmem:[%s1 + $0x7f8] sm:$0xff]
    %v398 = vld [vmem:[%s1 + $0x800] sm:$0xff]
    %v399 = vld [vmem:[%s1 + $0x808] sm:$0xff]
    %v400 = vld [vmem:[%s1 + $0x810] sm:$0xff]
    %v401 = vld [vmem:[%s1 + $0x818] sm:$0xff]
    %v402 = vld [vmem:[%s1 + $0x820] sm:$0xff]
    %v403 = vld [vmem:[%s1 + $0x828] sm:$0xff]
    %v404 = vld [vmem:[%s1 + $0x830] sm:$0xff]
    %v405 = vld [vmem:[%s1 + $0x838] sm:$0xff]
    %v406 = vld [vmem:[%s1 + $0x840] sm:$0xff]
    %v407 = vld [vmem:[%s1 + $0x848] sm:$0xff]
    %v408 = vld [vmem:[%s1 + $0x850] sm:$0xff]
    %v409 = vld [vmem:[%s1 + $0x858] sm:$0xff]
    %v410 = vld [vmem:[%s1 + $0x860] sm:$0xff]
    %v411 = vld [vmem:[%s1 + $0x868] sm:$0xff]
    %v412 = vld [vmem:[%s1 + $0x870] sm:$0xff]
    %v413 = vld [vmem:[%s1 + $0x878] sm:$0xff]
    %v414 = vld [vmem:[%s1 + $0x880] sm:$0xff]
    %v415 = vld [vmem:[%s1 + $0x888] sm:$0xff]
    %v416 = vld [vmem:[%s1 + $0x890] sm:$0xff]
    %v417 = vld [vmem:[%s1 + $0x898] sm:$0xff]
    %v418 = vld [vmem:[%s1 + $0x8a0] sm:$0xff]
    %v419 = vld [vmem:[%s1 + $0x8a8] sm:$0xff]
    %v420 = vld [vmem:[%s1 + $0x8b0] sm:$0xff]
    %v421 = vld [vmem:[%s1 + $0x8b8] sm:$0xff]
    %v422 = vld [vmem:[%s1 + $0x8c0] sm:$0xff]
    %v423 = vld [vmem:[%s1 + $0x8c8] sm:$0xff]
    %v424 = vld [vmem:[%s1 + $0x8d0] sm:$0xff]
    %v425 = vld [vmem:[%s1 + $0x8d8] sm:$0xff]
    %v426 = vld [vmem:[%s1 + $0x8e0] sm:$0xff]
    %v427 = vld [vmem:[%s1 + $0x8e8] sm:$0xff]
    %v428 = vld [vmem:[%s1 + $0x8f0] sm:$0xff]
    %v429 = vld [vmem:[%s1 + $0x8f8] sm:$0xff]
    %v430 = vld [vmem:[%s1 + $0x900] sm:$0xff]
    %v431 = vld [vmem:[%s1 + $0x908] sm:$0xff]
    %v432 = vld [vmem:[%s1 + $0x910] sm:$0xff]
    %v433 = vld [vmem:[%s1 + $0x918] sm:$0xff]
    %v434 = vld [vmem:[%s1 + $0x920] sm:$0xff]
    %v435 = vld [vmem:[%s1 + $0x928] sm:$0xff]
    %v436 = vld [vmem:[%s1 + $0x930] sm:$0xff]
    %v437 = vld [vmem:[%s1 + $0x938] sm:$0xff]
    %v438 = vld [vmem:[%s1 + $0x940] sm:$0xff]
    %v439 = vld [vmem:[%s1 + $0x948] sm:$0xff]
    %v440 = vld [vmem:[%s1 + $0x950] sm:$0xff]
    %v441 = vld [vmem:[%s1 + $0x958] sm:$0xff]
    %v442 = vld [vmem:[%s1 + $0x960] sm:$0xff]
    %v443 = vld [vmem:[%s1 + $0x968] sm:$0xff]
    %v444 = vld [vmem:[%s1 + $0x970] sm:$0xff]
    %v445 = vld [vmem:[%s1 + $0x978] sm:$0xff]
    %v446 = vld [vmem:[%s1 + $0x980] sm:$0xff]
    %v447 = vld [vmem:[%s1 + $0x988] sm:$0xff]
    %v448 = vld [vmem:[%s1 + $0x990] sm:$0xff]
    %v449 = vld [vmem:[%s1 + $0x998] sm:$0xff]
    %v450 = vld [vmem:[%s1 + $0x9a0] sm:$0xff]
    %v451 = vld [vmem:[%s1 + $0x9a8] sm:$0xff]
    %v452 = vld [vmem:[%s1 + $0x9b0] sm:$0xff]
    %v453 = vld [vmem:[%s1 + $0x9b8] sm:$0xff]
    %v454 = vld [vmem:[%s1 + $0x9c0] sm:$0xff]
    %v455 = vld [vmem:[%s1 + $0x9c8] sm:$0xff]
    %v456 = vld [vmem:[%s1 + $0x9d0] sm:$0xff]
    %v457 = vld [vmem:[%s1 + $0x9d8] sm:$0xff]
    %v458 = vld [vmem:[%s1 + $0x9e0] sm:$0xff]
    %v459 = vld [vmem:[%s1 + $0x9e8] sm:$0xff]
    %v460 = vld [vmem:[%s1 + $0x9f0] sm:$0xff]
    %v461 = vld [vmem:[%s1 + $0x9f8] sm:$0xff]
    %v462 = vld [vmem:[%s1 + $0xa00] sm:$0xff]
    %v463 = vld [vmem:[%s1 + $0xa08] sm:$0xff]
    %v464 = vld [vmem:[%s1 + $0xa10] sm:$0xff]
    %v465 = vld [vmem:[%s1 + $0xa18] sm:$0xff]
    %v466 = vld [vmem:[%s1 + $0xa20] sm:$0xff]
    %v467 = vld [vmem:[%s1 + $0xa28] sm:$0xff]
    %v468 = vld [vmem:[%s1 + $0xa30] sm:$0xff]
    %v469 = vld [vmem:[%s1 + $0xa38] sm:$0xff]
    %v470 = vld [vmem:[%s1 + $0xa40] sm:$0xff]
    %v471 = vld [vmem:[%s1 + $0xa48] sm:$0xff]
    %v472 = vld [vmem:[%s1 + $0xa50] sm:$0xff]
    %v473 = vld [vmem:[%s1 + $0xa58] sm:$0xff]
    %v474 = vld [vmem:[%s1 + $0xa60] sm:$0xff]
    %v475 = vld [vmem:[%s1 + $0xa68] sm:$0xff]
    %v476 = vld [vmem:[%s1 + $0xa70] sm:$0xff]
    %v477 = vld [vmem:[%s1 + $0xa78] sm:$0xff]
    %v478 = vld [vmem:[%s1 + $0xa80] sm:$0xff]
    %v479 = vld [vmem:[%s1 + $0xa88] sm:$0xff]
    %v480 = vld [vmem:[%s1 + $0xa90] sm:$0xff]
    %v481 = vld [vmem:[%s1 + $0xa98] sm:$0xff]
    %v482 = vld [vmem:[%s1 + $0xaa0] sm:$0xff]
    %v483 = vld [vmem:[%s1 + $0xaa8] sm:$0xff]
    %v484 = vld [vmem:[%s1 + $0xab0] sm:$0xff]
    %v485 = vld [vmem:[%s1 + $0xab8] sm:$0xff]
    %v486 = vld [vmem:[%s1 + $0xac0] sm:$0xff]
    %v487 = vld [vmem:[%s1 + $0xac8] sm:$0xff]
    %v488 = vld [vmem:[%s1 + $0xad0] sm:$0xff]
    %v489 = vld [vmem:[%s1 + $0xad8] sm:$0xff]
    %v490 = vld [vmem:[%s1 + $0xae0] sm:$0xff]
    %v491 = vld [vmem:[%s1 + $0xae8] sm:$0xff]
    %v492 = vld [vmem:[%s1 + $0xaf0] sm:$0xff]
    %v493 = vld [vmem:[%s1 + $0xaf8] sm:$0xff]
    %v494 = vld [vmem:[%s1 + $0xb00] sm:$0xff]
    %v495 = vld [vmem:[%s1 + $0xb08] sm:$0xff]
    %v496 = vld [vmem:[%s1 + $0xb10] sm:$0xff]
    %v497 = vld [vmem:[%s1 + $0xb18] sm:$0xff]
    %v498 = vld [vmem:[%s1 + $0xb20] sm:$0xff]
    %v499 = vld [vmem:[%s1 + $0xb28] sm:$0xff]
    %v500 = vld [vmem:[%s1 + $0xb30] sm:$0xff]
    %v501 = vld [vmem:[%s1 + $0xb38] sm:$0xff]
    %v502 = vld [vmem:[%s1 + $0xb40] sm:$0xff]
    %v503 = vld [vmem:[%s1 + $0xb48] sm:$0xff]
    %v504 = vld [vmem:[%s1 + $0xb50] sm:$0xff]
    %v505 = vld [vmem:[%s1 + $0xb58] sm:$0xff]
    %v506 = vld [vmem:[%s1 + $0xb60] sm:$0xff]
    %v507 = vld [vmem:[%s1 + $0xb68] sm:$0xff]
    %v508 = vld [vmem:[%s1 + $0xb70] sm:$0xff]
    %v509 = vld [vmem:[%s1 + $0xb78] sm:$0xff]
    %v510 = vld [vmem:[%s1 + $0xb80] sm:$0xff]
    %v511 = vld [vmem:[%s1 + $0xb88] sm:$0xff]
    %v512 = vld [vmem:[%s1 + $0xb90] sm:$0xff]
    %v513 = vld [vmem:[%s1 + $0xb98] sm:$0xff]
    %v514 = vld [vmem:[%s1 + $0xba0] sm:$0xff]
    %v515 = vld [vmem:[%s1 + $0xba8] sm:$0xff]
    %v516 = vld [vmem:[%s1 + $0xbb0] sm:$0xff]
    %v517 = vld [vmem:[%s1 + $0xbb8] sm:$0xff]
    %v518 = vld [vmem:[%s1 + $0xbc0] sm:$0xff]
    %v519 = vld [vmem:[%s1 + $0xbc8] sm:$0xff]
    %v520 = vld [vmem:[%s1 + $0xbd0] sm:$0xff]
    %v521 = vld [vmem:[%s1 + $0xbd8] sm:$0xff]
    %v522 = vld [vmem:[%s1 + $0xbe0] sm:$0xff]
    %v523 = vld [vmem:[%s1 + $0xbe8] sm:$0xff]
    %v524 = vld [vmem:[%s1 + $0xbf0] sm:$0xff]
    %v525 = vld [vmem:[%s1 + $0xbf8] sm:$0xff]
    %v526 = vld [vmem:[%s1 + $0xc00] sm:$0xff]
    %v527 = vld [vmem:[%s1 + $0xc08] sm:$0xff]
    %v528 = vld [vmem:[%s1 + $0xc10] sm:$0xff]
    %v529 = vld [vmem:[%s1 + $0xc18] sm:$0xff]
    %v530 = vld [vmem:[%s1 + $0xc20] sm:$0xff]
    %v531 = vld [vmem:[%s1 + $0xc28] sm:$0xff]
    %v532 = vld [vmem:[%s1 + $0xc30] sm:$0xff]
    %v533 = vld [vmem:[%s1 + $0xc38] sm:$0xff]
    %v534 = vld [vmem:[%s1 + $0xc40] sm:$0xff]
    %v535 = vld [vmem:[%s1 + $0xc48] sm:$0xff]
    %v536 = vld [vmem:[%s1 + $0xc50] sm:$0xff]
    %v537 = vld [vmem:[%s1 + $0xc58] sm:$0xff]
    %v538 = vld [vmem:[%s1 + $0xc60] sm:$0xff]
    %v539 = vld [vmem:[%s1 + $0xc68] sm:$0xff]
    %v540 = vld [vmem:[%s1 + $0xc70] sm:$0xff]
    %v541 = vld [vmem:[%s1 + $0xc78] sm:$0xff]
    %v542 = vld [vmem:[%s1 + $0xc80] sm:$0xff]
    %v543 = vld [vmem:[%s1 + $0xc88] sm:$0xff]
    %v544 = vld [vmem:[%s1 + $0xc90] sm:$0xff]
    %v545 = vld [vmem:[%s1 + $0xc98] sm:$0xff]
    %v546 = vld [vmem:[%s1 + $0xca0] sm:$0xff]
    %v547 = vld [vmem:[%s1 + $0xca8] sm:$0xff]
    %v548 = vld [vmem:[%s1 + $0xcb0] sm:$0xff]
    %v549 = vld [vmem:[%s1 + $0xcb8] sm:$0xff]
    %v550 = vld [vmem:[%s1 + $0xcc0] sm:$0xff]
    %v551 = vld [vmem:[%s1 + $0xcc8] sm:$0xff]
    %v552 = vld [vmem:[%s1 + $0xcd0] sm:$0xff]
    %v553 = vld [vmem:[%s1 + $0xcd8] sm:$0xff]
    %v554 = vld [vmem:[%s1 + $0xce0] sm:$0xff]
    %v555 = vld [vmem:[%s1 + $0xce8] sm:$0xff]
    %v556 = vld [vmem:[%s1 + $0xcf0] sm:$0xff]
    %v557 = vld [vmem:[%s1 + $0xcf8] sm:$0xff]
    %v558 = vld [vmem:[%s1 + $0xd00] sm:$0xff]
    %v559 = vld [vmem:[%s1 + $0xd08] sm:$0xff]
    %v560 = vld [vmem:[%s1 + $0xd10] sm:$0xff]
    %v561 = vld [vmem:[%s1 + $0xd18] sm:$0xff]
    %v562 = vld [vmem:[%s1 + $0xd20] sm:$0xff]
    %v563 = vld [vmem:[%s1 + $0xd28] sm:$0xff]
    %v564 = vld [vmem:[%s1 + $0xd30] sm:$0xff]
    %v565 = vld [vmem:[%s1 + $0xd38] sm:$0xff]
    %v566 = vld [vmem:[%s1 + $0xd40] sm:$0xff]
    %v567 = vld [vmem:[%s1 + $0xd48] sm:$0xff]
    %v568 = vld [vmem:[%s1 + $0xd50] sm:$0xff]
    %v569 = vld [vmem:[%s1 + $0xd58] sm:$0xff]
    %v570 = vld [vmem:[%s1 + $0xd60] sm:$0xff]
    %v571 = vld [vmem:[%s1 + $0xd68] sm:$0xff]
    %v572 = vld [vmem:[%s1 + $0xd70] sm:$0xff]
    %v573 = vld [vmem:[%s1 + $0xd78] sm:$0xff]
    %v574 = vld [vmem:[%s1 + $0xd80] sm:$0xff]
    %v575 = vld [vmem:[%s1 + $0xd88] sm:$0xff]
    %v576 = vld [vmem:[%s1 + $0xd90] sm:$0xff]
    %v577 = vld [vmem:[%s1 + $0xd98] sm:$0xff]
    %v578 = vld [vmem:[%s1 + $0xda0] sm:$0xff]
    %v579 = vld [vmem:[%s1 + $0xda8] sm:$0xff]
    %v580 = vld [vmem:[%s1 + $0xdb0] sm:$0xff]
    %v581 = vld [vmem:[%s1 + $0xdb8] sm:$0xff]
    %v582 = vld [vmem:[%s1 + $0xdc0] sm:$0xff]
    %v583 = vld [vmem:[%s1 + $0xdc8] sm:$0xff]
    %v584 = vld [vmem:[%s1 + $0xdd0] sm:$0xff]
    %v585 = vld [vmem:[%s1 + $0xdd8] sm:$0xff]
    %v586 = vld [vmem:[%s1 + $0xde0] sm:$0xff]
    %v587 = vld [vmem:[%s1 + $0xde8] sm:$0xff]
    %v588 = vld [vmem:[%s1 + $0xdf0] sm:$0xff]
    %v589 = vld [vmem:[%s1 + $0xdf8] sm:$0xff]
    %v590 = vld [vmem:[%s1 + $0xe00] sm:$0xff]
    %v591 = vld [vmem:[%s1 + $0xe08] sm:$0xff]
    %v592 = vld [vmem:[%s1 + $0xe10] sm:$0xff]
    %v593 = vld [vmem:[%s1 + $0xe18] sm:$0xff]
    %v594 = vld [vmem:[%s1 + $0xe20] sm:$0xff]
    %v595 = vld [vmem:[%s1 + $0xe28] sm:$0xff]
    %v596 = vld [vmem:[%s1 + $0xe30] sm:$0xff]
    %v597 = vld [vmem:[%s1 + $0xe38] sm:$0xff]
    %v598 = vld [vmem:[%s1 + $0xe40] sm:$0xff]
    %v599 = vld [vmem:[%s1 + $0xe48] sm:$0xff]
    %v600 = vld [vmem:[%s1 + $0xe50] sm:$0xff]
    %v601 = vld [vmem:[%s1 + $0xe58] sm:$0xff]
    %v602 = vld [vmem:[%s1 + $0xe60] sm:$0xff]
    %v603 = vld [vmem:[%s1 + $0xe68] sm:$0xff]
    %v604 = vld [vmem:[%s1 + $0xe70] sm:$0xff]
    %v605 = vld [vmem:[%s1 + $0xe78] sm:$0xff]
    %v606 = vld [vmem:[%s1 + $0xe80] sm:$0xff]
    %v607 = vld [vmem:[%s1 + $0xe88] sm:$0xff]
    %v608 = vld [vmem:[%s1 + $0xe90] sm:$0xff]
    %v609 = vld [vmem:[%s1 + $0xe98] sm:$0xff]
    %v610 = vld [vmem:[%s1 + $0xea0] sm:$0xff]
    %v611 = vld [vmem:[%s1 + $0xea8] sm:$0xff]
    %v612 = vld [vmem:[%s1 + $0xeb0] sm:$0xff]
    %v613 = vld [vmem:[%s1 + $0xeb8] sm:$0xff]
    %v614 = vld [vmem:[%s1 + $0xec0] sm:$0xff]
    %v615 = vld [vmem:[%s1 + $0xec8] sm:$0xff]
    %v616 = vld [vmem:[%s1 + $0xed0] sm:$0xff]
    %v617 = vld [vmem:[%s1 + $0xed8] sm:$0xff]
    %v618 = vld [vmem:[%s1 + $0xee0] sm:$0xff]
    %v619 = vld [vmem:[%s1 + $0xee8] sm:$0xff]
    %v620 = vld [vmem:[%s1 + $0xef0] sm:$0xff]
    %v621 = vld [vmem:[%s1 + $0xef8] sm:$0xff]
    %v622 = vld [vmem:[%s1 + $0xf00] sm:$0xff]
    %v623 = vld [vmem:[%s1 + $0xf08] sm:$0xff]
    %v624 = vld [vmem:[%s1 + $0xf10] sm:$0xff]
    %v625 = vld [vmem:[%s1 + $0xf18] sm:$0xff]
    %v626 = vld [vmem:[%s1 + $0xf20] sm:$0xff]
    %v627 = vld [vmem:[%s1 + $0xf28] sm:$0xff]
    %v628 = vld [vmem:[%s1 + $0xf30] sm:$0xff]
    %v629 = vld [vmem:[%s1 + $0xf38] sm:$0xff]
    %v630 = vld [vmem:[%s1 + $0xf40] sm:$0xff]
    %v631 = vld [vmem:[%s1 + $0xf48] sm:$0xff]
    %v632 = vld [vmem:[%s1 + $0xf50] sm:$0xff]
    %v633 = vld [vmem:[%s1 + $0xf58] sm:$0xff]
    %v634 = vld [vmem:[%s1 + $0xf60] sm:$0xff]
    %v635 = vld [vmem:[%s1 + $0xf68] sm:$0xff]
    %v636 = vld [vmem:[%s1 + $0xf70] sm:$0xff]
    %v637 = vld [vmem:[%s1 + $0xf78] sm:$0xff]
    %v638 = vld [vmem:[%s1 + $0xf80] sm:$0xff]
    %v639 = vld [vmem:[%s1 + $0xf88] sm:$0xff]
    %v640 = vld [vmem:[%s1 + $0xf90] sm:$0xff]
    %v641 = vld [vmem:[%s1 + $0xf98] sm:$0xff]
    %v642 = vld [vmem:[%s1 + $0xfa0] sm:$0xff]
    %v643 = vld [vmem:[%s1 + $0xfa8] sm:$0xff]
    %v644 = vld [vmem:[%s1 + $0xfb0] sm:$0xff]
    %v645 = vld [vmem:[%s1 + $0xfb8] sm:$0xff]
    %v646 = vld [vmem:[%s1 + $0xfc0] sm:$0xff]
    %v647 = vld [vmem:[%s1 + $0xfc8] sm:$0xff]
    %v648 = vld [vmem:[%s1 + $0xfd0] sm:$0xff]
    %v649 = vld [vmem:[%s1 + $0xfd8] sm:$0xff]
    %v650 = vld [vmem:[%s1 + $0xfe0] sm:$0xff]
    %v651 = vld [vmem:[%s1 + $0xfe8] sm:$0xff]
    %v652 = vld [vmem:[%s1 + $0xff0] sm:$0xff]
    %v653 = vld [vmem:[%s1 + $0xff8] sm:$0xff]
    %v654 = vld [vmem:[%s2] sm:$0x3]
    %v656 = vperm.slane %v654, 0
    %v657 = vperm.slane %v654, 1
    %v1172 = vunpack.c.l.b16 %v142
    %v1173 = vunpack.c.h.b16 %v142
    %v1174 = vunpack.c.l.b16 %v143
    %v1175 = vunpack.c.h.b16 %v143
    %v1176 = vunpack.c.l.b16 %v144
    %v1177 = vunpack.c.h.b16 %v144
    %v1178 = vunpack.c.l.b16 %v145
    %v1179 = vunpack.c.h.b16 %v145
    %v1180 = vunpack.c.l.b16 %v146
    %v1181 = vunpack.c.h.b16 %v146
    %v1182 = vunpack.c.l.b16 %v147
    %v1183 = vunpack.c.h.b16 %v147
    %v1184 = vunpack.c.l.b16 %v148
    %v1185 = vunpack.c.h.b16 %v148
    %v1186 = vunpack.c.l.b16 %v149
    %v1187 = vunpack.c.h.b16 %v149
    %v1188 = vunpack.c.l.b16 %v150
    %v1189 = vunpack.c.h.b16 %v150
    %v1190 = vunpack.c.l.b16 %v151
    %v1191 = vunpack.c.h.b16 %v151
    %v1192 = vunpack.c.l.b16 %v152
    %v1193 = vunpack.c.h.b16 %v152
    %v1194 = vunpack.c.l.b16 %v153
    %v1195 = vunpack.c.h.b16 %v153
    %v1196 = vunpack.c.l.b16 %v154
    %v1197 = vunpack.c.h.b16 %v154
    %v1198 = vunpack.c.l.b16 %v155
    %v1199 = vunpack.c.h.b16 %v155
    %v1200 = vunpack.c.l.b16 %v156
    %v1201 = vunpack.c.h.b16 %v156
    %v1202 = vunpack.c.l.b16 %v157
    %v1203 = vunpack.c.h.b16 %v157
    %v1204 = vunpack.c.l.b16 %v158
    %v1205 = vunpack.c.h.b16 %v158
    %v1206 = vunpack.c.l.b16 %v159
    %v1207 = vunpack.c.h.b16 %v159
    %v1208 = vunpack.c.l.b16 %v160
    %v1209 = vunpack.c.h.b16 %v160
    %v1210 = vunpack.c.l.b16 %v161
    %v1211 = vunpack.c.h.b16 %v161
    %v1212 = vunpack.c.l.b16 %v162
    %v1213 = vunpack.c.h.b16 %v162
    %v1214 = vunpack.c.l.b16 %v163
    %v1215 = vunpack.c.h.b16 %v163
    %v1216 = vunpack.c.l.b16 %v164
    %v1217 = vunpack.c.h.b16 %v164
    %v1218 = vunpack.c.l.b16 %v165
    %v1219 = vunpack.c.h.b16 %v165
    %v1220 = vunpack.c.l.b16 %v166
    %v1221 = vunpack.c.h.b16 %v166
    %v1222 = vunpack.c.l.b16 %v167
    %v1223 = vunpack.c.h.b16 %v167
    %v1224 = vunpack.c.l.b16 %v168
    %v1225 = vunpack.c.h.b16 %v168
    %v1226 = vunpack.c.l.b16 %v169
    %v1227 = vunpack.c.h.b16 %v169
    %v1228 = vunpack.c.l.b16 %v170
    %v1229 = vunpack.c.h.b16 %v170
    %v1230 = vunpack.c.l.b16 %v171
    %v1231 = vunpack.c.h.b16 %v171
    %v1232 = vunpack.c.l.b16 %v172
    %v1233 = vunpack.c.h.b16 %v172
    %v1234 = vunpack.c.l.b16 %v173
    %v1235 = vunpack.c.h.b16 %v173
    %v1236 = vunpack.c.l.b16 %v174
    %v1237 = vunpack.c.h.b16 %v174
    %v1238 = vunpack.c.l.b16 %v175
    %v1239 = vunpack.c.h.b16 %v175
    %v1240 = vunpack.c.l.b16 %v176
    %v1241 = vunpack.c.h.b16 %v176
    %v1242 = vunpack.c.l.b16 %v177
    %v1243 = vunpack.c.h.b16 %v177
    %v1244 = vunpack.c.l.b16 %v178
    %v1245 = vunpack.c.h.b16 %v178
    %v1246 = vunpack.c.l.b16 %v179
    %v1247 = vunpack.c.h.b16 %v179
    %v1248 = vunpack.c.l.b16 %v180
    %v1249 = vunpack.c.h.b16 %v180
    %v1250 = vunpack.c.l.b16 %v181
    %v1251 = vunpack.c.h.b16 %v181
    %v1252 = vunpack.c.l.b16 %v182
    %v1253 = vunpack.c.h.b16 %v182
    %v1254 = vunpack.c.l.b16 %v183
    %v1255 = vunpack.c.h.b16 %v183
    %v1256 = vunpack.c.l.b16 %v184
    %v1257 = vunpack.c.h.b16 %v184
    %v1258 = vunpack.c.l.b16 %v185
    %v1259 = vunpack.c.h.b16 %v185
    %v1260 = vunpack.c.l.b16 %v186
    %v1261 = vunpack.c.h.b16 %v186
    %v1262 = vunpack.c.l.b16 %v187
    %v1263 = vunpack.c.h.b16 %v187
    %v1264 = vunpack.c.l.b16 %v188
    %v1265 = vunpack.c.h.b16 %v188
    %v1266 = vunpack.c.l.b16 %v189
    %v1267 = vunpack.c.h.b16 %v189
    %v1268 = vunpack.c.l.b16 %v190
    %v1269 = vunpack.c.h.b16 %v190
    %v1270 = vunpack.c.l.b16 %v191
    %v1271 = vunpack.c.h.b16 %v191
    %v1272 = vunpack.c.l.b16 %v192
    %v1273 = vunpack.c.h.b16 %v192
    %v1274 = vunpack.c.l.b16 %v193
    %v1275 = vunpack.c.h.b16 %v193
    %v1276 = vunpack.c.l.b16 %v194
    %v1277 = vunpack.c.h.b16 %v194
    %v1278 = vunpack.c.l.b16 %v195
    %v1279 = vunpack.c.h.b16 %v195
    %v1280 = vunpack.c.l.b16 %v196
    %v1281 = vunpack.c.h.b16 %v196
    %v1282 = vunpack.c.l.b16 %v197
    %v1283 = vunpack.c.h.b16 %v197
    %v1284 = vunpack.c.l.b16 %v198
    %v1285 = vunpack.c.h.b16 %v198
    %v1286 = vunpack.c.l.b16 %v199
    %v1287 = vunpack.c.h.b16 %v199
    %v1288 = vunpack.c.l.b16 %v200
    %v1289 = vunpack.c.h.b16 %v200
    %v1290 = vunpack.c.l.b16 %v201
    %v1291 = vunpack.c.h.b16 %v201
    %v1292 = vunpack.c.l.b16 %v202
    %v1293 = vunpack.c.h.b16 %v202
    %v1294 = vunpack.c.l.b16 %v203
    %v1295 = vunpack.c.h.b16 %v203
    %v1296 = vunpack.c.l.b16 %v204
    %v1297 = vunpack.c.h.b16 %v204
    %v1298 = vunpack.c.l.b16 %v205
    %v1299 = vunpack.c.h.b16 %v205
    %v1300 = vunpack.c.l.b16 %v206
    %v1301 = vunpack.c.h.b16 %v206
    %v1302 = vunpack.c.l.b16 %v207
    %v1303 = vunpack.c.h.b16 %v207
    %v1304 = vunpack.c.l.b16 %v208
    %v1305 = vunpack.c.h.b16 %v208
    %v1306 = vunpack.c.l.b16 %v209
    %v1307 = vunpack.c.h.b16 %v209
    %v1308 = vunpack.c.l.b16 %v210
    %v1309 = vunpack.c.h.b16 %v210
    %v1310 = vunpack.c.l.b16 %v211
    %v1311 = vunpack.c.h.b16 %v211
    %v1312 = vunpack.c.l.b16 %v212
    %v1313 = vunpack.c.h.b16 %v212
    %v1314 = vunpack.c.l.b16 %v213
    %v1315 = vunpack.c.h.b16 %v213
    %v1316 = vunpack.c.l.b16 %v214
    %v1317 = vunpack.c.h.b16 %v214
    %v1318 = vunpack.c.l.b16 %v215
    %v1319 = vunpack.c.h.b16 %v215
    %v1320 = vunpack.c.l.b16 %v216
    %v1321 = vunpack.c.h.b16 %v216
    %v1322 = vunpack.c.l.b16 %v217
    %v1323 = vunpack.c.h.b16 %v217
    %v1324 = vunpack.c.l.b16 %v218
    %v1325 = vunpack.c.h.b16 %v218
    %v1326 = vunpack.c.l.b16 %v219
    %v1327 = vunpack.c.h.b16 %v219
    %v1328 = vunpack.c.l.b16 %v220
    %v1329 = vunpack.c.h.b16 %v220
    %v1330 = vunpack.c.l.b16 %v221
    %v1331 = vunpack.c.h.b16 %v221
    %v1332 = vunpack.c.l.b16 %v222
    %v1333 = vunpack.c.h.b16 %v222
    %v1334 = vunpack.c.l.b16 %v223
    %v1335 = vunpack.c.h.b16 %v223
    %v1336 = vunpack.c.l.b16 %v224
    %v1337 = vunpack.c.h.b16 %v224
    %v1338 = vunpack.c.l.b16 %v225
    %v1339 = vunpack.c.h.b16 %v225
    %v1340 = vunpack.c.l.b16 %v226
    %v1341 = vunpack.c.h.b16 %v226
    %v1342 = vunpack.c.l.b16 %v227
    %v1343 = vunpack.c.h.b16 %v227
    %v1344 = vunpack.c.l.b16 %v228
    %v1345 = vunpack.c.h.b16 %v228
    %v1346 = vunpack.c.l.b16 %v229
    %v1347 = vunpack.c.h.b16 %v229
    %v1348 = vunpack.c.l.b16 %v230
    %v1349 = vunpack.c.h.b16 %v230
    %v1350 = vunpack.c.l.b16 %v231
    %v1351 = vunpack.c.h.b16 %v231
    %v1352 = vunpack.c.l.b16 %v232
    %v1353 = vunpack.c.h.b16 %v232
    %v1354 = vunpack.c.l.b16 %v233
    %v1355 = vunpack.c.h.b16 %v233
    %v1356 = vunpack.c.l.b16 %v234
    %v1357 = vunpack.c.h.b16 %v234
    %v1358 = vunpack.c.l.b16 %v235
    %v1359 = vunpack.c.h.b16 %v235
    %v1360 = vunpack.c.l.b16 %v236
    %v1361 = vunpack.c.h.b16 %v236
    %v1362 = vunpack.c.l.b16 %v237
    %v1363 = vunpack.c.h.b16 %v237
    %v1364 = vunpack.c.l.b16 %v238
    %v1365 = vunpack.c.h.b16 %v238
    %v1366 = vunpack.c.l.b16 %v239
    %v1367 = vunpack.c.h.b16 %v239
    %v1368 = vunpack.c.l.b16 %v240
    %v1369 = vunpack.c.h.b16 %v240
    %v1370 = vunpack.c.l.b16 %v241
    %v1371 = vunpack.c.h.b16 %v241
    %v1372 = vunpack.c.l.b16 %v242
    %v1373 = vunpack.c.h.b16 %v242
    %v1374 = vunpack.c.l.b16 %v243
    %v1375 = vunpack.c.h.b16 %v243
    %v1376 = vunpack.c.l.b16 %v244
    %v1377 = vunpack.c.h.b16 %v244
    %v1378 = vunpack.c.l.b16 %v245
    %v1379 = vunpack.c.h.b16 %v245
    %v1380 = vunpack.c.l.b16 %v246
    %v1381 = vunpack.c.h.b16 %v246
    %v1382 = vunpack.c.l.b16 %v247
    %v1383 = vunpack.c.h.b16 %v247
    %v1384 = vunpack.c.l.b16 %v248
    %v1385 = vunpack.c.h.b16 %v248
    %v1386 = vunpack.c.l.b16 %v249
    %v1387 = vunpack.c.h.b16 %v249
    %v1388 = vunpack.c.l.b16 %v250
    %v1389 = vunpack.c.h.b16 %v250
    %v1390 = vunpack.c.l.b16 %v251
    %v1391 = vunpack.c.h.b16 %v251
    %v1392 = vunpack.c.l.b16 %v252
    %v1393 = vunpack.c.h.b16 %v252
    %v1394 = vunpack.c.l.b16 %v253
    %v1395 = vunpack.c.h.b16 %v253
    %v1396 = vunpack.c.l.b16 %v254
    %v1397 = vunpack.c.h.b16 %v254
    %v1398 = vunpack.c.l.b16 %v255
    %v1399 = vunpack.c.h.b16 %v255
    %v1400 = vunpack.c.l.b16 %v256
    %v1401 = vunpack.c.h.b16 %v256
    %v1402 = vunpack.c.l.b16 %v257
    %v1403 = vunpack.c.h.b16 %v257
    %v1404 = vunpack.c.l.b16 %v258
    %v1405 = vunpack.c.h.b16 %v258
    %v1406 = vunpack.c.l.b16 %v259
    %v1407 = vunpack.c.h.b16 %v259
    %v1408 = vunpack.c.l.b16 %v260
    %v1409 = vunpack.c.h.b16 %v260
    %v1410 = vunpack.c.l.b16 %v261
    %v1411 = vunpack.c.h.b16 %v261
    %v1412 = vunpack.c.l.b16 %v262
    %v1413 = vunpack.c.h.b16 %v262
    %v1414 = vunpack.c.l.b16 %v263
    %v1415 = vunpack.c.h.b16 %v263
    %v1416 = vunpack.c.l.b16 %v264
    %v1417 = vunpack.c.h.b16 %v264
    %v1418 = vunpack.c.l.b16 %v265
    %v1419 = vunpack.c.h.b16 %v265
    %v1420 = vunpack.c.l.b16 %v266
    %v1421 = vunpack.c.h.b16 %v266
    %v1422 = vunpack.c.l.b16 %v267
    %v1423 = vunpack.c.h.b16 %v267
    %v1424 = vunpack.c.l.b16 %v268
    %v1425 = vunpack.c.h.b16 %v268
    %v1426 = vunpack.c.l.b16 %v269
    %v1427 = vunpack.c.h.b16 %v269
    %v1428 = vunpack.c.l.b16 %v270
    %v1429 = vunpack.c.h.b16 %v270
    %v1430 = vunpack.c.l.b16 %v271
    %v1431 = vunpack.c.h.b16 %v271
    %v1432 = vunpack.c.l.b16 %v272
    %v1433 = vunpack.c.h.b16 %v272
    %v1434 = vunpack.c.l.b16 %v273
    %v1435 = vunpack.c.h.b16 %v273
    %v1436 = vunpack.c.l.b16 %v274
    %v1437 = vunpack.c.h.b16 %v274
    %v1438 = vunpack.c.l.b16 %v275
    %v1439 = vunpack.c.h.b16 %v275
    %v1440 = vunpack.c.l.b16 %v276
    %v1441 = vunpack.c.h.b16 %v276
    %v1442 = vunpack.c.l.b16 %v277
    %v1443 = vunpack.c.h.b16 %v277
    %v1444 = vunpack.c.l.b16 %v278
    %v1445 = vunpack.c.h.b16 %v278
    %v1446 = vunpack.c.l.b16 %v279
    %v1447 = vunpack.c.h.b16 %v279
    %v1448 = vunpack.c.l.b16 %v280
    %v1449 = vunpack.c.h.b16 %v280
    %v1450 = vunpack.c.l.b16 %v281
    %v1451 = vunpack.c.h.b16 %v281
    %v1452 = vunpack.c.l.b16 %v282
    %v1453 = vunpack.c.h.b16 %v282
    %v1454 = vunpack.c.l.b16 %v283
    %v1455 = vunpack.c.h.b16 %v283
    %v1456 = vunpack.c.l.b16 %v284
    %v1457 = vunpack.c.h.b16 %v284
    %v1458 = vunpack.c.l.b16 %v285
    %v1459 = vunpack.c.h.b16 %v285
    %v1460 = vunpack.c.l.b16 %v286
    %v1461 = vunpack.c.h.b16 %v286
    %v1462 = vunpack.c.l.b16 %v287
    %v1463 = vunpack.c.h.b16 %v287
    %v1464 = vunpack.c.l.b16 %v288
    %v1465 = vunpack.c.h.b16 %v288
    %v1466 = vunpack.c.l.b16 %v289
    %v1467 = vunpack.c.h.b16 %v289
    %v1468 = vunpack.c.l.b16 %v290
    %v1469 = vunpack.c.h.b16 %v290
    %v1470 = vunpack.c.l.b16 %v291
    %v1471 = vunpack.c.h.b16 %v291
    %v1472 = vunpack.c.l.b16 %v292
    %v1473 = vunpack.c.h.b16 %v292
    %v1474 = vunpack.c.l.b16 %v293
    %v1475 = vunpack.c.h.b16 %v293
    %v1476 = vunpack.c.l.b16 %v294
    %v1477 = vunpack.c.h.b16 %v294
    %v1478 = vunpack.c.l.b16 %v295
    %v1479 = vunpack.c.h.b16 %v295
    %v1480 = vunpack.c.l.b16 %v296
    %v1481 = vunpack.c.h.b16 %v296
    %v1482 = vunpack.c.l.b16 %v297
    %v1483 = vunpack.c.h.b16 %v297
    %v1484 = vunpack.c.l.b16 %v298
    %v1485 = vunpack.c.h.b16 %v298
    %v1486 = vunpack.c.l.b16 %v299
    %v1487 = vunpack.c.h.b16 %v299
    %v1488 = vunpack.c.l.b16 %v300
    %v1489 = vunpack.c.h.b16 %v300
    %v1490 = vunpack.c.l.b16 %v301
    %v1491 = vunpack.c.h.b16 %v301
    %v1492 = vunpack.c.l.b16 %v302
    %v1493 = vunpack.c.h.b16 %v302
    %v1494 = vunpack.c.l.b16 %v303
    %v1495 = vunpack.c.h.b16 %v303
    %v1496 = vunpack.c.l.b16 %v304
    %v1497 = vunpack.c.h.b16 %v304
    %v1498 = vunpack.c.l.b16 %v305
    %v1499 = vunpack.c.h.b16 %v305
    %v1500 = vunpack.c.l.b16 %v306
    %v1501 = vunpack.c.h.b16 %v306
    %v1502 = vunpack.c.l.b16 %v307
    %v1503 = vunpack.c.h.b16 %v307
    %v1504 = vunpack.c.l.b16 %v308
    %v1505 = vunpack.c.h.b16 %v308
    %v1506 = vunpack.c.l.b16 %v309
    %v1507 = vunpack.c.h.b16 %v309
    %v1508 = vunpack.c.l.b16 %v310
    %v1509 = vunpack.c.h.b16 %v310
    %v1510 = vunpack.c.l.b16 %v311
    %v1511 = vunpack.c.h.b16 %v311
    %v1512 = vunpack.c.l.b16 %v312
    %v1513 = vunpack.c.h.b16 %v312
    %v1514 = vunpack.c.l.b16 %v313
    %v1515 = vunpack.c.h.b16 %v313
    %v1516 = vunpack.c.l.b16 %v314
    %v1517 = vunpack.c.h.b16 %v314
    %v1518 = vunpack.c.l.b16 %v315
    %v1519 = vunpack.c.h.b16 %v315
    %v1520 = vunpack.c.l.b16 %v316
    %v1521 = vunpack.c.h.b16 %v316
    %v1522 = vunpack.c.l.b16 %v317
    %v1523 = vunpack.c.h.b16 %v317
    %v1524 = vunpack.c.l.b16 %v318
    %v1525 = vunpack.c.h.b16 %v318
    %v1526 = vunpack.c.l.b16 %v319
    %v1527 = vunpack.c.h.b16 %v319
    %v1528 = vunpack.c.l.b16 %v320
    %v1529 = vunpack.c.h.b16 %v320
    %v1530 = vunpack.c.l.b16 %v321
    %v1531 = vunpack.c.h.b16 %v321
    %v1532 = vunpack.c.l.b16 %v322
    %v1533 = vunpack.c.h.b16 %v322
    %v1534 = vunpack.c.l.b16 %v323
    %v1535 = vunpack.c.h.b16 %v323
    %v1536 = vunpack.c.l.b16 %v324
    %v1537 = vunpack.c.h.b16 %v324
    %v1538 = vunpack.c.l.b16 %v325
    %v1539 = vunpack.c.h.b16 %v325
    %v1540 = vunpack.c.l.b16 %v326
    %v1541 = vunpack.c.h.b16 %v326
    %v1542 = vunpack.c.l.b16 %v327
    %v1543 = vunpack.c.h.b16 %v327
    %v1544 = vunpack.c.l.b16 %v328
    %v1545 = vunpack.c.h.b16 %v328
    %v1546 = vunpack.c.l.b16 %v329
    %v1547 = vunpack.c.h.b16 %v329
    %v1548 = vunpack.c.l.b16 %v330
    %v1549 = vunpack.c.h.b16 %v330
    %v1550 = vunpack.c.l.b16 %v331
    %v1551 = vunpack.c.h.b16 %v331
    %v1552 = vunpack.c.l.b16 %v332
    %v1553 = vunpack.c.h.b16 %v332
    %v1554 = vunpack.c.l.b16 %v333
    %v1555 = vunpack.c.h.b16 %v333
    %v1556 = vunpack.c.l.b16 %v334
    %v1557 = vunpack.c.h.b16 %v334
    %v1558 = vunpack.c.l.b16 %v335
    %v1559 = vunpack.c.h.b16 %v335
    %v1560 = vunpack.c.l.b16 %v336
    %v1561 = vunpack.c.h.b16 %v336
    %v1562 = vunpack.c.l.b16 %v337
    %v1563 = vunpack.c.h.b16 %v337
    %v1564 = vunpack.c.l.b16 %v338
    %v1565 = vunpack.c.h.b16 %v338
    %v1566 = vunpack.c.l.b16 %v339
    %v1567 = vunpack.c.h.b16 %v339
    %v1568 = vunpack.c.l.b16 %v340
    %v1569 = vunpack.c.h.b16 %v340
    %v1570 = vunpack.c.l.b16 %v341
    %v1571 = vunpack.c.h.b16 %v341
    %v1572 = vunpack.c.l.b16 %v342
    %v1573 = vunpack.c.h.b16 %v342
    %v1574 = vunpack.c.l.b16 %v343
    %v1575 = vunpack.c.h.b16 %v343
    %v1576 = vunpack.c.l.b16 %v344
    %v1577 = vunpack.c.h.b16 %v344
    %v1578 = vunpack.c.l.b16 %v345
    %v1579 = vunpack.c.h.b16 %v345
    %v1580 = vunpack.c.l.b16 %v346
    %v1581 = vunpack.c.h.b16 %v346
    %v1582 = vunpack.c.l.b16 %v347
    %v1583 = vunpack.c.h.b16 %v347
    %v1584 = vunpack.c.l.b16 %v348
    %v1585 = vunpack.c.h.b16 %v348
    %v1586 = vunpack.c.l.b16 %v349
    %v1587 = vunpack.c.h.b16 %v349
    %v1588 = vunpack.c.l.b16 %v350
    %v1589 = vunpack.c.h.b16 %v350
    %v1590 = vunpack.c.l.b16 %v351
    %v1591 = vunpack.c.h.b16 %v351
    %v1592 = vunpack.c.l.b16 %v352
    %v1593 = vunpack.c.h.b16 %v352
    %v1594 = vunpack.c.l.b16 %v353
    %v1595 = vunpack.c.h.b16 %v353
    %v1596 = vunpack.c.l.b16 %v354
    %v1597 = vunpack.c.h.b16 %v354
    %v1598 = vunpack.c.l.b16 %v355
    %v1599 = vunpack.c.h.b16 %v355
    %v1600 = vunpack.c.l.b16 %v356
    %v1601 = vunpack.c.h.b16 %v356
    %v1602 = vunpack.c.l.b16 %v357
    %v1603 = vunpack.c.h.b16 %v357
    %v1604 = vunpack.c.l.b16 %v358
    %v1605 = vunpack.c.h.b16 %v358
    %v1606 = vunpack.c.l.b16 %v359
    %v1607 = vunpack.c.h.b16 %v359
    %v1608 = vunpack.c.l.b16 %v360
    %v1609 = vunpack.c.h.b16 %v360
    %v1610 = vunpack.c.l.b16 %v361
    %v1611 = vunpack.c.h.b16 %v361
    %v1612 = vunpack.c.l.b16 %v362
    %v1613 = vunpack.c.h.b16 %v362
    %v1614 = vunpack.c.l.b16 %v363
    %v1615 = vunpack.c.h.b16 %v363
    %v1616 = vunpack.c.l.b16 %v364
    %v1617 = vunpack.c.h.b16 %v364
    %v1618 = vunpack.c.l.b16 %v365
    %v1619 = vunpack.c.h.b16 %v365
    %v1620 = vunpack.c.l.b16 %v366
    %v1621 = vunpack.c.h.b16 %v366
    %v1622 = vunpack.c.l.b16 %v367
    %v1623 = vunpack.c.h.b16 %v367
    %v1624 = vunpack.c.l.b16 %v368
    %v1625 = vunpack.c.h.b16 %v368
    %v1626 = vunpack.c.l.b16 %v369
    %v1627 = vunpack.c.h.b16 %v369
    %v1628 = vunpack.c.l.b16 %v370
    %v1629 = vunpack.c.h.b16 %v370
    %v1630 = vunpack.c.l.b16 %v371
    %v1631 = vunpack.c.h.b16 %v371
    %v1632 = vunpack.c.l.b16 %v372
    %v1633 = vunpack.c.h.b16 %v372
    %v1634 = vunpack.c.l.b16 %v373
    %v1635 = vunpack.c.h.b16 %v373
    %v1636 = vunpack.c.l.b16 %v374
    %v1637 = vunpack.c.h.b16 %v374
    %v1638 = vunpack.c.l.b16 %v375
    %v1639 = vunpack.c.h.b16 %v375
    %v1640 = vunpack.c.l.b16 %v376
    %v1641 = vunpack.c.h.b16 %v376
    %v1642 = vunpack.c.l.b16 %v377
    %v1643 = vunpack.c.h.b16 %v377
    %v1644 = vunpack.c.l.b16 %v378
    %v1645 = vunpack.c.h.b16 %v378
    %v1646 = vunpack.c.l.b16 %v379
    %v1647 = vunpack.c.h.b16 %v379
    %v1648 = vunpack.c.l.b16 %v380
    %v1649 = vunpack.c.h.b16 %v380
    %v1650 = vunpack.c.l.b16 %v381
    %v1651 = vunpack.c.h.b16 %v381
    %v1652 = vunpack.c.l.b16 %v382
    %v1653 = vunpack.c.h.b16 %v382
    %v1654 = vunpack.c.l.b16 %v383
    %v1655 = vunpack.c.h.b16 %v383
    %v1656 = vunpack.c.l.b16 %v384
    %v1657 = vunpack.c.h.b16 %v384
    %v1658 = vunpack.c.l.b16 %v385
    %v1659 = vunpack.c.h.b16 %v385
    %v1660 = vunpack.c.l.b16 %v386
    %v1661 = vunpack.c.h.b16 %v386
    %v1662 = vunpack.c.l.b16 %v387
    %v1663 = vunpack.c.h.b16 %v387
    %v1664 = vunpack.c.l.b16 %v388
    %v1665 = vunpack.c.h.b16 %v388
    %v1666 = vunpack.c.l.b16 %v389
    %v1667 = vunpack.c.h.b16 %v389
    %v1668 = vunpack.c.l.b16 %v390
    %v1669 = vunpack.c.h.b16 %v390
    %v1670 = vunpack.c.l.b16 %v391
    %v1671 = vunpack.c.h.b16 %v391
    %v1672 = vunpack.c.l.b16 %v392
    %v1673 = vunpack.c.h.b16 %v392
    %v1674 = vunpack.c.l.b16 %v393
    %v1675 = vunpack.c.h.b16 %v393
    %v1676 = vunpack.c.l.b16 %v394
    %v1677 = vunpack.c.h.b16 %v394
    %v1678 = vunpack.c.l.b16 %v395
    %v1679 = vunpack.c.h.b16 %v395
    %v1680 = vunpack.c.l.b16 %v396
    %v1681 = vunpack.c.h.b16 %v396
    %v1682 = vunpack.c.l.b16 %v397
    %v1683 = vunpack.c.h.b16 %v397
    %v1684 = vunpack.c.l.b16 %v398
    %v1685 = vunpack.c.h.b16 %v398
    %v1686 = vunpack.c.l.b16 %v399
    %v1687 = vunpack.c.h.b16 %v399
    %v1688 = vunpack.c.l.b16 %v400
    %v1689 = vunpack.c.h.b16 %v400
    %v1690 = vunpack.c.l.b16 %v401
    %v1691 = vunpack.c.h.b16 %v401
    %v1692 = vunpack.c.l.b16 %v402
    %v1693 = vunpack.c.h.b16 %v402
    %v1694 = vunpack.c.l.b16 %v403
    %v1695 = vunpack.c.h.b16 %v403
    %v1696 = vunpack.c.l.b16 %v404
    %v1697 = vunpack.c.h.b16 %v404
    %v1698 = vunpack.c.l.b16 %v405
    %v1699 = vunpack.c.h.b16 %v405
    %v1700 = vunpack.c.l.b16 %v406
    %v1701 = vunpack.c.h.b16 %v406
    %v1702 = vunpack.c.l.b16 %v407
    %v1703 = vunpack.c.h.b16 %v407
    %v1704 = vunpack.c.l.b16 %v408
    %v1705 = vunpack.c.h.b16 %v408
    %v1706 = vunpack.c.l.b16 %v409
    %v1707 = vunpack.c.h.b16 %v409
    %v1708 = vunpack.c.l.b16 %v410
    %v1709 = vunpack.c.h.b16 %v410
    %v1710 = vunpack.c.l.b16 %v411
    %v1711 = vunpack.c.h.b16 %v411
    %v1712 = vunpack.c.l.b16 %v412
    %v1713 = vunpack.c.h.b16 %v412
    %v1714 = vunpack.c.l.b16 %v413
    %v1715 = vunpack.c.h.b16 %v413
    %v1716 = vunpack.c.l.b16 %v414
    %v1717 = vunpack.c.h.b16 %v414
    %v1718 = vunpack.c.l.b16 %v415
    %v1719 = vunpack.c.h.b16 %v415
    %v1720 = vunpack.c.l.b16 %v416
    %v1721 = vunpack.c.h.b16 %v416
    %v1722 = vunpack.c.l.b16 %v417
    %v1723 = vunpack.c.h.b16 %v417
    %v1724 = vunpack.c.l.b16 %v418
    %v1725 = vunpack.c.h.b16 %v418
    %v1726 = vunpack.c.l.b16 %v419
    %v1727 = vunpack.c.h.b16 %v419
    %v1728 = vunpack.c.l.b16 %v420
    %v1729 = vunpack.c.h.b16 %v420
    %v1730 = vunpack.c.l.b16 %v421
    %v1731 = vunpack.c.h.b16 %v421
    %v1732 = vunpack.c.l.b16 %v422
    %v1733 = vunpack.c.h.b16 %v422
    %v1734 = vunpack.c.l.b16 %v423
    %v1735 = vunpack.c.h.b16 %v423
    %v1736 = vunpack.c.l.b16 %v424
    %v1737 = vunpack.c.h.b16 %v424
    %v1738 = vunpack.c.l.b16 %v425
    %v1739 = vunpack.c.h.b16 %v425
    %v1740 = vunpack.c.l.b16 %v426
    %v1741 = vunpack.c.h.b16 %v426
    %v1742 = vunpack.c.l.b16 %v427
    %v1743 = vunpack.c.h.b16 %v427
    %v1744 = vunpack.c.l.b16 %v428
    %v1745 = vunpack.c.h.b16 %v428
    %v1746 = vunpack.c.l.b16 %v429
    %v1747 = vunpack.c.h.b16 %v429
    %v1748 = vunpack.c.l.b16 %v430
    %v1749 = vunpack.c.h.b16 %v430
    %v1750 = vunpack.c.l.b16 %v431
    %v1751 = vunpack.c.h.b16 %v431
    %v1752 = vunpack.c.l.b16 %v432
    %v1753 = vunpack.c.h.b16 %v432
    %v1754 = vunpack.c.l.b16 %v433
    %v1755 = vunpack.c.h.b16 %v433
    %v1756 = vunpack.c.l.b16 %v434
    %v1757 = vunpack.c.h.b16 %v434
    %v1758 = vunpack.c.l.b16 %v435
    %v1759 = vunpack.c.h.b16 %v435
    %v1760 = vunpack.c.l.b16 %v436
    %v1761 = vunpack.c.h.b16 %v436
    %v1762 = vunpack.c.l.b16 %v437
    %v1763 = vunpack.c.h.b16 %v437
    %v1764 = vunpack.c.l.b16 %v438
    %v1765 = vunpack.c.h.b16 %v438
    %v1766 = vunpack.c.l.b16 %v439
    %v1767 = vunpack.c.h.b16 %v439
    %v1768 = vunpack.c.l.b16 %v440
    %v1769 = vunpack.c.h.b16 %v440
    %v1770 = vunpack.c.l.b16 %v441
    %v1771 = vunpack.c.h.b16 %v441
    %v1772 = vunpack.c.l.b16 %v442
    %v1773 = vunpack.c.h.b16 %v442
    %v1774 = vunpack.c.l.b16 %v443
    %v1775 = vunpack.c.h.b16 %v443
    %v1776 = vunpack.c.l.b16 %v444
    %v1777 = vunpack.c.h.b16 %v444
    %v1778 = vunpack.c.l.b16 %v445
    %v1779 = vunpack.c.h.b16 %v445
    %v1780 = vunpack.c.l.b16 %v446
    %v1781 = vunpack.c.h.b16 %v446
    %v1782 = vunpack.c.l.b16 %v447
    %v1783 = vunpack.c.h.b16 %v447
    %v1784 = vunpack.c.l.b16 %v448
    %v1785 = vunpack.c.h.b16 %v448
    %v1786 = vunpack.c.l.b16 %v449
    %v1787 = vunpack.c.h.b16 %v449
    %v1788 = vunpack.c.l.b16 %v450
    %v1789 = vunpack.c.h.b16 %v450
    %v1790 = vunpack.c.l.b16 %v451
    %v1791 = vunpack.c.h.b16 %v451
    %v1792 = vunpack.c.l.b16 %v452
    %v1793 = vunpack.c.h.b16 %v452
    %v1794 = vunpack.c.l.b16 %v453
    %v1795 = vunpack.c.h.b16 %v453
    %v1796 = vunpack.c.l.b16 %v454
    %v1797 = vunpack.c.h.b16 %v454
    %v1798 = vunpack.c.l.b16 %v455
    %v1799 = vunpack.c.h.b16 %v455
    %v1800 = vunpack.c.l.b16 %v456
    %v1801 = vunpack.c.h.b16 %v456
    %v1802 = vunpack.c.l.b16 %v457
    %v1803 = vunpack.c.h.b16 %v457
    %v1804 = vunpack.c.l.b16 %v458
    %v1805 = vunpack.c.h.b16 %v458
    %v1806 = vunpack.c.l.b16 %v459
    %v1807 = vunpack.c.h.b16 %v459
    %v1808 = vunpack.c.l.b16 %v460
    %v1809 = vunpack.c.h.b16 %v460
    %v1810 = vunpack.c.l.b16 %v461
    %v1811 = vunpack.c.h.b16 %v461
    %v1812 = vunpack.c.l.b16 %v462
    %v1813 = vunpack.c.h.b16 %v462
    %v1814 = vunpack.c.l.b16 %v463
    %v1815 = vunpack.c.h.b16 %v463
    %v1816 = vunpack.c.l.b16 %v464
    %v1817 = vunpack.c.h.b16 %v464
    %v1818 = vunpack.c.l.b16 %v465
    %v1819 = vunpack.c.h.b16 %v465
    %v1820 = vunpack.c.l.b16 %v466
    %v1821 = vunpack.c.h.b16 %v466
    %v1822 = vunpack.c.l.b16 %v467
    %v1823 = vunpack.c.h.b16 %v467
    %v1824 = vunpack.c.l.b16 %v468
    %v1825 = vunpack.c.h.b16 %v468
    %v1826 = vunpack.c.l.b16 %v469
    %v1827 = vunpack.c.h.b16 %v469
    %v1828 = vunpack.c.l.b16 %v470
    %v1829 = vunpack.c.h.b16 %v470
    %v1830 = vunpack.c.l.b16 %v471
    %v1831 = vunpack.c.h.b16 %v471
    %v1832 = vunpack.c.l.b16 %v472
    %v1833 = vunpack.c.h.b16 %v472
    %v1834 = vunpack.c.l.b16 %v473
    %v1835 = vunpack.c.h.b16 %v473
    %v1836 = vunpack.c.l.b16 %v474
    %v1837 = vunpack.c.h.b16 %v474
    %v1838 = vunpack.c.l.b16 %v475
    %v1839 = vunpack.c.h.b16 %v475
    %v1840 = vunpack.c.l.b16 %v476
    %v1841 = vunpack.c.h.b16 %v476
    %v1842 = vunpack.c.l.b16 %v477
    %v1843 = vunpack.c.h.b16 %v477
    %v1844 = vunpack.c.l.b16 %v478
    %v1845 = vunpack.c.h.b16 %v478
    %v1846 = vunpack.c.l.b16 %v479
    %v1847 = vunpack.c.h.b16 %v479
    %v1848 = vunpack.c.l.b16 %v480
    %v1849 = vunpack.c.h.b16 %v480
    %v1850 = vunpack.c.l.b16 %v481
    %v1851 = vunpack.c.h.b16 %v481
    %v1852 = vunpack.c.l.b16 %v482
    %v1853 = vunpack.c.h.b16 %v482
    %v1854 = vunpack.c.l.b16 %v483
    %v1855 = vunpack.c.h.b16 %v483
    %v1856 = vunpack.c.l.b16 %v484
    %v1857 = vunpack.c.h.b16 %v484
    %v1858 = vunpack.c.l.b16 %v485
    %v1859 = vunpack.c.h.b16 %v485
    %v1860 = vunpack.c.l.b16 %v486
    %v1861 = vunpack.c.h.b16 %v486
    %v1862 = vunpack.c.l.b16 %v487
    %v1863 = vunpack.c.h.b16 %v487
    %v1864 = vunpack.c.l.b16 %v488
    %v1865 = vunpack.c.h.b16 %v488
    %v1866 = vunpack.c.l.b16 %v489
    %v1867 = vunpack.c.h.b16 %v489
    %v1868 = vunpack.c.l.b16 %v490
    %v1869 = vunpack.c.h.b16 %v490
    %v1870 = vunpack.c.l.b16 %v491
    %v1871 = vunpack.c.h.b16 %v491
    %v1872 = vunpack.c.l.b16 %v492
    %v1873 = vunpack.c.h.b16 %v492
    %v1874 = vunpack.c.l.b16 %v493
    %v1875 = vunpack.c.h.b16 %v493
    %v1876 = vunpack.c.l.b16 %v494
    %v1877 = vunpack.c.h.b16 %v494
    %v1878 = vunpack.c.l.b16 %v495
    %v1879 = vunpack.c.h.b16 %v495
    %v1880 = vunpack.c.l.b16 %v496
    %v1881 = vunpack.c.h.b16 %v496
    %v1882 = vunpack.c.l.b16 %v497
    %v1883 = vunpack.c.h.b16 %v497
    %v1884 = vunpack.c.l.b16 %v498
    %v1885 = vunpack.c.h.b16 %v498
    %v1886 = vunpack.c.l.b16 %v499
    %v1887 = vunpack.c.h.b16 %v499
    %v1888 = vunpack.c.l.b16 %v500
    %v1889 = vunpack.c.h.b16 %v500
    %v1890 = vunpack.c.l.b16 %v501
    %v1891 = vunpack.c.h.b16 %v501
    %v1892 = vunpack.c.l.b16 %v502
    %v1893 = vunpack.c.h.b16 %v502
    %v1894 = vunpack.c.l.b16 %v503
    %v1895 = vunpack.c.h.b16 %v503
    %v1896 = vunpack.c.l.b16 %v504
    %v1897 = vunpack.c.h.b16 %v504
    %v1898 = vunpack.c.l.b16 %v505
    %v1899 = vunpack.c.h.b16 %v505
    %v1900 = vunpack.c.l.b16 %v506
    %v1901 = vunpack.c.h.b16 %v506
    %v1902 = vunpack.c.l.b16 %v507
    %v1903 = vunpack.c.h.b16 %v507
    %v1904 = vunpack.c.l.b16 %v508
    %v1905 = vunpack.c.h.b16 %v508
    %v1906 = vunpack.c.l.b16 %v509
    %v1907 = vunpack.c.h.b16 %v509
    %v1908 = vunpack.c.l.b16 %v510
    %v1909 = vunpack.c.h.b16 %v510
    %v1910 = vunpack.c.l.b16 %v511
    %v1911 = vunpack.c.h.b16 %v511
    %v1912 = vunpack.c.l.b16 %v512
    %v1913 = vunpack.c.h.b16 %v512
    %v1914 = vunpack.c.l.b16 %v513
    %v1915 = vunpack.c.h.b16 %v513
    %v1916 = vunpack.c.l.b16 %v514
    %v1917 = vunpack.c.h.b16 %v514
    %v1918 = vunpack.c.l.b16 %v515
    %v1919 = vunpack.c.h.b16 %v515
    %v1920 = vunpack.c.l.b16 %v516
    %v1921 = vunpack.c.h.b16 %v516
    %v1922 = vunpack.c.l.b16 %v517
    %v1923 = vunpack.c.h.b16 %v517
    %v1924 = vunpack.c.l.b16 %v518
    %v1925 = vunpack.c.h.b16 %v518
    %v1926 = vunpack.c.l.b16 %v519
    %v1927 = vunpack.c.h.b16 %v519
    %v1928 = vunpack.c.l.b16 %v520
    %v1929 = vunpack.c.h.b16 %v520
    %v1930 = vunpack.c.l.b16 %v521
    %v1931 = vunpack.c.h.b16 %v521
    %v1932 = vunpack.c.l.b16 %v522
    %v1933 = vunpack.c.h.b16 %v522
    %v1934 = vunpack.c.l.b16 %v523
    %v1935 = vunpack.c.h.b16 %v523
    %v1936 = vunpack.c.l.b16 %v524
    %v1937 = vunpack.c.h.b16 %v524
    %v1938 = vunpack.c.l.b16 %v525
    %v1939 = vunpack.c.h.b16 %v525
    %v1940 = vunpack.c.l.b16 %v526
    %v1941 = vunpack.c.h.b16 %v526
    %v1942 = vunpack.c.l.b16 %v527
    %v1943 = vunpack.c.h.b16 %v527
    %v1944 = vunpack.c.l.b16 %v528
    %v1945 = vunpack.c.h.b16 %v528
    %v1946 = vunpack.c.l.b16 %v529
    %v1947 = vunpack.c.h.b16 %v529
    %v1948 = vunpack.c.l.b16 %v530
    %v1949 = vunpack.c.h.b16 %v530
    %v1950 = vunpack.c.l.b16 %v531
    %v1951 = vunpack.c.h.b16 %v531
    %v1952 = vunpack.c.l.b16 %v532
    %v1953 = vunpack.c.h.b16 %v532
    %v1954 = vunpack.c.l.b16 %v533
    %v1955 = vunpack.c.h.b16 %v533
    %v1956 = vunpack.c.l.b16 %v534
    %v1957 = vunpack.c.h.b16 %v534
    %v1958 = vunpack.c.l.b16 %v535
    %v1959 = vunpack.c.h.b16 %v535
    %v1960 = vunpack.c.l.b16 %v536
    %v1961 = vunpack.c.h.b16 %v536
    %v1962 = vunpack.c.l.b16 %v537
    %v1963 = vunpack.c.h.b16 %v537
    %v1964 = vunpack.c.l.b16 %v538
    %v1965 = vunpack.c.h.b16 %v538
    %v1966 = vunpack.c.l.b16 %v539
    %v1967 = vunpack.c.h.b16 %v539
    %v1968 = vunpack.c.l.b16 %v540
    %v1969 = vunpack.c.h.b16 %v540
    %v1970 = vunpack.c.l.b16 %v541
    %v1971 = vunpack.c.h.b16 %v541
    %v1972 = vunpack.c.l.b16 %v542
    %v1973 = vunpack.c.h.b16 %v542
    %v1974 = vunpack.c.l.b16 %v543
    %v1975 = vunpack.c.h.b16 %v543
    %v1976 = vunpack.c.l.b16 %v544
    %v1977 = vunpack.c.h.b16 %v544
    %v1978 = vunpack.c.l.b16 %v545
    %v1979 = vunpack.c.h.b16 %v545
    %v1980 = vunpack.c.l.b16 %v546
    %v1981 = vunpack.c.h.b16 %v546
    %v1982 = vunpack.c.l.b16 %v547
    %v1983 = vunpack.c.h.b16 %v547
    %v1984 = vunpack.c.l.b16 %v548
    %v1985 = vunpack.c.h.b16 %v548
    %v1986 = vunpack.c.l.b16 %v549
    %v1987 = vunpack.c.h.b16 %v549
    %v1988 = vunpack.c.l.b16 %v550
    %v1989 = vunpack.c.h.b16 %v550
    %v1990 = vunpack.c.l.b16 %v551
    %v1991 = vunpack.c.h.b16 %v551
    %v1992 = vunpack.c.l.b16 %v552
    %v1993 = vunpack.c.h.b16 %v552
    %v1994 = vunpack.c.l.b16 %v553
    %v1995 = vunpack.c.h.b16 %v553
    %v1996 = vunpack.c.l.b16 %v554
    %v1997 = vunpack.c.h.b16 %v554
    %v1998 = vunpack.c.l.b16 %v555
    %v1999 = vunpack.c.h.b16 %v555
    %v2000 = vunpack.c.l.b16 %v556
    %v2001 = vunpack.c.h.b16 %v556
    %v2002 = vunpack.c.l.b16 %v557
    %v2003 = vunpack.c.h.b16 %v557
    %v2004 = vunpack.c.l.b16 %v558
    %v2005 = vunpack.c.h.b16 %v558
    %v2006 = vunpack.c.l.b16 %v559
    %v2007 = vunpack.c.h.b16 %v559
    %v2008 = vunpack.c.l.b16 %v560
    %v2009 = vunpack.c.h.b16 %v560
    %v2010 = vunpack.c.l.b16 %v561
    %v2011 = vunpack.c.h.b16 %v561
    %v2012 = vunpack.c.l.b16 %v562
    %v2013 = vunpack.c.h.b16 %v562
    %v2014 = vunpack.c.l.b16 %v563
    %v2015 = vunpack.c.h.b16 %v563
    %v2016 = vunpack.c.l.b16 %v564
    %v2017 = vunpack.c.h.b16 %v564
    %v2018 = vunpack.c.l.b16 %v565
    %v2019 = vunpack.c.h.b16 %v565
    %v2020 = vunpack.c.l.b16 %v566
    %v2021 = vunpack.c.h.b16 %v566
    %v2022 = vunpack.c.l.b16 %v567
    %v2023 = vunpack.c.h.b16 %v567
    %v2024 = vunpack.c.l.b16 %v568
    %v2025 = vunpack.c.h.b16 %v568
    %v2026 = vunpack.c.l.b16 %v569
    %v2027 = vunpack.c.h.b16 %v569
    %v2028 = vunpack.c.l.b16 %v570
    %v2029 = vunpack.c.h.b16 %v570
    %v2030 = vunpack.c.l.b16 %v571
    %v2031 = vunpack.c.h.b16 %v571
    %v2032 = vunpack.c.l.b16 %v572
    %v2033 = vunpack.c.h.b16 %v572
    %v2034 = vunpack.c.l.b16 %v573
    %v2035 = vunpack.c.h.b16 %v573
    %v2036 = vunpack.c.l.b16 %v574
    %v2037 = vunpack.c.h.b16 %v574
    %v2038 = vunpack.c.l.b16 %v575
    %v2039 = vunpack.c.h.b16 %v575
    %v2040 = vunpack.c.l.b16 %v576
    %v2041 = vunpack.c.h.b16 %v576
    %v2042 = vunpack.c.l.b16 %v577
    %v2043 = vunpack.c.h.b16 %v577
    %v2044 = vunpack.c.l.b16 %v578
    %v2045 = vunpack.c.h.b16 %v578
    %v2046 = vunpack.c.l.b16 %v579
    %v2047 = vunpack.c.h.b16 %v579
    %v2048 = vunpack.c.l.b16 %v580
    %v2049 = vunpack.c.h.b16 %v580
    %v2050 = vunpack.c.l.b16 %v581
    %v2051 = vunpack.c.h.b16 %v581
    %v2052 = vunpack.c.l.b16 %v582
    %v2053 = vunpack.c.h.b16 %v582
    %v2054 = vunpack.c.l.b16 %v583
    %v2055 = vunpack.c.h.b16 %v583
    %v2056 = vunpack.c.l.b16 %v584
    %v2057 = vunpack.c.h.b16 %v584
    %v2058 = vunpack.c.l.b16 %v585
    %v2059 = vunpack.c.h.b16 %v585
    %v2060 = vunpack.c.l.b16 %v586
    %v2061 = vunpack.c.h.b16 %v586
    %v2062 = vunpack.c.l.b16 %v587
    %v2063 = vunpack.c.h.b16 %v587
    %v2064 = vunpack.c.l.b16 %v588
    %v2065 = vunpack.c.h.b16 %v588
    %v2066 = vunpack.c.l.b16 %v589
    %v2067 = vunpack.c.h.b16 %v589
    %v2068 = vunpack.c.l.b16 %v590
    %v2069 = vunpack.c.h.b16 %v590
    %v2070 = vunpack.c.l.b16 %v591
    %v2071 = vunpack.c.h.b16 %v591
    %v2072 = vunpack.c.l.b16 %v592
    %v2073 = vunpack.c.h.b16 %v592
    %v2074 = vunpack.c.l.b16 %v593
    %v2075 = vunpack.c.h.b16 %v593
    %v2076 = vunpack.c.l.b16 %v594
    %v2077 = vunpack.c.h.b16 %v594
    %v2078 = vunpack.c.l.b16 %v595
    %v2079 = vunpack.c.h.b16 %v595
    %v2080 = vunpack.c.l.b16 %v596
    %v2081 = vunpack.c.h.b16 %v596
    %v2082 = vunpack.c.l.b16 %v597
    %v2083 = vunpack.c.h.b16 %v597
    %v2084 = vunpack.c.l.b16 %v598
    %v2085 = vunpack.c.h.b16 %v598
    %v2086 = vunpack.c.l.b16 %v599
    %v2087 = vunpack.c.h.b16 %v599
    %v2088 = vunpack.c.l.b16 %v600
    %v2089 = vunpack.c.h.b16 %v600
    %v2090 = vunpack.c.l.b16 %v601
    %v2091 = vunpack.c.h.b16 %v601
    %v2092 = vunpack.c.l.b16 %v602
    %v2093 = vunpack.c.h.b16 %v602
    %v2094 = vunpack.c.l.b16 %v603
    %v2095 = vunpack.c.h.b16 %v603
    %v2096 = vunpack.c.l.b16 %v604
    %v2097 = vunpack.c.h.b16 %v604
    %v2098 = vunpack.c.l.b16 %v605
    %v2099 = vunpack.c.h.b16 %v605
    %v2100 = vunpack.c.l.b16 %v606
    %v2101 = vunpack.c.h.b16 %v606
    %v2102 = vunpack.c.l.b16 %v607
    %v2103 = vunpack.c.h.b16 %v607
    %v2104 = vunpack.c.l.b16 %v608
    %v2105 = vunpack.c.h.b16 %v608
    %v2106 = vunpack.c.l.b16 %v609
    %v2107 = vunpack.c.h.b16 %v609
    %v2108 = vunpack.c.l.b16 %v610
    %v2109 = vunpack.c.h.b16 %v610
    %v2110 = vunpack.c.l.b16 %v611
    %v2111 = vunpack.c.h.b16 %v611
    %v2112 = vunpack.c.l.b16 %v612
    %v2113 = vunpack.c.h.b16 %v612
    %v2114 = vunpack.c.l.b16 %v613
    %v2115 = vunpack.c.h.b16 %v613
    %v2116 = vunpack.c.l.b16 %v614
    %v2117 = vunpack.c.h.b16 %v614
    %v2118 = vunpack.c.l.b16 %v615
    %v2119 = vunpack.c.h.b16 %v615
    %v2120 = vunpack.c.l.b16 %v616
    %v2121 = vunpack.c.h.b16 %v616
    %v2122 = vunpack.c.l.b16 %v617
    %v2123 = vunpack.c.h.b16 %v617
    %v2124 = vunpack.c.l.b16 %v618
    %v2125 = vunpack.c.h.b16 %v618
    %v2126 = vunpack.c.l.b16 %v619
    %v2127 = vunpack.c.h.b16 %v619
    %v2128 = vunpack.c.l.b16 %v620
    %v2129 = vunpack.c.h.b16 %v620
    %v2130 = vunpack.c.l.b16 %v621
    %v2131 = vunpack.c.h.b16 %v621
    %v2132 = vunpack.c.l.b16 %v622
    %v2133 = vunpack.c.h.b16 %v622
    %v2134 = vunpack.c.l.b16 %v623
    %v2135 = vunpack.c.h.b16 %v623
    %v2136 = vunpack.c.l.b16 %v624
    %v2137 = vunpack.c.h.b16 %v624
    %v2138 = vunpack.c.l.b16 %v625
    %v2139 = vunpack.c.h.b16 %v625
    %v2140 = vunpack.c.l.b16 %v626
    %v2141 = vunpack.c.h.b16 %v626
    %v2142 = vunpack.c.l.b16 %v627
    %v2143 = vunpack.c.h.b16 %v627
    %v2144 = vunpack.c.l.b16 %v628
    %v2145 = vunpack.c.h.b16 %v628
    %v2146 = vunpack.c.l.b16 %v629
    %v2147 = vunpack.c.h.b16 %v629
    %v2148 = vunpack.c.l.b16 %v630
    %v2149 = vunpack.c.h.b16 %v630
    %v2150 = vunpack.c.l.b16 %v631
    %v2151 = vunpack.c.h.b16 %v631
    %v2152 = vunpack.c.l.b16 %v632
    %v2153 = vunpack.c.h.b16 %v632
    %v2154 = vunpack.c.l.b16 %v633
    %v2155 = vunpack.c.h.b16 %v633
    %v2156 = vunpack.c.l.b16 %v634
    %v2157 = vunpack.c.h.b16 %v634
    %v2158 = vunpack.c.l.b16 %v635
    %v2159 = vunpack.c.h.b16 %v635
    %v2160 = vunpack.c.l.b16 %v636
    %v2161 = vunpack.c.h.b16 %v636
    %v2162 = vunpack.c.l.b16 %v637
    %v2163 = vunpack.c.h.b16 %v637
    %v2164 = vunpack.c.l.b16 %v638
    %v2165 = vunpack.c.h.b16 %v638
    %v2166 = vunpack.c.l.b16 %v639
    %v2167 = vunpack.c.h.b16 %v639
    %v2168 = vunpack.c.l.b16 %v640
    %v2169 = vunpack.c.h.b16 %v640
    %v2170 = vunpack.c.l.b16 %v641
    %v2171 = vunpack.c.h.b16 %v641
    %v2172 = vunpack.c.l.b16 %v642
    %v2173 = vunpack.c.h.b16 %v642
    %v2174 = vunpack.c.l.b16 %v643
    %v2175 = vunpack.c.h.b16 %v643
    %v2176 = vunpack.c.l.b16 %v644
    %v2177 = vunpack.c.h.b16 %v644
    %v2178 = vunpack.c.l.b16 %v645
    %v2179 = vunpack.c.h.b16 %v645
    %v2180 = vunpack.c.l.b16 %v646
    %v2181 = vunpack.c.h.b16 %v646
    %v2182 = vunpack.c.l.b16 %v647
    %v2183 = vunpack.c.h.b16 %v647
    %v2184 = vunpack.c.l.b16 %v648
    %v2185 = vunpack.c.h.b16 %v648
    %v2186 = vunpack.c.l.b16 %v649
    %v2187 = vunpack.c.h.b16 %v649
    %v2188 = vunpack.c.l.b16 %v650
    %v2189 = vunpack.c.h.b16 %v650
    %v2190 = vunpack.c.l.b16 %v651
    %v2191 = vunpack.c.h.b16 %v651
    %v2192 = vunpack.c.l.b16 %v652
    %v2193 = vunpack.c.h.b16 %v652
    %v2194 = vunpack.c.l.b16 %v653
    %v2195 = vunpack.c.h.b16 %v653
    %v2196 = vpack.c.b16 %v1174, %v1172
    %v2197 = vpack.c.b16 %v1175, %v1173
    %v2198 = vpack.c.b16 %v1178, %v1176
    %v2199 = vpack.c.b16 %v1179, %v1177
    %v2200 = vpack.c.b16 %v1182, %v1180
    %v2201 = vpack.c.b16 %v1183, %v1181
    %v2202 = vpack.c.b16 %v1186, %v1184
    %v2203 = vpack.c.b16 %v1187, %v1185
    %v2204 = vpack.c.b16 %v1190, %v1188
    %v2205 = vpack.c.b16 %v1191, %v1189
    %v2206 = vpack.c.b16 %v1194, %v1192
    %v2207 = vpack.c.b16 %v1195, %v1193
    %v2208 = vpack.c.b16 %v1198, %v1196
    %v2209 = vpack.c.b16 %v1199, %v1197
    %v2210 = vpack.c.b16 %v1202, %v1200
    %v2211 = vpack.c.b16 %v1203, %v1201
    %v2212 = vpack.c.b16 %v1206, %v1204
    %v2213 = vpack.c.b16 %v1207, %v1205
    %v2214 = vpack.c.b16 %v1210, %v1208
    %v2215 = vpack.c.b16 %v1211, %v1209
    %v2216 = vpack.c.b16 %v1214, %v1212
    %v2217 = vpack.c.b16 %v1215, %v1213
    %v2218 = vpack.c.b16 %v1218, %v1216
    %v2219 = vpack.c.b16 %v1219, %v1217
    %v2220 = vpack.c.b16 %v1222, %v1220
    %v2221 = vpack.c.b16 %v1223, %v1221
    %v2222 = vpack.c.b16 %v1226, %v1224
    %v2223 = vpack.c.b16 %v1227, %v1225
    %v2224 = vpack.c.b16 %v1230, %v1228
    %v2225 = vpack.c.b16 %v1231, %v1229
    %v2226 = vpack.c.b16 %v1234, %v1232
    %v2227 = vpack.c.b16 %v1235, %v1233
    %v2228 = vpack.c.b16 %v1238, %v1236
    %v2229 = vpack.c.b16 %v1239, %v1237
    %v2230 = vpack.c.b16 %v1242, %v1240
    %v2231 = vpack.c.b16 %v1243, %v1241
    %v2232 = vpack.c.b16 %v1246, %v1244
    %v2233 = vpack.c.b16 %v1247, %v1245
    %v2234 = vpack.c.b16 %v1250, %v1248
    %v2235 = vpack.c.b16 %v1251, %v1249
    %v2236 = vpack.c.b16 %v1254, %v1252
    %v2237 = vpack.c.b16 %v1255, %v1253
    %v2238 = vpack.c.b16 %v1258, %v1256
    %v2239 = vpack.c.b16 %v1259, %v1257
    %v2240 = vpack.c.b16 %v1262, %v1260
    %v2241 = vpack.c.b16 %v1263, %v1261
    %v2242 = vpack.c.b16 %v1266, %v1264
    %v2243 = vpack.c.b16 %v1267, %v1265
    %v2244 = vpack.c.b16 %v1270, %v1268
    %v2245 = vpack.c.b16 %v1271, %v1269
    %v2246 = vpack.c.b16 %v1274, %v1272
    %v2247 = vpack.c.b16 %v1275, %v1273
    %v2248 = vpack.c.b16 %v1278, %v1276
    %v2249 = vpack.c.b16 %v1279, %v1277
    %v2250 = vpack.c.b16 %v1282, %v1280
    %v2251 = vpack.c.b16 %v1283, %v1281
    %v2252 = vpack.c.b16 %v1286, %v1284
    %v2253 = vpack.c.b16 %v1287, %v1285
    %v2254 = vpack.c.b16 %v1290, %v1288
    %v2255 = vpack.c.b16 %v1291, %v1289
    %v2256 = vpack.c.b16 %v1294, %v1292
    %v2257 = vpack.c.b16 %v1295, %v1293
    %v2258 = vpack.c.b16 %v1298, %v1296
    %v2259 = vpack.c.b16 %v1299, %v1297
    %v2260 = vpack.c.b16 %v1302, %v1300
    %v2261 = vpack.c.b16 %v1303, %v1301
    %v2262 = vpack.c.b16 %v1306, %v1304
    %v2263 = vpack.c.b16 %v1307, %v1305
    %v2264 = vpack.c.b16 %v1310, %v1308
    %v2265 = vpack.c.b16 %v1311, %v1309
    %v2266 = vpack.c.b16 %v1314, %v1312
    %v2267 = vpack.c.b16 %v1315, %v1313
    %v2268 = vpack.c.b16 %v1318, %v1316
    %v2269 = vpack.c.b16 %v1319, %v1317
    %v2270 = vpack.c.b16 %v1322, %v1320
    %v2271 = vpack.c.b16 %v1323, %v1321
    %v2272 = vpack.c.b16 %v1326, %v1324
    %v2273 = vpack.c.b16 %v1327, %v1325
    %v2274 = vpack.c.b16 %v1330, %v1328
    %v2275 = vpack.c.b16 %v1331, %v1329
    %v2276 = vpack.c.b16 %v1334, %v1332
    %v2277 = vpack.c.b16 %v1335, %v1333
    %v2278 = vpack.c.b16 %v1338, %v1336
    %v2279 = vpack.c.b16 %v1339, %v1337
    %v2280 = vpack.c.b16 %v1342, %v1340
    %v2281 = vpack.c.b16 %v1343, %v1341
    %v2282 = vpack.c.b16 %v1346, %v1344
    %v2283 = vpack.c.b16 %v1347, %v1345
    %v2284 = vpack.c.b16 %v1350, %v1348
    %v2285 = vpack.c.b16 %v1351, %v1349
    %v2286 = vpack.c.b16 %v1354, %v1352
    %v2287 = vpack.c.b16 %v1355, %v1353
    %v2288 = vpack.c.b16 %v1358, %v1356
    %v2289 = vpack.c.b16 %v1359, %v1357
    %v2290 = vpack.c.b16 %v1362, %v1360
    %v2291 = vpack.c.b16 %v1363, %v1361
    %v2292 = vpack.c.b16 %v1366, %v1364
    %v2293 = vpack.c.b16 %v1367, %v1365
    %v2294 = vpack.c.b16 %v1370, %v1368
    %v2295 = vpack.c.b16 %v1371, %v1369
    %v2296 = vpack.c.b16 %v1374, %v1372
    %v2297 = vpack.c.b16 %v1375, %v1373
    %v2298 = vpack.c.b16 %v1378, %v1376
    %v2299 = vpack.c.b16 %v1379, %v1377
    %v2300 = vpack.c.b16 %v1382, %v1380
    %v2301 = vpack.c.b16 %v1383, %v1381
    %v2302 = vpack.c.b16 %v1386, %v1384
    %v2303 = vpack.c.b16 %v1387, %v1385
    %v2304 = vpack.c.b16 %v1390, %v1388
    %v2305 = vpack.c.b16 %v1391, %v1389
    %v2306 = vpack.c.b16 %v1394, %v1392
    %v2307 = vpack.c.b16 %v1395, %v1393
    %v2308 = vpack.c.b16 %v1398, %v1396
    %v2309 = vpack.c.b16 %v1399, %v1397
    %v2310 = vpack.c.b16 %v1402, %v1400
    %v2311 = vpack.c.b16 %v1403, %v1401
    %v2312 = vpack.c.b16 %v1406, %v1404
    %v2313 = vpack.c.b16 %v1407, %v1405
    %v2314 = vpack.c.b16 %v1410, %v1408
    %v2315 = vpack.c.b16 %v1411, %v1409
    %v2316 = vpack.c.b16 %v1414, %v1412
    %v2317 = vpack.c.b16 %v1415, %v1413
    %v2318 = vpack.c.b16 %v1418, %v1416
    %v2319 = vpack.c.b16 %v1419, %v1417
    %v2320 = vpack.c.b16 %v1422, %v1420
    %v2321 = vpack.c.b16 %v1423, %v1421
    %v2322 = vpack.c.b16 %v1426, %v1424
    %v2323 = vpack.c.b16 %v1427, %v1425
    %v2324 = vpack.c.b16 %v1430, %v1428
    %v2325 = vpack.c.b16 %v1431, %v1429
    %v2326 = vpack.c.b16 %v1434, %v1432
    %v2327 = vpack.c.b16 %v1435, %v1433
    %v2328 = vpack.c.b16 %v1438, %v1436
    %v2329 = vpack.c.b16 %v1439, %v1437
    %v2330 = vpack.c.b16 %v1442, %v1440
    %v2331 = vpack.c.b16 %v1443, %v1441
    %v2332 = vpack.c.b16 %v1446, %v1444
    %v2333 = vpack.c.b16 %v1447, %v1445
    %v2334 = vpack.c.b16 %v1450, %v1448
    %v2335 = vpack.c.b16 %v1451, %v1449
    %v2336 = vpack.c.b16 %v1454, %v1452
    %v2337 = vpack.c.b16 %v1455, %v1453
    %v2338 = vpack.c.b16 %v1458, %v1456
    %v2339 = vpack.c.b16 %v1459, %v1457
    %v2340 = vpack.c.b16 %v1462, %v1460
    %v2341 = vpack.c.b16 %v1463, %v1461
    %v2342 = vpack.c.b16 %v1466, %v1464
    %v2343 = vpack.c.b16 %v1467, %v1465
    %v2344 = vpack.c.b16 %v1470, %v1468
    %v2345 = vpack.c.b16 %v1471, %v1469
    %v2346 = vpack.c.b16 %v1474, %v1472
    %v2347 = vpack.c.b16 %v1475, %v1473
    %v2348 = vpack.c.b16 %v1478, %v1476
    %v2349 = vpack.c.b16 %v1479, %v1477
    %v2350 = vpack.c.b16 %v1482, %v1480
    %v2351 = vpack.c.b16 %v1483, %v1481
    %v2352 = vpack.c.b16 %v1486, %v1484
    %v2353 = vpack.c.b16 %v1487, %v1485
    %v2354 = vpack.c.b16 %v1490, %v1488
    %v2355 = vpack.c.b16 %v1491, %v1489
    %v2356 = vpack.c.b16 %v1494, %v1492
    %v2357 = vpack.c.b16 %v1495, %v1493
    %v2358 = vpack.c.b16 %v1498, %v1496
    %v2359 = vpack.c.b16 %v1499, %v1497
    %v2360 = vpack.c.b16 %v1502, %v1500
    %v2361 = vpack.c.b16 %v1503, %v1501
    %v2362 = vpack.c.b16 %v1506, %v1504
    %v2363 = vpack.c.b16 %v1507, %v1505
    %v2364 = vpack.c.b16 %v1510, %v1508
    %v2365 = vpack.c.b16 %v1511, %v1509
    %v2366 = vpack.c.b16 %v1514, %v1512
    %v2367 = vpack.c.b16 %v1515, %v1513
    %v2368 = vpack.c.b16 %v1518, %v1516
    %v2369 = vpack.c.b16 %v1519, %v1517
    %v2370 = vpack.c.b16 %v1522, %v1520
    %v2371 = vpack.c.b16 %v1523, %v1521
    %v2372 = vpack.c.b16 %v1526, %v1524
    %v2373 = vpack.c.b16 %v1527, %v1525
    %v2374 = vpack.c.b16 %v1530, %v1528
    %v2375 = vpack.c.b16 %v1531, %v1529
    %v2376 = vpack.c.b16 %v1534, %v1532
    %v2377 = vpack.c.b16 %v1535, %v1533
    %v2378 = vpack.c.b16 %v1538, %v1536
    %v2379 = vpack.c.b16 %v1539, %v1537
    %v2380 = vpack.c.b16 %v1542, %v1540
    %v2381 = vpack.c.b16 %v1543, %v1541
    %v2382 = vpack.c.b16 %v1546, %v1544
    %v2383 = vpack.c.b16 %v1547, %v1545
    %v2384 = vpack.c.b16 %v1550, %v1548
    %v2385 = vpack.c.b16 %v1551, %v1549
    %v2386 = vpack.c.b16 %v1554, %v1552
    %v2387 = vpack.c.b16 %v1555, %v1553
    %v2388 = vpack.c.b16 %v1558, %v1556
    %v2389 = vpack.c.b16 %v1559, %v1557
    %v2390 = vpack.c.b16 %v1562, %v1560
    %v2391 = vpack.c.b16 %v1563, %v1561
    %v2392 = vpack.c.b16 %v1566, %v1564
    %v2393 = vpack.c.b16 %v1567, %v1565
    %v2394 = vpack.c.b16 %v1570, %v1568
    %v2395 = vpack.c.b16 %v1571, %v1569
    %v2396 = vpack.c.b16 %v1574, %v1572
    %v2397 = vpack.c.b16 %v1575, %v1573
    %v2398 = vpack.c.b16 %v1578, %v1576
    %v2399 = vpack.c.b16 %v1579, %v1577
    %v2400 = vpack.c.b16 %v1582, %v1580
    %v2401 = vpack.c.b16 %v1583, %v1581
    %v2402 = vpack.c.b16 %v1586, %v1584
    %v2403 = vpack.c.b16 %v1587, %v1585
    %v2404 = vpack.c.b16 %v1590, %v1588
    %v2405 = vpack.c.b16 %v1591, %v1589
    %v2406 = vpack.c.b16 %v1594, %v1592
    %v2407 = vpack.c.b16 %v1595, %v1593
    %v2408 = vpack.c.b16 %v1598, %v1596
    %v2409 = vpack.c.b16 %v1599, %v1597
    %v2410 = vpack.c.b16 %v1602, %v1600
    %v2411 = vpack.c.b16 %v1603, %v1601
    %v2412 = vpack.c.b16 %v1606, %v1604
    %v2413 = vpack.c.b16 %v1607, %v1605
    %v2414 = vpack.c.b16 %v1610, %v1608
    %v2415 = vpack.c.b16 %v1611, %v1609
    %v2416 = vpack.c.b16 %v1614, %v1612
    %v2417 = vpack.c.b16 %v1615, %v1613
    %v2418 = vpack.c.b16 %v1618, %v1616
    %v2419 = vpack.c.b16 %v1619, %v1617
    %v2420 = vpack.c.b16 %v1622, %v1620
    %v2421 = vpack.c.b16 %v1623, %v1621
    %v2422 = vpack.c.b16 %v1626, %v1624
    %v2423 = vpack.c.b16 %v1627, %v1625
    %v2424 = vpack.c.b16 %v1630, %v1628
    %v2425 = vpack.c.b16 %v1631, %v1629
    %v2426 = vpack.c.b16 %v1634, %v1632
    %v2427 = vpack.c.b16 %v1635, %v1633
    %v2428 = vpack.c.b16 %v1638, %v1636
    %v2429 = vpack.c.b16 %v1639, %v1637
    %v2430 = vpack.c.b16 %v1642, %v1640
    %v2431 = vpack.c.b16 %v1643, %v1641
    %v2432 = vpack.c.b16 %v1646, %v1644
    %v2433 = vpack.c.b16 %v1647, %v1645
    %v2434 = vpack.c.b16 %v1650, %v1648
    %v2435 = vpack.c.b16 %v1651, %v1649
    %v2436 = vpack.c.b16 %v1654, %v1652
    %v2437 = vpack.c.b16 %v1655, %v1653
    %v2438 = vpack.c.b16 %v1658, %v1656
    %v2439 = vpack.c.b16 %v1659, %v1657
    %v2440 = vpack.c.b16 %v1662, %v1660
    %v2441 = vpack.c.b16 %v1663, %v1661
    %v2442 = vpack.c.b16 %v1666, %v1664
    %v2443 = vpack.c.b16 %v1667, %v1665
    %v2444 = vpack.c.b16 %v1670, %v1668
    %v2445 = vpack.c.b16 %v1671, %v1669
    %v2446 = vpack.c.b16 %v1674, %v1672
    %v2447 = vpack.c.b16 %v1675, %v1673
    %v2448 = vpack.c.b16 %v1678, %v1676
    %v2449 = vpack.c.b16 %v1679, %v1677
    %v2450 = vpack.c.b16 %v1682, %v1680
    %v2451 = vpack.c.b16 %v1683, %v1681
    %v2452 = vpack.c.b16 %v1686, %v1684
    %v2453 = vpack.c.b16 %v1687, %v1685
    %v2454 = vpack.c.b16 %v1690, %v1688
    %v2455 = vpack.c.b16 %v1691, %v1689
    %v2456 = vpack.c.b16 %v1694, %v1692
    %v2457 = vpack.c.b16 %v1695, %v1693
    %v2458 = vpack.c.b16 %v1698, %v1696
    %v2459 = vpack.c.b16 %v1699, %v1697
    %v2460 = vpack.c.b16 %v1702, %v1700
    %v2461 = vpack.c.b16 %v1703, %v1701
    %v2462 = vpack.c.b16 %v1706, %v1704
    %v2463 = vpack.c.b16 %v1707, %v1705
    %v2464 = vpack.c.b16 %v1710, %v1708
    %v2465 = vpack.c.b16 %v1711, %v1709
    %v2466 = vpack.c.b16 %v1714, %v1712
    %v2467 = vpack.c.b16 %v1715, %v1713
    %v2468 = vpack.c.b16 %v1718, %v1716
    %v2469 = vpack.c.b16 %v1719, %v1717
    %v2470 = vpack.c.b16 %v1722, %v1720
    %v2471 = vpack.c.b16 %v1723, %v1721
    %v2472 = vpack.c.b16 %v1726, %v1724
    %v2473 = vpack.c.b16 %v1727, %v1725
    %v2474 = vpack.c.b16 %v1730, %v1728
    %v2475 = vpack.c.b16 %v1731, %v1729
    %v2476 = vpack.c.b16 %v1734, %v1732
    %v2477 = vpack.c.b16 %v1735, %v1733
    %v2478 = vpack.c.b16 %v1738, %v1736
    %v2479 = vpack.c.b16 %v1739, %v1737
    %v2480 = vpack.c.b16 %v1742, %v1740
    %v2481 = vpack.c.b16 %v1743, %v1741
    %v2482 = vpack.c.b16 %v1746, %v1744
    %v2483 = vpack.c.b16 %v1747, %v1745
    %v2484 = vpack.c.b16 %v1750, %v1748
    %v2485 = vpack.c.b16 %v1751, %v1749
    %v2486 = vpack.c.b16 %v1754, %v1752
    %v2487 = vpack.c.b16 %v1755, %v1753
    %v2488 = vpack.c.b16 %v1758, %v1756
    %v2489 = vpack.c.b16 %v1759, %v1757
    %v2490 = vpack.c.b16 %v1762, %v1760
    %v2491 = vpack.c.b16 %v1763, %v1761
    %v2492 = vpack.c.b16 %v1766, %v1764
    %v2493 = vpack.c.b16 %v1767, %v1765
    %v2494 = vpack.c.b16 %v1770, %v1768
    %v2495 = vpack.c.b16 %v1771, %v1769
    %v2496 = vpack.c.b16 %v1774, %v1772
    %v2497 = vpack.c.b16 %v1775, %v1773
    %v2498 = vpack.c.b16 %v1778, %v1776
    %v2499 = vpack.c.b16 %v1779, %v1777
    %v2500 = vpack.c.b16 %v1782, %v1780
    %v2501 = vpack.c.b16 %v1783, %v1781
    %v2502 = vpack.c.b16 %v1786, %v1784
    %v2503 = vpack.c.b16 %v1787, %v1785
    %v2504 = vpack.c.b16 %v1790, %v1788
    %v2505 = vpack.c.b16 %v1791, %v1789
    %v2506 = vpack.c.b16 %v1794, %v1792
    %v2507 = vpack.c.b16 %v1795, %v1793
    %v2508 = vpack.c.b16 %v1798, %v1796
    %v2509 = vpack.c.b16 %v1799, %v1797
    %v2510 = vpack.c.b16 %v1802, %v1800
    %v2511 = vpack.c.b16 %v1803, %v1801
    %v2512 = vpack.c.b16 %v1806, %v1804
    %v2513 = vpack.c.b16 %v1807, %v1805
    %v2514 = vpack.c.b16 %v1810, %v1808
    %v2515 = vpack.c.b16 %v1811, %v1809
    %v2516 = vpack.c.b16 %v1814, %v1812
    %v2517 = vpack.c.b16 %v1815, %v1813
    %v2518 = vpack.c.b16 %v1818, %v1816
    %v2519 = vpack.c.b16 %v1819, %v1817
    %v2520 = vpack.c.b16 %v1822, %v1820
    %v2521 = vpack.c.b16 %v1823, %v1821
    %v2522 = vpack.c.b16 %v1826, %v1824
    %v2523 = vpack.c.b16 %v1827, %v1825
    %v2524 = vpack.c.b16 %v1830, %v1828
    %v2525 = vpack.c.b16 %v1831, %v1829
    %v2526 = vpack.c.b16 %v1834, %v1832
    %v2527 = vpack.c.b16 %v1835, %v1833
    %v2528 = vpack.c.b16 %v1838, %v1836
    %v2529 = vpack.c.b16 %v1839, %v1837
    %v2530 = vpack.c.b16 %v1842, %v1840
    %v2531 = vpack.c.b16 %v1843, %v1841
    %v2532 = vpack.c.b16 %v1846, %v1844
    %v2533 = vpack.c.b16 %v1847, %v1845
    %v2534 = vpack.c.b16 %v1850, %v1848
    %v2535 = vpack.c.b16 %v1851, %v1849
    %v2536 = vpack.c.b16 %v1854, %v1852
    %v2537 = vpack.c.b16 %v1855, %v1853
    %v2538 = vpack.c.b16 %v1858, %v1856
    %v2539 = vpack.c.b16 %v1859, %v1857
    %v2540 = vpack.c.b16 %v1862, %v1860
    %v2541 = vpack.c.b16 %v1863, %v1861
    %v2542 = vpack.c.b16 %v1866, %v1864
    %v2543 = vpack.c.b16 %v1867, %v1865
    %v2544 = vpack.c.b16 %v1870, %v1868
    %v2545 = vpack.c.b16 %v1871, %v1869
    %v2546 = vpack.c.b16 %v1874, %v1872
    %v2547 = vpack.c.b16 %v1875, %v1873
    %v2548 = vpack.c.b16 %v1878, %v1876
    %v2549 = vpack.c.b16 %v1879, %v1877
    %v2550 = vpack.c.b16 %v1882, %v1880
    %v2551 = vpack.c.b16 %v1883, %v1881
    %v2552 = vpack.c.b16 %v1886, %v1884
    %v2553 = vpack.c.b16 %v1887, %v1885
    %v2554 = vpack.c.b16 %v1890, %v1888
    %v2555 = vpack.c.b16 %v1891, %v1889
    %v2556 = vpack.c.b16 %v1894, %v1892
    %v2557 = vpack.c.b16 %v1895, %v1893
    %v2558 = vpack.c.b16 %v1898, %v1896
    %v2559 = vpack.c.b16 %v1899, %v1897
    %v2560 = vpack.c.b16 %v1902, %v1900
    %v2561 = vpack.c.b16 %v1903, %v1901
    %v2562 = vpack.c.b16 %v1906, %v1904
    %v2563 = vpack.c.b16 %v1907, %v1905
    %v2564 = vpack.c.b16 %v1910, %v1908
    %v2565 = vpack.c.b16 %v1911, %v1909
    %v2566 = vpack.c.b16 %v1914, %v1912
    %v2567 = vpack.c.b16 %v1915, %v1913
    %v2568 = vpack.c.b16 %v1918, %v1916
    %v2569 = vpack.c.b16 %v1919, %v1917
    %v2570 = vpack.c.b16 %v1922, %v1920
    %v2571 = vpack.c.b16 %v1923, %v1921
    %v2572 = vpack.c.b16 %v1926, %v1924
    %v2573 = vpack.c.b16 %v1927, %v1925
    %v2574 = vpack.c.b16 %v1930, %v1928
    %v2575 = vpack.c.b16 %v1931, %v1929
    %v2576 = vpack.c.b16 %v1934, %v1932
    %v2577 = vpack.c.b16 %v1935, %v1933
    %v2578 = vpack.c.b16 %v1938, %v1936
    %v2579 = vpack.c.b16 %v1939, %v1937
    %v2580 = vpack.c.b16 %v1942, %v1940
    %v2581 = vpack.c.b16 %v1943, %v1941
    %v2582 = vpack.c.b16 %v1946, %v1944
    %v2583 = vpack.c.b16 %v1947, %v1945
    %v2584 = vpack.c.b16 %v1950, %v1948
    %v2585 = vpack.c.b16 %v1951, %v1949
    %v2586 = vpack.c.b16 %v1954, %v1952
    %v2587 = vpack.c.b16 %v1955, %v1953
    %v2588 = vpack.c.b16 %v1958, %v1956
    %v2589 = vpack.c.b16 %v1959, %v1957
    %v2590 = vpack.c.b16 %v1962, %v1960
    %v2591 = vpack.c.b16 %v1963, %v1961
    %v2592 = vpack.c.b16 %v1966, %v1964
    %v2593 = vpack.c.b16 %v1967, %v1965
    %v2594 = vpack.c.b16 %v1970, %v1968
    %v2595 = vpack.c.b16 %v1971, %v1969
    %v2596 = vpack.c.b16 %v1974, %v1972
    %v2597 = vpack.c.b16 %v1975, %v1973
    %v2598 = vpack.c.b16 %v1978, %v1976
    %v2599 = vpack.c.b16 %v1979, %v1977
    %v2600 = vpack.c.b16 %v1982, %v1980
    %v2601 = vpack.c.b16 %v1983, %v1981
    %v2602 = vpack.c.b16 %v1986, %v1984
    %v2603 = vpack.c.b16 %v1987, %v1985
    %v2604 = vpack.c.b16 %v1990, %v1988
    %v2605 = vpack.c.b16 %v1991, %v1989
    %v2606 = vpack.c.b16 %v1994, %v1992
    %v2607 = vpack.c.b16 %v1995, %v1993
    %v2608 = vpack.c.b16 %v1998, %v1996
    %v2609 = vpack.c.b16 %v1999, %v1997
    %v2610 = vpack.c.b16 %v2002, %v2000
    %v2611 = vpack.c.b16 %v2003, %v2001
    %v2612 = vpack.c.b16 %v2006, %v2004
    %v2613 = vpack.c.b16 %v2007, %v2005
    %v2614 = vpack.c.b16 %v2010, %v2008
    %v2615 = vpack.c.b16 %v2011, %v2009
    %v2616 = vpack.c.b16 %v2014, %v2012
    %v2617 = vpack.c.b16 %v2015, %v2013
    %v2618 = vpack.c.b16 %v2018, %v2016
    %v2619 = vpack.c.b16 %v2019, %v2017
    %v2620 = vpack.c.b16 %v2022, %v2020
    %v2621 = vpack.c.b16 %v2023, %v2021
    %v2622 = vpack.c.b16 %v2026, %v2024
    %v2623 = vpack.c.b16 %v2027, %v2025
    %v2624 = vpack.c.b16 %v2030, %v2028
    %v2625 = vpack.c.b16 %v2031, %v2029
    %v2626 = vpack.c.b16 %v2034, %v2032
    %v2627 = vpack.c.b16 %v2035, %v2033
    %v2628 = vpack.c.b16 %v2038, %v2036
    %v2629 = vpack.c.b16 %v2039, %v2037
    %v2630 = vpack.c.b16 %v2042, %v2040
    %v2631 = vpack.c.b16 %v2043, %v2041
    %v2632 = vpack.c.b16 %v2046, %v2044
    %v2633 = vpack.c.b16 %v2047, %v2045
    %v2634 = vpack.c.b16 %v2050, %v2048
    %v2635 = vpack.c.b16 %v2051, %v2049
    %v2636 = vpack.c.b16 %v2054, %v2052
    %v2637 = vpack.c.b16 %v2055, %v2053
    %v2638 = vpack.c.b16 %v2058, %v2056
    %v2639 = vpack.c.b16 %v2059, %v2057
    %v2640 = vpack.c.b16 %v2062, %v2060
    %v2641 = vpack.c.b16 %v2063, %v2061
    %v2642 = vpack.c.b16 %v2066, %v2064
    %v2643 = vpack.c.b16 %v2067, %v2065
    %v2644 = vpack.c.b16 %v2070, %v2068
    %v2645 = vpack.c.b16 %v2071, %v2069
    %v2646 = vpack.c.b16 %v2074, %v2072
    %v2647 = vpack.c.b16 %v2075, %v2073
    %v2648 = vpack.c.b16 %v2078, %v2076
    %v2649 = vpack.c.b16 %v2079, %v2077
    %v2650 = vpack.c.b16 %v2082, %v2080
    %v2651 = vpack.c.b16 %v2083, %v2081
    %v2652 = vpack.c.b16 %v2086, %v2084
    %v2653 = vpack.c.b16 %v2087, %v2085
    %v2654 = vpack.c.b16 %v2090, %v2088
    %v2655 = vpack.c.b16 %v2091, %v2089
    %v2656 = vpack.c.b16 %v2094, %v2092
    %v2657 = vpack.c.b16 %v2095, %v2093
    %v2658 = vpack.c.b16 %v2098, %v2096
    %v2659 = vpack.c.b16 %v2099, %v2097
    %v2660 = vpack.c.b16 %v2102, %v2100
    %v2661 = vpack.c.b16 %v2103, %v2101
    %v2662 = vpack.c.b16 %v2106, %v2104
    %v2663 = vpack.c.b16 %v2107, %v2105
    %v2664 = vpack.c.b16 %v2110, %v2108
    %v2665 = vpack.c.b16 %v2111, %v2109
    %v2666 = vpack.c.b16 %v2114, %v2112
    %v2667 = vpack.c.b16 %v2115, %v2113
    %v2668 = vpack.c.b16 %v2118, %v2116
    %v2669 = vpack.c.b16 %v2119, %v2117
    %v2670 = vpack.c.b16 %v2122, %v2120
    %v2671 = vpack.c.b16 %v2123, %v2121
    %v2672 = vpack.c.b16 %v2126, %v2124
    %v2673 = vpack.c.b16 %v2127, %v2125
    %v2674 = vpack.c.b16 %v2130, %v2128
    %v2675 = vpack.c.b16 %v2131, %v2129
    %v2676 = vpack.c.b16 %v2134, %v2132
    %v2677 = vpack.c.b16 %v2135, %v2133
    %v2678 = vpack.c.b16 %v2138, %v2136
    %v2679 = vpack.c.b16 %v2139, %v2137
    %v2680 = vpack.c.b16 %v2142, %v2140
    %v2681 = vpack.c.b16 %v2143, %v2141
    %v2682 = vpack.c.b16 %v2146, %v2144
    %v2683 = vpack.c.b16 %v2147, %v2145
    %v2684 = vpack.c.b16 %v2150, %v2148
    %v2685 = vpack.c.b16 %v2151, %v2149
    %v2686 = vpack.c.b16 %v2154, %v2152
    %v2687 = vpack.c.b16 %v2155, %v2153
    %v2688 = vpack.c.b16 %v2158, %v2156
    %v2689 = vpack.c.b16 %v2159, %v2157
    %v2690 = vpack.c.b16 %v2162, %v2160
    %v2691 = vpack.c.b16 %v2163, %v2161
    %v2692 = vpack.c.b16 %v2166, %v2164
    %v2693 = vpack.c.b16 %v2167, %v2165
    %v2694 = vpack.c.b16 %v2170, %v2168
    %v2695 = vpack.c.b16 %v2171, %v2169
    %v2696 = vpack.c.b16 %v2174, %v2172
    %v2697 = vpack.c.b16 %v2175, %v2173
    %v2698 = vpack.c.b16 %v2178, %v2176
    %v2699 = vpack.c.b16 %v2179, %v2177
    %v2700 = vpack.c.b16 %v2182, %v2180
    %v2701 = vpack.c.b16 %v2183, %v2181
    %v2702 = vpack.c.b16 %v2186, %v2184
    %v2703 = vpack.c.b16 %v2187, %v2185
    %v2704 = vpack.c.b16 %v2190, %v2188
    %v2705 = vpack.c.b16 %v2191, %v2189
    %v2706 = vpack.c.b16 %v2194, %v2192
    %v2707 = vpack.c.b16 %v2195, %v2193
    %3220 = vmatpush.bf16.msra.mxu0 %v2210
    %3221 = vmatpush.bf16.msra.mxu0 %v2208
    %3222 = vmatpush.bf16.msra.mxu0 %v2206
    %3223 = vmatpush.bf16.msra.mxu0 %v2204
    %3224 = vmatpush.bf16.msra.mxu0 %v2202
    %3225 = vmatpush.bf16.msra.mxu0 %v2200
    %3226 = vmatpush.bf16.msra.mxu0 %v2198
    %3227 = vmatpush.bf16.msra.mxu0 %v2196
    %3228 = vmatmul.bf16.gmra.mxu0 %v110
    %v3229 = vpop.f32.mrf.mxu0
    %v3230 = vadd.f32 %v656, %v3229
    %v3231 = vpop.f32.mrf.mxu0
    %3232 = vdwg.mxu0
    %3233 = vmatpush.bf16.msra.mxu0 %v2226
    %3234 = vmatpush.bf16.msra.mxu0 %v2224
    %3235 = vmatpush.bf16.msra.mxu0 %v2222
    %3236 = vmatpush.bf16.msra.mxu0 %v2220
    %3237 = vmatpush.bf16.msra.mxu0 %v2218
    %3238 = vmatpush.bf16.msra.mxu0 %v2216
    %3239 = vmatpush.bf16.msra.mxu0 %v2214
    %3240 = vmatpush.bf16.msra.mxu0 %v2212
    %3241 = vmatmul.bf16.gmra.mxu0 %v111
    %v3242 = vpop.f32.mrf.mxu0
    %v3243 = vadd.f32 %v3230, %v3242
    %v3244 = vpop.f32.mrf.mxu0
    %3245 = vdwg.mxu0
    %3246 = vmatpush.bf16.msra.mxu0 %v2242
    %3247 = vmatpush.bf16.msra.mxu0 %v2240
    %3248 = vmatpush.bf16.msra.mxu0 %v2238
    %3249 = vmatpush.bf16.msra.mxu0 %v2236
    %3250 = vmatpush.bf16.msra.mxu0 %v2234
    %3251 = vmatpush.bf16.msra.mxu0 %v2232
    %3252 = vmatpush.bf16.msra.mxu0 %v2230
    %3253 = vmatpush.bf16.msra.mxu0 %v2228
    %3254 = vmatmul.bf16.gmra.mxu0 %v112
    %v3255 = vpop.f32.mrf.mxu0
    %v3256 = vadd.f32 %v3243, %v3255
    %v3257 = vpop.f32.mrf.mxu0
    %3258 = vdwg.mxu0
    %3259 = vmatpush.bf16.msra.mxu0 %v2258
    %3260 = vmatpush.bf16.msra.mxu0 %v2256
    %3261 = vmatpush.bf16.msra.mxu0 %v2254
    %3262 = vmatpush.bf16.msra.mxu0 %v2252
    %3263 = vmatpush.bf16.msra.mxu0 %v2250
    %3264 = vmatpush.bf16.msra.mxu0 %v2248
    %3265 = vmatpush.bf16.msra.mxu0 %v2246
    %3266 = vmatpush.bf16.msra.mxu0 %v2244
    %3267 = vmatmul.bf16.gmra.mxu0 %v113
    %v3268 = vpop.f32.mrf.mxu0
    %v3269 = vadd.f32 %v3256, %v3268
    %v3270 = vpop.f32.mrf.mxu0
    %3271 = vdwg.mxu0
    %3272 = vmatpush.bf16.msra.mxu0 %v2274
    %3273 = vmatpush.bf16.msra.mxu0 %v2272
    %3274 = vmatpush.bf16.msra.mxu0 %v2270
    %3275 = vmatpush.bf16.msra.mxu0 %v2268
    %3276 = vmatpush.bf16.msra.mxu0 %v2266
    %3277 = vmatpush.bf16.msra.mxu0 %v2264
    %3278 = vmatpush.bf16.msra.mxu0 %v2262
    %3279 = vmatpush.bf16.msra.mxu0 %v2260
    %3280 = vmatmul.bf16.gmra.mxu0 %v114
    %v3281 = vpop.f32.mrf.mxu0
    %v3282 = vadd.f32 %v3269, %v3281
    %v3283 = vpop.f32.mrf.mxu0
    %3284 = vdwg.mxu0
    %3285 = vmatpush.bf16.msra.mxu0 %v2290
    %3286 = vmatpush.bf16.msra.mxu0 %v2288
    %3287 = vmatpush.bf16.msra.mxu0 %v2286
    %3288 = vmatpush.bf16.msra.mxu0 %v2284
    %3289 = vmatpush.bf16.msra.mxu0 %v2282
    %3290 = vmatpush.bf16.msra.mxu0 %v2280
    %3291 = vmatpush.bf16.msra.mxu0 %v2278
    %3292 = vmatpush.bf16.msra.mxu0 %v2276
    %3293 = vmatmul.bf16.gmra.mxu0 %v115
    %v3294 = vpop.f32.mrf.mxu0
    %v3295 = vadd.f32 %v3282, %v3294
    %v3296 = vpop.f32.mrf.mxu0
    %3297 = vdwg.mxu0
    %3298 = vmatpush.bf16.msra.mxu0 %v2306
    %3299 = vmatpush.bf16.msra.mxu0 %v2304
    %3300 = vmatpush.bf16.msra.mxu0 %v2302
    %3301 = vmatpush.bf16.msra.mxu0 %v2300
    %3302 = vmatpush.bf16.msra.mxu0 %v2298
    %3303 = vmatpush.bf16.msra.mxu0 %v2296
    %3304 = vmatpush.bf16.msra.mxu0 %v2294
    %3305 = vmatpush.bf16.msra.mxu0 %v2292
    %3306 = vmatmul.bf16.gmra.mxu0 %v116
    %v3307 = vpop.f32.mrf.mxu0
    %v3308 = vadd.f32 %v3295, %v3307
    %v3309 = vpop.f32.mrf.mxu0
    %3310 = vdwg.mxu0
    %3311 = vmatpush.bf16.msra.mxu0 %v2322
    %3312 = vmatpush.bf16.msra.mxu0 %v2320
    %3313 = vmatpush.bf16.msra.mxu0 %v2318
    %3314 = vmatpush.bf16.msra.mxu0 %v2316
    %3315 = vmatpush.bf16.msra.mxu0 %v2314
    %3316 = vmatpush.bf16.msra.mxu0 %v2312
    %3317 = vmatpush.bf16.msra.mxu0 %v2310
    %3318 = vmatpush.bf16.msra.mxu0 %v2308
    %3319 = vmatmul.bf16.gmra.mxu0 %v117
    %v3320 = vpop.f32.mrf.mxu0
    %v3321 = vadd.f32 %v3308, %v3320
    %v3322 = vpop.f32.mrf.mxu0
    %3323 = vdwg.mxu0
    %3324 = vmatpush.bf16.msra.mxu0 %v2338
    %3325 = vmatpush.bf16.msra.mxu0 %v2336
    %3326 = vmatpush.bf16.msra.mxu0 %v2334
    %3327 = vmatpush.bf16.msra.mxu0 %v2332
    %3328 = vmatpush.bf16.msra.mxu0 %v2330
    %3329 = vmatpush.bf16.msra.mxu0 %v2328
    %3330 = vmatpush.bf16.msra.mxu0 %v2326
    %3331 = vmatpush.bf16.msra.mxu0 %v2324
    %3332 = vmatmul.bf16.gmra.mxu0 %v118
    %v3333 = vpop.f32.mrf.mxu0
    %v3334 = vadd.f32 %v3321, %v3333
    %v3335 = vpop.f32.mrf.mxu0
    %3336 = vdwg.mxu0
    %3337 = vmatpush.bf16.msra.mxu0 %v2354
    %3338 = vmatpush.bf16.msra.mxu0 %v2352
    %3339 = vmatpush.bf16.msra.mxu0 %v2350
    %3340 = vmatpush.bf16.msra.mxu0 %v2348
    %3341 = vmatpush.bf16.msra.mxu0 %v2346
    %3342 = vmatpush.bf16.msra.mxu0 %v2344
    %3343 = vmatpush.bf16.msra.mxu0 %v2342
    %3344 = vmatpush.bf16.msra.mxu0 %v2340
    %3345 = vmatmul.bf16.gmra.mxu0 %v119
    %v3346 = vpop.f32.mrf.mxu0
    %v3347 = vadd.f32 %v3334, %v3346
    %v3348 = vpop.f32.mrf.mxu0
    %3349 = vdwg.mxu0
    %3350 = vmatpush.bf16.msra.mxu0 %v2370
    %3351 = vmatpush.bf16.msra.mxu0 %v2368
    %3352 = vmatpush.bf16.msra.mxu0 %v2366
    %3353 = vmatpush.bf16.msra.mxu0 %v2364
    %3354 = vmatpush.bf16.msra.mxu0 %v2362
    %3355 = vmatpush.bf16.msra.mxu0 %v2360
    %3356 = vmatpush.bf16.msra.mxu0 %v2358
    %3357 = vmatpush.bf16.msra.mxu0 %v2356
    %3358 = vmatmul.bf16.gmra.mxu0 %v120
    %v3359 = vpop.f32.mrf.mxu0
    %v3360 = vadd.f32 %v3347, %v3359
    %v3361 = vpop.f32.mrf.mxu0
    %3362 = vdwg.mxu0
    %3363 = vmatpush.bf16.msra.mxu0 %v2386
    %3364 = vmatpush.bf16.msra.mxu0 %v2384
    %3365 = vmatpush.bf16.msra.mxu0 %v2382
    %3366 = vmatpush.bf16.msra.mxu0 %v2380
    %3367 = vmatpush.bf16.msra.mxu0 %v2378
    %3368 = vmatpush.bf16.msra.mxu0 %v2376
    %3369 = vmatpush.bf16.msra.mxu0 %v2374
    %3370 = vmatpush.bf16.msra.mxu0 %v2372
    %3371 = vmatmul.bf16.gmra.mxu0 %v121
    %v3372 = vpop.f32.mrf.mxu0
    %v3373 = vadd.f32 %v3360, %v3372
    %v3374 = vpop.f32.mrf.mxu0
    %3375 = vdwg.mxu0
    %3376 = vmatpush.bf16.msra.mxu0 %v2402
    %3377 = vmatpush.bf16.msra.mxu0 %v2400
    %3378 = vmatpush.bf16.msra.mxu0 %v2398
    %3379 = vmatpush.bf16.msra.mxu0 %v2396
    %3380 = vmatpush.bf16.msra.mxu0 %v2394
    %3381 = vmatpush.bf16.msra.mxu0 %v2392
    %3382 = vmatpush.bf16.msra.mxu0 %v2390
    %3383 = vmatpush.bf16.msra.mxu0 %v2388
    %3384 = vmatmul.bf16.gmra.mxu0 %v122
    %v3385 = vpop.f32.mrf.mxu0
    %v3386 = vadd.f32 %v3373, %v3385
    %v3387 = vpop.f32.mrf.mxu0
    %3388 = vdwg.mxu0
    %3389 = vmatpush.bf16.msra.mxu0 %v2418
    %3390 = vmatpush.bf16.msra.mxu0 %v2416
    %3391 = vmatpush.bf16.msra.mxu0 %v2414
    %3392 = vmatpush.bf16.msra.mxu0 %v2412
    %3393 = vmatpush.bf16.msra.mxu0 %v2410
    %3394 = vmatpush.bf16.msra.mxu0 %v2408
    %3395 = vmatpush.bf16.msra.mxu0 %v2406
    %3396 = vmatpush.bf16.msra.mxu0 %v2404
    %3397 = vmatmul.bf16.gmra.mxu0 %v123
    %v3398 = vpop.f32.mrf.mxu0
    %v3399 = vadd.f32 %v3386, %v3398
    %v3400 = vpop.f32.mrf.mxu0
    %3401 = vdwg.mxu0
    %3402 = vmatpush.bf16.msra.mxu0 %v2434
    %3403 = vmatpush.bf16.msra.mxu0 %v2432
    %3404 = vmatpush.bf16.msra.mxu0 %v2430
    %3405 = vmatpush.bf16.msra.mxu0 %v2428
    %3406 = vmatpush.bf16.msra.mxu0 %v2426
    %3407 = vmatpush.bf16.msra.mxu0 %v2424
    %3408 = vmatpush.bf16.msra.mxu0 %v2422
    %3409 = vmatpush.bf16.msra.mxu0 %v2420
    %3410 = vmatmul.bf16.gmra.mxu0 %v124
    %v3411 = vpop.f32.mrf.mxu0
    %v3412 = vadd.f32 %v3399, %v3411
    %v3413 = vpop.f32.mrf.mxu0
    %3414 = vdwg.mxu0
    %3415 = vmatpush.bf16.msra.mxu0 %v2450
    %3416 = vmatpush.bf16.msra.mxu0 %v2448
    %3417 = vmatpush.bf16.msra.mxu0 %v2446
    %3418 = vmatpush.bf16.msra.mxu0 %v2444
    %3419 = vmatpush.bf16.msra.mxu0 %v2442
    %3420 = vmatpush.bf16.msra.mxu0 %v2440
    %3421 = vmatpush.bf16.msra.mxu0 %v2438
    %3422 = vmatpush.bf16.msra.mxu0 %v2436
    %3423 = vmatmul.bf16.gmra.mxu0 %v125
    %v3424 = vpop.f32.mrf.mxu0
    %v3425 = vadd.f32 %v3412, %v3424
    %v3426 = vpop.f32.mrf.mxu0
    %3427 = vdwg.mxu0
    %3428 = vmatpush.bf16.msra.mxu0 %v2466
    %3429 = vmatpush.bf16.msra.mxu0 %v2464
    %3430 = vmatpush.bf16.msra.mxu0 %v2462
    %3431 = vmatpush.bf16.msra.mxu0 %v2460
    %3432 = vmatpush.bf16.msra.mxu0 %v2458
    %3433 = vmatpush.bf16.msra.mxu0 %v2456
    %3434 = vmatpush.bf16.msra.mxu0 %v2454
    %3435 = vmatpush.bf16.msra.mxu0 %v2452
    %3436 = vmatmul.bf16.gmra.mxu0 %v126
    %v3437 = vpop.f32.mrf.mxu0
    %v3438 = vadd.f32 %v3425, %v3437
    %v3439 = vpop.f32.mrf.mxu0
    %3440 = vdwg.mxu0
    %3441 = vmatpush.bf16.msra.mxu0 %v2482
    %3442 = vmatpush.bf16.msra.mxu0 %v2480
    %3443 = vmatpush.bf16.msra.mxu0 %v2478
    %3444 = vmatpush.bf16.msra.mxu0 %v2476
    %3445 = vmatpush.bf16.msra.mxu0 %v2474
    %3446 = vmatpush.bf16.msra.mxu0 %v2472
    %3447 = vmatpush.bf16.msra.mxu0 %v2470
    %3448 = vmatpush.bf16.msra.mxu0 %v2468
    %3449 = vmatmul.bf16.gmra.mxu0 %v127
    %v3450 = vpop.f32.mrf.mxu0
    %v3451 = vadd.f32 %v3438, %v3450
    %v3452 = vpop.f32.mrf.mxu0
    %3453 = vdwg.mxu0
    %3454 = vmatpush.bf16.msra.mxu0 %v2498
    %3455 = vmatpush.bf16.msra.mxu0 %v2496
    %3456 = vmatpush.bf16.msra.mxu0 %v2494
    %3457 = vmatpush.bf16.msra.mxu0 %v2492
    %3458 = vmatpush.bf16.msra.mxu0 %v2490
    %3459 = vmatpush.bf16.msra.mxu0 %v2488
    %3460 = vmatpush.bf16.msra.mxu0 %v2486
    %3461 = vmatpush.bf16.msra.mxu0 %v2484
    %3462 = vmatmul.bf16.gmra.mxu0 %v128
    %v3463 = vpop.f32.mrf.mxu0
    %v3464 = vadd.f32 %v3451, %v3463
    %v3465 = vpop.f32.mrf.mxu0
    %3466 = vdwg.mxu0
    %3467 = vmatpush.bf16.msra.mxu0 %v2514
    %3468 = vmatpush.bf16.msra.mxu0 %v2512
    %3469 = vmatpush.bf16.msra.mxu0 %v2510
    %3470 = vmatpush.bf16.msra.mxu0 %v2508
    %3471 = vmatpush.bf16.msra.mxu0 %v2506
    %3472 = vmatpush.bf16.msra.mxu0 %v2504
    %3473 = vmatpush.bf16.msra.mxu0 %v2502
    %3474 = vmatpush.bf16.msra.mxu0 %v2500
    %3475 = vmatmul.bf16.gmra.mxu0 %v129
    %v3476 = vpop.f32.mrf.mxu0
    %v3477 = vadd.f32 %v3464, %v3476
    %v3478 = vpop.f32.mrf.mxu0
    %3479 = vdwg.mxu0
    %3480 = vmatpush.bf16.msra.mxu0 %v2530
    %3481 = vmatpush.bf16.msra.mxu0 %v2528
    %3482 = vmatpush.bf16.msra.mxu0 %v2526
    %3483 = vmatpush.bf16.msra.mxu0 %v2524
    %3484 = vmatpush.bf16.msra.mxu0 %v2522
    %3485 = vmatpush.bf16.msra.mxu0 %v2520
    %3486 = vmatpush.bf16.msra.mxu0 %v2518
    %3487 = vmatpush.bf16.msra.mxu0 %v2516
    %3488 = vmatmul.bf16.gmra.mxu0 %v130
    %v3489 = vpop.f32.mrf.mxu0
    %v3490 = vadd.f32 %v3477, %v3489
    %v3491 = vpop.f32.mrf.mxu0
    %3492 = vdwg.mxu0
    %3493 = vmatpush.bf16.msra.mxu0 %v2546
    %3494 = vmatpush.bf16.msra.mxu0 %v2544
    %3495 = vmatpush.bf16.msra.mxu0 %v2542
    %3496 = vmatpush.bf16.msra.mxu0 %v2540
    %3497 = vmatpush.bf16.msra.mxu0 %v2538
    %3498 = vmatpush.bf16.msra.mxu0 %v2536
    %3499 = vmatpush.bf16.msra.mxu0 %v2534
    %3500 = vmatpush.bf16.msra.mxu0 %v2532
    %3501 = vmatmul.bf16.gmra.mxu0 %v131
    %v3502 = vpop.f32.mrf.mxu0
    %v3503 = vadd.f32 %v3490, %v3502
    %v3504 = vpop.f32.mrf.mxu0
    %3505 = vdwg.mxu0
    %3506 = vmatpush.bf16.msra.mxu0 %v2562
    %3507 = vmatpush.bf16.msra.mxu0 %v2560
    %3508 = vmatpush.bf16.msra.mxu0 %v2558
    %3509 = vmatpush.bf16.msra.mxu0 %v2556
    %3510 = vmatpush.bf16.msra.mxu0 %v2554
    %3511 = vmatpush.bf16.msra.mxu0 %v2552
    %3512 = vmatpush.bf16.msra.mxu0 %v2550
    %3513 = vmatpush.bf16.msra.mxu0 %v2548
    %3514 = vmatmul.bf16.gmra.mxu0 %v132
    %v3515 = vpop.f32.mrf.mxu0
    %v3516 = vadd.f32 %v3503, %v3515
    %v3517 = vpop.f32.mrf.mxu0
    %3518 = vdwg.mxu0
    %3519 = vmatpush.bf16.msra.mxu0 %v2578
    %3520 = vmatpush.bf16.msra.mxu0 %v2576
    %3521 = vmatpush.bf16.msra.mxu0 %v2574
    %3522 = vmatpush.bf16.msra.mxu0 %v2572
    %3523 = vmatpush.bf16.msra.mxu0 %v2570
    %3524 = vmatpush.bf16.msra.mxu0 %v2568
    %3525 = vmatpush.bf16.msra.mxu0 %v2566
    %3526 = vmatpush.bf16.msra.mxu0 %v2564
    %3527 = vmatmul.bf16.gmra.mxu0 %v133
    %v3528 = vpop.f32.mrf.mxu0
    %v3529 = vadd.f32 %v3516, %v3528
    %v3530 = vpop.f32.mrf.mxu0
    %3531 = vdwg.mxu0
    %3532 = vmatpush.bf16.msra.mxu0 %v2594
    %3533 = vmatpush.bf16.msra.mxu0 %v2592
    %3534 = vmatpush.bf16.msra.mxu0 %v2590
    %3535 = vmatpush.bf16.msra.mxu0 %v2588
    %3536 = vmatpush.bf16.msra.mxu0 %v2586
    %3537 = vmatpush.bf16.msra.mxu0 %v2584
    %3538 = vmatpush.bf16.msra.mxu0 %v2582
    %3539 = vmatpush.bf16.msra.mxu0 %v2580
    %3540 = vmatmul.bf16.gmra.mxu0 %v134
    %v3541 = vpop.f32.mrf.mxu0
    %v3542 = vadd.f32 %v3529, %v3541
    %v3543 = vpop.f32.mrf.mxu0
    %3544 = vdwg.mxu0
    %3545 = vmatpush.bf16.msra.mxu0 %v2610
    %3546 = vmatpush.bf16.msra.mxu0 %v2608
    %3547 = vmatpush.bf16.msra.mxu0 %v2606
    %3548 = vmatpush.bf16.msra.mxu0 %v2604
    %3549 = vmatpush.bf16.msra.mxu0 %v2602
    %3550 = vmatpush.bf16.msra.mxu0 %v2600
    %3551 = vmatpush.bf16.msra.mxu0 %v2598
    %3552 = vmatpush.bf16.msra.mxu0 %v2596
    %3553 = vmatmul.bf16.gmra.mxu0 %v135
    %v3554 = vpop.f32.mrf.mxu0
    %v3555 = vadd.f32 %v3542, %v3554
    %v3556 = vpop.f32.mrf.mxu0
    %3557 = vdwg.mxu0
    %3558 = vmatpush.bf16.msra.mxu0 %v2626
    %3559 = vmatpush.bf16.msra.mxu0 %v2624
    %3560 = vmatpush.bf16.msra.mxu0 %v2622
    %3561 = vmatpush.bf16.msra.mxu0 %v2620
    %3562 = vmatpush.bf16.msra.mxu0 %v2618
    %3563 = vmatpush.bf16.msra.mxu0 %v2616
    %3564 = vmatpush.bf16.msra.mxu0 %v2614
    %3565 = vmatpush.bf16.msra.mxu0 %v2612
    %3566 = vmatmul.bf16.gmra.mxu0 %v136
    %v3567 = vpop.f32.mrf.mxu0
    %v3568 = vadd.f32 %v3555, %v3567
    %v3569 = vpop.f32.mrf.mxu0
    %3570 = vdwg.mxu0
    %3571 = vmatpush.bf16.msra.mxu0 %v2642
    %3572 = vmatpush.bf16.msra.mxu0 %v2640
    %3573 = vmatpush.bf16.msra.mxu0 %v2638
    %3574 = vmatpush.bf16.msra.mxu0 %v2636
    %3575 = vmatpush.bf16.msra.mxu0 %v2634
    %3576 = vmatpush.bf16.msra.mxu0 %v2632
    %3577 = vmatpush.bf16.msra.mxu0 %v2630
    %3578 = vmatpush.bf16.msra.mxu0 %v2628
    %3579 = vmatmul.bf16.gmra.mxu0 %v137
    %v3580 = vpop.f32.mrf.mxu0
    %v3581 = vadd.f32 %v3568, %v3580
    %v3582 = vpop.f32.mrf.mxu0
    %3583 = vdwg.mxu0
    %3584 = vmatpush.bf16.msra.mxu0 %v2658
    %3585 = vmatpush.bf16.msra.mxu0 %v2656
    %3586 = vmatpush.bf16.msra.mxu0 %v2654
    %3587 = vmatpush.bf16.msra.mxu0 %v2652
    %3588 = vmatpush.bf16.msra.mxu0 %v2650
    %3589 = vmatpush.bf16.msra.mxu0 %v2648
    %3590 = vmatpush.bf16.msra.mxu0 %v2646
    %3591 = vmatpush.bf16.msra.mxu0 %v2644
    %3592 = vmatmul.bf16.gmra.mxu0 %v138
    %v3593 = vpop.f32.mrf.mxu0
    %v3594 = vadd.f32 %v3581, %v3593
    %v3595 = vpop.f32.mrf.mxu0
    %3596 = vdwg.mxu0
    %3597 = vmatpush.bf16.msra.mxu0 %v2674
    %3598 = vmatpush.bf16.msra.mxu0 %v2672
    %3599 = vmatpush.bf16.msra.mxu0 %v2670
    %3600 = vmatpush.bf16.msra.mxu0 %v2668
    %3601 = vmatpush.bf16.msra.mxu0 %v2666
    %3602 = vmatpush.bf16.msra.mxu0 %v2664
    %3603 = vmatpush.bf16.msra.mxu0 %v2662
    %3604 = vmatpush.bf16.msra.mxu0 %v2660
    %3605 = vmatmul.bf16.gmra.mxu0 %v139
    %v3606 = vpop.f32.mrf.mxu0
    %v3607 = vadd.f32 %v3594, %v3606
    %v3608 = vpop.f32.mrf.mxu0
    %3609 = vdwg.mxu0
    %3610 = vmatpush.bf16.msra.mxu0 %v2690
    %3611 = vmatpush.bf16.msra.mxu0 %v2688
    %3612 = vmatpush.bf16.msra.mxu0 %v2686
    %3613 = vmatpush.bf16.msra.mxu0 %v2684
    %3614 = vmatpush.bf16.msra.mxu0 %v2682
    %3615 = vmatpush.bf16.msra.mxu0 %v2680
    %3616 = vmatpush.bf16.msra.mxu0 %v2678
    %3617 = vmatpush.bf16.msra.mxu0 %v2676
    %3618 = vmatmul.bf16.gmra.mxu0 %v140
    %v3619 = vpop.f32.mrf.mxu0
    %v3620 = vadd.f32 %v3607, %v3619
    %v3621 = vpop.f32.mrf.mxu0
    %3622 = vdwg.mxu0
    %3623 = vmatpush.bf16.msra.mxu0 %v2706
    %3624 = vmatpush.bf16.msra.mxu0 %v2704
    %3625 = vmatpush.bf16.msra.mxu0 %v2702
    %3626 = vmatpush.bf16.msra.mxu0 %v2700
    %3627 = vmatpush.bf16.msra.mxu0 %v2698
    %3628 = vmatpush.bf16.msra.mxu0 %v2696
    %3629 = vmatpush.bf16.msra.mxu0 %v2694
    %3630 = vmatpush.bf16.msra.mxu0 %v2692
    %3631 = vmatmul.bf16.gmra.mxu0 %v141
    %v3632 = vpop.f32.mrf.mxu0
    %v3633 = vadd.f32 %v3620, %v3632
    %v3634 = vpop.f32.mrf.mxu0
    %3635 = vdwg.mxu0
    %3636 = vmatpush.bf16.msra.mxu0 %v2211
    %3637 = vmatpush.bf16.msra.mxu0 %v2209
    %3638 = vmatpush.bf16.msra.mxu0 %v2207
    %3639 = vmatpush.bf16.msra.mxu0 %v2205
    %3640 = vmatpush.bf16.msra.mxu0 %v2203
    %3641 = vmatpush.bf16.msra.mxu0 %v2201
    %3642 = vmatpush.bf16.msra.mxu0 %v2199
    %3643 = vmatpush.bf16.msra.mxu0 %v2197
    %3644 = vmatmul.bf16.gmra.mxu0 %v110
    %v3645 = vpop.f32.mrf.mxu0
    %v3646 = vadd.f32 %v657, %v3645
    %v3647 = vpop.f32.mrf.mxu0
    %3648 = vdwg.mxu0
    %3649 = vmatpush.bf16.msra.mxu0 %v2227
    %3650 = vmatpush.bf16.msra.mxu0 %v2225
    %3651 = vmatpush.bf16.msra.mxu0 %v2223
    %3652 = vmatpush.bf16.msra.mxu0 %v2221
    %3653 = vmatpush.bf16.msra.mxu0 %v2219
    %3654 = vmatpush.bf16.msra.mxu0 %v2217
    %3655 = vmatpush.bf16.msra.mxu0 %v2215
    %3656 = vmatpush.bf16.msra.mxu0 %v2213
    %3657 = vmatmul.bf16.gmra.mxu0 %v111
    %v3658 = vpop.f32.mrf.mxu0
    %v3659 = vadd.f32 %v3646, %v3658
    %v3660 = vpop.f32.mrf.mxu0
    %3661 = vdwg.mxu0
    %3662 = vmatpush.bf16.msra.mxu0 %v2243
    %3663 = vmatpush.bf16.msra.mxu0 %v2241
    %3664 = vmatpush.bf16.msra.mxu0 %v2239
    %3665 = vmatpush.bf16.msra.mxu0 %v2237
    %3666 = vmatpush.bf16.msra.mxu0 %v2235
    %3667 = vmatpush.bf16.msra.mxu0 %v2233
    %3668 = vmatpush.bf16.msra.mxu0 %v2231
    %3669 = vmatpush.bf16.msra.mxu0 %v2229
    %3670 = vmatmul.bf16.gmra.mxu0 %v112
    %v3671 = vpop.f32.mrf.mxu0
    %v3672 = vadd.f32 %v3659, %v3671
    %v3673 = vpop.f32.mrf.mxu0
    %3674 = vdwg.mxu0
    %3675 = vmatpush.bf16.msra.mxu0 %v2259
    %3676 = vmatpush.bf16.msra.mxu0 %v2257
    %3677 = vmatpush.bf16.msra.mxu0 %v2255
    %3678 = vmatpush.bf16.msra.mxu0 %v2253
    %3679 = vmatpush.bf16.msra.mxu0 %v2251
    %3680 = vmatpush.bf16.msra.mxu0 %v2249
    %3681 = vmatpush.bf16.msra.mxu0 %v2247
    %3682 = vmatpush.bf16.msra.mxu0 %v2245
    %3683 = vmatmul.bf16.gmra.mxu0 %v113
    %v3684 = vpop.f32.mrf.mxu0
    %v3685 = vadd.f32 %v3672, %v3684
    %v3686 = vpop.f32.mrf.mxu0
    %3687 = vdwg.mxu0
    %3688 = vmatpush.bf16.msra.mxu0 %v2275
    %3689 = vmatpush.bf16.msra.mxu0 %v2273
    %3690 = vmatpush.bf16.msra.mxu0 %v2271
    %3691 = vmatpush.bf16.msra.mxu0 %v2269
    %3692 = vmatpush.bf16.msra.mxu0 %v2267
    %3693 = vmatpush.bf16.msra.mxu0 %v2265
    %3694 = vmatpush.bf16.msra.mxu0 %v2263
    %3695 = vmatpush.bf16.msra.mxu0 %v2261
    %3696 = vmatmul.bf16.gmra.mxu0 %v114
    %v3697 = vpop.f32.mrf.mxu0
    %v3698 = vadd.f32 %v3685, %v3697
    %v3699 = vpop.f32.mrf.mxu0
    %3700 = vdwg.mxu0
    %3701 = vmatpush.bf16.msra.mxu0 %v2291
    %3702 = vmatpush.bf16.msra.mxu0 %v2289
    %3703 = vmatpush.bf16.msra.mxu0 %v2287
    %3704 = vmatpush.bf16.msra.mxu0 %v2285
    %3705 = vmatpush.bf16.msra.mxu0 %v2283
    %3706 = vmatpush.bf16.msra.mxu0 %v2281
    %3707 = vmatpush.bf16.msra.mxu0 %v2279
    %3708 = vmatpush.bf16.msra.mxu0 %v2277
    %3709 = vmatmul.bf16.gmra.mxu0 %v115
    %v3710 = vpop.f32.mrf.mxu0
    %v3711 = vadd.f32 %v3698, %v3710
    %v3712 = vpop.f32.mrf.mxu0
    %3713 = vdwg.mxu0
    %3714 = vmatpush.bf16.msra.mxu0 %v2307
    %3715 = vmatpush.bf16.msra.mxu0 %v2305
    %3716 = vmatpush.bf16.msra.mxu0 %v2303
    %3717 = vmatpush.bf16.msra.mxu0 %v2301
    %3718 = vmatpush.bf16.msra.mxu0 %v2299
    %3719 = vmatpush.bf16.msra.mxu0 %v2297
    %3720 = vmatpush.bf16.msra.mxu0 %v2295
    %3721 = vmatpush.bf16.msra.mxu0 %v2293
    %3722 = vmatmul.bf16.gmra.mxu0 %v116
    %v3723 = vpop.f32.mrf.mxu0
    %v3724 = vadd.f32 %v3711, %v3723
    %v3725 = vpop.f32.mrf.mxu0
    %3726 = vdwg.mxu0
    %3727 = vmatpush.bf16.msra.mxu0 %v2323
    %3728 = vmatpush.bf16.msra.mxu0 %v2321
    %3729 = vmatpush.bf16.msra.mxu0 %v2319
    %3730 = vmatpush.bf16.msra.mxu0 %v2317
    %3731 = vmatpush.bf16.msra.mxu0 %v2315
    %3732 = vmatpush.bf16.msra.mxu0 %v2313
    %3733 = vmatpush.bf16.msra.mxu0 %v2311
    %3734 = vmatpush.bf16.msra.mxu0 %v2309
    %3735 = vmatmul.bf16.gmra.mxu0 %v117
    %v3736 = vpop.f32.mrf.mxu0
    %v3737 = vadd.f32 %v3724, %v3736
    %v3738 = vpop.f32.mrf.mxu0
    %3739 = vdwg.mxu0
    %3740 = vmatpush.bf16.msra.mxu0 %v2339
    %3741 = vmatpush.bf16.msra.mxu0 %v2337
    %3742 = vmatpush.bf16.msra.mxu0 %v2335
    %3743 = vmatpush.bf16.msra.mxu0 %v2333
    %3744 = vmatpush.bf16.msra.mxu0 %v2331
    %3745 = vmatpush.bf16.msra.mxu0 %v2329
    %3746 = vmatpush.bf16.msra.mxu0 %v2327
    %3747 = vmatpush.bf16.msra.mxu0 %v2325
    %3748 = vmatmul.bf16.gmra.mxu0 %v118
    %v3749 = vpop.f32.mrf.mxu0
    %v3750 = vadd.f32 %v3737, %v3749
    %v3751 = vpop.f32.mrf.mxu0
    %3752 = vdwg.mxu0
    %3753 = vmatpush.bf16.msra.mxu0 %v2355
    %3754 = vmatpush.bf16.msra.mxu0 %v2353
    %3755 = vmatpush.bf16.msra.mxu0 %v2351
    %3756 = vmatpush.bf16.msra.mxu0 %v2349
    %3757 = vmatpush.bf16.msra.mxu0 %v2347
    %3758 = vmatpush.bf16.msra.mxu0 %v2345
    %3759 = vmatpush.bf16.msra.mxu0 %v2343
    %3760 = vmatpush.bf16.msra.mxu0 %v2341
    %3761 = vmatmul.bf16.gmra.mxu0 %v119
    %v3762 = vpop.f32.mrf.mxu0
    %v3763 = vadd.f32 %v3750, %v3762
    %v3764 = vpop.f32.mrf.mxu0
    %3765 = vdwg.mxu0
    %3766 = vmatpush.bf16.msra.mxu0 %v2371
    %3767 = vmatpush.bf16.msra.mxu0 %v2369
    %3768 = vmatpush.bf16.msra.mxu0 %v2367
    %3769 = vmatpush.bf16.msra.mxu0 %v2365
    %3770 = vmatpush.bf16.msra.mxu0 %v2363
    %3771 = vmatpush.bf16.msra.mxu0 %v2361
    %3772 = vmatpush.bf16.msra.mxu0 %v2359
    %3773 = vmatpush.bf16.msra.mxu0 %v2357
    %3774 = vmatmul.bf16.gmra.mxu0 %v120
    %v3775 = vpop.f32.mrf.mxu0
    %v3776 = vadd.f32 %v3763, %v3775
    %v3777 = vpop.f32.mrf.mxu0
    %3778 = vdwg.mxu0
    %3779 = vmatpush.bf16.msra.mxu0 %v2387
    %3780 = vmatpush.bf16.msra.mxu0 %v2385
    %3781 = vmatpush.bf16.msra.mxu0 %v2383
    %3782 = vmatpush.bf16.msra.mxu0 %v2381
    %3783 = vmatpush.bf16.msra.mxu0 %v2379
    %3784 = vmatpush.bf16.msra.mxu0 %v2377
    %3785 = vmatpush.bf16.msra.mxu0 %v2375
    %3786 = vmatpush.bf16.msra.mxu0 %v2373
    %3787 = vmatmul.bf16.gmra.mxu0 %v121
    %v3788 = vpop.f32.mrf.mxu0
    %v3789 = vadd.f32 %v3776, %v3788
    %v3790 = vpop.f32.mrf.mxu0
    %3791 = vdwg.mxu0
    %3792 = vmatpush.bf16.msra.mxu0 %v2403
    %3793 = vmatpush.bf16.msra.mxu0 %v2401
    %3794 = vmatpush.bf16.msra.mxu0 %v2399
    %3795 = vmatpush.bf16.msra.mxu0 %v2397
    %3796 = vmatpush.bf16.msra.mxu0 %v2395
    %3797 = vmatpush.bf16.msra.mxu0 %v2393
    %3798 = vmatpush.bf16.msra.mxu0 %v2391
    %3799 = vmatpush.bf16.msra.mxu0 %v2389
    %3800 = vmatmul.bf16.gmra.mxu0 %v122
    %v3801 = vpop.f32.mrf.mxu0
    %v3802 = vadd.f32 %v3789, %v3801
    %v3803 = vpop.f32.mrf.mxu0
    %3804 = vdwg.mxu0
    %3805 = vmatpush.bf16.msra.mxu0 %v2419
    %3806 = vmatpush.bf16.msra.mxu0 %v2417
    %3807 = vmatpush.bf16.msra.mxu0 %v2415
    %3808 = vmatpush.bf16.msra.mxu0 %v2413
    %3809 = vmatpush.bf16.msra.mxu0 %v2411
    %3810 = vmatpush.bf16.msra.mxu0 %v2409
    %3811 = vmatpush.bf16.msra.mxu0 %v2407
    %3812 = vmatpush.bf16.msra.mxu0 %v2405
    %3813 = vmatmul.bf16.gmra.mxu0 %v123
    %v3814 = vpop.f32.mrf.mxu0
    %v3815 = vadd.f32 %v3802, %v3814
    %v3816 = vpop.f32.mrf.mxu0
    %3817 = vdwg.mxu0
    %3818 = vmatpush.bf16.msra.mxu0 %v2435
    %3819 = vmatpush.bf16.msra.mxu0 %v2433
    %3820 = vmatpush.bf16.msra.mxu0 %v2431
    %3821 = vmatpush.bf16.msra.mxu0 %v2429
    %3822 = vmatpush.bf16.msra.mxu0 %v2427
    %3823 = vmatpush.bf16.msra.mxu0 %v2425
    %3824 = vmatpush.bf16.msra.mxu0 %v2423
    %3825 = vmatpush.bf16.msra.mxu0 %v2421
    %3826 = vmatmul.bf16.gmra.mxu0 %v124
    %v3827 = vpop.f32.mrf.mxu0
    %v3828 = vadd.f32 %v3815, %v3827
    %v3829 = vpop.f32.mrf.mxu0
    %3830 = vdwg.mxu0
    %3831 = vmatpush.bf16.msra.mxu0 %v2451
    %3832 = vmatpush.bf16.msra.mxu0 %v2449
    %3833 = vmatpush.bf16.msra.mxu0 %v2447
    %3834 = vmatpush.bf16.msra.mxu0 %v2445
    %3835 = vmatpush.bf16.msra.mxu0 %v2443
    %3836 = vmatpush.bf16.msra.mxu0 %v2441
    %3837 = vmatpush.bf16.msra.mxu0 %v2439
    %3838 = vmatpush.bf16.msra.mxu0 %v2437
    %3839 = vmatmul.bf16.gmra.mxu0 %v125
    %v3840 = vpop.f32.mrf.mxu0
    %v3841 = vadd.f32 %v3828, %v3840
    %v3842 = vpop.f32.mrf.mxu0
    %3843 = vdwg.mxu0
    %3844 = vmatpush.bf16.msra.mxu0 %v2467
    %3845 = vmatpush.bf16.msra.mxu0 %v2465
    %3846 = vmatpush.bf16.msra.mxu0 %v2463
    %3847 = vmatpush.bf16.msra.mxu0 %v2461
    %3848 = vmatpush.bf16.msra.mxu0 %v2459
    %3849 = vmatpush.bf16.msra.mxu0 %v2457
    %3850 = vmatpush.bf16.msra.mxu0 %v2455
    %3851 = vmatpush.bf16.msra.mxu0 %v2453
    %3852 = vmatmul.bf16.gmra.mxu0 %v126
    %v3853 = vpop.f32.mrf.mxu0
    %v3854 = vadd.f32 %v3841, %v3853
    %v3855 = vpop.f32.mrf.mxu0
    %3856 = vdwg.mxu0
    %3857 = vmatpush.bf16.msra.mxu0 %v2483
    %3858 = vmatpush.bf16.msra.mxu0 %v2481
    %3859 = vmatpush.bf16.msra.mxu0 %v2479
    %3860 = vmatpush.bf16.msra.mxu0 %v2477
    %3861 = vmatpush.bf16.msra.mxu0 %v2475
    %3862 = vmatpush.bf16.msra.mxu0 %v2473
    %3863 = vmatpush.bf16.msra.mxu0 %v2471
    %3864 = vmatpush.bf16.msra.mxu0 %v2469
    %3865 = vmatmul.bf16.gmra.mxu0 %v127
    %v3866 = vpop.f32.mrf.mxu0
    %v3867 = vadd.f32 %v3854, %v3866
    %v3868 = vpop.f32.mrf.mxu0
    %3869 = vdwg.mxu0
    %3870 = vmatpush.bf16.msra.mxu0 %v2499
    %3871 = vmatpush.bf16.msra.mxu0 %v2497
    %3872 = vmatpush.bf16.msra.mxu0 %v2495
    %3873 = vmatpush.bf16.msra.mxu0 %v2493
    %3874 = vmatpush.bf16.msra.mxu0 %v2491
    %3875 = vmatpush.bf16.msra.mxu0 %v2489
    %3876 = vmatpush.bf16.msra.mxu0 %v2487
    %3877 = vmatpush.bf16.msra.mxu0 %v2485
    %3878 = vmatmul.bf16.gmra.mxu0 %v128
    %v3879 = vpop.f32.mrf.mxu0
    %v3880 = vadd.f32 %v3867, %v3879
    %v3881 = vpop.f32.mrf.mxu0
    %3882 = vdwg.mxu0
    %3883 = vmatpush.bf16.msra.mxu0 %v2515
    %3884 = vmatpush.bf16.msra.mxu0 %v2513
    %3885 = vmatpush.bf16.msra.mxu0 %v2511
    %3886 = vmatpush.bf16.msra.mxu0 %v2509
    %3887 = vmatpush.bf16.msra.mxu0 %v2507
    %3888 = vmatpush.bf16.msra.mxu0 %v2505
    %3889 = vmatpush.bf16.msra.mxu0 %v2503
    %3890 = vmatpush.bf16.msra.mxu0 %v2501
    %3891 = vmatmul.bf16.gmra.mxu0 %v129
    %v3892 = vpop.f32.mrf.mxu0
    %v3893 = vadd.f32 %v3880, %v3892
    %v3894 = vpop.f32.mrf.mxu0
    %3895 = vdwg.mxu0
    %3896 = vmatpush.bf16.msra.mxu0 %v2531
    %3897 = vmatpush.bf16.msra.mxu0 %v2529
    %3898 = vmatpush.bf16.msra.mxu0 %v2527
    %3899 = vmatpush.bf16.msra.mxu0 %v2525
    %3900 = vmatpush.bf16.msra.mxu0 %v2523
    %3901 = vmatpush.bf16.msra.mxu0 %v2521
    %3902 = vmatpush.bf16.msra.mxu0 %v2519
    %3903 = vmatpush.bf16.msra.mxu0 %v2517
    %3904 = vmatmul.bf16.gmra.mxu0 %v130
    %v3905 = vpop.f32.mrf.mxu0
    %v3906 = vadd.f32 %v3893, %v3905
    %v3907 = vpop.f32.mrf.mxu0
    %3908 = vdwg.mxu0
    %3909 = vmatpush.bf16.msra.mxu0 %v2547
    %3910 = vmatpush.bf16.msra.mxu0 %v2545
    %3911 = vmatpush.bf16.msra.mxu0 %v2543
    %3912 = vmatpush.bf16.msra.mxu0 %v2541
    %3913 = vmatpush.bf16.msra.mxu0 %v2539
    %3914 = vmatpush.bf16.msra.mxu0 %v2537
    %3915 = vmatpush.bf16.msra.mxu0 %v2535
    %3916 = vmatpush.bf16.msra.mxu0 %v2533
    %3917 = vmatmul.bf16.gmra.mxu0 %v131
    %v3918 = vpop.f32.mrf.mxu0
    %v3919 = vadd.f32 %v3906, %v3918
    %v3920 = vpop.f32.mrf.mxu0
    %3921 = vdwg.mxu0
    %3922 = vmatpush.bf16.msra.mxu0 %v2563
    %3923 = vmatpush.bf16.msra.mxu0 %v2561
    %3924 = vmatpush.bf16.msra.mxu0 %v2559
    %3925 = vmatpush.bf16.msra.mxu0 %v2557
    %3926 = vmatpush.bf16.msra.mxu0 %v2555
    %3927 = vmatpush.bf16.msra.mxu0 %v2553
    %3928 = vmatpush.bf16.msra.mxu0 %v2551
    %3929 = vmatpush.bf16.msra.mxu0 %v2549
    %3930 = vmatmul.bf16.gmra.mxu0 %v132
    %v3931 = vpop.f32.mrf.mxu0
    %v3932 = vadd.f32 %v3919, %v3931
    %v3933 = vpop.f32.mrf.mxu0
    %3934 = vdwg.mxu0
    %3935 = vmatpush.bf16.msra.mxu0 %v2579
    %3936 = vmatpush.bf16.msra.mxu0 %v2577
    %3937 = vmatpush.bf16.msra.mxu0 %v2575
    %3938 = vmatpush.bf16.msra.mxu0 %v2573
    %3939 = vmatpush.bf16.msra.mxu0 %v2571
    %3940 = vmatpush.bf16.msra.mxu0 %v2569
    %3941 = vmatpush.bf16.msra.mxu0 %v2567
    %3942 = vmatpush.bf16.msra.mxu0 %v2565
    %3943 = vmatmul.bf16.gmra.mxu0 %v133
    %v3944 = vpop.f32.mrf.mxu0
    %v3945 = vadd.f32 %v3932, %v3944
    %v3946 = vpop.f32.mrf.mxu0
    %3947 = vdwg.mxu0
    %3948 = vmatpush.bf16.msra.mxu0 %v2595
    %3949 = vmatpush.bf16.msra.mxu0 %v2593
    %3950 = vmatpush.bf16.msra.mxu0 %v2591
    %3951 = vmatpush.bf16.msra.mxu0 %v2589
    %3952 = vmatpush.bf16.msra.mxu0 %v2587
    %3953 = vmatpush.bf16.msra.mxu0 %v2585
    %3954 = vmatpush.bf16.msra.mxu0 %v2583
    %3955 = vmatpush.bf16.msra.mxu0 %v2581
    %3956 = vmatmul.bf16.gmra.mxu0 %v134
    %v3957 = vpop.f32.mrf.mxu0
    %v3958 = vadd.f32 %v3945, %v3957
    %v3959 = vpop.f32.mrf.mxu0
    %3960 = vdwg.mxu0
    %3961 = vmatpush.bf16.msra.mxu0 %v2611
    %3962 = vmatpush.bf16.msra.mxu0 %v2609
    %3963 = vmatpush.bf16.msra.mxu0 %v2607
    %3964 = vmatpush.bf16.msra.mxu0 %v2605
    %3965 = vmatpush.bf16.msra.mxu0 %v2603
    %3966 = vmatpush.bf16.msra.mxu0 %v2601
    %3967 = vmatpush.bf16.msra.mxu0 %v2599
    %3968 = vmatpush.bf16.msra.mxu0 %v2597
    %3969 = vmatmul.bf16.gmra.mxu0 %v135
    %v3970 = vpop.f32.mrf.mxu0
    %v3971 = vadd.f32 %v3958, %v3970
    %v3972 = vpop.f32.mrf.mxu0
    %3973 = vdwg.mxu0
    %3974 = vmatpush.bf16.msra.mxu0 %v2627
    %3975 = vmatpush.bf16.msra.mxu0 %v2625
    %3976 = vmatpush.bf16.msra.mxu0 %v2623
    %3977 = vmatpush.bf16.msra.mxu0 %v2621
    %3978 = vmatpush.bf16.msra.mxu0 %v2619
    %3979 = vmatpush.bf16.msra.mxu0 %v2617
    %3980 = vmatpush.bf16.msra.mxu0 %v2615
    %3981 = vmatpush.bf16.msra.mxu0 %v2613
    %3982 = vmatmul.bf16.gmra.mxu0 %v136
    %v3983 = vpop.f32.mrf.mxu0
    %v3984 = vadd.f32 %v3971, %v3983
    %v3985 = vpop.f32.mrf.mxu0
    %3986 = vdwg.mxu0
    %3987 = vmatpush.bf16.msra.mxu0 %v2643
    %3988 = vmatpush.bf16.msra.mxu0 %v2641
    %3989 = vmatpush.bf16.msra.mxu0 %v2639
    %3990 = vmatpush.bf16.msra.mxu0 %v2637
    %3991 = vmatpush.bf16.msra.mxu0 %v2635
    %3992 = vmatpush.bf16.msra.mxu0 %v2633
    %3993 = vmatpush.bf16.msra.mxu0 %v2631
    %3994 = vmatpush.bf16.msra.mxu0 %v2629
    %3995 = vmatmul.bf16.gmra.mxu0 %v137
    %v3996 = vpop.f32.mrf.mxu0
    %v3997 = vadd.f32 %v3984, %v3996
    %v3998 = vpop.f32.mrf.mxu0
    %3999 = vdwg.mxu0
    %4000 = vmatpush.bf16.msra.mxu0 %v2659
    %4001 = vmatpush.bf16.msra.mxu0 %v2657
    %4002 = vmatpush.bf16.msra.mxu0 %v2655
    %4003 = vmatpush.bf16.msra.mxu0 %v2653
    %4004 = vmatpush.bf16.msra.mxu0 %v2651
    %4005 = vmatpush.bf16.msra.mxu0 %v2649
    %4006 = vmatpush.bf16.msra.mxu0 %v2647
    %4007 = vmatpush.bf16.msra.mxu0 %v2645
    %4008 = vmatmul.bf16.gmra.mxu0 %v138
    %v4009 = vpop.f32.mrf.mxu0
    %v4010 = vadd.f32 %v3997, %v4009
    %v4011 = vpop.f32.mrf.mxu0
    %4012 = vdwg.mxu0
    %4013 = vmatpush.bf16.msra.mxu0 %v2675
    %4014 = vmatpush.bf16.msra.mxu0 %v2673
    %4015 = vmatpush.bf16.msra.mxu0 %v2671
    %4016 = vmatpush.bf16.msra.mxu0 %v2669
    %4017 = vmatpush.bf16.msra.mxu0 %v2667
    %4018 = vmatpush.bf16.msra.mxu0 %v2665
    %4019 = vmatpush.bf16.msra.mxu0 %v2663
    %4020 = vmatpush.bf16.msra.mxu0 %v2661
    %4021 = vmatmul.bf16.gmra.mxu0 %v139
    %v4022 = vpop.f32.mrf.mxu0
    %v4023 = vadd.f32 %v4010, %v4022
    %v4024 = vpop.f32.mrf.mxu0
    %4025 = vdwg.mxu0
    %4026 = vmatpush.bf16.msra.mxu0 %v2691
    %4027 = vmatpush.bf16.msra.mxu0 %v2689
    %4028 = vmatpush.bf16.msra.mxu0 %v2687
    %4029 = vmatpush.bf16.msra.mxu0 %v2685
    %4030 = vmatpush.bf16.msra.mxu0 %v2683
    %4031 = vmatpush.bf16.msra.mxu0 %v2681
    %4032 = vmatpush.bf16.msra.mxu0 %v2679
    %4033 = vmatpush.bf16.msra.mxu0 %v2677
    %4034 = vmatmul.bf16.gmra.mxu0 %v140
    %v4035 = vpop.f32.mrf.mxu0
    %v4036 = vadd.f32 %v4023, %v4035
    %v4037 = vpop.f32.mrf.mxu0
    %4038 = vdwg.mxu0
    %4039 = vmatpush.bf16.msra.mxu0 %v2707
    %4040 = vmatpush.bf16.msra.mxu0 %v2705
    %4041 = vmatpush.bf16.msra.mxu0 %v2703
    %4042 = vmatpush.bf16.msra.mxu0 %v2701
    %4043 = vmatpush.bf16.msra.mxu0 %v2699
    %4044 = vmatpush.bf16.msra.mxu0 %v2697
    %4045 = vmatpush.bf16.msra.mxu0 %v2695
    %4046 = vmatpush.bf16.msra.mxu0 %v2693
    %4047 = vmatmul.bf16.gmra.mxu0 %v141
    %v4048 = vpop.f32.mrf.mxu0
    %v4049 = vadd.f32 %v4036, %v4048
    %v4050 = vpop.f32.mrf.mxu0
    %4051 = vdwg.mxu0
    %v4052 = vmax.f32 %v3633, 0.0
    %v4053 = vmax.f32 %v4049, 0.0
    %v4054 = vpack.c.bf16 %v4052, %v4052
    %v4055 = vpack.c.bf16 %v4053, %v4053
    %v4056 = vld [vmem:[%s3] sm:$0xf]
    %v4057 = vld [vmem:[%s3 + $0x4] sm:$0xf]
    %v4058 = vld [vmem:[%s3 + $0x8] sm:$0xf]
    %v4059 = vld [vmem:[%s3 + $0xc] sm:$0xf]
    %v4060 = vld [vmem:[%s3 + $0x10] sm:$0xf]
    %v4061 = vld [vmem:[%s3 + $0x14] sm:$0xf]
    %v4062 = vld [vmem:[%s3 + $0x18] sm:$0xf]
    %v4063 = vld [vmem:[%s3 + $0x1c] sm:$0xf]
    %v4064 = vld [vmem:[%s3 + $0x20] sm:$0xf]
    %v4065 = vld [vmem:[%s3 + $0x24] sm:$0xf]
    %v4066 = vld [vmem:[%s3 + $0x28] sm:$0xf]
    %v4067 = vld [vmem:[%s3 + $0x2c] sm:$0xf]
    %v4068 = vld [vmem:[%s3 + $0x30] sm:$0xf]
    %v4069 = vld [vmem:[%s3 + $0x34] sm:$0xf]
    %v4070 = vld [vmem:[%s3 + $0x38] sm:$0xf]
    %v4071 = vld [vmem:[%s3 + $0x3c] sm:$0xf]
    %v4072 = vld [vmem:[%s3 + $0x40] sm:$0xf]
    %v4073 = vld [vmem:[%s3 + $0x44] sm:$0xf]
    %v4074 = vld [vmem:[%s3 + $0x48] sm:$0xf]
    %v4075 = vld [vmem:[%s3 + $0x4c] sm:$0xf]
    %v4076 = vld [vmem:[%s3 + $0x50] sm:$0xf]
    %v4077 = vld [vmem:[%s3 + $0x54] sm:$0xf]
    %v4078 = vld [vmem:[%s3 + $0x58] sm:$0xf]
    %v4079 = vld [vmem:[%s3 + $0x5c] sm:$0xf]
    %v4080 = vld [vmem:[%s3 + $0x60] sm:$0xf]
    %v4081 = vld [vmem:[%s3 + $0x64] sm:$0xf]
    %v4082 = vld [vmem:[%s3 + $0x68] sm:$0xf]
    %v4083 = vld [vmem:[%s3 + $0x6c] sm:$0xf]
    %v4084 = vld [vmem:[%s3 + $0x70] sm:$0xf]
    %v4085 = vld [vmem:[%s3 + $0x74] sm:$0xf]
    %v4086 = vld [vmem:[%s3 + $0x78] sm:$0xf]
    %v4087 = vld [vmem:[%s3 + $0x7c] sm:$0xf]
    %v4088 = vld [vmem:[%s4] sm:$0x1]
    %v4090 = vperm.slane %v4088, 0
    %v4124 = vunpack.c.l.b16 %v4056
    %v4125 = vunpack.c.l.b16 %v4057
    %v4126 = vunpack.c.l.b16 %v4058
    %v4127 = vunpack.c.l.b16 %v4059
    %v4128 = vunpack.c.l.b16 %v4060
    %v4129 = vunpack.c.l.b16 %v4061
    %v4130 = vunpack.c.l.b16 %v4062
    %v4131 = vunpack.c.l.b16 %v4063
    %v4132 = vunpack.c.l.b16 %v4064
    %v4133 = vunpack.c.l.b16 %v4065
    %v4134 = vunpack.c.l.b16 %v4066
    %v4135 = vunpack.c.l.b16 %v4067
    %v4136 = vunpack.c.l.b16 %v4068
    %v4137 = vunpack.c.l.b16 %v4069
    %v4138 = vunpack.c.l.b16 %v4070
    %v4139 = vunpack.c.l.b16 %v4071
    %v4140 = vunpack.c.l.b16 %v4072
    %v4141 = vunpack.c.l.b16 %v4073
    %v4142 = vunpack.c.l.b16 %v4074
    %v4143 = vunpack.c.l.b16 %v4075
    %v4144 = vunpack.c.l.b16 %v4076
    %v4145 = vunpack.c.l.b16 %v4077
    %v4146 = vunpack.c.l.b16 %v4078
    %v4147 = vunpack.c.l.b16 %v4079
    %v4148 = vunpack.c.l.b16 %v4080
    %v4149 = vunpack.c.l.b16 %v4081
    %v4150 = vunpack.c.l.b16 %v4082
    %v4151 = vunpack.c.l.b16 %v4083
    %v4152 = vunpack.c.l.b16 %v4084
    %v4153 = vunpack.c.l.b16 %v4085
    %v4154 = vunpack.c.l.b16 %v4086
    %v4155 = vunpack.c.l.b16 %v4087
    %v4156 = vpack.c.b16 %v4125, %v4124
    %v4157 = vpack.c.b16 %v4127, %v4126
    %v4158 = vpack.c.b16 %v4129, %v4128
    %v4159 = vpack.c.b16 %v4131, %v4130
    %v4160 = vpack.c.b16 %v4133, %v4132
    %v4161 = vpack.c.b16 %v4135, %v4134
    %v4162 = vpack.c.b16 %v4137, %v4136
    %v4163 = vpack.c.b16 %v4139, %v4138
    %v4164 = vpack.c.b16 %v4141, %v4140
    %v4165 = vpack.c.b16 %v4143, %v4142
    %v4166 = vpack.c.b16 %v4145, %v4144
    %v4167 = vpack.c.b16 %v4147, %v4146
    %v4168 = vpack.c.b16 %v4149, %v4148
    %v4169 = vpack.c.b16 %v4151, %v4150
    %v4170 = vpack.c.b16 %v4153, %v4152
    %v4171 = vpack.c.b16 %v4155, %v4154
    %4188 = vmatpush.bf16.msra.mxu0 %v4163
    %4189 = vmatpush.bf16.msra.mxu0 %v4162
    %4190 = vmatpush.bf16.msra.mxu0 %v4161
    %4191 = vmatpush.bf16.msra.mxu0 %v4160
    %4192 = vmatpush.bf16.msra.mxu0 %v4159
    %4193 = vmatpush.bf16.msra.mxu0 %v4158
    %4194 = vmatpush.bf16.msra.mxu0 %v4157
    %4195 = vmatpush.bf16.msra.mxu0 %v4156
    %4196 = vmatmul.bf16.gmra.mxu0 %v4054
    %v4197 = vpop.f32.mrf.mxu0
    %v4198 = vadd.f32 %v4090, %v4197
    %v4199 = vpop.f32.mrf.mxu0
    %4200 = vdwg.mxu0
    %4201 = vmatpush.bf16.msra.mxu0 %v4171
    %4202 = vmatpush.bf16.msra.mxu0 %v4170
    %4203 = vmatpush.bf16.msra.mxu0 %v4169
    %4204 = vmatpush.bf16.msra.mxu0 %v4168
    %4205 = vmatpush.bf16.msra.mxu0 %v4167
    %4206 = vmatpush.bf16.msra.mxu0 %v4166
    %4207 = vmatpush.bf16.msra.mxu0 %v4165
    %4208 = vmatpush.bf16.msra.mxu0 %v4164
    %4209 = vmatmul.bf16.gmra.mxu0 %v4055
    %v4210 = vpop.f32.mrf.mxu0
    %v4211 = vadd.f32 %v4198, %v4210
    %v4212 = vpop.f32.mrf.mxu0
    %4213 = vdwg.mxu0
    %v4214 = vmax.f32 %v4211, 0.0
    %vm4215 = vcmask 517120
    %4216 = vst.msk [vmem:[#allocation2] sm:$0x3] %vm4215, %v4214
    // Predicated region
    $region22: #{forward.11} parent=1 // pred_check
      _
    $region23: #{forward.11} parent=1 // pred_check_branch
      %4218 = sbr.rel (0) target = $region25
    $region24: #{forward.11} parent=1 // pred_region
      %4220 = vsyncadd [#allocation3], 0
      %s4222 = sshll.u32 [#allocation2], 4
      %s4223 = int_to_ptr.vmem [resolvable:$true] %s4222
      %s4224 = sshll.u32 %s5, 4
      %s4225 = int_to_ptr.hbm [resolvable:$true] %s4224
      %4227 = dma.vmem_to_hbm [thread:$0]  %s4223, 32, %s4225, [#allocation3]
    $region25: #{forward.11} parent=1 // pred_fallthru
      _
    // Predicated region
    $region26: #{forward.11} parent=1 // pred_check
      _
    $region27: #{forward.11} parent=1 // pred_check_branch
      %4229 = sbr.rel (0) target = $region29
    $region28: #{forward.11} parent=1 // pred_region
      %4231 = dma.done [#allocation3], 32
    $region29: #{forward.11} parent=1 // pred_fallthru
      _
    %4232 = vsyncpa [#allocation3], 1

</llo_original>
